<compile_context>
chip_gen: v7x
topology: tpu7x:2x2x1
jax: 0.10.0
libtpu: 0.0.40
codegen_flags: <defaults>
</compile_context>

<pallas_src>
import functools
import numpy as np
import jax
import jax.numpy as jnp
from jax.experimental import pallas as pl
from jax.experimental.pallas import tpu as pltpu

EPS = 1e-5  # nn.BatchNorm2d default eps


# ----------------------------- kernel helpers ------------------------------

def _accum_taps(patch_ref, w_ref, th, wd):
    """9-tap 3x3 conv on the halo patch: sum_k patch[tap_k] @ w[k]."""
    cin = w_ref.shape[1]
    cout = w_ref.shape[2]
    acc = jnp.zeros((th * wd, cout), jnp.float32)
    for k in range(9):
        dy, dx = divmod(k, 3)
        tap = patch_ref[dy:dy + th, dx:dx + wd, :].reshape(th * wd, cin)
        acc = acc + jnp.dot(tap, w_ref[k], preferred_element_type=jnp.float32)
    return acc


def _store_stats(st_ref, y):
    # per-tile BN sufficient statistics: column sum and sum of squares
    st_ref[0, 0, 0:1, :] = jnp.sum(y, axis=0, keepdims=True)
    st_ref[0, 0, 1:2, :] = jnp.sum(y * y, axis=0, keepdims=True)


# ------------------------------ Pallas kernels ------------------------------

def _conv1_kernel(body_ref, top_ref, bot_ref, w_ref, b_ref,
                  y_ref, st_ref, patch_ref, *, th, wd):
    """conv1 + bias on one (1, TILE_H, W, Cin) tile; emit BN1 partial stats."""
    hi = pl.program_id(1)
    nh = pl.num_programs(1)

    patch_ref[...] = jnp.zeros(patch_ref.shape, jnp.float32)
    patch_ref[1:th + 1, 1:wd + 1, :] = body_ref[0]

    @pl.when(hi > 0)
    def _():
        patch_ref[0:1, 1:wd + 1, :] = top_ref[0]

    @pl.when(hi < nh - 1)
    def _():
        patch_ref[th + 1:th + 2, 1:wd + 1, :] = bot_ref[0]

    y = _accum_taps(patch_ref, w_ref, th, wd) + b_ref[...]
    y_ref[0] = y.reshape(th, wd, w_ref.shape[2])
    _store_stats(st_ref, y)


def _bnact_conv2_kernel(body_ref, top_ref, bot_ref, sc_ref, sh_ref, a_ref,
                        w_ref, b_ref, res_ref, y_ref, st_ref, patch_ref,
                        *, th, wd):
    """BN1+PReLU (fused, from precomputed affine) -> conv2 + bias + residual,
    emitting BN2 partial stats."""
    hi = pl.program_id(1)
    nh = pl.num_programs(1)
    alpha = a_ref[0, 0]
    sc = sc_ref[...]
    sh = sh_ref[...]

    def act(v):  # BN affine + PReLU
        z = v * sc + sh
        return jnp.where(z >= 0.0, z, alpha * z)

    patch_ref[...] = jnp.zeros(patch_ref.shape, jnp.float32)
    patch_ref[1:th + 1, 1:wd + 1, :] = act(body_ref[0])

    @pl.when(hi > 0)
    def _():
        patch_ref[0:1, 1:wd + 1, :] = act(top_ref[0])

    @pl.when(hi < nh - 1)
    def _():
        patch_ref[th + 1:th + 2, 1:wd + 1, :] = act(bot_ref[0])

    cout = w_ref.shape[2]
    y = (_accum_taps(patch_ref, w_ref, th, wd) + b_ref[...]
         + res_ref[0].reshape(th * wd, cout))
    y_ref[0] = y.reshape(th, wd, cout)
    _store_stats(st_ref, y)


def _bnact_pool_kernel(y_ref, sc_ref, sh_ref, a_ref,
                       out_ref, pool_ref, idx_ref, *, th, wfull):
    """BN2 + PReLU + 2x2/stride-2 max-pool with PyTorch flat indices.

    Input/`out` use a column-paired layout (N, H, W/2, 2C) so the even/odd
    column split is a lane slice (no strided gathers / risky reshapes)."""
    hi = pl.program_id(1)
    alpha = a_ref[0, 0]

    z = y_ref[0] * sc_ref[...] + sh_ref[...]
    z = jnp.where(z >= 0.0, z, alpha * z)        # (th, W/2, 2C)
    out_ref[0] = z

    c2 = z.shape[-1]
    c = c2 // 2
    w2 = z.shape[1]
    t2 = th // 2

    zc_even = z[:, :, :c]                        # even image columns
    zc_odd = z[:, :, c:]                         # odd image columns
    z4e = zc_even.reshape(t2, 2, w2, c)          # split rows into pairs
    z4o = zc_odd.reshape(t2, 2, w2, c)
    v00 = z4e[:, 0]
    v10 = z4e[:, 1]
    v01 = z4o[:, 0]
    v11 = z4o[:, 1]

    best = v00
    off = jnp.zeros(v00.shape, jnp.int32)
    for cand, o in ((v01, 1), (v10, wfull), (v11, wfull + 1)):
        take = cand > best                       # ties pick earliest element
        best = jnp.where(take, cand, best)
        off = jnp.where(take, jnp.int32(o), off)

    ph = jax.lax.broadcasted_iota(jnp.int32, best.shape, 0)
    pw = jax.lax.broadcasted_iota(jnp.int32, best.shape, 1)
    base = (hi * th + 2 * ph) * wfull + 2 * pw   # flat h*W + w per (N,C) plane

    pool_ref[0] = best
    idx_ref[0] = base + off


# ------------------------------- glue / wrapper -----------------------------

def _pick_tile_h(h):
    for t in (8, 4, 2):
        if h % t == 0:
            return t
    raise ValueError("spatial height must be even")


def _bn_affine(stats, count, gamma, beta):
    """Fold batch mean/var (from per-tile sum/sumsq) + gamma/beta into a
    per-channel scale/shift."""
    s = jnp.sum(stats, axis=(0, 1))              # (2, C)
    mean = s[0] / count
    var = jnp.maximum(s[1] / count - mean * mean, 0.0)
    rstd = jax.lax.rsqrt(var + EPS)
    scale = gamma * rstd
    shift = beta - mean * scale
    return scale.reshape(1, -1), shift.reshape(1, -1)


def init_params(key, in_ch, out_ch):
    k1, k2, k3, k4, k5, k6, k7, k8 = jax.random.split(key, 8)
    return dict(
        w1=0.1 * jax.random.normal(k1, (3, 3, in_ch, out_ch), jnp.float32),  # HWIO
        b1=0.1 * jax.random.normal(k2, (out_ch,), jnp.float32),
        w2=0.1 * jax.random.normal(k3, (3, 3, out_ch, out_ch), jnp.float32),
        b2=0.1 * jax.random.normal(k4, (out_ch,), jnp.float32),
        g1=1.0 + 0.1 * jax.random.normal(k5, (out_ch,), jnp.float32),
        beta1=0.1 * jax.random.normal(k6, (out_ch,), jnp.float32),
        g2=1.0 + 0.1 * jax.random.normal(k7, (out_ch,), jnp.float32),
        beta2=0.1 * jax.random.normal(k8, (out_ch,), jnp.float32),
        a=jnp.full((1, 1), 0.25, jnp.float32),   # nn.PReLU() default init
    )


def encoder_block(x_nchw, params):
    x = jnp.transpose(x_nchw, (0, 2, 3, 1)).astype(jnp.float32)  # NCHW -> NHWC
    N, H, W, Cin = x.shape
    Cout = params["w1"].shape[-1]
    assert Cin == Cout, "residual add requires in_ch == out_ch"
    assert H % 2 == 0 and W % 2 == 0
    TH = _pick_tile_h(H)                          # even, divides H
    nH = H // TH
    grid = (N, nH)
    M = N * H * W

    cparams = pltpu.CompilerParams(
        dimension_semantics=("parallel", "parallel"),  # shard over 2 TCs on v7x
        vmem_limit_bytes=32 * 1024 * 1024,
    )

    def body_spec(c):
        return pl.BlockSpec((1, TH, W, c), lambda n, h: (n, h, 0, 0))

    def top_spec(c):  # halo row above the tile (clamped; zeroed in-kernel at h==0)
        return pl.BlockSpec((1, 1, W, c),
                            lambda n, h: (n, jnp.maximum(h * TH - 1, 0), 0, 0))

    def bot_spec(c):  # halo row below the tile (clamped; zeroed in-kernel at last h)
        return pl.BlockSpec((1, 1, W, c),
                            lambda n, h: (n, jnp.minimum((h + 1) * TH, H - 1), 0, 0))

    def row_vec_spec(c):
        return pl.BlockSpec((1, c), lambda n, h: (0, 0))

    alpha_spec = pl.BlockSpec((1, 1), lambda n, h: (0, 0),
                              memory_space=pltpu.MemorySpace.SMEM)
    y_spec = pl.BlockSpec((1, TH, W, Cout), lambda n, h: (n, h, 0, 0))
    st_spec = pl.BlockSpec((1, 1, 2, Cout), lambda n, h: (n, h, 0, 0))

    w1 = params["w1"].reshape(9, Cin, Cout)
    b1 = params["b1"].reshape(1, Cout)
    w2 = params["w2"].reshape(9, Cout, Cout)
    b2 = params["b2"].reshape(1, Cout)
    alpha = params["a"].reshape(1, 1)

    # ---- pass 1: conv1 + bias, per-tile BN1 sufficient statistics ----------
    y1, st1 = pl.pallas_call(
        functools.partial(_conv1_kernel, th=TH, wd=W),
        out_shape=(jax.ShapeDtypeStruct((N, H, W, Cout), jnp.float32),
                   jax.ShapeDtypeStruct((N, nH, 2, Cout), jnp.float32)),
        grid=grid,
        in_specs=[body_spec(Cin), top_spec(Cin), bot_spec(Cin),
                  pl.BlockSpec((9, Cin, Cout), lambda n, h: (0, 0, 0)),
                  row_vec_spec(Cout)],
        out_specs=(y_spec, st_spec),
        scratch_shapes=[pltpu.VMEM((TH + 2, W + 2, Cin), jnp.float32)],
        compiler_params=cparams,
    )(x, x, x, w1, b1)

    scale1, shift1 = _bn_affine(st1, M, params["g1"], params["beta1"])

    # ---- pass 2: BN1+PReLU fused into conv2 + bias + residual, BN2 stats ---
    y2, st2 = pl.pallas_call(
        functools.partial(_bnact_conv2_kernel, th=TH, wd=W),
        out_shape=(jax.ShapeDtypeStruct((N, H, W, Cout), jnp.float32),
                   jax.ShapeDtypeStruct((N, nH, 2, Cout), jnp.float32)),
        grid=grid,
        in_specs=[body_spec(Cout), top_spec(Cout), bot_spec(Cout),
                  row_vec_spec(Cout), row_vec_spec(Cout), alpha_spec,
                  pl.BlockSpec((9, Cout, Cout), lambda n, h: (0, 0, 0)),
                  row_vec_spec(Cout), body_spec(Cin)],
        out_specs=(y_spec, st_spec),
        scratch_shapes=[pltpu.VMEM((TH + 2, W + 2, Cout), jnp.float32)],
        compiler_params=cparams,
    )(y1, y1, y1, scale1, shift1, alpha, w2, b2, x)

    scale2, shift2 = _bn_affine(st2, M, params["g2"], params["beta2"])

    # ---- pass 3: BN2 + PReLU + fused 2x2 max-pool (values + indices) -------
    # column-paired view: (N, H, W, C) -> (N, H, W/2, 2C); lane dim stays last
    W2, T2 = W // 2, TH // 2
    y2p = y2.reshape(N, H, W2, 2 * Cout)
    sc2 = jnp.concatenate([scale2, scale2], axis=-1)
    sh2 = jnp.concatenate([shift2, shift2], axis=-1)

    out_p, pooled, idx = pl.pallas_call(
        functools.partial(_bnact_pool_kernel, th=TH, wfull=W),
        out_shape=(jax.ShapeDtypeStruct((N, H, W2, 2 * Cout), jnp.float32),
                   jax.ShapeDtypeStruct((N, H // 2, W2, Cout), jnp.float32),
                   jax.ShapeDtypeStruct((N, H // 2, W2, Cout), jnp.int32)),
        grid=grid,
        in_specs=[pl.BlockSpec((1, TH, W2, 2 * Cout), lambda n, h: (n, h, 0, 0)),
                  pl.BlockSpec((1, 2 * Cout), lambda n, h: (0, 0)),
                  pl.BlockSpec((1, 2 * Cout), lambda n, h: (0, 0)),
                  alpha_spec],
        out_specs=(pl.BlockSpec((1, TH, W2, 2 * Cout), lambda n, h: (n, h, 0, 0)),
                   pl.BlockSpec((1, T2, W2, Cout), lambda n, h: (n, h, 0, 0)),
                   pl.BlockSpec((1, T2, W2, Cout), lambda n, h: (n, h, 0, 0))),
        compiler_params=cparams,
    )(y2p, sc2, sh2, alpha)

    out = out_p.reshape(N, H, W, Cout)
    out_nchw = jnp.transpose(out, (0, 3, 1, 2))
    out_enc = jnp.transpose(pooled, (0, 3, 1, 2))
    # TODO(synk): PyTorch returns int64 pool indices; int32 here (same values).
    idx_nchw = jnp.transpose(idx, (0, 3, 1, 2))
    return out_enc, out_nchw, idx_nchw


# ------------------------------ pure-JAX reference --------------------------

def _reference(x_nchw, params):
    x = jnp.transpose(x_nchw, (0, 2, 3, 1))

    def conv(h, w, b):
        y = jax.lax.conv_general_dilated(
            h, w, (1, 1), "SAME", dimension_numbers=("NHWC", "HWIO", "NHWC"))
        return y + b

    def bn(h, g, be):
        mean = jnp.mean(h, axis=(0, 1, 2), keepdims=True)
        var = jnp.mean((h - mean) ** 2, axis=(0, 1, 2), keepdims=True)
        return (h - mean) * jax.lax.rsqrt(var + EPS) * g + be

    def prelu(h, a):
        return jnp.where(h >= 0, h, a * h)

    a = params["a"][0, 0]
    h = prelu(bn(conv(x, params["w1"], params["b1"]), params["g1"], params["beta1"]), a)
    h = conv(h, params["w2"], params["b2"])
    out = prelu(bn(h + x, params["g2"], params["beta2"]), a)
    N, H, W, C = out.shape
    pooled = jnp.max(out.reshape(N, H // 2, 2, W // 2, 2, C), axis=(2, 4))
    return jnp.transpose(pooled, (0, 3, 1, 2)), jnp.transpose(out, (0, 3, 1, 2))


if __name__ == "__main__":
    key = jax.random.PRNGKey(0)
    kx, kp = jax.random.split(key)
    in_ch = out_ch = 4                      # residual add requires in_ch == out_ch
    x = jax.random.normal(kx, (2, in_ch, 16, 16), jnp.float32)   # NCHW like PyTorch
    params = init_params(kp, in_ch, out_ch)

    fwd = jax.jit(encoder_block)
    out_enc, out_full, indices = jax.block_until_ready(fwd(x, params))

    ref_enc, ref_full = _reference(x, params)
    np.testing.assert_allclose(np.asarray(out_full), np.asarray(ref_full),
                               atol=2e-4, rtol=2e-4)
    np.testing.assert_allclose(np.asarray(out_enc), np.asarray(ref_enc),
                               atol=2e-4, rtol=2e-4)
    # indices sanity: gathering with them reproduces the pooled values
    N, C, H, W = out_full.shape
    gathered = jnp.take_along_axis(out_full.reshape(N, C, H * W),
                                   indices.reshape(N, C, -1), axis=-1)
    np.testing.assert_allclose(np.asarray(gathered.reshape(out_enc.shape)),
                               np.asarray(out_enc))
    print("KERNEL_OK")
</pallas_src>

<mosaic_0001>
module attributes {stable_mosaic.version = 11 : i64} {
  func.func @_conv1_kernel(%arg0: i32, %arg1: i32, %arg2: memref<1x8x16x4xf32, #tpu.memory_space<vmem>>, %arg3: memref<1x1x16x4xf32, #tpu.memory_space<vmem>>, %arg4: memref<1x1x16x4xf32, #tpu.memory_space<vmem>>, %arg5: memref<9x4x4xf32, #tpu.memory_space<vmem>>, %arg6: memref<1x4xf32, #tpu.memory_space<vmem>>, %arg7: memref<1x8x16x4xf32, #tpu.memory_space<vmem>>, %arg8: memref<1x1x2x4xf32, #tpu.memory_space<vmem>>, %arg9: memref<10x18x4xf32, #tpu.memory_space<vmem>>) attributes {dimension_semantics = [#tpu.dimension_semantics<parallel>, #tpu.dimension_semantics<parallel>], iteration_bounds = array<i64: 2, 2>, scalar_prefetch = 0 : i64, scratch_operands = 1 : i64, tpu.core_type = #tpu.core_type<tc>, window_params = [{transform_indices = @transform_0, window_bounds = array<i64: 1, 8, 16, 4>}, {transform_indices = @transform_1, window_bounds = array<i64: 1, 1, 16, 4>}, {transform_indices = @transform_2, window_bounds = array<i64: 1, 1, 16, 4>}, {pipeline_mode = #tpu.pipeline_mode<synchronous>, transform_indices = @transform_3, window_bounds = array<i64: 9, 4, 4>}, {pipeline_mode = #tpu.pipeline_mode<synchronous>, transform_indices = @transform_4, window_bounds = array<i64: 1, 4>}, {transform_indices = @transform_5, window_bounds = array<i64: 1, 8, 16, 4>}, {transform_indices = @transform_6, window_bounds = array<i64: 1, 1, 2, 4>}]} {
    %cst = arith.constant 0.000000e+00 : f32
    %0 = vector.broadcast %cst : f32 to vector<10x18x4xf32>
    %c0 = arith.constant 0 : index
    %c0_0 = arith.constant 0 : index
    %c0_1 = arith.constant 0 : index
    %1 = vector.load %arg9[%c0, %c0_0, %c0_1] : memref<10x18x4xf32, #tpu.memory_space<vmem>>, vector<10x18x4xf32>
    tpu.vector_store %arg9[%c0, %c0_0, %c0_1], %0 {strides = array<i32>} : memref<10x18x4xf32, #tpu.memory_space<vmem>>, vector<10x18x4xf32>,
    %c0_2 = arith.constant 0 : index
    %c0_3 = arith.constant 0 : index
    %c0_4 = arith.constant 0 : index
    %c0_5 = arith.constant 0 : index
    %2 = vector.load %arg2[%c0_2, %c0_3, %c0_4, %c0_5] : memref<1x8x16x4xf32, #tpu.memory_space<vmem>>, vector<1x8x16x4xf32>
    %3 = vector.shape_cast %2 : vector<1x8x16x4xf32> to vector<8x16x4xf32>
    %c1 = arith.constant 1 : index
    %c1_6 = arith.constant 1 : index
    %c0_7 = arith.constant 0 : index
    %4 = vector.load %arg9[%c1, %c1_6, %c0_7] : memref<10x18x4xf32, #tpu.memory_space<vmem>>, vector<8x16x4xf32>
    tpu.vector_store %arg9[%c1, %c1_6, %c0_7], %3 {strides = array<i32>} : memref<10x18x4xf32, #tpu.memory_space<vmem>>, vector<8x16x4xf32>,
    %c0_i32 = arith.constant 0 : i32
    %5 = arith.cmpi sgt, %arg1, %c0_i32 : i32
    %6 = arith.extui %5 : i1 to i32
    %c0_i32_8 = arith.constant 0 : i32
    %7 = arith.cmpi ne, %6, %c0_i32_8 : i32
    scf.if %7 {
      %c0_83 = arith.constant 0 : index
      %c0_84 = arith.constant 0 : index
      %c0_85 = arith.constant 0 : index
      %c0_86 = arith.constant 0 : index
      %84 = vector.load %arg3[%c0_83, %c0_84, %c0_85, %c0_86] : memref<1x1x16x4xf32, #tpu.memory_space<vmem>>, vector<1x1x16x4xf32>
      %85 = vector.shape_cast %84 : vector<1x1x16x4xf32> to vector<1x16x4xf32>
      %c0_87 = arith.constant 0 : index
      %c1_88 = arith.constant 1 : index
      %c0_89 = arith.constant 0 : index
      %86 = vector.load %arg9[%c0_87, %c1_88, %c0_89] : memref<10x18x4xf32, #tpu.memory_space<vmem>>, vector<1x16x4xf32>
      tpu.vector_store %arg9[%c0_87, %c1_88, %c0_89], %85 {strides = array<i32>} : memref<10x18x4xf32, #tpu.memory_space<vmem>>, vector<1x16x4xf32>,
    } else {
    }
    %c1_i32 = arith.constant 1 : i32
    %8 = arith.cmpi slt, %arg1, %c1_i32 : i32
    %9 = arith.extui %8 : i1 to i32
    %c0_i32_9 = arith.constant 0 : i32
    %10 = arith.cmpi ne, %9, %c0_i32_9 : i32
    scf.if %10 {
      %c0_83 = arith.constant 0 : index
      %c0_84 = arith.constant 0 : index
      %c0_85 = arith.constant 0 : index
      %c0_86 = arith.constant 0 : index
      %84 = vector.load %arg4[%c0_83, %c0_84, %c0_85, %c0_86] : memref<1x1x16x4xf32, #tpu.memory_space<vmem>>, vector<1x1x16x4xf32>
      %85 = vector.shape_cast %84 : vector<1x1x16x4xf32> to vector<1x16x4xf32>
      %c9 = arith.constant 9 : index
      %c1_87 = arith.constant 1 : index
      %c0_88 = arith.constant 0 : index
      %86 = vector.load %arg9[%c9, %c1_87, %c0_88] : memref<10x18x4xf32, #tpu.memory_space<vmem>>, vector<1x16x4xf32>
      tpu.vector_store %arg9[%c9, %c1_87, %c0_88], %85 {strides = array<i32>} : memref<10x18x4xf32, #tpu.memory_space<vmem>>, vector<1x16x4xf32>,
    } else {
    }
    %cst_10 = arith.constant 0.000000e+00 : f32
    %11 = vector.broadcast %cst_10 : f32 to vector<128x4xf32>
    %c0_11 = arith.constant 0 : index
    %c0_12 = arith.constant 0 : index
    %c0_13 = arith.constant 0 : index
    %12 = vector.load %arg9[%c0_11, %c0_12, %c0_13] : memref<10x18x4xf32, #tpu.memory_space<vmem>>, vector<8x16x4xf32>
    %13 = vector.shape_cast %12 : vector<8x16x4xf32> to vector<128x4xf32>
    %c0_14 = arith.constant 0 : index
    %c0_15 = arith.constant 0 : index
    %c0_16 = arith.constant 0 : index
    %14 = vector.load %arg5[%c0_14, %c0_15, %c0_16] : memref<9x4x4xf32, #tpu.memory_space<vmem>>, vector<1x4x4xf32>
    %15 = vector.shape_cast %14 : vector<1x4x4xf32> to vector<4x4xf32>
    %cst_17 = arith.constant dense<0.000000e+00> : vector<128x4xf32>
    %16 = tpu.matmul %13, %15, %cst_17 {dimension_numbers = #tpu.dot_dimension_numbers<[1], [0], [0], [1], [0, 0, 1, 1], [], []>} : vector<128x4xf32>, vector<4x4xf32>, vector<128x4xf32> -> vector<128x4xf32>
    %17 = arith.addf %11, %16 : vector<128x4xf32>
    %c0_18 = arith.constant 0 : index
    %c1_19 = arith.constant 1 : index
    %c0_20 = arith.constant 0 : index
    %18 = vector.load %arg9[%c0_18, %c1_19, %c0_20] : memref<10x18x4xf32, #tpu.memory_space<vmem>>, vector<8x16x4xf32>
    %19 = vector.shape_cast %18 : vector<8x16x4xf32> to vector<128x4xf32>
    %c1_21 = arith.constant 1 : index
    %c0_22 = arith.constant 0 : index
    %c0_23 = arith.constant 0 : index
    %20 = vector.load %arg5[%c1_21, %c0_22, %c0_23] : memref<9x4x4xf32, #tpu.memory_space<vmem>>, vector<1x4x4xf32>
    %21 = vector.shape_cast %20 : vector<1x4x4xf32> to vector<4x4xf32>
    %cst_24 = arith.constant dense<0.000000e+00> : vector<128x4xf32>
    %22 = tpu.matmul %19, %21, %cst_24 {dimension_numbers = #tpu.dot_dimension_numbers<[1], [0], [0], [1], [0, 0, 1, 1], [], []>} : vector<128x4xf32>, vector<4x4xf32>, vector<128x4xf32> -> vector<128x4xf32>
    %23 = arith.addf %17, %22 : vector<128x4xf32>
    %c0_25 = arith.constant 0 : index
    %c2 = arith.constant 2 : index
    %c0_26 = arith.constant 0 : index
    %24 = vector.load %arg9[%c0_25, %c2, %c0_26] : memref<10x18x4xf32, #tpu.memory_space<vmem>>, vector<8x16x4xf32>
    %25 = vector.shape_cast %24 : vector<8x16x4xf32> to vector<128x4xf32>
    %c2_27 = arith.constant 2 : index
    %c0_28 = arith.constant 0 : index
    %c0_29 = arith.constant 0 : index
    %26 = vector.load %arg5[%c2_27, %c0_28, %c0_29] : memref<9x4x4xf32, #tpu.memory_space<vmem>>, vector<1x4x4xf32>
    %27 = vector.shape_cast %26 : vector<1x4x4xf32> to vector<4x4xf32>
    %cst_30 = arith.constant dense<0.000000e+00> : vector<128x4xf32>
    %28 = tpu.matmul %25, %27, %cst_30 {dimension_numbers = #tpu.dot_dimension_numbers<[1], [0], [0], [1], [0, 0, 1, 1], [], []>} : vector<128x4xf32>, vector<4x4xf32>, vector<128x4xf32> -> vector<128x4xf32>
    %29 = arith.addf %23, %28 : vector<128x4xf32>
    %c1_31 = arith.constant 1 : index
    %c0_32 = arith.constant 0 : index
    %c0_33 = arith.constant 0 : index
    %30 = vector.load %arg9[%c1_31, %c0_32, %c0_33] : memref<10x18x4xf32, #tpu.memory_space<vmem>>, vector<8x16x4xf32>
    %31 = vector.shape_cast %30 : vector<8x16x4xf32> to vector<128x4xf32>
    %c3 = arith.constant 3 : index
    %c0_34 = arith.constant 0 : index
    %c0_35 = arith.constant 0 : index
    %32 = vector.load %arg5[%c3, %c0_34, %c0_35] : memref<9x4x4xf32, #tpu.memory_space<vmem>>, vector<1x4x4xf32>
    %33 = vector.shape_cast %32 : vector<1x4x4xf32> to vector<4x4xf32>
    %cst_36 = arith.constant dense<0.000000e+00> : vector<128x4xf32>
    %34 = tpu.matmul %31, %33, %cst_36 {dimension_numbers = #tpu.dot_dimension_numbers<[1], [0], [0], [1], [0, 0, 1, 1], [], []>} : vector<128x4xf32>, vector<4x4xf32>, vector<128x4xf32> -> vector<128x4xf32>
    %35 = arith.addf %29, %34 : vector<128x4xf32>
    %c1_37 = arith.constant 1 : index
    %c1_38 = arith.constant 1 : index
    %c0_39 = arith.constant 0 : index
    %36 = vector.load %arg9[%c1_37, %c1_38, %c0_39] : memref<10x18x4xf32, #tpu.memory_space<vmem>>, vector<8x16x4xf32>
    %37 = vector.shape_cast %36 : vector<8x16x4xf32> to vector<128x4xf32>
    %c4 = arith.constant 4 : index
    %c0_40 = arith.constant 0 : index
    %c0_41 = arith.constant 0 : index
    %38 = vector.load %arg5[%c4, %c0_40, %c0_41] : memref<9x4x4xf32, #tpu.memory_space<vmem>>, vector<1x4x4xf32>
    %39 = vector.shape_cast %38 : vector<1x4x4xf32> to vector<4x4xf32>
    %cst_42 = arith.constant dense<0.000000e+00> : vector<128x4xf32>
    %40 = tpu.matmul %37, %39, %cst_42 {dimension_numbers = #tpu.dot_dimension_numbers<[1], [0], [0], [1], [0, 0, 1, 1], [], []>} : vector<128x4xf32>, vector<4x4xf32>, vector<128x4xf32> -> vector<128x4xf32>
    %41 = arith.addf %35, %40 : vector<128x4xf32>
    %c1_43 = arith.constant 1 : index
    %c2_44 = arith.constant 2 : index
    %c0_45 = arith.constant 0 : index
    %42 = vector.load %arg9[%c1_43, %c2_44, %c0_45] : memref<10x18x4xf32, #tpu.memory_space<vmem>>, vector<8x16x4xf32>
    %43 = vector.shape_cast %42 : vector<8x16x4xf32> to vector<128x4xf32>
    %c5 = arith.constant 5 : index
    %c0_46 = arith.constant 0 : index
    %c0_47 = arith.constant 0 : index
    %44 = vector.load %arg5[%c5, %c0_46, %c0_47] : memref<9x4x4xf32, #tpu.memory_space<vmem>>, vector<1x4x4xf32>
    %45 = vector.shape_cast %44 : vector<1x4x4xf32> to vector<4x4xf32>
    %cst_48 = arith.constant dense<0.000000e+00> : vector<128x4xf32>
    %46 = tpu.matmul %43, %45, %cst_48 {dimension_numbers = #tpu.dot_dimension_numbers<[1], [0], [0], [1], [0, 0, 1, 1], [], []>} : vector<128x4xf32>, vector<4x4xf32>, vector<128x4xf32> -> vector<128x4xf32>
    %47 = arith.addf %41, %46 : vector<128x4xf32>
    %c2_49 = arith.constant 2 : index
    %c0_50 = arith.constant 0 : index
    %c0_51 = arith.constant 0 : index
    %48 = vector.load %arg9[%c2_49, %c0_50, %c0_51] : memref<10x18x4xf32, #tpu.memory_space<vmem>>, vector<8x16x4xf32>
    %49 = vector.shape_cast %48 : vector<8x16x4xf32> to vector<128x4xf32>
    %c6 = arith.constant 6 : index
    %c0_52 = arith.constant 0 : index
    %c0_53 = arith.constant 0 : index
    %50 = vector.load %arg5[%c6, %c0_52, %c0_53] : memref<9x4x4xf32, #tpu.memory_space<vmem>>, vector<1x4x4xf32>
    %51 = vector.shape_cast %50 : vector<1x4x4xf32> to vector<4x4xf32>
    %cst_54 = arith.constant dense<0.000000e+00> : vector<128x4xf32>
    %52 = tpu.matmul %49, %51, %cst_54 {dimension_numbers = #tpu.dot_dimension_numbers<[1], [0], [0], [1], [0, 0, 1, 1], [], []>} : vector<128x4xf32>, vector<4x4xf32>, vector<128x4xf32> -> vector<128x4xf32>
    %53 = arith.addf %47, %52 : vector<128x4xf32>
    %c2_55 = arith.constant 2 : index
    %c1_56 = arith.constant 1 : index
    %c0_57 = arith.constant 0 : index
    %54 = vector.load %arg9[%c2_55, %c1_56, %c0_57] : memref<10x18x4xf32, #tpu.memory_space<vmem>>, vector<8x16x4xf32>
    %55 = vector.shape_cast %54 : vector<8x16x4xf32> to vector<128x4xf32>
    %c7 = arith.constant 7 : index
    %c0_58 = arith.constant 0 : index
    %c0_59 = arith.constant 0 : index
    %56 = vector.load %arg5[%c7, %c0_58, %c0_59] : memref<9x4x4xf32, #tpu.memory_space<vmem>>, vector<1x4x4xf32>
    %57 = vector.shape_cast %56 : vector<1x4x4xf32> to vector<4x4xf32>
    %cst_60 = arith.constant dense<0.000000e+00> : vector<128x4xf32>
    %58 = tpu.matmul %55, %57, %cst_60 {dimension_numbers = #tpu.dot_dimension_numbers<[1], [0], [0], [1], [0, 0, 1, 1], [], []>} : vector<128x4xf32>, vector<4x4xf32>, vector<128x4xf32> -> vector<128x4xf32>
    %59 = arith.addf %53, %58 : vector<128x4xf32>
    %c2_61 = arith.constant 2 : index
    %c2_62 = arith.constant 2 : index
    %c0_63 = arith.constant 0 : index
    %60 = vector.load %arg9[%c2_61, %c2_62, %c0_63] : memref<10x18x4xf32, #tpu.memory_space<vmem>>, vector<8x16x4xf32>
    %61 = vector.shape_cast %60 : vector<8x16x4xf32> to vector<128x4xf32>
    %c8 = arith.constant 8 : index
    %c0_64 = arith.constant 0 : index
    %c0_65 = arith.constant 0 : index
    %62 = vector.load %arg5[%c8, %c0_64, %c0_65] : memref<9x4x4xf32, #tpu.memory_space<vmem>>, vector<1x4x4xf32>
    %63 = vector.shape_cast %62 : vector<1x4x4xf32> to vector<4x4xf32>
    %cst_66 = arith.constant dense<0.000000e+00> : vector<128x4xf32>
    %64 = tpu.matmul %61, %63, %cst_66 {dimension_numbers = #tpu.dot_dimension_numbers<[1], [0], [0], [1], [0, 0, 1, 1], [], []>} : vector<128x4xf32>, vector<4x4xf32>, vector<128x4xf32> -> vector<128x4xf32>
    %65 = arith.addf %59, %64 : vector<128x4xf32>
    %c0_67 = arith.constant 0 : index
    %c0_68 = arith.constant 0 : index
    %66 = vector.load %arg6[%c0_67, %c0_68] : memref<1x4xf32, #tpu.memory_space<vmem>>, vector<1x4xf32>
    %67 = vector.broadcast %66 : vector<1x4xf32> to vector<128x4xf32>
    %68 = arith.addf %65, %67 : vector<128x4xf32>
    %69 = vector.shape_cast %68 : vector<128x4xf32> to vector<8x16x4xf32>
    %c0_69 = arith.constant 0 : index
    %c0_70 = arith.constant 0 : index
    %c0_71 = arith.constant 0 : index
    %c0_72 = arith.constant 0 : index
    %70 = vector.load %arg7[%c0_69, %c0_70, %c0_71, %c0_72] : memref<1x8x16x4xf32, #tpu.memory_space<vmem>>, vector<1x8x16x4xf32>
    %71 = vector.shape_cast %70 : vector<1x8x16x4xf32> to vector<8x16x4xf32>
    %72 = vector.shape_cast %69 : vector<8x16x4xf32> to vector<1x8x16x4xf32>
    tpu.vector_store %arg7[%c0_69, %c0_70, %c0_71, %c0_72], %72 {strides = array<i32>} : memref<1x8x16x4xf32, #tpu.memory_space<vmem>>, vector<1x8x16x4xf32>,
    %cst_73 = arith.constant dense<0.000000e+00> : vector<4xf32>
    %73 = vector.multi_reduction <add>, %68, %cst_73 [0] : vector<128x4xf32> to vector<4xf32>
    %74 = vector.shape_cast %73 : vector<4xf32> to vector<1x4xf32>
    %c0_74 = arith.constant 0 : index
    %c0_75 = arith.constant 0 : index
    %c0_76 = arith.constant 0 : index
    %c0_77 = arith.constant 0 : index
    %75 = vector.load %arg8[%c0_74, %c0_75, %c0_76, %c0_77] : memref<1x1x2x4xf32, #tpu.memory_space<vmem>>, vector<1x1x1x4xf32>
    %76 = vector.shape_cast %75 : vector<1x1x1x4xf32> to vector<1x4xf32>
    %77 = vector.shape_cast %74 : vector<1x4xf32> to vector<1x1x1x4xf32>
    tpu.vector_store %arg8[%c0_74, %c0_75, %c0_76, %c0_77], %77 {strides = array<i32>} : memref<1x1x2x4xf32, #tpu.memory_space<vmem>>, vector<1x1x1x4xf32>,
    %78 = arith.mulf %68, %68 : vector<128x4xf32>
    %cst_78 = arith.constant dense<0.000000e+00> : vector<4xf32>
    %79 = vector.multi_reduction <add>, %78, %cst_78 [0] : vector<128x4xf32> to vector<4xf32>
    %80 = vector.shape_cast %79 : vector<4xf32> to vector<1x4xf32>
    %c0_79 = arith.constant 0 : index
    %c0_80 = arith.constant 0 : index
    %c1_81 = arith.constant 1 : index
    %c0_82 = arith.constant 0 : index
    %81 = vector.load %arg8[%c0_79, %c0_80, %c1_81, %c0_82] : memref<1x1x2x4xf32, #tpu.memory_space<vmem>>, vector<1x1x1x4xf32>
    %82 = vector.shape_cast %81 : vector<1x1x1x4xf32> to vector<1x4xf32>
    %83 = vector.shape_cast %80 : vector<1x4xf32> to vector<1x1x1x4xf32>
    tpu.vector_store %arg8[%c0_79, %c0_80, %c1_81, %c0_82], %83 {strides = array<i32>} : memref<1x1x2x4xf32, #tpu.memory_space<vmem>>, vector<1x1x1x4xf32>,
    return
  }
  func.func @transform_0(%arg0: i32, %arg1: i32) -> (i32, i32, i32, i32) {
    %c0_i32 = arith.constant 0 : i32
    %c0_i32_0 = arith.constant 0 : i32
    %c0_i32_1 = arith.constant 0 : i32
    return %arg0, %arg1, %c0_i32, %c0_i32_0 : i32, i32, i32, i32
  }
  func.func @transform_1(%arg0: i32, %arg1: i32) -> (i32, i32, i32, i32) {
    %c8_i32 = arith.constant 8 : i32
    %0 = arith.muli %arg1, %c8_i32 : i32
    %c1_i32 = arith.constant 1 : i32
    %1 = arith.subi %0, %c1_i32 : i32
    %c0_i32 = arith.constant 0 : i32
    %2 = arith.maxsi %1, %c0_i32 : i32
    %c0_i32_0 = arith.constant 0 : i32
    %c0_i32_1 = arith.constant 0 : i32
    %c0_i32_2 = arith.constant 0 : i32
    return %arg0, %2, %c0_i32_0, %c0_i32_1 : i32, i32, i32, i32
  }
  func.func @transform_2(%arg0: i32, %arg1: i32) -> (i32, i32, i32, i32) {
    %c1_i32 = arith.constant 1 : i32
    %0 = arith.addi %arg1, %c1_i32 : i32
    %c8_i32 = arith.constant 8 : i32
    %1 = arith.muli %0, %c8_i32 : i32
    %c15_i32 = arith.constant 15 : i32
    %2 = arith.minsi %1, %c15_i32 : i32
    %c0_i32 = arith.constant 0 : i32
    %c0_i32_0 = arith.constant 0 : i32
    %c0_i32_1 = arith.constant 0 : i32
    return %arg0, %2, %c0_i32, %c0_i32_0 : i32, i32, i32, i32
  }
  func.func @transform_3(%arg0: i32, %arg1: i32) -> (i32, i32, i32) {
    %c0_i32 = arith.constant 0 : i32
    %c0_i32_0 = arith.constant 0 : i32
    %c0_i32_1 = arith.constant 0 : i32
    %c0_i32_2 = arith.constant 0 : i32
    return %c0_i32, %c0_i32_0, %c0_i32_1 : i32, i32, i32
  }
  func.func @transform_4(%arg0: i32, %arg1: i32) -> (i32, i32) {
    %c0_i32 = arith.constant 0 : i32
    %c0_i32_0 = arith.constant 0 : i32
    %c0_i32_1 = arith.constant 0 : i32
    return %c0_i32, %c0_i32_0 : i32, i32
  }
  func.func @transform_5(%arg0: i32, %arg1: i32) -> (i32, i32, i32, i32) {
    %c0_i32 = arith.constant 0 : i32
    %c0_i32_0 = arith.constant 0 : i32
    %c0_i32_1 = arith.constant 0 : i32
    return %arg0, %arg1, %c0_i32, %c0_i32_0 : i32, i32, i32, i32
  }
  func.func @transform_6(%arg0: i32, %arg1: i32) -> (i32, i32, i32, i32) {
    %c0_i32 = arith.constant 0 : i32
    %c0_i32_0 = arith.constant 0 : i32
    %c0_i32_1 = arith.constant 0 : i32
    return %arg0, %arg1, %c0_i32, %c0_i32_0 : i32, i32, i32, i32
  }
}

module attributes {stable_mosaic.version = 11 : i64} {
  func.func @_bnact_conv2_kernel(%arg0: i32, %arg1: i32, %arg2: memref<1x8x16x4xf32, #tpu.memory_space<vmem>>, %arg3: memref<1x1x16x4xf32, #tpu.memory_space<vmem>>, %arg4: memref<1x1x16x4xf32, #tpu.memory_space<vmem>>, %arg5: memref<1x4xf32, #tpu.memory_space<vmem>>, %arg6: memref<1x4xf32, #tpu.memory_space<vmem>>, %arg7: memref<1x1xf32, #tpu.memory_space<smem>>, %arg8: memref<9x4x4xf32, #tpu.memory_space<vmem>>, %arg9: memref<1x4xf32, #tpu.memory_space<vmem>>, %arg10: memref<1x8x16x4xf32, #tpu.memory_space<vmem>>, %arg11: memref<1x8x16x4xf32, #tpu.memory_space<vmem>>, %arg12: memref<1x1x2x4xf32, #tpu.memory_space<vmem>>, %arg13: memref<10x18x4xf32, #tpu.memory_space<vmem>>) attributes {dimension_semantics = [#tpu.dimension_semantics<parallel>, #tpu.dimension_semantics<parallel>], iteration_bounds = array<i64: 2, 2>, scalar_prefetch = 0 : i64, scratch_operands = 1 : i64, tpu.core_type = #tpu.core_type<tc>, window_params = [{transform_indices = @transform_0, window_bounds = array<i64: 1, 8, 16, 4>}, {transform_indices = @transform_1, window_bounds = array<i64: 1, 1, 16, 4>}, {transform_indices = @transform_2, window_bounds = array<i64: 1, 1, 16, 4>}, {pipeline_mode = #tpu.pipeline_mode<synchronous>, transform_indices = @transform_3, window_bounds = array<i64: 1, 4>}, {pipeline_mode = #tpu.pipeline_mode<synchronous>, transform_indices = @transform_4, window_bounds = array<i64: 1, 4>}, {transform_indices = @transform_5, window_bounds = array<i64: 1, 1>}, {pipeline_mode = #tpu.pipeline_mode<synchronous>, transform_indices = @transform_6, window_bounds = array<i64: 9, 4, 4>}, {pipeline_mode = #tpu.pipeline_mode<synchronous>, transform_indices = @transform_7, window_bounds = array<i64: 1, 4>}, {transform_indices = @transform_8, window_bounds = array<i64: 1, 8, 16, 4>}, {transform_indices = @transform_9, window_bounds = array<i64: 1, 8, 16, 4>}, {transform_indices = @transform_10, window_bounds = array<i64: 1, 1, 2, 4>}]} {
    %c0 = arith.constant 0 : index
    %c0_0 = arith.constant 0 : index
    %0 = memref.load %arg7[%c0, %c0_0] : memref<1x1xf32, #tpu.memory_space<smem>>
    %c0_1 = arith.constant 0 : index
    %c0_2 = arith.constant 0 : index
    %1 = vector.load %arg5[%c0_1, %c0_2] : memref<1x4xf32, #tpu.memory_space<vmem>>, vector<1x4xf32>
    %c0_3 = arith.constant 0 : index
    %c0_4 = arith.constant 0 : index
    %2 = vector.load %arg6[%c0_3, %c0_4] : memref<1x4xf32, #tpu.memory_space<vmem>>, vector<1x4xf32>
    %cst = arith.constant 0.000000e+00 : f32
    %3 = vector.broadcast %cst : f32 to vector<10x18x4xf32>
    %c0_5 = arith.constant 0 : index
    %c0_6 = arith.constant 0 : index
    %c0_7 = arith.constant 0 : index
    %4 = vector.load %arg13[%c0_5, %c0_6, %c0_7] : memref<10x18x4xf32, #tpu.memory_space<vmem>>, vector<10x18x4xf32>
    tpu.vector_store %arg13[%c0_5, %c0_6, %c0_7], %3 {strides = array<i32>} : memref<10x18x4xf32, #tpu.memory_space<vmem>>, vector<10x18x4xf32>,
    %c0_8 = arith.constant 0 : index
    %c0_9 = arith.constant 0 : index
    %c0_10 = arith.constant 0 : index
    %c0_11 = arith.constant 0 : index
    %5 = vector.load %arg2[%c0_8, %c0_9, %c0_10, %c0_11] : memref<1x8x16x4xf32, #tpu.memory_space<vmem>>, vector<1x8x16x4xf32>
    %6 = vector.shape_cast %5 : vector<1x8x16x4xf32> to vector<8x16x4xf32>
    %7 = vector.shape_cast %1 : vector<1x4xf32> to vector<1x1x4xf32>
    %8 = vector.broadcast %7 : vector<1x1x4xf32> to vector<8x16x4xf32>
    %9 = arith.mulf %6, %8 : vector<8x16x4xf32>
    %10 = vector.shape_cast %2 : vector<1x4xf32> to vector<1x1x4xf32>
    %11 = vector.broadcast %10 : vector<1x1x4xf32> to vector<8x16x4xf32>
    %12 = arith.addf %9, %11 : vector<8x16x4xf32>
    %cst_12 = arith.constant 0.000000e+00 : f32
    %13 = vector.broadcast %cst_12 : f32 to vector<8x16x4xf32>
    %14 = arith.cmpf oge, %12, %13 : vector<8x16x4xf32>
    %15 = vector.broadcast %0 : f32 to vector<8x16x4xf32>
    %16 = arith.mulf %15, %12 : vector<8x16x4xf32>
    %17 = arith.select %14, %12, %16 : vector<8x16x4xi1>, vector<8x16x4xf32>
    %c1 = arith.constant 1 : index
    %c1_13 = arith.constant 1 : index
    %c0_14 = arith.constant 0 : index
    %18 = vector.load %arg13[%c1, %c1_13, %c0_14] : memref<10x18x4xf32, #tpu.memory_space<vmem>>, vector<8x16x4xf32>
    tpu.vector_store %arg13[%c1, %c1_13, %c0_14], %17 {strides = array<i32>} : memref<10x18x4xf32, #tpu.memory_space<vmem>>, vector<8x16x4xf32>,
    %c0_i32 = arith.constant 0 : i32
    %19 = arith.cmpi sgt, %arg1, %c0_i32 : i32
    %20 = arith.extui %19 : i1 to i32
    %c0_i32_15 = arith.constant 0 : i32
    %21 = arith.cmpi ne, %20, %c0_i32_15 : i32
    scf.if %21 {
      %c0_94 = arith.constant 0 : index
      %c0_95 = arith.constant 0 : index
      %c0_96 = arith.constant 0 : index
      %c0_97 = arith.constant 0 : index
      %102 = vector.load %arg3[%c0_94, %c0_95, %c0_96, %c0_97] : memref<1x1x16x4xf32, #tpu.memory_space<vmem>>, vector<1x1x16x4xf32>
      %103 = vector.shape_cast %102 : vector<1x1x16x4xf32> to vector<1x16x4xf32>
      %104 = vector.shape_cast %1 : vector<1x4xf32> to vector<1x1x4xf32>
      %105 = vector.broadcast %104 : vector<1x1x4xf32> to vector<1x16x4xf32>
      %106 = arith.mulf %103, %105 : vector<1x16x4xf32>
      %107 = vector.shape_cast %2 : vector<1x4xf32> to vector<1x1x4xf32>
      %108 = vector.broadcast %107 : vector<1x1x4xf32> to vector<1x16x4xf32>
      %109 = arith.addf %106, %108 : vector<1x16x4xf32>
      %cst_98 = arith.constant 0.000000e+00 : f32
      %110 = vector.broadcast %cst_98 : f32 to vector<1x16x4xf32>
      %111 = arith.cmpf oge, %109, %110 : vector<1x16x4xf32>
      %112 = vector.broadcast %0 : f32 to vector<1x16x4xf32>
      %113 = arith.mulf %112, %109 : vector<1x16x4xf32>
      %114 = arith.select %111, %109, %113 : vector<1x16x4xi1>, vector<1x16x4xf32>
      %c0_99 = arith.constant 0 : index
      %c1_100 = arith.constant 1 : index
      %c0_101 = arith.constant 0 : index
      %115 = vector.load %arg13[%c0_99, %c1_100, %c0_101] : memref<10x18x4xf32, #tpu.memory_space<vmem>>, vector<1x16x4xf32>
      tpu.vector_store %arg13[%c0_99, %c1_100, %c0_101], %114 {strides = array<i32>} : memref<10x18x4xf32, #tpu.memory_space<vmem>>, vector<1x16x4xf32>,
    } else {
    }
    %c1_i32 = arith.constant 1 : i32
    %22 = arith.cmpi slt, %arg1, %c1_i32 : i32
    %23 = arith.extui %22 : i1 to i32
    %c0_i32_16 = arith.constant 0 : i32
    %24 = arith.cmpi ne, %23, %c0_i32_16 : i32
    scf.if %24 {
      %c0_94 = arith.constant 0 : index
      %c0_95 = arith.constant 0 : index
      %c0_96 = arith.constant 0 : index
      %c0_97 = arith.constant 0 : index
      %102 = vector.load %arg4[%c0_94, %c0_95, %c0_96, %c0_97] : memref<1x1x16x4xf32, #tpu.memory_space<vmem>>, vector<1x1x16x4xf32>
      %103 = vector.shape_cast %102 : vector<1x1x16x4xf32> to vector<1x16x4xf32>
      %104 = vector.shape_cast %1 : vector<1x4xf32> to vector<1x1x4xf32>
      %105 = vector.broadcast %104 : vector<1x1x4xf32> to vector<1x16x4xf32>
      %106 = arith.mulf %103, %105 : vector<1x16x4xf32>
      %107 = vector.shape_cast %2 : vector<1x4xf32> to vector<1x1x4xf32>
      %108 = vector.broadcast %107 : vector<1x1x4xf32> to vector<1x16x4xf32>
      %109 = arith.addf %106, %108 : vector<1x16x4xf32>
      %cst_98 = arith.constant 0.000000e+00 : f32
      %110 = vector.broadcast %cst_98 : f32 to vector<1x16x4xf32>
      %111 = arith.cmpf oge, %109, %110 : vector<1x16x4xf32>
      %112 = vector.broadcast %0 : f32 to vector<1x16x4xf32>
      %113 = arith.mulf %112, %109 : vector<1x16x4xf32>
      %114 = arith.select %111, %109, %113 : vector<1x16x4xi1>, vector<1x16x4xf32>
      %c9 = arith.constant 9 : index
      %c1_99 = arith.constant 1 : index
      %c0_100 = arith.constant 0 : index
      %115 = vector.load %arg13[%c9, %c1_99, %c0_100] : memref<10x18x4xf32, #tpu.memory_space<vmem>>, vector<1x16x4xf32>
      tpu.vector_store %arg13[%c9, %c1_99, %c0_100], %114 {strides = array<i32>} : memref<10x18x4xf32, #tpu.memory_space<vmem>>, vector<1x16x4xf32>,
    } else {
    }
    %cst_17 = arith.constant 0.000000e+00 : f32
    %25 = vector.broadcast %cst_17 : f32 to vector<128x4xf32>
    %c0_18 = arith.constant 0 : index
    %c0_19 = arith.constant 0 : index
    %c0_20 = arith.constant 0 : index
    %26 = vector.load %arg13[%c0_18, %c0_19, %c0_20] : memref<10x18x4xf32, #tpu.memory_space<vmem>>, vector<8x16x4xf32>
    %27 = vector.shape_cast %26 : vector<8x16x4xf32> to vector<128x4xf32>
    %c0_21 = arith.constant 0 : index
    %c0_22 = arith.constant 0 : index
    %c0_23 = arith.constant 0 : index
    %28 = vector.load %arg8[%c0_21, %c0_22, %c0_23] : memref<9x4x4xf32, #tpu.memory_space<vmem>>, vector<1x4x4xf32>
    %29 = vector.shape_cast %28 : vector<1x4x4xf32> to vector<4x4xf32>
    %cst_24 = arith.constant dense<0.000000e+00> : vector<128x4xf32>
    %30 = tpu.matmul %27, %29, %cst_24 {dimension_numbers = #tpu.dot_dimension_numbers<[1], [0], [0], [1], [0, 0, 1, 1], [], []>} : vector<128x4xf32>, vector<4x4xf32>, vector<128x4xf32> -> vector<128x4xf32>
    %31 = arith.addf %25, %30 : vector<128x4xf32>
    %c0_25 = arith.constant 0 : index
    %c1_26 = arith.constant 1 : index
    %c0_27 = arith.constant 0 : index
    %32 = vector.load %arg13[%c0_25, %c1_26, %c0_27] : memref<10x18x4xf32, #tpu.memory_space<vmem>>, vector<8x16x4xf32>
    %33 = vector.shape_cast %32 : vector<8x16x4xf32> to vector<128x4xf32>
    %c1_28 = arith.constant 1 : index
    %c0_29 = arith.constant 0 : index
    %c0_30 = arith.constant 0 : index
    %34 = vector.load %arg8[%c1_28, %c0_29, %c0_30] : memref<9x4x4xf32, #tpu.memory_space<vmem>>, vector<1x4x4xf32>
    %35 = vector.shape_cast %34 : vector<1x4x4xf32> to vector<4x4xf32>
    %cst_31 = arith.constant dense<0.000000e+00> : vector<128x4xf32>
    %36 = tpu.matmul %33, %35, %cst_31 {dimension_numbers = #tpu.dot_dimension_numbers<[1], [0], [0], [1], [0, 0, 1, 1], [], []>} : vector<128x4xf32>, vector<4x4xf32>, vector<128x4xf32> -> vector<128x4xf32>
    %37 = arith.addf %31, %36 : vector<128x4xf32>
    %c0_32 = arith.constant 0 : index
    %c2 = arith.constant 2 : index
    %c0_33 = arith.constant 0 : index
    %38 = vector.load %arg13[%c0_32, %c2, %c0_33] : memref<10x18x4xf32, #tpu.memory_space<vmem>>, vector<8x16x4xf32>
    %39 = vector.shape_cast %38 : vector<8x16x4xf32> to vector<128x4xf32>
    %c2_34 = arith.constant 2 : index
    %c0_35 = arith.constant 0 : index
    %c0_36 = arith.constant 0 : index
    %40 = vector.load %arg8[%c2_34, %c0_35, %c0_36] : memref<9x4x4xf32, #tpu.memory_space<vmem>>, vector<1x4x4xf32>
    %41 = vector.shape_cast %40 : vector<1x4x4xf32> to vector<4x4xf32>
    %cst_37 = arith.constant dense<0.000000e+00> : vector<128x4xf32>
    %42 = tpu.matmul %39, %41, %cst_37 {dimension_numbers = #tpu.dot_dimension_numbers<[1], [0], [0], [1], [0, 0, 1, 1], [], []>} : vector<128x4xf32>, vector<4x4xf32>, vector<128x4xf32> -> vector<128x4xf32>
    %43 = arith.addf %37, %42 : vector<128x4xf32>
    %c1_38 = arith.constant 1 : index
    %c0_39 = arith.constant 0 : index
    %c0_40 = arith.constant 0 : index
    %44 = vector.load %arg13[%c1_38, %c0_39, %c0_40] : memref<10x18x4xf32, #tpu.memory_space<vmem>>, vector<8x16x4xf32>
    %45 = vector.shape_cast %44 : vector<8x16x4xf32> to vector<128x4xf32>
    %c3 = arith.constant 3 : index
    %c0_41 = arith.constant 0 : index
    %c0_42 = arith.constant 0 : index
    %46 = vector.load %arg8[%c3, %c0_41, %c0_42] : memref<9x4x4xf32, #tpu.memory_space<vmem>>, vector<1x4x4xf32>
    %47 = vector.shape_cast %46 : vector<1x4x4xf32> to vector<4x4xf32>
    %cst_43 = arith.constant dense<0.000000e+00> : vector<128x4xf32>
    %48 = tpu.matmul %45, %47, %cst_43 {dimension_numbers = #tpu.dot_dimension_numbers<[1], [0], [0], [1], [0, 0, 1, 1], [], []>} : vector<128x4xf32>, vector<4x4xf32>, vector<128x4xf32> -> vector<128x4xf32>
    %49 = arith.addf %43, %48 : vector<128x4xf32>
    %c1_44 = arith.constant 1 : index
    %c1_45 = arith.constant 1 : index
    %c0_46 = arith.constant 0 : index
    %50 = vector.load %arg13[%c1_44, %c1_45, %c0_46] : memref<10x18x4xf32, #tpu.memory_space<vmem>>, vector<8x16x4xf32>
    %51 = vector.shape_cast %50 : vector<8x16x4xf32> to vector<128x4xf32>
    %c4 = arith.constant 4 : index
    %c0_47 = arith.constant 0 : index
    %c0_48 = arith.constant 0 : index
    %52 = vector.load %arg8[%c4, %c0_47, %c0_48] : memref<9x4x4xf32, #tpu.memory_space<vmem>>, vector<1x4x4xf32>
    %53 = vector.shape_cast %52 : vector<1x4x4xf32> to vector<4x4xf32>
    %cst_49 = arith.constant dense<0.000000e+00> : vector<128x4xf32>
    %54 = tpu.matmul %51, %53, %cst_49 {dimension_numbers = #tpu.dot_dimension_numbers<[1], [0], [0], [1], [0, 0, 1, 1], [], []>} : vector<128x4xf32>, vector<4x4xf32>, vector<128x4xf32> -> vector<128x4xf32>
    %55 = arith.addf %49, %54 : vector<128x4xf32>
    %c1_50 = arith.constant 1 : index
    %c2_51 = arith.constant 2 : index
    %c0_52 = arith.constant 0 : index
    %56 = vector.load %arg13[%c1_50, %c2_51, %c0_52] : memref<10x18x4xf32, #tpu.memory_space<vmem>>, vector<8x16x4xf32>
    %57 = vector.shape_cast %56 : vector<8x16x4xf32> to vector<128x4xf32>
    %c5 = arith.constant 5 : index
    %c0_53 = arith.constant 0 : index
    %c0_54 = arith.constant 0 : index
    %58 = vector.load %arg8[%c5, %c0_53, %c0_54] : memref<9x4x4xf32, #tpu.memory_space<vmem>>, vector<1x4x4xf32>
    %59 = vector.shape_cast %58 : vector<1x4x4xf32> to vector<4x4xf32>
    %cst_55 = arith.constant dense<0.000000e+00> : vector<128x4xf32>
    %60 = tpu.matmul %57, %59, %cst_55 {dimension_numbers = #tpu.dot_dimension_numbers<[1], [0], [0], [1], [0, 0, 1, 1], [], []>} : vector<128x4xf32>, vector<4x4xf32>, vector<128x4xf32> -> vector<128x4xf32>
    %61 = arith.addf %55, %60 : vector<128x4xf32>
    %c2_56 = arith.constant 2 : index
    %c0_57 = arith.constant 0 : index
    %c0_58 = arith.constant 0 : index
    %62 = vector.load %arg13[%c2_56, %c0_57, %c0_58] : memref<10x18x4xf32, #tpu.memory_space<vmem>>, vector<8x16x4xf32>
    %63 = vector.shape_cast %62 : vector<8x16x4xf32> to vector<128x4xf32>
    %c6 = arith.constant 6 : index
    %c0_59 = arith.constant 0 : index
    %c0_60 = arith.constant 0 : index
    %64 = vector.load %arg8[%c6, %c0_59, %c0_60] : memref<9x4x4xf32, #tpu.memory_space<vmem>>, vector<1x4x4xf32>
    %65 = vector.shape_cast %64 : vector<1x4x4xf32> to vector<4x4xf32>
    %cst_61 = arith.constant dense<0.000000e+00> : vector<128x4xf32>
    %66 = tpu.matmul %63, %65, %cst_61 {dimension_numbers = #tpu.dot_dimension_numbers<[1], [0], [0], [1], [0, 0, 1, 1], [], []>} : vector<128x4xf32>, vector<4x4xf32>, vector<128x4xf32> -> vector<128x4xf32>
    %67 = arith.addf %61, %66 : vector<128x4xf32>
    %c2_62 = arith.constant 2 : index
    %c1_63 = arith.constant 1 : index
    %c0_64 = arith.constant 0 : index
    %68 = vector.load %arg13[%c2_62, %c1_63, %c0_64] : memref<10x18x4xf32, #tpu.memory_space<vmem>>, vector<8x16x4xf32>
    %69 = vector.shape_cast %68 : vector<8x16x4xf32> to vector<128x4xf32>
    %c7 = arith.constant 7 : index
    %c0_65 = arith.constant 0 : index
    %c0_66 = arith.constant 0 : index
    %70 = vector.load %arg8[%c7, %c0_65, %c0_66] : memref<9x4x4xf32, #tpu.memory_space<vmem>>, vector<1x4x4xf32>
    %71 = vector.shape_cast %70 : vector<1x4x4xf32> to vector<4x4xf32>
    %cst_67 = arith.constant dense<0.000000e+00> : vector<128x4xf32>
    %72 = tpu.matmul %69, %71, %cst_67 {dimension_numbers = #tpu.dot_dimension_numbers<[1], [0], [0], [1], [0, 0, 1, 1], [], []>} : vector<128x4xf32>, vector<4x4xf32>, vector<128x4xf32> -> vector<128x4xf32>
    %73 = arith.addf %67, %72 : vector<128x4xf32>
    %c2_68 = arith.constant 2 : index
    %c2_69 = arith.constant 2 : index
    %c0_70 = arith.constant 0 : index
    %74 = vector.load %arg13[%c2_68, %c2_69, %c0_70] : memref<10x18x4xf32, #tpu.memory_space<vmem>>, vector<8x16x4xf32>
    %75 = vector.shape_cast %74 : vector<8x16x4xf32> to vector<128x4xf32>
    %c8 = arith.constant 8 : index
    %c0_71 = arith.constant 0 : index
    %c0_72 = arith.constant 0 : index
    %76 = vector.load %arg8[%c8, %c0_71, %c0_72] : memref<9x4x4xf32, #tpu.memory_space<vmem>>, vector<1x4x4xf32>
    %77 = vector.shape_cast %76 : vector<1x4x4xf32> to vector<4x4xf32>
    %cst_73 = arith.constant dense<0.000000e+00> : vector<128x4xf32>
    %78 = tpu.matmul %75, %77, %cst_73 {dimension_numbers = #tpu.dot_dimension_numbers<[1], [0], [0], [1], [0, 0, 1, 1], [], []>} : vector<128x4xf32>, vector<4x4xf32>, vector<128x4xf32> -> vector<128x4xf32>
    %79 = arith.addf %73, %78 : vector<128x4xf32>
    %c0_74 = arith.constant 0 : index
    %c0_75 = arith.constant 0 : index
    %80 = vector.load %arg9[%c0_74, %c0_75] : memref<1x4xf32, #tpu.memory_space<vmem>>, vector<1x4xf32>
    %81 = vector.broadcast %80 : vector<1x4xf32> to vector<128x4xf32>
    %82 = arith.addf %79, %81 : vector<128x4xf32>
    %c0_76 = arith.constant 0 : index
    %c0_77 = arith.constant 0 : index
    %c0_78 = arith.constant 0 : index
    %c0_79 = arith.constant 0 : index
    %83 = vector.load %arg10[%c0_76, %c0_77, %c0_78, %c0_79] : memref<1x8x16x4xf32, #tpu.memory_space<vmem>>, vector<1x8x16x4xf32>
    %84 = vector.shape_cast %83 : vector<1x8x16x4xf32> to vector<8x16x4xf32>
    %85 = vector.shape_cast %84 : vector<8x16x4xf32> to vector<128x4xf32>
    %86 = arith.addf %82, %85 : vector<128x4xf32>
    %87 = vector.shape_cast %86 : vector<128x4xf32> to vector<8x16x4xf32>
    %c0_80 = arith.constant 0 : index
    %c0_81 = arith.constant 0 : index
    %c0_82 = arith.constant 0 : index
    %c0_83 = arith.constant 0 : index
    %88 = vector.load %arg11[%c0_80, %c0_81, %c0_82, %c0_83] : memref<1x8x16x4xf32, #tpu.memory_space<vmem>>, vector<1x8x16x4xf32>
    %89 = vector.shape_cast %88 : vector<1x8x16x4xf32> to vector<8x16x4xf32>
    %90 = vector.shape_cast %87 : vector<8x16x4xf32> to vector<1x8x16x4xf32>
    tpu.vector_store %arg11[%c0_80, %c0_81, %c0_82, %c0_83], %90 {strides = array<i32>} : memref<1x8x16x4xf32, #tpu.memory_space<vmem>>, vector<1x8x16x4xf32>,
    %cst_84 = arith.constant dense<0.000000e+00> : vector<4xf32>
    %91 = vector.multi_reduction <add>, %86, %cst_84 [0] : vector<128x4xf32> to vector<4xf32>
    %92 = vector.shape_cast %91 : vector<4xf32> to vector<1x4xf32>
    %c0_85 = arith.constant 0 : index
    %c0_86 = arith.constant 0 : index
    %c0_87 = arith.constant 0 : index
    %c0_88 = arith.constant 0 : index
    %93 = vector.load %arg12[%c0_85, %c0_86, %c0_87, %c0_88] : memref<1x1x2x4xf32, #tpu.memory_space<vmem>>, vector<1x1x1x4xf32>
    %94 = vector.shape_cast %93 : vector<1x1x1x4xf32> to vector<1x4xf32>
    %95 = vector.shape_cast %92 : vector<1x4xf32> to vector<1x1x1x4xf32>
    tpu.vector_store %arg12[%c0_85, %c0_86, %c0_87, %c0_88], %95 {strides = array<i32>} : memref<1x1x2x4xf32, #tpu.memory_space<vmem>>, vector<1x1x1x4xf32>,
    %96 = arith.mulf %86, %86 : vector<128x4xf32>
    %cst_89 = arith.constant dense<0.000000e+00> : vector<4xf32>
    %97 = vector.multi_reduction <add>, %96, %cst_89 [0] : vector<128x4xf32> to vector<4xf32>
    %98 = vector.shape_cast %97 : vector<4xf32> to vector<1x4xf32>
    %c0_90 = arith.constant 0 : index
    %c0_91 = arith.constant 0 : index
    %c1_92 = arith.constant 1 : index
    %c0_93 = arith.constant 0 : index
    %99 = vector.load %arg12[%c0_90, %c0_91, %c1_92, %c0_93] : memref<1x1x2x4xf32, #tpu.memory_space<vmem>>, vector<1x1x1x4xf32>
    %100 = vector.shape_cast %99 : vector<1x1x1x4xf32> to vector<1x4xf32>
    %101 = vector.shape_cast %98 : vector<1x4xf32> to vector<1x1x1x4xf32>
    tpu.vector_store %arg12[%c0_90, %c0_91, %c1_92, %c0_93], %101 {strides = array<i32>} : memref<1x1x2x4xf32, #tpu.memory_space<vmem>>, vector<1x1x1x4xf32>,
    return
  }
  func.func @transform_0(%arg0: i32, %arg1: i32) -> (i32, i32, i32, i32) {
    %c0_i32 = arith.constant 0 : i32
    %c0_i32_0 = arith.constant 0 : i32
    %c0_i32_1 = arith.constant 0 : i32
    return %arg0, %arg1, %c0_i32, %c0_i32_0 : i32, i32, i32, i32
  }
  func.func @transform_1(%arg0: i32, %arg1: i32) -> (i32, i32, i32, i32) {
    %c8_i32 = arith.constant 8 : i32
    %0 = arith.muli %arg1, %c8_i32 : i32
    %c1_i32 = arith.constant 1 : i32
    %1 = arith.subi %0, %c1_i32 : i32
    %c0_i32 = arith.constant 0 : i32
    %2 = arith.maxsi %1, %c0_i32 : i32
    %c0_i32_0 = arith.constant 0 : i32
    %c0_i32_1 = arith.constant 0 : i32
    %c0_i32_2 = arith.constant 0 : i32
    return %arg0, %2, %c0_i32_0, %c0_i32_1 : i32, i32, i32, i32
  }
  func.func @transform_2(%arg0: i32, %arg1: i32) -> (i32, i32, i32, i32) {
    %c1_i32 = arith.constant 1 : i32
    %0 = arith.addi %arg1, %c1_i32 : i32
    %c8_i32 = arith.constant 8 : i32
    %1 = arith.muli %0, %c8_i32 : i32
    %c15_i32 = arith.constant 15 : i32
    %2 = arith.minsi %1, %c15_i32 : i32
    %c0_i32 = arith.constant 0 : i32
    %c0_i32_0 = arith.constant 0 : i32
    %c0_i32_1 = arith.constant 0 : i32
    return %arg0, %2, %c0_i32, %c0_i32_0 : i32, i32, i32, i32
  }
  func.func @transform_3(%arg0: i32, %arg1: i32) -> (i32, i32) {
    %c0_i32 = arith.constant 0 : i32
    %c0_i32_0 = arith.constant 0 : i32
    %c0_i32_1 = arith.constant 0 : i32
    return %c0_i32, %c0_i32_0 : i32, i32
  }
  func.func @transform_4(%arg0: i32, %arg1: i32) -> (i32, i32) {
    %c0_i32 = arith.constant 0 : i32
    %c0_i32_0 = arith.constant 0 : i32
    %c0_i32_1 = arith.constant 0 : i32
    return %c0_i32, %c0_i32_0 : i32, i32
  }
  func.func @transform_5(%arg0: i32, %arg1: i32) -> (i32, i32) {
    %c0_i32 = arith.constant 0 : i32
    %c0_i32_0 = arith.constant 0 : i32
    %c0_i32_1 = arith.constant 0 : i32
    return %c0_i32, %c0_i32_0 : i32, i32
  }
  func.func @transform_6(%arg0: i32, %arg1: i32) -> (i32, i32, i32) {
    %c0_i32 = arith.constant 0 : i32
    %c0_i32_0 = arith.constant 0 : i32
    %c0_i32_1 = arith.constant 0 : i32
    %c0_i32_2 = arith.constant 0 : i32
    return %c0_i32, %c0_i32_0, %c0_i32_1 : i32, i32, i32
  }
  func.func @transform_7(%arg0: i32, %arg1: i32) -> (i32, i32) {
    %c0_i32 = arith.constant 0 : i32
    %c0_i32_0 = arith.constant 0 : i32
    %c0_i32_1 = arith.constant 0 : i32
    return %c0_i32, %c0_i32_0 : i32, i32
  }
  func.func @transform_8(%arg0: i32, %arg1: i32) -> (i32, i32, i32, i32) {
    %c0_i32 = arith.constant 0 : i32
    %c0_i32_0 = arith.constant 0 : i32
    %c0_i32_1 = arith.constant 0 : i32
    return %arg0, %arg1, %c0_i32, %c0_i32_0 : i32, i32, i32, i32
  }
  func.func @transform_9(%arg0: i32, %arg1: i32) -> (i32, i32, i32, i32) {
    %c0_i32 = arith.constant 0 : i32
    %c0_i32_0 = arith.constant 0 : i32
    %c0_i32_1 = arith.constant 0 : i32
    return %arg0, %arg1, %c0_i32, %c0_i32_0 : i32, i32, i32, i32
  }
  func.func @transform_10(%arg0: i32, %arg1: i32) -> (i32, i32, i32, i32) {
    %c0_i32 = arith.constant 0 : i32
    %c0_i32_0 = arith.constant 0 : i32
    %c0_i32_1 = arith.constant 0 : i32
    return %arg0, %arg1, %c0_i32, %c0_i32_0 : i32, i32, i32, i32
  }
}

module attributes {stable_mosaic.version = 11 : i64} {
  func.func @_bnact_pool_kernel(%arg0: i32, %arg1: i32, %arg2: memref<1x8x8x8xf32, #tpu.memory_space<vmem>>, %arg3: memref<1x8xf32, #tpu.memory_space<vmem>>, %arg4: memref<1x8xf32, #tpu.memory_space<vmem>>, %arg5: memref<1x1xf32, #tpu.memory_space<smem>>, %arg6: memref<1x8x8x8xf32, #tpu.memory_space<vmem>>, %arg7: memref<1x4x8x4xf32, #tpu.memory_space<vmem>>, %arg8: memref<1x4x8x4xi32, #tpu.memory_space<vmem>>) attributes {dimension_semantics = [#tpu.dimension_semantics<parallel>, #tpu.dimension_semantics<parallel>], iteration_bounds = array<i64: 2, 2>, scalar_prefetch = 0 : i64, scratch_operands = 0 : i64, tpu.core_type = #tpu.core_type<tc>, window_params = [{transform_indices = @transform_0, window_bounds = array<i64: 1, 8, 8, 8>}, {pipeline_mode = #tpu.pipeline_mode<synchronous>, transform_indices = @transform_1, window_bounds = array<i64: 1, 8>}, {pipeline_mode = #tpu.pipeline_mode<synchronous>, transform_indices = @transform_2, window_bounds = array<i64: 1, 8>}, {transform_indices = @transform_3, window_bounds = array<i64: 1, 1>}, {transform_indices = @transform_4, window_bounds = array<i64: 1, 8, 8, 8>}, {transform_indices = @transform_5, window_bounds = array<i64: 1, 4, 8, 4>}, {transform_indices = @transform_6, window_bounds = array<i64: 1, 4, 8, 4>}]} {
    %c0 = arith.constant 0 : index
    %c0_0 = arith.constant 0 : index
    %0 = memref.load %arg5[%c0, %c0_0] : memref<1x1xf32, #tpu.memory_space<smem>>
    %c0_1 = arith.constant 0 : index
    %c0_2 = arith.constant 0 : index
    %c0_3 = arith.constant 0 : index
    %c0_4 = arith.constant 0 : index
    %1 = vector.load %arg2[%c0_1, %c0_2, %c0_3, %c0_4] : memref<1x8x8x8xf32, #tpu.memory_space<vmem>>, vector<1x8x8x8xf32>
    %2 = vector.shape_cast %1 : vector<1x8x8x8xf32> to vector<8x8x8xf32>
    %c0_5 = arith.constant 0 : index
    %c0_6 = arith.constant 0 : index
    %3 = vector.load %arg3[%c0_5, %c0_6] : memref<1x8xf32, #tpu.memory_space<vmem>>, vector<1x8xf32>
    %4 = vector.shape_cast %3 : vector<1x8xf32> to vector<1x1x8xf32>
    %5 = vector.broadcast %4 : vector<1x1x8xf32> to vector<8x8x8xf32>
    %6 = arith.mulf %2, %5 : vector<8x8x8xf32>
    %c0_7 = arith.constant 0 : index
    %c0_8 = arith.constant 0 : index
    %7 = vector.load %arg4[%c0_7, %c0_8] : memref<1x8xf32, #tpu.memory_space<vmem>>, vector<1x8xf32>
    %8 = vector.shape_cast %7 : vector<1x8xf32> to vector<1x1x8xf32>
    %9 = vector.broadcast %8 : vector<1x1x8xf32> to vector<8x8x8xf32>
    %10 = arith.addf %6, %9 : vector<8x8x8xf32>
    %cst = arith.constant 0.000000e+00 : f32
    %11 = vector.broadcast %cst : f32 to vector<8x8x8xf32>
    %12 = arith.cmpf oge, %10, %11 : vector<8x8x8xf32>
    %13 = vector.broadcast %0 : f32 to vector<8x8x8xf32>
    %14 = arith.mulf %13, %10 : vector<8x8x8xf32>
    %15 = arith.select %12, %10, %14 : vector<8x8x8xi1>, vector<8x8x8xf32>
    %c0_9 = arith.constant 0 : index
    %c0_10 = arith.constant 0 : index
    %c0_11 = arith.constant 0 : index
    %c0_12 = arith.constant 0 : index
    %16 = vector.load %arg6[%c0_9, %c0_10, %c0_11, %c0_12] : memref<1x8x8x8xf32, #tpu.memory_space<vmem>>, vector<1x8x8x8xf32>
    %17 = vector.shape_cast %16 : vector<1x8x8x8xf32> to vector<8x8x8xf32>
    %18 = vector.shape_cast %15 : vector<8x8x8xf32> to vector<1x8x8x8xf32>
    tpu.vector_store %arg6[%c0_9, %c0_10, %c0_11, %c0_12], %18 {strides = array<i32>} : memref<1x8x8x8xf32, #tpu.memory_space<vmem>>, vector<1x8x8x8xf32>,
    %19 = vector.extract_strided_slice %15 {offsets = [0, 0, 0], sizes = [8, 8, 4], strides = [1, 1, 1]} : vector<8x8x8xf32> to vector<8x8x4xf32>
    %20 = vector.extract_strided_slice %15 {offsets = [0, 0, 4], sizes = [8, 8, 4], strides = [1, 1, 1]} : vector<8x8x8xf32> to vector<8x8x4xf32>
    %21 = vector.shape_cast %19 : vector<8x8x4xf32> to vector<4x2x8x4xf32>
    %22 = vector.shape_cast %20 : vector<8x8x4xf32> to vector<4x2x8x4xf32>
    %23 = vector.extract_strided_slice %21 {offsets = [0, 0, 0, 0], sizes = [4, 1, 8, 4], strides = [1, 1, 1, 1]} : vector<4x2x8x4xf32> to vector<4x1x8x4xf32>
    %24 = vector.shape_cast %23 : vector<4x1x8x4xf32> to vector<4x8x4xf32>
    %25 = vector.extract_strided_slice %21 {offsets = [0, 1, 0, 0], sizes = [4, 1, 8, 4], strides = [1, 1, 1, 1]} : vector<4x2x8x4xf32> to vector<4x1x8x4xf32>
    %26 = vector.shape_cast %25 : vector<4x1x8x4xf32> to vector<4x8x4xf32>
    %27 = vector.extract_strided_slice %22 {offsets = [0, 0, 0, 0], sizes = [4, 1, 8, 4], strides = [1, 1, 1, 1]} : vector<4x2x8x4xf32> to vector<4x1x8x4xf32>
    %28 = vector.shape_cast %27 : vector<4x1x8x4xf32> to vector<4x8x4xf32>
    %29 = vector.extract_strided_slice %22 {offsets = [0, 1, 0, 0], sizes = [4, 1, 8, 4], strides = [1, 1, 1, 1]} : vector<4x2x8x4xf32> to vector<4x1x8x4xf32>
    %30 = vector.shape_cast %29 : vector<4x1x8x4xf32> to vector<4x8x4xf32>
    %c0_i32 = arith.constant 0 : i32
    %31 = vector.broadcast %c0_i32 : i32 to vector<4x8x4xi32>
    %32 = arith.cmpf ogt, %28, %24 : vector<4x8x4xf32>
    %33 = arith.select %32, %28, %24 : vector<4x8x4xi1>, vector<4x8x4xf32>
    %c1_i32 = arith.constant 1 : i32
    %34 = vector.broadcast %c1_i32 : i32 to vector<4x8x4xi32>
    %35 = arith.select %32, %34, %31 : vector<4x8x4xi1>, vector<4x8x4xi32>
    %36 = arith.cmpf ogt, %26, %33 : vector<4x8x4xf32>
    %37 = arith.select %36, %26, %33 : vector<4x8x4xi1>, vector<4x8x4xf32>
    %c16_i32 = arith.constant 16 : i32
    %38 = vector.broadcast %c16_i32 : i32 to vector<4x8x4xi32>
    %39 = arith.select %36, %38, %35 : vector<4x8x4xi1>, vector<4x8x4xi32>
    %40 = arith.cmpf ogt, %30, %37 : vector<4x8x4xf32>
    %41 = arith.select %40, %30, %37 : vector<4x8x4xi1>, vector<4x8x4xf32>
    %c17_i32 = arith.constant 17 : i32
    %42 = vector.broadcast %c17_i32 : i32 to vector<4x8x4xi32>
    %43 = arith.select %40, %42, %39 : vector<4x8x4xi1>, vector<4x8x4xi32>
    %44 = tpu.iota {dimensions = array<i32: 0>} : vector<4x8x4xi32>
    %45 = tpu.iota {dimensions = array<i32: 1>} : vector<4x8x4xi32>
    %c8_i32 = arith.constant 8 : i32
    %46 = arith.muli %arg1, %c8_i32 : i32
    %c2_i32 = arith.constant 2 : i32
    %47 = vector.broadcast %c2_i32 : i32 to vector<4x8x4xi32>
    %48 = arith.muli %47, %44 : vector<4x8x4xi32>
    %49 = vector.broadcast %46 : i32 to vector<4x8x4xi32>
    %50 = arith.addi %49, %48 : vector<4x8x4xi32>
    %c16_i32_13 = arith.constant 16 : i32
    %51 = vector.broadcast %c16_i32_13 : i32 to vector<4x8x4xi32>
    %52 = arith.muli %50, %51 : vector<4x8x4xi32>
    %c2_i32_14 = arith.constant 2 : i32
    %53 = vector.broadcast %c2_i32_14 : i32 to vector<4x8x4xi32>
    %54 = arith.muli %53, %45 : vector<4x8x4xi32>
    %55 = arith.addi %52, %54 : vector<4x8x4xi32>
    %c0_15 = arith.constant 0 : index
    %c0_16 = arith.constant 0 : index
    %c0_17 = arith.constant 0 : index
    %c0_18 = arith.constant 0 : index
    %56 = vector.load %arg7[%c0_15, %c0_16, %c0_17, %c0_18] : memref<1x4x8x4xf32, #tpu.memory_space<vmem>>, vector<1x4x8x4xf32>
    %57 = vector.shape_cast %56 : vector<1x4x8x4xf32> to vector<4x8x4xf32>
    %58 = vector.shape_cast %41 : vector<4x8x4xf32> to vector<1x4x8x4xf32>
    tpu.vector_store %arg7[%c0_15, %c0_16, %c0_17, %c0_18], %58 {strides = array<i32>} : memref<1x4x8x4xf32, #tpu.memory_space<vmem>>, vector<1x4x8x4xf32>,
    %59 = arith.addi %55, %43 : vector<4x8x4xi32>
    %c0_19 = arith.constant 0 : index
    %c0_20 = arith.constant 0 : index
    %c0_21 = arith.constant 0 : index
    %c0_22 = arith.constant 0 : index
    %60 = vector.load %arg8[%c0_19, %c0_20, %c0_21, %c0_22] : memref<1x4x8x4xi32, #tpu.memory_space<vmem>>, vector<1x4x8x4xi32>
    %61 = vector.shape_cast %60 : vector<1x4x8x4xi32> to vector<4x8x4xi32>
    %62 = vector.shape_cast %59 : vector<4x8x4xi32> to vector<1x4x8x4xi32>
    tpu.vector_store %arg8[%c0_19, %c0_20, %c0_21, %c0_22], %62 {strides = array<i32>} : memref<1x4x8x4xi32, #tpu.memory_space<vmem>>, vector<1x4x8x4xi32>,
    return
  }
  func.func @transform_0(%arg0: i32, %arg1: i32) -> (i32, i32, i32, i32) {
    %c0_i32 = arith.constant 0 : i32
    %c0_i32_0 = arith.constant 0 : i32
    %c0_i32_1 = arith.constant 0 : i32
    return %arg0, %arg1, %c0_i32, %c0_i32_0 : i32, i32, i32, i32
  }
  func.func @transform_1(%arg0: i32, %arg1: i32) -> (i32, i32) {
    %c0_i32 = arith.constant 0 : i32
    %c0_i32_0 = arith.constant 0 : i32
    %c0_i32_1 = arith.constant 0 : i32
    return %c0_i32, %c0_i32_0 : i32, i32
  }
  func.func @transform_2(%arg0: i32, %arg1: i32) -> (i32, i32) {
    %c0_i32 = arith.constant 0 : i32
    %c0_i32_0 = arith.constant 0 : i32
    %c0_i32_1 = arith.constant 0 : i32
    return %c0_i32, %c0_i32_0 : i32, i32
  }
  func.func @transform_3(%arg0: i32, %arg1: i32) -> (i32, i32) {
    %c0_i32 = arith.constant 0 : i32
    %c0_i32_0 = arith.constant 0 : i32
    %c0_i32_1 = arith.constant 0 : i32
    return %c0_i32, %c0_i32_0 : i32, i32
  }
  func.func @transform_4(%arg0: i32, %arg1: i32) -> (i32, i32, i32, i32) {
    %c0_i32 = arith.constant 0 : i32
    %c0_i32_0 = arith.constant 0 : i32
    %c0_i32_1 = arith.constant 0 : i32
    return %arg0, %arg1, %c0_i32, %c0_i32_0 : i32, i32, i32, i32
  }
  func.func @transform_5(%arg0: i32, %arg1: i32) -> (i32, i32, i32, i32) {
    %c0_i32 = arith.constant 0 : i32
    %c0_i32_0 = arith.constant 0 : i32
    %c0_i32_1 = arith.constant 0 : i32
    return %arg0, %arg1, %c0_i32, %c0_i32_0 : i32, i32, i32, i32
  }
  func.func @transform_6(%arg0: i32, %arg1: i32) -> (i32, i32, i32, i32) {
    %c0_i32 = arith.constant 0 : i32
    %c0_i32_0 = arith.constant 0 : i32
    %c0_i32_1 = arith.constant 0 : i32
    return %arg0, %arg1, %c0_i32, %c0_i32_0 : i32, i32, i32, i32
  }
}

</mosaic_0001>

<llo_original>
// kernel: encoder_block.5
$region0: #{encoder_block.5}
  #allocation0 [shape = 'u32[]', space=smem, size = 0x4, offset = 0x4, fixed_abs, tag = 'smem constant byte address 0x4 - core index']
  #allocation1 [shape = 'u32[144,128]{1,0:T(1,128)}', space=vmem, size = 0x12000, scoped, tag = 'internal scratch']
  #allocation2 [shape = 'f32[1,1]{1,0:T(1,128)S(6)}', space=smem, size = 0x200, scoped, tag = 'scoped memory for encoder_block.5']
  %s0 = inlined_call_operand.vmem [shape: f32[2,16,8,8], index: 0, kind: input, shape index: {}]
  %s1 = inlined_call_operand.vmem [shape: f32[1,8], index: 1, kind: input, shape index: {}]
  %s2 = inlined_call_operand.vmem [shape: f32[1,8], index: 2, kind: input, shape index: {}]
  %s3 = inlined_call_operand.<no memory space> [shape: f32[1,1], index: 3, kind: input, shape index: {}]
  %s4 = inlined_call_operand.vmem [shape: f32[2,16,8,8], index: 4, kind: output, shape index: {0}]
  %s5 = inlined_call_operand.vmem [shape: f32[2,8,8,4], index: 5, kind: output, shape index: {1}]
  %s6 = inlined_call_operand.vmem [shape: s32[2,8,8,4], index: 6, kind: output, shape index: {2}]
  %7 = xla_tuple %s4, %s5, %s6
  %s8 = sld [smem:[#allocation0]]
  $region65: #{encoder_block.5} parent=0
    _
  %s10 = ssub.s32 1, %s8
  %s11 = scalar_select 0, %s10, %s8
  %12 = sst [smem:[#allocation2]] %s3
  loop: start=0, step=1, limit=6
  $region2: #{encoder_block.5} parent=0 // loop_pre_header
    _
  $region3: #{encoder_block.5} parent=0 // loop_header
    %s14 = sphi 0, %s18
    %p15 = scmp.ge.s32.totalorder %s14, 6
    %s21 = sphi 0, %s33
    %s22 = sphi 0, %s29
    %s23 = sphi 0, %s21
    %s24 = sphi 0, %s22
    %s25 = sphi 0, %s23
    %s26 = sphi 0, %s24
    %s38 = sphi 0, %s40
    %s41 = sphi 0, %s38
    %s42 = sphi 0, %s41
    %s58 = sphi 0, %s42
    %s62 = sphi 0, %s62
    %s64 = sphi 0, %s62
    %s65 = sphi 0, %s64
    %s79 = sphi 0, %s65
    %s83 = sphi 0, %s83
    %s85 = sphi 0, %s83
    %s86 = sphi 0, %s85
    %s100 = sphi 0, %s86
    %s104 = sphi 0, %s104
    %s106 = sphi 0, %s104
    %s107 = sphi 0, %s106
    %s121 = sphi 0, %s107
    %s129 = sphi 0, %s131
    %s132 = sphi 0, %s129
    %s133 = sphi 0, %s132
    %s149 = sphi 0, %s133
    %s157 = sphi 0, %s159
    %s160 = sphi 0, %s157
    %s161 = sphi 0, %s160
    %s177 = sphi 0, %s161
    %s185 = sphi 0, %s187
    %s188 = sphi 0, %s185
    %s189 = sphi 0, %s188
    %s205 = sphi 0, %s189
  $region4: #{encoder_block.5} parent=0 // loop_header_branch
    %17 = sbr.rel (%p15) target = $region8
  $region5: #{encoder_block.5} parent=0 // loop_body
    %s19 = ssub.s32 %s14, 1
    %s20 = ssub.s32 %s14, 2
    %s27 = sadd.s32 1, %s22
    %p28 = scmp.ge.s32.totalorder %s27, 2
    %s29 = scalar_select %p28, 0, %s27
    %s30 = sadd.s32 1, %s21
    %s31 = scalar_select %p28, %s30, %s21
    %p32 = scmp.ge.s32.totalorder %s31, 2
    %s33 = scalar_select %p32, 0, %s31
    %s34 = ssub.s32 %s21, %s33
    %s35 = ssub.s32 %s22, %s29
    %s36 = sor.u32 %s34, %s35
    %p37 = scmp.eq.s32.totalorder %s36, 0
    %s39 = sadd.s32 %s38, 1
    %s40 = scalar_select %p37, %s38, %s39
    %p43 = pneg %p37
    %p44 = scmp.eq.s32.totalorder %s14, 3
    %p45 = por %p43, %p44
    %p46 = scmp.ne.s32.totalorder %s38, %s41
    %p47 = scmp.eq.s32.totalorder %s14, 0
    %p48 = por %p46, %p47
    %p49 = scmp.ne.s32.totalorder %s38, %s41
    %p50 = scmp.eq.s32.totalorder %s19, 3
    %p51 = por %p49, %p50
    %p52 = scmp.ne.s32.totalorder %s41, %s42
    %p53 = scmp.eq.s32.totalorder %s19, 0
    %p54 = por %p52, %p53
    %p55 = scmp.ne.s32.totalorder %s41, %s42
    %p56 = scmp.eq.s32.totalorder %s20, 3
    %p57 = por %p55, %p56
    %p59 = scmp.ne.s32.totalorder %s42, %s58
    %p60 = scmp.eq.s32.totalorder %s20, 0
    %p61 = por %p59, %p60
    %s63 = sadd.s32 %s62, 1
    %p66 = scmp.eq.s32.totalorder %s14, 3
    %p67 = scmp.ne.s32.totalorder %s62, %s64
    %p68 = scmp.eq.s32.totalorder %s14, 0
    %p69 = por %p67, %p68
    %p70 = scmp.ne.s32.totalorder %s62, %s64
    %p71 = scmp.eq.s32.totalorder %s19, 3
    %p72 = por %p70, %p71
    %p73 = scmp.ne.s32.totalorder %s64, %s65
    %p74 = scmp.eq.s32.totalorder %s19, 0
    %p75 = por %p73, %p74
    %p76 = scmp.ne.s32.totalorder %s64, %s65
    %p77 = scmp.eq.s32.totalorder %s20, 3
    %p78 = por %p76, %p77
    %p80 = scmp.ne.s32.totalorder %s65, %s79
    %p81 = scmp.eq.s32.totalorder %s20, 0
    %p82 = por %p80, %p81
    %s84 = sadd.s32 %s83, 1
    %p87 = scmp.eq.s32.totalorder %s14, 3
    %p88 = scmp.ne.s32.totalorder %s83, %s85
    %p89 = scmp.eq.s32.totalorder %s14, 0
    %p90 = por %p88, %p89
    %p91 = scmp.ne.s32.totalorder %s83, %s85
    %p92 = scmp.eq.s32.totalorder %s19, 3
    %p93 = por %p91, %p92
    %p94 = scmp.ne.s32.totalorder %s85, %s86
    %p95 = scmp.eq.s32.totalorder %s19, 0
    %p96 = por %p94, %p95
    %p97 = scmp.ne.s32.totalorder %s85, %s86
    %p98 = scmp.eq.s32.totalorder %s20, 3
    %p99 = por %p97, %p98
    %p101 = scmp.ne.s32.totalorder %s86, %s100
    %p102 = scmp.eq.s32.totalorder %s20, 0
    %p103 = por %p101, %p102
    %s105 = sadd.s32 %s104, 1
    %p108 = scmp.eq.s32.totalorder %s14, 3
    %p109 = scmp.ne.s32.totalorder %s104, %s106
    %p110 = scmp.eq.s32.totalorder %s14, 0
    %p111 = por %p109, %p110
    %p112 = scmp.ne.s32.totalorder %s104, %s106
    %p113 = scmp.eq.s32.totalorder %s19, 3
    %p114 = por %p112, %p113
    %p115 = scmp.ne.s32.totalorder %s106, %s107
    %p116 = scmp.eq.s32.totalorder %s19, 0
    %p117 = por %p115, %p116
    %p118 = scmp.ne.s32.totalorder %s106, %s107
    %p119 = scmp.eq.s32.totalorder %s20, 3
    %p120 = por %p118, %p119
    %p122 = scmp.ne.s32.totalorder %s107, %s121
    %p123 = scmp.eq.s32.totalorder %s20, 0
    %p124 = por %p122, %p123
    %s125 = ssub.s32 %s21, %s33
    %s126 = ssub.s32 %s22, %s29
    %s127 = sor.u32 %s125, %s126
    %p128 = scmp.eq.s32.totalorder %s127, 0
    %s130 = sadd.s32 %s129, 1
    %s131 = scalar_select %p128, %s129, %s130
    %p134 = pneg %p128
    %p135 = scmp.eq.s32.totalorder %s14, 3
    %p136 = por %p134, %p135
    %p137 = scmp.ne.s32.totalorder %s129, %s132
    %p138 = scmp.eq.s32.totalorder %s14, 0
    %p139 = por %p137, %p138
    %p140 = scmp.ne.s32.totalorder %s129, %s132
    %p141 = scmp.eq.s32.totalorder %s19, 3
    %p142 = por %p140, %p141
    %p143 = scmp.ne.s32.totalorder %s132, %s133
    %p144 = scmp.eq.s32.totalorder %s19, 0
    %p145 = por %p143, %p144
    %p146 = scmp.ne.s32.totalorder %s132, %s133
    %p147 = scmp.eq.s32.totalorder %s20, 3
    %p148 = por %p146, %p147
    %p150 = scmp.ne.s32.totalorder %s133, %s149
    %p151 = scmp.eq.s32.totalorder %s20, 0
    %p152 = por %p150, %p151
    %s153 = ssub.s32 %s21, %s33
    %s154 = ssub.s32 %s22, %s29
    %s155 = sor.u32 %s153, %s154
    %p156 = scmp.eq.s32.totalorder %s155, 0
    %s158 = sadd.s32 %s157, 1
    %s159 = scalar_select %p156, %s157, %s158
    %p162 = pneg %p156
    %p163 = scmp.eq.s32.totalorder %s14, 3
    %p164 = por %p162, %p163
    %p165 = scmp.ne.s32.totalorder %s157, %s160
    %p166 = scmp.eq.s32.totalorder %s14, 0
    %p167 = por %p165, %p166
    %p168 = scmp.ne.s32.totalorder %s157, %s160
    %p169 = scmp.eq.s32.totalorder %s19, 3
    %p170 = por %p168, %p169
    %p171 = scmp.ne.s32.totalorder %s160, %s161
    %p172 = scmp.eq.s32.totalorder %s19, 0
    %p173 = por %p171, %p172
    %p174 = scmp.ne.s32.totalorder %s160, %s161
    %p175 = scmp.eq.s32.totalorder %s20, 3
    %p176 = por %p174, %p175
    %p178 = scmp.ne.s32.totalorder %s161, %s177
    %p179 = scmp.eq.s32.totalorder %s20, 0
    %p180 = por %p178, %p179
    %s181 = ssub.s32 %s21, %s33
    %s182 = ssub.s32 %s22, %s29
    %s183 = sor.u32 %s181, %s182
    %p184 = scmp.eq.s32.totalorder %s183, 0
    %s186 = sadd.s32 %s185, 1
    %s187 = scalar_select %p184, %s185, %s186
    %p190 = pneg %p184
    %p191 = scmp.eq.s32.totalorder %s14, 3
    %p192 = por %p190, %p191
    %p193 = scmp.ne.s32.totalorder %s185, %s188
    %p194 = scmp.eq.s32.totalorder %s14, 0
    %p195 = por %p193, %p194
    %p196 = scmp.ne.s32.totalorder %s185, %s188
    %p197 = scmp.eq.s32.totalorder %s19, 3
    %p198 = por %p196, %p197
    %p199 = scmp.ne.s32.totalorder %s188, %s189
    %p200 = scmp.eq.s32.totalorder %s19, 0
    %p201 = por %p199, %p200
    %p202 = scmp.ne.s32.totalorder %s188, %s189
    %p203 = scmp.eq.s32.totalorder %s20, 3
    %p204 = por %p202, %p203
    %p206 = scmp.ne.s32.totalorder %s189, %s205
    %p207 = scmp.eq.s32.totalorder %s20, 0
    %p208 = por %p206, %p207
    %p209 = scmp.le.s32.totalorder 1, %s14
    %p210 = scmp.lt.s32.totalorder %s14, 5
    %p211 = pnand %p209, %p210
    %p212 = pneg %p211
    // Predicated region
    $region9: #{encoder_block.5} parent=5 // pred_check
      _
    $region10: #{encoder_block.5} parent=5 // pred_check_branch
      %214 = sbr.rel (%p211) target = $region12
    $region11: #{encoder_block.5} parent=5 // pred_region
      %s215 = ssub.s32 %s14, 1
      // Predicated region
      $region13: #{encoder_block.5} parent=11 // pred_check
        %p216 = pneg %p75
      $region14: #{encoder_block.5} parent=11 // pred_check_branch
        %218 = sbr.rel (%p216) target = $region16
      $region15: #{encoder_block.5} parent=11 // pred_region
        _
      $region16: #{encoder_block.5} parent=11 // pred_fallthru
        _
      // Predicated region
      $region17: #{encoder_block.5} parent=11 // pred_check
        %p219 = pneg %p96
      $region18: #{encoder_block.5} parent=11 // pred_check_branch
        %221 = sbr.rel (%p219) target = $region20
      $region19: #{encoder_block.5} parent=11 // pred_region
        _
      $region20: #{encoder_block.5} parent=11 // pred_fallthru
        _
      // Predicated region
      $region21: #{encoder_block.5} parent=11 // pred_check
        %p222 = pneg %p117
      $region22: #{encoder_block.5} parent=11 // pred_check_branch
        %224 = sbr.rel (%p222) target = $region24
      $region23: #{encoder_block.5} parent=11 // pred_region
        _
      $region24: #{encoder_block.5} parent=11 // pred_fallthru
        _
    $region12: #{encoder_block.5} parent=5 // pred_fallthru
      _
    %p225 = scmp.lt.s32.totalorder %s14, 4
    // Predicated region
    $region25: #{encoder_block.5} parent=5 // pred_check
      %p226 = pneg %p225
    $region26: #{encoder_block.5} parent=5 // pred_check_branch
      %228 = sbr.rel (%p226) target = $region28
    $region27: #{encoder_block.5} parent=5 // pred_region
      // Predicated region
      $region29: #{encoder_block.5} parent=27 // pred_check
        %p229 = pneg %p48
      $region30: #{encoder_block.5} parent=27 // pred_check_branch
        %231 = sbr.rel (%p229) target = $region32
      $region31: #{encoder_block.5} parent=27 // pred_region
        %s232 = smul.u32 8, %s22
        %p233 = scmp.lt.s32.totalorder %s21, 1
        %s234 = scalar_select %p233, %s21, 1
        %p235 = scmp.lt.s32.totalorder %s232, 15
        %s236 = scalar_select %p235, %s232, 15
        %s237 = smul.addr %s234, 16
        %s238 = sadd.s32 %s236, %s237
        %s239 = smul.addr %s238, 8
        %s240 = scalar_lea.vmem %s0, %s239
        %s241 = smul.u32 8, %s22
      $region32: #{encoder_block.5} parent=27 // pred_fallthru
        _
    $region28: #{encoder_block.5} parent=5 // pred_fallthru
      _
    %p242 = scmp.le.s32.totalorder 1, %s14
    %p243 = scmp.lt.s32.totalorder %s14, 5
    %p244 = pnand %p242, %p243
    %p245 = pneg %p244
    // Predicated region
    $region33: #{encoder_block.5} parent=5 // pred_check
      _
    $region34: #{encoder_block.5} parent=5 // pred_check_branch
      %247 = sbr.rel (%p244) target = $region36
    $region35: #{encoder_block.5} parent=5 // pred_region
      %s248 = ssub.s32 %s14, 1
      %s249 = smul.u32 8, %s24
      %p250 = scmp.lt.s32.totalorder %s23, 1
      %s251 = scalar_select %p250, %s23, 1
      %p252 = scmp.lt.s32.totalorder %s249, 15
      %s253 = scalar_select %p252, %s249, 15
      %s254 = smul.addr %s251, 16
      %s255 = sadd.s32 %s253, %s254
      %s256 = smul.addr %s255, 8
      %s257 = scalar_lea.vmem %s0, %s256
      %p258 = pneg %p54
      %p259 = pneg %p51
      %p260 = pneg %p75
      %p261 = pneg %p72
      %p262 = pneg %p96
      %p263 = pneg %p93
      %p264 = pneg %p117
      %p265 = pneg %p114
      %p266 = pneg %p145
      %p267 = pneg %p142
      %s268 = smul.u32 8, %s24
      %p269 = scmp.lt.s32.totalorder %s23, 1
      %s270 = scalar_select %p269, %s23, 1
      %p271 = scmp.lt.s32.totalorder %s268, 15
      %s272 = scalar_select %p271, %s268, 15
      %s273 = smul.addr %s270, 16
      %s274 = sadd.s32 %s272, %s273
      %s275 = smul.addr %s274, 8
      %s276 = scalar_lea.vmem %s4, %s275
      %p277 = pneg %p173
      %p278 = pneg %p170
      %s279 = smul.u32 4, %s24
      %p280 = scmp.lt.s32.totalorder %s23, 1
      %s281 = scalar_select %p280, %s23, 1
      %p282 = scmp.lt.s32.totalorder %s279, 7
      %s283 = scalar_select %p282, %s279, 7
      %s284 = smul.addr %s281, 8
      %s285 = sadd.s32 %s283, %s284
      %s286 = smul.addr %s285, 8
      %s287 = scalar_lea.vmem %s5, %s286
      %p288 = pneg %p201
      %p289 = pneg %p198
      %s290 = smul.u32 4, %s24
      %p291 = scmp.lt.s32.totalorder %s23, 1
      %s292 = scalar_select %p291, %s23, 1
      %p293 = scmp.lt.s32.totalorder %s290, 7
      %s294 = scalar_select %p293, %s290, 7
      %s295 = smul.addr %s292, 8
      %s296 = sadd.s32 %s294, %s295
      %s297 = smul.addr %s296, 8
      %s298 = scalar_lea.vmem %s6, %s297
      %s299 = smul.u32 8, %s24
      %p300 = scmp.lt.s32.totalorder %s23, 1
      %s301 = scalar_select %p300, %s23, 1
      %p302 = scmp.lt.s32.totalorder %s299, 15
      %s303 = scalar_select %p302, %s299, 15
      %s304 = smul.addr %s301, 16
      %s305 = sadd.s32 %s303, %s304
      %s306 = smul.addr %s305, 8
      %s307 = scalar_lea.vmem %s0, %s306
      %s308 = smul.u32 8, %s24
      %s309 = smul.u32 8, %s24
      %p310 = scmp.lt.s32.totalorder %s23, 1
      %s311 = scalar_select %p310, %s23, 1
      %p312 = scmp.lt.s32.totalorder %s309, 15
      %s313 = scalar_select %p312, %s309, 15
      %s314 = smul.addr %s311, 16
      %s315 = sadd.s32 %s313, %s314
      %s316 = smul.addr %s315, 8
      %s317 = scalar_lea.vmem %s4, %s316
      %s318 = smul.u32 8, %s24
      %s319 = smul.u32 4, %s24
      %p320 = scmp.lt.s32.totalorder %s23, 1
      %s321 = scalar_select %p320, %s23, 1
      %p322 = scmp.lt.s32.totalorder %s319, 7
      %s323 = scalar_select %p322, %s319, 7
      %s324 = smul.addr %s321, 8
      %s325 = sadd.s32 %s323, %s324
      %s326 = smul.addr %s325, 8
      %s327 = scalar_lea.vmem %s5, %s326
      %s328 = smul.u32 4, %s24
      %s329 = smul.u32 4, %s24
      %p330 = scmp.lt.s32.totalorder %s23, 1
      %s331 = scalar_select %p330, %s23, 1
      %p332 = scmp.lt.s32.totalorder %s329, 7
      %s333 = scalar_select %p332, %s329, 7
      %s334 = smul.addr %s331, 8
      %s335 = sadd.s32 %s333, %s334
      %s336 = smul.addr %s335, 8
      %s337 = scalar_lea.vmem %s6, %s336
      %s338 = smul.u32 4, %s24
      %s339 = sld [smem:[#allocation2]]
      %v340 = vld [vmem:[%s307] sm:$0xff]
      %v341 = vld [vmem:[%s307 + $0x8] sm:$0xff]
      %v342 = vld [vmem:[%s307 + $0x10] sm:$0xff]
      %v343 = vld [vmem:[%s307 + $0x18] sm:$0xff]
      %v344 = vld [vmem:[%s307 + $0x20] sm:$0xff]
      %v345 = vld [vmem:[%s307 + $0x28] sm:$0xff]
      %v346 = vld [vmem:[%s307 + $0x30] sm:$0xff]
      %v347 = vld [vmem:[%s307 + $0x38] sm:$0xff]
      %v348 = vld [vmem:[%s1] sm:$0x1]
      %v350 = vlaneseq
      %v351 = vshrl.u32 %v350, 7
      %v352 = vsub.s32 0, %v351
      %v353 = vrot.slane %v348, %v352
      %v355 = vmul.f32 %v340, %v353
      %v356 = vmul.f32 %v341, %v353
      %v357 = vmul.f32 %v342, %v353
      %v358 = vmul.f32 %v343, %v353
      %v359 = vmul.f32 %v344, %v353
      %v360 = vmul.f32 %v345, %v353
      %v361 = vmul.f32 %v346, %v353
      %v362 = vmul.f32 %v347, %v353
      %v363 = vld [vmem:[%s2] sm:$0x1]
      %v365 = vlaneseq
      %v366 = vshrl.u32 %v365, 7
      %v367 = vsub.s32 0, %v366
      %v368 = vrot.slane %v363, %v367
      %v370 = vadd.f32 %v355, %v368
      %v371 = vadd.f32 %v356, %v368
      %v372 = vadd.f32 %v357, %v368
      %v373 = vadd.f32 %v358, %v368
      %v374 = vadd.f32 %v359, %v368
      %v375 = vadd.f32 %v360, %v368
      %v376 = vadd.f32 %v361, %v368
      %v377 = vadd.f32 %v362, %v368
      %vm378 = vcmp.ge.f32.partialorder %v370, 0.0
      %vm379 = vcmp.ge.f32.partialorder %v371, 0.0
      %vm380 = vcmp.ge.f32.partialorder %v372, 0.0
      %vm381 = vcmp.ge.f32.partialorder %v373, 0.0
      %vm382 = vcmp.ge.f32.partialorder %v374, 0.0
      %vm383 = vcmp.ge.f32.partialorder %v375, 0.0
      %vm384 = vcmp.ge.f32.partialorder %v376, 0.0
      %vm385 = vcmp.ge.f32.partialorder %v377, 0.0
      %v386 = vstv %s339
      %v387 = vmul.f32 %v386, %v370
      %v388 = vmul.f32 %v386, %v371
      %v389 = vmul.f32 %v386, %v372
      %v390 = vmul.f32 %v386, %v373
      %v391 = vmul.f32 %v386, %v374
      %v392 = vmul.f32 %v386, %v375
      %v393 = vmul.f32 %v386, %v376
      %v394 = vmul.f32 %v386, %v377
      %v395 = vsel %vm378, %v370, %v387
      %v396 = vsel %vm379, %v371, %v388
      %v397 = vsel %vm380, %v372, %v389
      %v398 = vsel %vm381, %v373, %v390
      %v399 = vsel %vm382, %v374, %v391
      %v400 = vsel %vm383, %v375, %v392
      %v401 = vsel %vm384, %v376, %v393
      %v402 = vsel %vm385, %v377, %v394
      %vm403 = vcmask 64512
      %404 = vst.msk [vmem:[%s317] sm:$0xff] %vm403, %v395
      %405 = vst.msk [vmem:[%s317 + $0x8] sm:$0xff] %vm403, %v396
      %406 = vst.msk [vmem:[%s317 + $0x10] sm:$0xff] %vm403, %v397
      %407 = vst.msk [vmem:[%s317 + $0x18] sm:$0xff] %vm403, %v398
      %408 = vst.msk [vmem:[%s317 + $0x20] sm:$0xff] %vm403, %v399
      %409 = vst.msk [vmem:[%s317 + $0x28] sm:$0xff] %vm403, %v400
      %410 = vst.msk [vmem:[%s317 + $0x30] sm:$0xff] %vm403, %v401
      %411 = vst.msk [vmem:[%s317 + $0x38] sm:$0xff] %vm403, %v402
      %416 = vrot.lane.b32.xlu0 %v395, 4
      %v417 = vpop.permute.xlu0 %416
      %418 = vrot.lane.b32.xlu0 %v397, 4
      %v419 = vpop.permute.xlu0 %418
      %420 = vrot.lane.b32.xlu0 %v399, 4
      %v421 = vpop.permute.xlu0 %420
      %422 = vrot.lane.b32.xlu0 %v401, 4
      %v423 = vpop.permute.xlu0 %422
      %vm428 = vcmp.gt.f32.partialorder %v395, %v417
      %vm429 = vcmp.gt.f32.partialorder %v397, %v419
      %vm430 = vcmp.gt.f32.partialorder %v399, %v421
      %vm431 = vcmp.gt.f32.partialorder %v401, %v423
      %v432 = vsel %vm428, %v395, %v417
      %v433 = vsel %vm429, %v397, %v419
      %v434 = vsel %vm430, %v399, %v421
      %v435 = vsel %vm431, %v401, %v423
      %v436 = vsel %vm428, 1, 0
      %v437 = vsel %vm429, 1, 0
      %v438 = vsel %vm430, 1, 0
      %v439 = vsel %vm431, 1, 0
      %444 = vrot.lane.b32.xlu0 %v432, 124
      %v445 = vpop.permute.xlu0 %444
      %446 = vrot.lane.b32.xlu0 %v433, 124
      %v447 = vpop.permute.xlu0 %446
      %448 = vrot.lane.b32.xlu0 %v434, 124
      %v449 = vpop.permute.xlu0 %448
      %450 = vrot.lane.b32.xlu0 %v435, 124
      %v451 = vpop.permute.xlu0 %450
      %vm456 = vcmp.gt.f32.partialorder %v396, %v445
      %vm457 = vcmp.gt.f32.partialorder %v398, %v447
      %vm458 = vcmp.gt.f32.partialorder %v400, %v449
      %vm459 = vcmp.gt.f32.partialorder %v402, %v451
      %v460 = vsel %vm456, %v396, %v445
      %v461 = vsel %vm457, %v398, %v447
      %v462 = vsel %vm458, %v400, %v449
      %v463 = vsel %vm459, %v402, %v451
      %464 = vrot.lane.b32.xlu0 %v436, 124
      %v465 = vpop.permute.xlu0 %464
      %466 = vrot.lane.b32.xlu0 %v437, 124
      %v467 = vpop.permute.xlu0 %466
      %468 = vrot.lane.b32.xlu0 %v438, 124
      %v469 = vpop.permute.xlu0 %468
      %470 = vrot.lane.b32.xlu0 %v439, 124
      %v471 = vpop.permute.xlu0 %470
      %v472 = vsel %vm456, 16, %v465
      %v473 = vsel %vm457, 16, %v467
      %v474 = vsel %vm458, 16, %v469
      %v475 = vsel %vm459, 16, %v471
      %480 = vrot.lane.b32.xlu0 %v460, 4
      %v481 = vpop.permute.xlu0 %480
      %482 = vrot.lane.b32.xlu0 %v461, 4
      %v483 = vpop.permute.xlu0 %482
      %484 = vrot.lane.b32.xlu0 %v462, 4
      %v485 = vpop.permute.xlu0 %484
      %486 = vrot.lane.b32.xlu0 %v463, 4
      %v487 = vpop.permute.xlu0 %486
      %vm492 = vcmp.gt.f32.partialorder %v396, %v481
      %vm493 = vcmp.gt.f32.partialorder %v398, %v483
      %vm494 = vcmp.gt.f32.partialorder %v400, %v485
      %vm495 = vcmp.gt.f32.partialorder %v402, %v487
      %v496 = vsel %vm492, %v396, %v481
      %v497 = vsel %vm493, %v398, %v483
      %v498 = vsel %vm494, %v400, %v485
      %v499 = vsel %vm495, %v402, %v487
      %500 = vrot.lane.b32.xlu0 %v472, 4
      %v501 = vpop.permute.xlu0 %500
      %502 = vrot.lane.b32.xlu0 %v473, 4
      %v503 = vpop.permute.xlu0 %502
      %504 = vrot.lane.b32.xlu0 %v474, 4
      %v505 = vpop.permute.xlu0 %504
      %506 = vrot.lane.b32.xlu0 %v475, 4
      %v507 = vpop.permute.xlu0 %506
      %v508 = vsel %vm492, 17, %v501
      %v509 = vsel %vm493, 17, %v503
      %v510 = vsel %vm494, 17, %v505
      %v511 = vsel %vm495, 17, %v507
      %v512 = vlaneseq
      %v513 = vshrl.u32 %v512, 7
      %s514 = smul.u32 %s24, 8
      %v515 = vstv %s514
      %v516 = vadd.s32 %v515, 2
      %v517 = vadd.s32 %v515, 4
      %v518 = vadd.s32 %v515, 6
      %v519 = vmul.u32 %v515, 16
      %v520 = vmul.u32 %v516, 16
      %v521 = vmul.u32 %v517, 16
      %v522 = vmul.u32 %v518, 16
      %v523 = vmul.u32 %v513, 2
      %v524 = vadd.s32 %v519, %v523
      %v525 = vadd.s32 %v520, %v523
      %v526 = vadd.s32 %v521, %v523
      %v527 = vadd.s32 %v522, %v523
      %532 = vrot.lane.b32.xlu0 %v496, 124
      %v533 = vpop.permute.xlu0 %532
      %534 = vrot.lane.b32.xlu0 %v497, 124
      %v535 = vpop.permute.xlu0 %534
      %536 = vrot.lane.b32.xlu0 %v498, 124
      %v537 = vpop.permute.xlu0 %536
      %538 = vrot.lane.b32.xlu0 %v499, 124
      %v539 = vpop.permute.xlu0 %538
      %vm544 = vcmask 31744
      %545 = vst.msk [vmem:[%s327] sm:$0xff] %vm544, %v533
      %546 = vst.msk [vmem:[%s327 + $0x8] sm:$0xff] %vm544, %v535
      %547 = vst.msk [vmem:[%s327 + $0x10] sm:$0xff] %vm544, %v537
      %548 = vst.msk [vmem:[%s327 + $0x18] sm:$0xff] %vm544, %v539
      %v549 = vadd.s32 %v524, %v508
      %v550 = vadd.s32 %v525, %v509
      %v551 = vadd.s32 %v526, %v510
      %v552 = vadd.s32 %v527, %v511
      %553 = vrot.lane.b32.xlu0 %v549, 124
      %v554 = vpop.permute.xlu0 %553
      %555 = vrot.lane.b32.xlu0 %v550, 124
      %v556 = vpop.permute.xlu0 %555
      %557 = vrot.lane.b32.xlu0 %v551, 124
      %v558 = vpop.permute.xlu0 %557
      %559 = vrot.lane.b32.xlu0 %v552, 124
      %v560 = vpop.permute.xlu0 %559
      %561 = vst.msk [vmem:[%s337] sm:$0xff] %vm544, %v554
      %562 = vst.msk [vmem:[%s337 + $0x8] sm:$0xff] %vm544, %v556
      %563 = vst.msk [vmem:[%s337 + $0x10] sm:$0xff] %vm544, %v558
      %564 = vst.msk [vmem:[%s337 + $0x18] sm:$0xff] %vm544, %v560
      %s565 = smul.u32 8, %s24
      %p566 = scmp.lt.s32.totalorder %s23, 1
      %s567 = scalar_select %p566, %s23, 1
      %p568 = scmp.lt.s32.totalorder %s565, 15
      %s569 = scalar_select %p568, %s565, 15
      %s570 = smul.addr %s567, 16
      %s571 = sadd.s32 %s569, %s570
      %s572 = smul.addr %s571, 8
      %s573 = scalar_lea.vmem %s4, %s572
      %s574 = smul.u32 4, %s24
      %p575 = scmp.lt.s32.totalorder %s23, 1
      %s576 = scalar_select %p575, %s23, 1
      %p577 = scmp.lt.s32.totalorder %s574, 7
      %s578 = scalar_select %p577, %s574, 7
      %s579 = smul.addr %s576, 8
      %s580 = sadd.s32 %s578, %s579
      %s581 = smul.addr %s580, 8
      %s582 = scalar_lea.vmem %s5, %s581
      %s583 = smul.u32 4, %s24
      %p584 = scmp.lt.s32.totalorder %s23, 1
      %s585 = scalar_select %p584, %s23, 1
      %p586 = scmp.lt.s32.totalorder %s583, 7
      %s587 = scalar_select %p586, %s583, 7
      %s588 = smul.addr %s585, 8
      %s589 = sadd.s32 %s587, %s588
      %s590 = smul.addr %s589, 8
      %s591 = scalar_lea.vmem %s6, %s590
      // Predicated region
      $region37: #{encoder_block.5} parent=35 // pred_check
        %p592 = pneg %p142
      $region38: #{encoder_block.5} parent=35 // pred_check_branch
        %594 = sbr.rel (%p592) target = $region40
      $region39: #{encoder_block.5} parent=35 // pred_region
        %s595 = smul.u32 8, %s24
      $region40: #{encoder_block.5} parent=35 // pred_fallthru
        _
      // Predicated region
      $region41: #{encoder_block.5} parent=35 // pred_check
        %p596 = pneg %p170
      $region42: #{encoder_block.5} parent=35 // pred_check_branch
        %598 = sbr.rel (%p596) target = $region44
      $region43: #{encoder_block.5} parent=35 // pred_region
        %s599 = smul.u32 4, %s24
      $region44: #{encoder_block.5} parent=35 // pred_fallthru
        _
      // Predicated region
      $region45: #{encoder_block.5} parent=35 // pred_check
        %p600 = pneg %p198
      $region46: #{encoder_block.5} parent=35 // pred_check_branch
        %602 = sbr.rel (%p600) target = $region48
      $region47: #{encoder_block.5} parent=35 // pred_region
        %s603 = smul.u32 4, %s24
      $region48: #{encoder_block.5} parent=35 // pred_fallthru
        _
    $region36: #{encoder_block.5} parent=5 // pred_fallthru
      _
    %p604 = scmp.le.s32.totalorder 2, %s14
    // Predicated region
    $region49: #{encoder_block.5} parent=5 // pred_check
      %p605 = pneg %p604
    $region50: #{encoder_block.5} parent=5 // pred_check_branch
      %607 = sbr.rel (%p605) target = $region52
    $region51: #{encoder_block.5} parent=5 // pred_region
      %s608 = ssub.s32 %s14, 2
      // Predicated region
      $region53: #{encoder_block.5} parent=51 // pred_check
        %p609 = pneg %p148
      $region54: #{encoder_block.5} parent=51 // pred_check_branch
        %611 = sbr.rel (%p609) target = $region56
      $region55: #{encoder_block.5} parent=51 // pred_region
        %s612 = smul.u32 8, %s26
        %p613 = scmp.lt.s32.totalorder %s25, 1
        %s614 = scalar_select %p613, %s25, 1
        %p615 = scmp.lt.s32.totalorder %s612, 15
        %s616 = scalar_select %p615, %s612, 15
        %s617 = smul.addr %s614, 16
        %s618 = sadd.s32 %s616, %s617
        %s619 = smul.addr %s618, 8
        %s620 = scalar_lea.vmem %s4, %s619
      $region56: #{encoder_block.5} parent=51 // pred_fallthru
        _
      // Predicated region
      $region57: #{encoder_block.5} parent=51 // pred_check
        %p621 = pneg %p176
      $region58: #{encoder_block.5} parent=51 // pred_check_branch
        %623 = sbr.rel (%p621) target = $region60
      $region59: #{encoder_block.5} parent=51 // pred_region
        %s624 = smul.u32 4, %s26
        %p625 = scmp.lt.s32.totalorder %s25, 1
        %s626 = scalar_select %p625, %s25, 1
        %p627 = scmp.lt.s32.totalorder %s624, 7
        %s628 = scalar_select %p627, %s624, 7
        %s629 = smul.addr %s626, 8
        %s630 = sadd.s32 %s628, %s629
        %s631 = smul.addr %s630, 8
        %s632 = scalar_lea.vmem %s5, %s631
      $region60: #{encoder_block.5} parent=51 // pred_fallthru
        _
      // Predicated region
      $region61: #{encoder_block.5} parent=51 // pred_check
        %p633 = pneg %p204
      $region62: #{encoder_block.5} parent=51 // pred_check_branch
        %635 = sbr.rel (%p633) target = $region64
      $region63: #{encoder_block.5} parent=51 // pred_region
        %s636 = smul.u32 4, %s26
        %p637 = scmp.lt.s32.totalorder %s25, 1
        %s638 = scalar_select %p637, %s25, 1
        %p639 = scmp.lt.s32.totalorder %s636, 7
        %s640 = scalar_select %p639, %s636, 7
        %s641 = smul.addr %s638, 8
        %s642 = sadd.s32 %s640, %s641
        %s643 = smul.addr %s642, 8
        %s644 = scalar_lea.vmem %s6, %s643
      $region64: #{encoder_block.5} parent=51 // pred_fallthru
        _
    $region52: #{encoder_block.5} parent=5 // pred_fallthru
      _
  $region6: #{encoder_block.5} parent=0 // loop_footer
    %s18 = sadd.s32 1, %s14
  $region7: #{encoder_block.5} parent=0 // loop_footer_branch
    %13 = sbr.rel target = $region3
  $region8: #{encoder_block.5} parent=0 // loop_exit
    _

// kernel: encoder_block.3
$region0: #{encoder_block.3}
  #allocation0 [shape = 'u32[]', space=smem, size = 0x4, offset = 0x4, fixed_abs, tag = 'smem constant byte address 0x4 - core index']
  #allocation1 [shape = 'u32[144,128]{1,0:T(1,128)}', space=vmem, size = 0x12000, scoped, tag = 'internal scratch']
  #allocation2 [shape = 'f32[10,18,4]{2,1,0:T(8,128)}', space=vmem, size = 0x1e000, scoped, tag = 'scratch operand']
  %s0 = inlined_call_operand.vmem [shape: f32[2,16,16,4], index: 0, kind: input, shape index: {}, may-alias: {0,1,2}]
  %s1 = inlined_call_operand.vmem [shape: f32[2,16,16,4], index: 1, kind: input, shape index: {}, may-alias: {0,1,2}]
  %s2 = inlined_call_operand.vmem [shape: f32[2,16,16,4], index: 2, kind: input, shape index: {}, may-alias: {0,1,2}]
  %s3 = inlined_call_operand.vmem [shape: f32[9,4,4], index: 3, kind: input, shape index: {}]
  %s4 = inlined_call_operand.vmem [shape: f32[1,4], index: 4, kind: input, shape index: {}]
  %s5 = inlined_call_operand.vmem [shape: f32[2,16,16,4], index: 5, kind: output, shape index: {0}]
  %s6 = inlined_call_operand.vmem [shape: f32[2,2,2,4], index: 6, kind: output, shape index: {1}]
  %7 = xla_tuple %s5, %s6
  %s8 = sld [smem:[#allocation0]]
  $region69: #{encoder_block.3} parent=0
    _
  %s10 = ssub.s32 1, %s8
  %s11 = scalar_select 0, %s10, %s8
  loop: start=0, step=1, limit=6
  $region2: #{encoder_block.3} parent=0 // loop_pre_header
    _
  $region3: #{encoder_block.3} parent=0 // loop_header
    %s13 = sphi 0, %s17
    %p14 = scmp.ge.s32.totalorder %s13, 6
    %s20 = sphi 0, %s32
    %s21 = sphi 0, %s28
    %s22 = sphi 0, %s20
    %s23 = sphi 0, %s21
    %s24 = sphi 0, %s22
    %s25 = sphi 0, %s23
    %s37 = sphi 0, %s39
    %s40 = sphi 0, %s37
    %s41 = sphi 0, %s40
    %s57 = sphi 0, %s41
    %s73 = sphi 0, %s75
    %s76 = sphi 0, %s73
    %s77 = sphi 0, %s76
    %s93 = sphi 0, %s77
    %s109 = sphi 0, %s111
    %s112 = sphi 0, %s109
    %s113 = sphi 0, %s112
    %s129 = sphi 0, %s113
    %s133 = sphi 0, %s133
    %s135 = sphi 0, %s133
    %s136 = sphi 0, %s135
    %s150 = sphi 0, %s136
    %s154 = sphi 0, %s154
    %s156 = sphi 0, %s154
    %s157 = sphi 0, %s156
    %s171 = sphi 0, %s157
    %s179 = sphi 0, %s181
    %s182 = sphi 0, %s179
    %s183 = sphi 0, %s182
    %s199 = sphi 0, %s183
    %s207 = sphi 0, %s209
    %s210 = sphi 0, %s207
    %s211 = sphi 0, %s210
    %s227 = sphi 0, %s211
  $region4: #{encoder_block.3} parent=0 // loop_header_branch
    %16 = sbr.rel (%p14) target = $region8
  $region5: #{encoder_block.3} parent=0 // loop_body
    %s18 = ssub.s32 %s13, 1
    %s19 = ssub.s32 %s13, 2
    %s26 = sadd.s32 1, %s21
    %p27 = scmp.ge.s32.totalorder %s26, 2
    %s28 = scalar_select %p27, 0, %s26
    %s29 = sadd.s32 1, %s20
    %s30 = scalar_select %p27, %s29, %s20
    %p31 = scmp.ge.s32.totalorder %s30, 2
    %s32 = scalar_select %p31, 0, %s30
    %s33 = ssub.s32 %s20, %s32
    %s34 = ssub.s32 %s21, %s28
    %s35 = sor.u32 %s33, %s34
    %p36 = scmp.eq.s32.totalorder %s35, 0
    %s38 = sadd.s32 %s37, 1
    %s39 = scalar_select %p36, %s37, %s38
    %p42 = pneg %p36
    %p43 = scmp.eq.s32.totalorder %s13, 3
    %p44 = por %p42, %p43
    %p45 = scmp.ne.s32.totalorder %s37, %s40
    %p46 = scmp.eq.s32.totalorder %s13, 0
    %p47 = por %p45, %p46
    %p48 = scmp.ne.s32.totalorder %s37, %s40
    %p49 = scmp.eq.s32.totalorder %s18, 3
    %p50 = por %p48, %p49
    %p51 = scmp.ne.s32.totalorder %s40, %s41
    %p52 = scmp.eq.s32.totalorder %s18, 0
    %p53 = por %p51, %p52
    %p54 = scmp.ne.s32.totalorder %s40, %s41
    %p55 = scmp.eq.s32.totalorder %s19, 3
    %p56 = por %p54, %p55
    %p58 = scmp.ne.s32.totalorder %s41, %s57
    %p59 = scmp.eq.s32.totalorder %s19, 0
    %p60 = por %p58, %p59
    %s61 = smul.u32 %s21, 8
    %s62 = ssub.s32 %s61, 1
    %p63 = scmp.gt.s32.totalorder %s62, 0
    %s64 = scalar_select %p63, %s62, 0
    %s65 = smul.u32 %s28, 8
    %s66 = ssub.s32 %s65, 1
    %p67 = scmp.gt.s32.totalorder %s66, 0
    %s68 = scalar_select %p67, %s66, 0
    %s69 = ssub.s32 %s20, %s32
    %s70 = ssub.s32 %s64, %s68
    %s71 = sor.u32 %s69, %s70
    %p72 = scmp.eq.s32.totalorder %s71, 0
    %s74 = sadd.s32 %s73, 1
    %s75 = scalar_select %p72, %s73, %s74
    %p78 = pneg %p72
    %p79 = scmp.eq.s32.totalorder %s13, 3
    %p80 = por %p78, %p79
    %p81 = scmp.ne.s32.totalorder %s73, %s76
    %p82 = scmp.eq.s32.totalorder %s13, 0
    %p83 = por %p81, %p82
    %p84 = scmp.ne.s32.totalorder %s73, %s76
    %p85 = scmp.eq.s32.totalorder %s18, 3
    %p86 = por %p84, %p85
    %p87 = scmp.ne.s32.totalorder %s76, %s77
    %p88 = scmp.eq.s32.totalorder %s18, 0
    %p89 = por %p87, %p88
    %p90 = scmp.ne.s32.totalorder %s76, %s77
    %p91 = scmp.eq.s32.totalorder %s19, 3
    %p92 = por %p90, %p91
    %p94 = scmp.ne.s32.totalorder %s77, %s93
    %p95 = scmp.eq.s32.totalorder %s19, 0
    %p96 = por %p94, %p95
    %s97 = sadd.s32 %s21, 1
    %s98 = smul.u32 %s97, 8
    %p99 = scmp.lt.s32.totalorder %s98, 15
    %s100 = scalar_select %p99, %s98, 15
    %s101 = sadd.s32 %s28, 1
    %s102 = smul.u32 %s101, 8
    %p103 = scmp.lt.s32.totalorder %s102, 15
    %s104 = scalar_select %p103, %s102, 15
    %s105 = ssub.s32 %s20, %s32
    %s106 = ssub.s32 %s100, %s104
    %s107 = sor.u32 %s105, %s106
    %p108 = scmp.eq.s32.totalorder %s107, 0
    %s110 = sadd.s32 %s109, 1
    %s111 = scalar_select %p108, %s109, %s110
    %p114 = pneg %p108
    %p115 = scmp.eq.s32.totalorder %s13, 3
    %p116 = por %p114, %p115
    %p117 = scmp.ne.s32.totalorder %s109, %s112
    %p118 = scmp.eq.s32.totalorder %s13, 0
    %p119 = por %p117, %p118
    %p120 = scmp.ne.s32.totalorder %s109, %s112
    %p121 = scmp.eq.s32.totalorder %s18, 3
    %p122 = por %p120, %p121
    %p123 = scmp.ne.s32.totalorder %s112, %s113
    %p124 = scmp.eq.s32.totalorder %s18, 0
    %p125 = por %p123, %p124
    %p126 = scmp.ne.s32.totalorder %s112, %s113
    %p127 = scmp.eq.s32.totalorder %s19, 3
    %p128 = por %p126, %p127
    %p130 = scmp.ne.s32.totalorder %s113, %s129
    %p131 = scmp.eq.s32.totalorder %s19, 0
    %p132 = por %p130, %p131
    %s134 = sadd.s32 %s133, 1
    %p137 = scmp.eq.s32.totalorder %s13, 3
    %p138 = scmp.ne.s32.totalorder %s133, %s135
    %p139 = scmp.eq.s32.totalorder %s13, 0
    %p140 = por %p138, %p139
    %p141 = scmp.ne.s32.totalorder %s133, %s135
    %p142 = scmp.eq.s32.totalorder %s18, 3
    %p143 = por %p141, %p142
    %p144 = scmp.ne.s32.totalorder %s135, %s136
    %p145 = scmp.eq.s32.totalorder %s18, 0
    %p146 = por %p144, %p145
    %p147 = scmp.ne.s32.totalorder %s135, %s136
    %p148 = scmp.eq.s32.totalorder %s19, 3
    %p149 = por %p147, %p148
    %p151 = scmp.ne.s32.totalorder %s136, %s150
    %p152 = scmp.eq.s32.totalorder %s19, 0
    %p153 = por %p151, %p152
    %s155 = sadd.s32 %s154, 1
    %p158 = scmp.eq.s32.totalorder %s13, 3
    %p159 = scmp.ne.s32.totalorder %s154, %s156
    %p160 = scmp.eq.s32.totalorder %s13, 0
    %p161 = por %p159, %p160
    %p162 = scmp.ne.s32.totalorder %s154, %s156
    %p163 = scmp.eq.s32.totalorder %s18, 3
    %p164 = por %p162, %p163
    %p165 = scmp.ne.s32.totalorder %s156, %s157
    %p166 = scmp.eq.s32.totalorder %s18, 0
    %p167 = por %p165, %p166
    %p168 = scmp.ne.s32.totalorder %s156, %s157
    %p169 = scmp.eq.s32.totalorder %s19, 3
    %p170 = por %p168, %p169
    %p172 = scmp.ne.s32.totalorder %s157, %s171
    %p173 = scmp.eq.s32.totalorder %s19, 0
    %p174 = por %p172, %p173
    %s175 = ssub.s32 %s20, %s32
    %s176 = ssub.s32 %s21, %s28
    %s177 = sor.u32 %s175, %s176
    %p178 = scmp.eq.s32.totalorder %s177, 0
    %s180 = sadd.s32 %s179, 1
    %s181 = scalar_select %p178, %s179, %s180
    %p184 = pneg %p178
    %p185 = scmp.eq.s32.totalorder %s13, 3
    %p186 = por %p184, %p185
    %p187 = scmp.ne.s32.totalorder %s179, %s182
    %p188 = scmp.eq.s32.totalorder %s13, 0
    %p189 = por %p187, %p188
    %p190 = scmp.ne.s32.totalorder %s179, %s182
    %p191 = scmp.eq.s32.totalorder %s18, 3
    %p192 = por %p190, %p191
    %p193 = scmp.ne.s32.totalorder %s182, %s183
    %p194 = scmp.eq.s32.totalorder %s18, 0
    %p195 = por %p193, %p194
    %p196 = scmp.ne.s32.totalorder %s182, %s183
    %p197 = scmp.eq.s32.totalorder %s19, 3
    %p198 = por %p196, %p197
    %p200 = scmp.ne.s32.totalorder %s183, %s199
    %p201 = scmp.eq.s32.totalorder %s19, 0
    %p202 = por %p200, %p201
    %s203 = ssub.s32 %s20, %s32
    %s204 = ssub.s32 %s21, %s28
    %s205 = sor.u32 %s203, %s204
    %p206 = scmp.eq.s32.totalorder %s205, 0
    %s208 = sadd.s32 %s207, 1
    %s209 = scalar_select %p206, %s207, %s208
    %p212 = pneg %p206
    %p213 = scmp.eq.s32.totalorder %s13, 3
    %p214 = por %p212, %p213
    %p215 = scmp.ne.s32.totalorder %s207, %s210
    %p216 = scmp.eq.s32.totalorder %s13, 0
    %p217 = por %p215, %p216
    %p218 = scmp.ne.s32.totalorder %s207, %s210
    %p219 = scmp.eq.s32.totalorder %s18, 3
    %p220 = por %p218, %p219
    %p221 = scmp.ne.s32.totalorder %s210, %s211
    %p222 = scmp.eq.s32.totalorder %s18, 0
    %p223 = por %p221, %p222
    %p224 = scmp.ne.s32.totalorder %s210, %s211
    %p225 = scmp.eq.s32.totalorder %s19, 3
    %p226 = por %p224, %p225
    %p228 = scmp.ne.s32.totalorder %s211, %s227
    %p229 = scmp.eq.s32.totalorder %s19, 0
    %p230 = por %p228, %p229
    %p231 = scmp.le.s32.totalorder 1, %s13
    %p232 = scmp.lt.s32.totalorder %s13, 5
    %p233 = pnand %p231, %p232
    %p234 = pneg %p233
    // Predicated region
    $region9: #{encoder_block.3} parent=5 // pred_check
      _
    $region10: #{encoder_block.3} parent=5 // pred_check_branch
      %236 = sbr.rel (%p233) target = $region12
    $region11: #{encoder_block.3} parent=5 // pred_region
      %s237 = ssub.s32 %s13, 1
      // Predicated region
      $region13: #{encoder_block.3} parent=11 // pred_check
        %p238 = pneg %p146
      $region14: #{encoder_block.3} parent=11 // pred_check_branch
        %240 = sbr.rel (%p238) target = $region16
      $region15: #{encoder_block.3} parent=11 // pred_region
        _
      $region16: #{encoder_block.3} parent=11 // pred_fallthru
        _
      // Predicated region
      $region17: #{encoder_block.3} parent=11 // pred_check
        %p241 = pneg %p167
      $region18: #{encoder_block.3} parent=11 // pred_check_branch
        %243 = sbr.rel (%p241) target = $region20
      $region19: #{encoder_block.3} parent=11 // pred_region
        _
      $region20: #{encoder_block.3} parent=11 // pred_fallthru
        _
    $region12: #{encoder_block.3} parent=5 // pred_fallthru
      _
    %p244 = scmp.lt.s32.totalorder %s13, 4
    // Predicated region
    $region21: #{encoder_block.3} parent=5 // pred_check
      %p245 = pneg %p244
    $region22: #{encoder_block.3} parent=5 // pred_check_branch
      %247 = sbr.rel (%p245) target = $region24
    $region23: #{encoder_block.3} parent=5 // pred_region
      // Predicated region
      $region25: #{encoder_block.3} parent=23 // pred_check
        %p248 = pneg %p47
      $region26: #{encoder_block.3} parent=23 // pred_check_branch
        %250 = sbr.rel (%p248) target = $region28
      $region27: #{encoder_block.3} parent=23 // pred_region
        %s251 = smul.u32 8, %s21
        %p252 = scmp.lt.s32.totalorder %s20, 1
        %s253 = scalar_select %p252, %s20, 1
        %p254 = scmp.lt.s32.totalorder %s251, 15
        %s255 = scalar_select %p254, %s251, 15
        %s256 = smul.addr %s255, 2
        %s257 = smul.addr %s253, 32
        %s258 = sadd.s32 %s256, %s257
        %s259 = smul.addr %s258, 8
        %s260 = scalar_lea.vmem %s0, %s259
        %s261 = smul.u32 8, %s21
      $region28: #{encoder_block.3} parent=23 // pred_fallthru
        _
      // Predicated region
      $region29: #{encoder_block.3} parent=23 // pred_check
        %p262 = pneg %p83
      $region30: #{encoder_block.3} parent=23 // pred_check_branch
        %264 = sbr.rel (%p262) target = $region32
      $region31: #{encoder_block.3} parent=23 // pred_region
        %s265 = smul.u32 %s21, 8
        %s266 = ssub.s32 %s265, 1
        %p267 = scmp.gt.s32.totalorder %s266, 0
        %s268 = scalar_select %p267, %s266, 0
        %p269 = scmp.lt.s32.totalorder %s20, 1
        %s270 = scalar_select %p269, %s20, 1
        %p271 = scmp.lt.s32.totalorder %s268, 15
        %s272 = scalar_select %p271, %s268, 15
        %s273 = smul.addr %s272, 2
        %s274 = smul.addr %s270, 32
        %s275 = sadd.s32 %s273, %s274
        %s276 = smul.addr %s275, 8
        %s277 = scalar_lea.vmem %s1, %s276
        %s278 = smul.u32 %s21, 8
        %s279 = ssub.s32 %s278, 1
        %p280 = scmp.gt.s32.totalorder %s279, 0
        %s281 = scalar_select %p280, %s279, 0
      $region32: #{encoder_block.3} parent=23 // pred_fallthru
        _
      // Predicated region
      $region33: #{encoder_block.3} parent=23 // pred_check
        %p282 = pneg %p119
      $region34: #{encoder_block.3} parent=23 // pred_check_branch
        %284 = sbr.rel (%p282) target = $region36
      $region35: #{encoder_block.3} parent=23 // pred_region
        %s285 = sadd.s32 %s21, 1
        %s286 = smul.u32 %s285, 8
        %p287 = scmp.lt.s32.totalorder %s286, 15
        %s288 = scalar_select %p287, %s286, 15
        %p289 = scmp.lt.s32.totalorder %s20, 1
        %s290 = scalar_select %p289, %s20, 1
        %p291 = scmp.lt.s32.totalorder %s288, 15
        %s292 = scalar_select %p291, %s288, 15
        %s293 = smul.addr %s292, 2
        %s294 = smul.addr %s290, 32
        %s295 = sadd.s32 %s293, %s294
        %s296 = smul.addr %s295, 8
        %s297 = scalar_lea.vmem %s2, %s296
        %s298 = sadd.s32 %s21, 1
        %s299 = smul.u32 %s298, 8
        %p300 = scmp.lt.s32.totalorder %s299, 15
        %s301 = scalar_select %p300, %s299, 15
      $region36: #{encoder_block.3} parent=23 // pred_fallthru
        _
    $region24: #{encoder_block.3} parent=5 // pred_fallthru
      _
    %p302 = scmp.le.s32.totalorder 1, %s13
    %p303 = scmp.lt.s32.totalorder %s13, 5
    %p304 = pnand %p302, %p303
    %p305 = pneg %p304
    // Predicated region
    $region37: #{encoder_block.3} parent=5 // pred_check
      _
    $region38: #{encoder_block.3} parent=5 // pred_check_branch
      %307 = sbr.rel (%p304) target = $region40
    $region39: #{encoder_block.3} parent=5 // pred_region
      %s308 = ssub.s32 %s13, 1
      %s309 = smul.u32 8, %s23
      %p310 = scmp.lt.s32.totalorder %s22, 1
      %s311 = scalar_select %p310, %s22, 1
      %p312 = scmp.lt.s32.totalorder %s309, 15
      %s313 = scalar_select %p312, %s309, 15
      %s314 = smul.addr %s313, 2
      %s315 = smul.addr %s311, 32
      %s316 = sadd.s32 %s314, %s315
      %s317 = smul.addr %s316, 8
      %s318 = scalar_lea.vmem %s0, %s317
      %p319 = pneg %p53
      %p320 = pneg %p50
      %s321 = smul.u32 %s23, 8
      %s322 = ssub.s32 %s321, 1
      %p323 = scmp.gt.s32.totalorder %s322, 0
      %s324 = scalar_select %p323, %s322, 0
      %p325 = scmp.lt.s32.totalorder %s22, 1
      %s326 = scalar_select %p325, %s22, 1
      %p327 = scmp.lt.s32.totalorder %s324, 15
      %s328 = scalar_select %p327, %s324, 15
      %s329 = smul.addr %s328, 2
      %s330 = smul.addr %s326, 32
      %s331 = sadd.s32 %s329, %s330
      %s332 = smul.addr %s331, 8
      %s333 = scalar_lea.vmem %s1, %s332
      %p334 = pneg %p89
      %p335 = pneg %p86
      %s336 = sadd.s32 %s23, 1
      %s337 = smul.u32 %s336, 8
      %p338 = scmp.lt.s32.totalorder %s337, 15
      %s339 = scalar_select %p338, %s337, 15
      %p340 = scmp.lt.s32.totalorder %s22, 1
      %s341 = scalar_select %p340, %s22, 1
      %p342 = scmp.lt.s32.totalorder %s339, 15
      %s343 = scalar_select %p342, %s339, 15
      %s344 = smul.addr %s343, 2
      %s345 = smul.addr %s341, 32
      %s346 = sadd.s32 %s344, %s345
      %s347 = smul.addr %s346, 8
      %s348 = scalar_lea.vmem %s2, %s347
      %p349 = pneg %p125
      %p350 = pneg %p122
      %p351 = pneg %p146
      %p352 = pneg %p143
      %p353 = pneg %p167
      %p354 = pneg %p164
      %p355 = pneg %p195
      %p356 = pneg %p192
      %s357 = smul.u32 8, %s23
      %p358 = scmp.lt.s32.totalorder %s22, 1
      %s359 = scalar_select %p358, %s22, 1
      %p360 = scmp.lt.s32.totalorder %s357, 15
      %s361 = scalar_select %p360, %s357, 15
      %s362 = smul.addr %s361, 2
      %s363 = smul.addr %s359, 32
      %s364 = sadd.s32 %s362, %s363
      %s365 = smul.addr %s364, 8
      %s366 = scalar_lea.vmem %s5, %s365
      %p367 = pneg %p223
      %p368 = pneg %p220
      %p369 = scmp.lt.s32.totalorder %s22, 1
      %s370 = scalar_select %p369, %s22, 1
      %p371 = scmp.lt.s32.totalorder %s23, 1
      %s372 = scalar_select %p371, %s23, 1
      %s373 = smul.addr %s370, 2
      %s374 = sadd.s32 %s372, %s373
      %s375 = smul.addr %s374, 2
      %s376 = scalar_lea.vmem %s6, %s375
      %s377 = smul.u32 8, %s23
      %p378 = scmp.lt.s32.totalorder %s22, 1
      %s379 = scalar_select %p378, %s22, 1
      %p380 = scmp.lt.s32.totalorder %s377, 15
      %s381 = scalar_select %p380, %s377, 15
      %s382 = smul.addr %s381, 2
      %s383 = smul.addr %s379, 32
      %s384 = sadd.s32 %s382, %s383
      %s385 = smul.addr %s384, 8
      %s386 = scalar_lea.vmem %s0, %s385
      %s387 = smul.u32 8, %s23
      %s388 = smul.u32 %s23, 8
      %s389 = ssub.s32 %s388, 1
      %p390 = scmp.gt.s32.totalorder %s389, 0
      %s391 = scalar_select %p390, %s389, 0
      %p392 = scmp.lt.s32.totalorder %s22, 1
      %s393 = scalar_select %p392, %s22, 1
      %p394 = scmp.lt.s32.totalorder %s391, 15
      %s395 = scalar_select %p394, %s391, 15
      %s396 = smul.addr %s395, 2
      %s397 = smul.addr %s393, 32
      %s398 = sadd.s32 %s396, %s397
      %s399 = smul.addr %s398, 8
      %s400 = scalar_lea.vmem %s1, %s399
      %s401 = smul.u32 %s23, 8
      %s402 = ssub.s32 %s401, 1
      %p403 = scmp.gt.s32.totalorder %s402, 0
      %s404 = scalar_select %p403, %s402, 0
      %s405 = sadd.s32 %s23, 1
      %s406 = smul.u32 %s405, 8
      %p407 = scmp.lt.s32.totalorder %s406, 15
      %s408 = scalar_select %p407, %s406, 15
      %p409 = scmp.lt.s32.totalorder %s22, 1
      %s410 = scalar_select %p409, %s22, 1
      %p411 = scmp.lt.s32.totalorder %s408, 15
      %s412 = scalar_select %p411, %s408, 15
      %s413 = smul.addr %s412, 2
      %s414 = smul.addr %s410, 32
      %s415 = sadd.s32 %s413, %s414
      %s416 = smul.addr %s415, 8
      %s417 = scalar_lea.vmem %s2, %s416
      %s418 = sadd.s32 %s23, 1
      %s419 = smul.u32 %s418, 8
      %p420 = scmp.lt.s32.totalorder %s419, 15
      %s421 = scalar_select %p420, %s419, 15
      %s422 = smul.u32 8, %s23
      %p423 = scmp.lt.s32.totalorder %s22, 1
      %s424 = scalar_select %p423, %s22, 1
      %p425 = scmp.lt.s32.totalorder %s422, 15
      %s426 = scalar_select %p425, %s422, 15
      %s427 = smul.addr %s426, 2
      %s428 = smul.addr %s424, 32
      %s429 = sadd.s32 %s427, %s428
      %s430 = smul.addr %s429, 8
      %s431 = scalar_lea.vmem %s5, %s430
      %s432 = smul.u32 8, %s23
      %p433 = scmp.lt.s32.totalorder %s22, 1
      %s434 = scalar_select %p433, %s22, 1
      %p435 = scmp.lt.s32.totalorder %s23, 1
      %s436 = scalar_select %p435, %s23, 1
      %s437 = smul.addr %s434, 2
      %s438 = sadd.s32 %s436, %s437
      %s439 = smul.addr %s438, 2
      %s440 = scalar_lea.vmem %s6, %s439
      %vm441 = vcmask 31744
      %442 = vst.msk [vmem:[#allocation2] sm:$0xff] %vm441, 0.0
      %443 = vst.msk [vmem:[#allocation2 + $0x8] sm:$0xff] %vm441, 0.0
      %vm444 = vcmask 25600
      %445 = vst.msk [vmem:[#allocation2 + $0x10] sm:$0x3] %vm444, 0.0
      %446 = vst.msk [vmem:[#allocation2 + $0x18] sm:$0xff] %vm441, 0.0
      %447 = vst.msk [vmem:[#allocation2 + $0x20] sm:$0xff] %vm441, 0.0
      %448 = vst.msk [vmem:[#allocation2 + $0x28] sm:$0x3] %vm444, 0.0
      %449 = vst.msk [vmem:[#allocation2 + $0x30] sm:$0xff] %vm441, 0.0
      %450 = vst.msk [vmem:[#allocation2 + $0x38] sm:$0xff] %vm441, 0.0
      %451 = vst.msk [vmem:[#allocation2 + $0x40] sm:$0x3] %vm444, 0.0
      %452 = vst.msk [vmem:[#allocation2 + $0x48] sm:$0xff] %vm441, 0.0
      %453 = vst.msk [vmem:[#allocation2 + $0x50] sm:$0xff] %vm441, 0.0
      %454 = vst.msk [vmem:[#allocation2 + $0x58] sm:$0x3] %vm444, 0.0
      %455 = vst.msk [vmem:[#allocation2 + $0x60] sm:$0xff] %vm441, 0.0
      %456 = vst.msk [vmem:[#allocation2 + $0x68] sm:$0xff] %vm441, 0.0
      %457 = vst.msk [vmem:[#allocation2 + $0x70] sm:$0x3] %vm444, 0.0
      %458 = vst.msk [vmem:[#allocation2 + $0x78] sm:$0xff] %vm441, 0.0
      %459 = vst.msk [vmem:[#allocation2 + $0x80] sm:$0xff] %vm441, 0.0
      %460 = vst.msk [vmem:[#allocation2 + $0x88] sm:$0x3] %vm444, 0.0
      %461 = vst.msk [vmem:[#allocation2 + $0x90] sm:$0xff] %vm441, 0.0
      %462 = vst.msk [vmem:[#allocation2 + $0x98] sm:$0xff] %vm441, 0.0
      %463 = vst.msk [vmem:[#allocation2 + $0xa0] sm:$0x3] %vm444, 0.0
      %464 = vst.msk [vmem:[#allocation2 + $0xa8] sm:$0xff] %vm441, 0.0
      %465 = vst.msk [vmem:[#allocation2 + $0xb0] sm:$0xff] %vm441, 0.0
      %466 = vst.msk [vmem:[#allocation2 + $0xb8] sm:$0x3] %vm444, 0.0
      %467 = vst.msk [vmem:[#allocation2 + $0xc0] sm:$0xff] %vm441, 0.0
      %468 = vst.msk [vmem:[#allocation2 + $0xc8] sm:$0xff] %vm441, 0.0
      %469 = vst.msk [vmem:[#allocation2 + $0xd0] sm:$0x3] %vm444, 0.0
      %470 = vst.msk [vmem:[#allocation2 + $0xd8] sm:$0xff] %vm441, 0.0
      %471 = vst.msk [vmem:[#allocation2 + $0xe0] sm:$0xff] %vm441, 0.0
      %472 = vst.msk [vmem:[#allocation2 + $0xe8] sm:$0x3] %vm444, 0.0
      %v473 = vld [vmem:[%s386] sm:$0xff]
      %v474 = vld [vmem:[%s386 + $0x8] sm:$0xff]
      %v475 = vld [vmem:[%s386 + $0x10] sm:$0xff]
      %v476 = vld [vmem:[%s386 + $0x18] sm:$0xff]
      %v477 = vld [vmem:[%s386 + $0x20] sm:$0xff]
      %v478 = vld [vmem:[%s386 + $0x28] sm:$0xff]
      %v479 = vld [vmem:[%s386 + $0x30] sm:$0xff]
      %v480 = vld [vmem:[%s386 + $0x38] sm:$0xff]
      %v481 = vld [vmem:[%s386 + $0x40] sm:$0xff]
      %v482 = vld [vmem:[%s386 + $0x48] sm:$0xff]
      %v483 = vld [vmem:[%s386 + $0x50] sm:$0xff]
      %v484 = vld [vmem:[%s386 + $0x58] sm:$0xff]
      %v485 = vld [vmem:[%s386 + $0x60] sm:$0xff]
      %v486 = vld [vmem:[%s386 + $0x68] sm:$0xff]
      %v487 = vld [vmem:[%s386 + $0x70] sm:$0xff]
      %v488 = vld [vmem:[%s386 + $0x78] sm:$0xff]
      %s489 = scalar_lea.vmem [#allocation2], 24
      %490 = vst.msk [vmem:[%s489 + $0x1] sm:$0xff] %vm441, %v473
      %491 = vst.msk [vmem:[%s489 + $0x9] sm:$0xff] %vm441, %v474
      %492 = vst.msk [vmem:[%s489 + $0x19] sm:$0xff] %vm441, %v475
      %493 = vst.msk [vmem:[%s489 + $0x21] sm:$0xff] %vm441, %v476
      %494 = vst.msk [vmem:[%s489 + $0x31] sm:$0xff] %vm441, %v477
      %495 = vst.msk [vmem:[%s489 + $0x39] sm:$0xff] %vm441, %v478
      %496 = vst.msk [vmem:[%s489 + $0x49] sm:$0xff] %vm441, %v479
      %497 = vst.msk [vmem:[%s489 + $0x51] sm:$0xff] %vm441, %v480
      %498 = vst.msk [vmem:[%s489 + $0x61] sm:$0xff] %vm441, %v481
      %499 = vst.msk [vmem:[%s489 + $0x69] sm:$0xff] %vm441, %v482
      %500 = vst.msk [vmem:[%s489 + $0x79] sm:$0xff] %vm441, %v483
      %501 = vst.msk [vmem:[%s489 + $0x81] sm:$0xff] %vm441, %v484
      %502 = vst.msk [vmem:[%s489 + $0x91] sm:$0xff] %vm441, %v485
      %503 = vst.msk [vmem:[%s489 + $0x99] sm:$0xff] %vm441, %v486
      %504 = vst.msk [vmem:[%s489 + $0xa9] sm:$0xff] %vm441, %v487
      %505 = vst.msk [vmem:[%s489 + $0xb1] sm:$0xff] %vm441, %v488
      %p506 = scmp.gt.s32.totalorder %s23, 0
      // Predicated region
      $region41: #{encoder_block.3} parent=39 // pred_check
        %p507 = pneg %p506
      $region42: #{encoder_block.3} parent=39 // pred_check_branch
        %509 = sbr.rel (%p507) target = $region44
      $region43: #{encoder_block.3} parent=39 // pred_region
        %v510 = vld [vmem:[%s400] sm:$0xff]
        %v511 = vld [vmem:[%s400 + $0x8] sm:$0xff]
        %512 = vst.msk [vmem:[#allocation2 + $0x1] sm:$0xff] %vm441, %v510
        %513 = vst.msk [vmem:[#allocation2 + $0x9] sm:$0xff] %vm441, %v511
      $region44: #{encoder_block.3} parent=39 // pred_fallthru
        _
      %p514 = scmp.lt.s32.totalorder %s23, 1
      // Predicated region
      $region45: #{encoder_block.3} parent=39 // pred_check
        %p515 = pneg %p514
      $region46: #{encoder_block.3} parent=39 // pred_check_branch
        %517 = sbr.rel (%p515) target = $region48
      $region47: #{encoder_block.3} parent=39 // pred_region
        %v518 = vld [vmem:[%s417] sm:$0xff]
        %v519 = vld [vmem:[%s417 + $0x8] sm:$0xff]
        %s520 = scalar_lea.vmem [#allocation2], 216
        %521 = vst.msk [vmem:[%s520 + $0x1] sm:$0xff] %vm441, %v518
        %522 = vst.msk [vmem:[%s520 + $0x9] sm:$0xff] %vm441, %v519
      $region48: #{encoder_block.3} parent=39 // pred_fallthru
        _
      %v523 = vld [vmem:[#allocation2] sm:$0xff]
      %v524 = vld [vmem:[#allocation2 + $0x8] sm:$0xff]
      %v525 = vld [vmem:[#allocation2 + $0x18] sm:$0xff]
      %v526 = vld [vmem:[#allocation2 + $0x20] sm:$0xff]
      %v527 = vld [vmem:[#allocation2 + $0x30] sm:$0xff]
      %v528 = vld [vmem:[#allocation2 + $0x38] sm:$0xff]
      %v529 = vld [vmem:[#allocation2 + $0x48] sm:$0xff]
      %v530 = vld [vmem:[#allocation2 + $0x50] sm:$0xff]
      %v531 = vld [vmem:[#allocation2 + $0x60] sm:$0xff]
      %v532 = vld [vmem:[#allocation2 + $0x68] sm:$0xff]
      %v533 = vld [vmem:[#allocation2 + $0x78] sm:$0xff]
      %v534 = vld [vmem:[#allocation2 + $0x80] sm:$0xff]
      %v535 = vld [vmem:[#allocation2 + $0x90] sm:$0xff]
      %v536 = vld [vmem:[#allocation2 + $0x98] sm:$0xff]
      %v537 = vld [vmem:[#allocation2 + $0xa8] sm:$0xff]
      %v538 = vld [vmem:[#allocation2 + $0xb0] sm:$0xff]
      %v539 = vld [vmem:[%s3] sm:$0xf]
      %v540 = vld [vmem:[#allocation2 + $0x1] sm:$0xff]
      %v541 = vld [vmem:[#allocation2 + $0x9] sm:$0xff]
      %v542 = vld [vmem:[#allocation2 + $0x19] sm:$0xff]
      %v543 = vld [vmem:[#allocation2 + $0x21] sm:$0xff]
      %v544 = vld [vmem:[#allocation2 + $0x31] sm:$0xff]
      %v545 = vld [vmem:[#allocation2 + $0x39] sm:$0xff]
      %v546 = vld [vmem:[#allocation2 + $0x49] sm:$0xff]
      %v547 = vld [vmem:[#allocation2 + $0x51] sm:$0xff]
      %v548 = vld [vmem:[#allocation2 + $0x61] sm:$0xff]
      %v549 = vld [vmem:[#allocation2 + $0x69] sm:$0xff]
      %v550 = vld [vmem:[#allocation2 + $0x79] sm:$0xff]
      %v551 = vld [vmem:[#allocation2 + $0x81] sm:$0xff]
      %v552 = vld [vmem:[#allocation2 + $0x91] sm:$0xff]
      %v553 = vld [vmem:[#allocation2 + $0x99] sm:$0xff]
      %v554 = vld [vmem:[#allocation2 + $0xa9] sm:$0xff]
      %v555 = vld [vmem:[#allocation2 + $0xb1] sm:$0xff]
      %s556 = scalar_lea.vmem %s3, 4
      %v557 = vld [vmem:[%s556] sm:$0xf]
      %v559 = vsel %vm441, %v540, 0
      %v562 = vsel %vm441, %v541, 0
      %v565 = vsel %vm441, %v542, 0
      %v568 = vsel %vm441, %v543, 0
      %v571 = vsel %vm441, %v544, 0
      %v574 = vsel %vm441, %v545, 0
      %v577 = vsel %vm441, %v546, 0
      %v580 = vsel %vm441, %v547, 0
      %v583 = vsel %vm441, %v548, 0
      %v586 = vsel %vm441, %v549, 0
      %v589 = vsel %vm441, %v550, 0
      %v592 = vsel %vm441, %v551, 0
      %v595 = vsel %vm441, %v552, 0
      %v598 = vsel %vm441, %v553, 0
      %v601 = vsel %vm441, %v554, 0
      %v604 = vsel %vm441, %v555, 0
      %vm606 = vcmask 1043456
      %v608 = vsel %vm606, %v557, 0
      %610 = vmatprep.subr.mxu0 0.0
      %611 = vmatpush1.msra.mxu0 %v608
      %612 = vmatprep.subr.mxu0 0.0
      %613 = vmatpush1.msra.mxu0 0.0
      %614 = vmatprep.subr.mxu0 0.0
      %615 = vmatpush1.msra.mxu0 0.0
      %616 = vmatprep.subr.mxu0 0.0
      %617 = vmatpush1.msra.mxu0 0.0
      %618 = vmatprep.subr.mxu0 0.0
      %619 = vmatpush1.msra.mxu0 0.0
      %620 = vmatprep.subr.mxu0 0.0
      %621 = vmatpush1.msra.mxu0 0.0
      %622 = vmatprep.subr.mxu0 0.0
      %623 = vmatpush1.msra.mxu0 0.0
      %624 = vmatprep.subr.mxu0 0.0
      %625 = vmatpush1.msra.mxu0 0.0
      %626 = vmatprep.subr.mxu0 0.0
      %627 = vmatpush1.msra.mxu0 0.0
      %628 = vmatprep.subr.mxu0 0.0
      %629 = vmatpush1.msra.mxu0 0.0
      %630 = vmatprep.subr.mxu0 0.0
      %631 = vmatpush1.msra.mxu0 0.0
      %632 = vmatprep.subr.mxu0 0.0
      %633 = vmatpush1.msra.mxu0 0.0
      %634 = vmatprep.subr.mxu0 0.0
      %635 = vmatpush1.msra.mxu0 0.0
      %636 = vmatprep.subr.mxu0 0.0
      %637 = vmatpush1.msra.mxu0 0.0
      %638 = vmatprep.subr.mxu0 0.0
      %639 = vmatpush1.msra.mxu0 0.0
      %640 = vmatprep.subr.mxu0 0.0
      %641 = vmatpush1.msra.mxu0 0.0
      %642 = vmatprep.subr.mxu0 0.0
      %643 = vmatpush1.msra.mxu0 0.0
      %644 = vmatprep.subr.mxu0 0.0
      %645 = vmatpush1.msra.mxu0 0.0
      %646 = vmatprep.subr.mxu0 0.0
      %647 = vmatpush1.msra.mxu0 0.0
      %648 = vmatprep.subr.mxu0 0.0
      %649 = vmatpush1.msra.mxu0 0.0
      %650 = vmatprep.subr.mxu0 0.0
      %651 = vmatpush1.msra.mxu0 0.0
      %652 = vmatprep.subr.mxu0 0.0
      %653 = vmatpush1.msra.mxu0 0.0
      %654 = vmatprep.subr.mxu0 0.0
      %655 = vmatpush1.msra.mxu0 0.0
      %656 = vmatprep.subr.mxu0 0.0
      %657 = vmatpush1.msra.mxu0 0.0
      %658 = vmatprep.subr.mxu0 0.0
      %659 = vmatpush1.msra.mxu0 0.0
      %660 = vmatprep.subr.mxu0 0.0
      %661 = vmatpush1.msra.mxu0 0.0
      %662 = vmatprep.subr.mxu0 0.0
      %663 = vmatpush1.msra.mxu0 0.0
      %664 = vmatprep.subr.mxu0 0.0
      %665 = vmatpush1.msra.mxu0 0.0
      %666 = vmatprep.subr.mxu0 0.0
      %667 = vmatpush1.msra.mxu0 0.0
      %668 = vmatprep.subr.mxu0 0.0
      %669 = vmatpush1.msra.mxu0 0.0
      %670 = vmatprep.subr.mxu0 0.0
      %671 = vmatpush1.msra.mxu0 0.0
      %672 = vmatprep.subr.mxu0 0.0
      %673 = vmatpush1.msra.mxu0 0.0
      %674 = vmatprep.mubr.f32.mxu0 0.0
      %675 = vmatmul.mubr.f32.gmra.mrb[0].mxu0 %v559
      %v676 = vpop.f32.mrb[0].mxu0
      %v677 = vadd.f32 0.0, %v676
      %v678 = vpop.f32.mrb[0].mxu0
      %679 = vmatprep.mubr.f32.mxu0 0.0
      %680 = vmatmul.mubr.f32.gmra.mrb[0].mxu0 %v562
      %v681 = vpop.f32.mrb[0].mxu0
      %v682 = vadd.f32 0.0, %v681
      %v683 = vpop.f32.mrb[0].mxu0
      %684 = vmatprep.mubr.f32.mxu0 0.0
      %685 = vmatmul.mubr.f32.gmra.mrb[0].mxu0 %v565
      %v686 = vpop.f32.mrb[0].mxu0
      %v687 = vadd.f32 0.0, %v686
      %v688 = vpop.f32.mrb[0].mxu0
      %689 = vmatprep.mubr.f32.mxu0 0.0
      %690 = vmatmul.mubr.f32.gmra.mrb[0].mxu0 %v568
      %v691 = vpop.f32.mrb[0].mxu0
      %v692 = vadd.f32 0.0, %v691
      %v693 = vpop.f32.mrb[0].mxu0
      %694 = vmatprep.mubr.f32.mxu0 0.0
      %695 = vmatmul.mubr.f32.gmra.mrb[0].mxu0 %v571
      %v696 = vpop.f32.mrb[0].mxu0
      %v697 = vadd.f32 0.0, %v696
      %v698 = vpop.f32.mrb[0].mxu0
      %699 = vmatprep.mubr.f32.mxu0 0.0
      %700 = vmatmul.mubr.f32.gmra.mrb[0].mxu0 %v574
      %v701 = vpop.f32.mrb[0].mxu0
      %v702 = vadd.f32 0.0, %v701
      %v703 = vpop.f32.mrb[0].mxu0
      %704 = vmatprep.mubr.f32.mxu0 0.0
      %705 = vmatmul.mubr.f32.gmra.mrb[0].mxu0 %v577
      %v706 = vpop.f32.mrb[0].mxu0
      %v707 = vadd.f32 0.0, %v706
      %v708 = vpop.f32.mrb[0].mxu0
      %709 = vmatprep.mubr.f32.mxu0 0.0
      %710 = vmatmul.mubr.f32.gmra.mrb[0].mxu0 %v580
      %v711 = vpop.f32.mrb[0].mxu0
      %v712 = vadd.f32 0.0, %v711
      %v713 = vpop.f32.mrb[0].mxu0
      %714 = vmatprep.mubr.f32.mxu0 0.0
      %715 = vmatmul.mubr.f32.gmra.mrb[0].mxu0 %v583
      %v716 = vpop.f32.mrb[0].mxu0
      %v717 = vadd.f32 0.0, %v716
      %v718 = vpop.f32.mrb[0].mxu0
      %719 = vmatprep.mubr.f32.mxu0 0.0
      %720 = vmatmul.mubr.f32.gmra.mrb[0].mxu0 %v586
      %v721 = vpop.f32.mrb[0].mxu0
      %v722 = vadd.f32 0.0, %v721
      %v723 = vpop.f32.mrb[0].mxu0
      %724 = vmatprep.mubr.f32.mxu0 0.0
      %725 = vmatmul.mubr.f32.gmra.mrb[0].mxu0 %v589
      %v726 = vpop.f32.mrb[0].mxu0
      %v727 = vadd.f32 0.0, %v726
      %v728 = vpop.f32.mrb[0].mxu0
      %729 = vmatprep.mubr.f32.mxu0 0.0
      %730 = vmatmul.mubr.f32.gmra.mrb[0].mxu0 %v592
      %v731 = vpop.f32.mrb[0].mxu0
      %v732 = vadd.f32 0.0, %v731
      %v733 = vpop.f32.mrb[0].mxu0
      %734 = vmatprep.mubr.f32.mxu0 0.0
      %735 = vmatmul.mubr.f32.gmra.mrb[0].mxu0 %v595
      %v736 = vpop.f32.mrb[0].mxu0
      %v737 = vadd.f32 0.0, %v736
      %v738 = vpop.f32.mrb[0].mxu0
      %739 = vmatprep.mubr.f32.mxu0 0.0
      %740 = vmatmul.mubr.f32.gmra.mrb[0].mxu0 %v598
      %v741 = vpop.f32.mrb[0].mxu0
      %v742 = vadd.f32 0.0, %v741
      %v743 = vpop.f32.mrb[0].mxu0
      %744 = vmatprep.mubr.f32.mxu0 0.0
      %745 = vmatmul.mubr.f32.gmra.mrb[0].mxu0 %v601
      %v746 = vpop.f32.mrb[0].mxu0
      %v747 = vadd.f32 0.0, %v746
      %v748 = vpop.f32.mrb[0].mxu0
      %749 = vmatprep.mubr.f32.mxu0 0.0
      %750 = vmatmul.mubr.f32.gmra.mrb[0].mxu0 %v604
      %v751 = vpop.f32.mrb[0].mxu0
      %v752 = vadd.f32 0.0, %v751
      %v753 = vpop.f32.mrb[0].mxu0
      %754 = vdwg.mxu0
      %v756 = vsel %vm441, %v523, 0
      %v759 = vsel %vm441, %v524, 0
      %v762 = vsel %vm441, %v525, 0
      %v765 = vsel %vm441, %v526, 0
      %v768 = vsel %vm441, %v527, 0
      %v771 = vsel %vm441, %v528, 0
      %v774 = vsel %vm441, %v529, 0
      %v777 = vsel %vm441, %v530, 0
      %v780 = vsel %vm441, %v531, 0
      %v783 = vsel %vm441, %v532, 0
      %v786 = vsel %vm441, %v533, 0
      %v789 = vsel %vm441, %v534, 0
      %v792 = vsel %vm441, %v535, 0
      %v795 = vsel %vm441, %v536, 0
      %v798 = vsel %vm441, %v537, 0
      %v801 = vsel %vm441, %v538, 0
      %v804 = vsel %vm606, %v539, 0
      %806 = vmatprep.subr.mxu0 0.0
      %807 = vmatpush1.msra.mxu0 %v804
      %808 = vmatprep.subr.mxu0 0.0
      %809 = vmatpush1.msra.mxu0 0.0
      %810 = vmatprep.subr.mxu0 0.0
      %811 = vmatpush1.msra.mxu0 0.0
      %812 = vmatprep.subr.mxu0 0.0
      %813 = vmatpush1.msra.mxu0 0.0
      %814 = vmatprep.subr.mxu0 0.0
      %815 = vmatpush1.msra.mxu0 0.0
      %816 = vmatprep.subr.mxu0 0.0
      %817 = vmatpush1.msra.mxu0 0.0
      %818 = vmatprep.subr.mxu0 0.0
      %819 = vmatpush1.msra.mxu0 0.0
      %820 = vmatprep.subr.mxu0 0.0
      %821 = vmatpush1.msra.mxu0 0.0
      %822 = vmatprep.subr.mxu0 0.0
      %823 = vmatpush1.msra.mxu0 0.0
      %824 = vmatprep.subr.mxu0 0.0
      %825 = vmatpush1.msra.mxu0 0.0
      %826 = vmatprep.subr.mxu0 0.0
      %827 = vmatpush1.msra.mxu0 0.0
      %828 = vmatprep.subr.mxu0 0.0
      %829 = vmatpush1.msra.mxu0 0.0
      %830 = vmatprep.subr.mxu0 0.0
      %831 = vmatpush1.msra.mxu0 0.0
      %832 = vmatprep.subr.mxu0 0.0
      %833 = vmatpush1.msra.mxu0 0.0
      %834 = vmatprep.subr.mxu0 0.0
      %835 = vmatpush1.msra.mxu0 0.0
      %836 = vmatprep.subr.mxu0 0.0
      %837 = vmatpush1.msra.mxu0 0.0
      %838 = vmatprep.subr.mxu0 0.0
      %839 = vmatpush1.msra.mxu0 0.0
      %840 = vmatprep.subr.mxu0 0.0
      %841 = vmatpush1.msra.mxu0 0.0
      %842 = vmatprep.subr.mxu0 0.0
      %843 = vmatpush1.msra.mxu0 0.0
      %844 = vmatprep.subr.mxu0 0.0
      %845 = vmatpush1.msra.mxu0 0.0
      %846 = vmatprep.subr.mxu0 0.0
      %847 = vmatpush1.msra.mxu0 0.0
      %848 = vmatprep.subr.mxu0 0.0
      %849 = vmatpush1.msra.mxu0 0.0
      %850 = vmatprep.subr.mxu0 0.0
      %851 = vmatpush1.msra.mxu0 0.0
      %852 = vmatprep.subr.mxu0 0.0
      %853 = vmatpush1.msra.mxu0 0.0
      %854 = vmatprep.subr.mxu0 0.0
      %855 = vmatpush1.msra.mxu0 0.0
      %856 = vmatprep.subr.mxu0 0.0
      %857 = vmatpush1.msra.mxu0 0.0
      %858 = vmatprep.subr.mxu0 0.0
      %859 = vmatpush1.msra.mxu0 0.0
      %860 = vmatprep.subr.mxu0 0.0
      %861 = vmatpush1.msra.mxu0 0.0
      %862 = vmatprep.subr.mxu0 0.0
      %863 = vmatpush1.msra.mxu0 0.0
      %864 = vmatprep.subr.mxu0 0.0
      %865 = vmatpush1.msra.mxu0 0.0
      %866 = vmatprep.subr.mxu0 0.0
      %867 = vmatpush1.msra.mxu0 0.0
      %868 = vmatprep.subr.mxu0 0.0
      %869 = vmatpush1.msra.mxu0 0.0
      %870 = vmatprep.mubr.f32.mxu0 0.0
      %871 = vmatmul.mubr.f32.gmra.mrb[0].mxu0 %v756
      %v872 = vpop.f32.mrb[0].mxu0
      %v873 = vadd.f32 %v677, %v872
      %v874 = vpop.f32.mrb[0].mxu0
      %875 = vmatprep.mubr.f32.mxu0 0.0
      %876 = vmatmul.mubr.f32.gmra.mrb[0].mxu0 %v759
      %v877 = vpop.f32.mrb[0].mxu0
      %v878 = vadd.f32 %v682, %v877
      %v879 = vpop.f32.mrb[0].mxu0
      %880 = vmatprep.mubr.f32.mxu0 0.0
      %881 = vmatmul.mubr.f32.gmra.mrb[0].mxu0 %v762
      %v882 = vpop.f32.mrb[0].mxu0
      %v883 = vadd.f32 %v687, %v882
      %v884 = vpop.f32.mrb[0].mxu0
      %885 = vmatprep.mubr.f32.mxu0 0.0
      %886 = vmatmul.mubr.f32.gmra.mrb[0].mxu0 %v765
      %v887 = vpop.f32.mrb[0].mxu0
      %v888 = vadd.f32 %v692, %v887
      %v889 = vpop.f32.mrb[0].mxu0
      %890 = vmatprep.mubr.f32.mxu0 0.0
      %891 = vmatmul.mubr.f32.gmra.mrb[0].mxu0 %v768
      %v892 = vpop.f32.mrb[0].mxu0
      %v893 = vadd.f32 %v697, %v892
      %v894 = vpop.f32.mrb[0].mxu0
      %895 = vmatprep.mubr.f32.mxu0 0.0
      %896 = vmatmul.mubr.f32.gmra.mrb[0].mxu0 %v771
      %v897 = vpop.f32.mrb[0].mxu0
      %v898 = vadd.f32 %v702, %v897
      %v899 = vpop.f32.mrb[0].mxu0
      %900 = vmatprep.mubr.f32.mxu0 0.0
      %901 = vmatmul.mubr.f32.gmra.mrb[0].mxu0 %v774
      %v902 = vpop.f32.mrb[0].mxu0
      %v903 = vadd.f32 %v707, %v902
      %v904 = vpop.f32.mrb[0].mxu0
      %905 = vmatprep.mubr.f32.mxu0 0.0
      %906 = vmatmul.mubr.f32.gmra.mrb[0].mxu0 %v777
      %v907 = vpop.f32.mrb[0].mxu0
      %v908 = vadd.f32 %v712, %v907
      %v909 = vpop.f32.mrb[0].mxu0
      %910 = vmatprep.mubr.f32.mxu0 0.0
      %911 = vmatmul.mubr.f32.gmra.mrb[0].mxu0 %v780
      %v912 = vpop.f32.mrb[0].mxu0
      %v913 = vadd.f32 %v717, %v912
      %v914 = vpop.f32.mrb[0].mxu0
      %915 = vmatprep.mubr.f32.mxu0 0.0
      %916 = vmatmul.mubr.f32.gmra.mrb[0].mxu0 %v783
      %v917 = vpop.f32.mrb[0].mxu0
      %v918 = vadd.f32 %v722, %v917
      %v919 = vpop.f32.mrb[0].mxu0
      %920 = vmatprep.mubr.f32.mxu0 0.0
      %921 = vmatmul.mubr.f32.gmra.mrb[0].mxu0 %v786
      %v922 = vpop.f32.mrb[0].mxu0
      %v923 = vadd.f32 %v727, %v922
      %v924 = vpop.f32.mrb[0].mxu0
      %925 = vmatprep.mubr.f32.mxu0 0.0
      %926 = vmatmul.mubr.f32.gmra.mrb[0].mxu0 %v789
      %v927 = vpop.f32.mrb[0].mxu0
      %v928 = vadd.f32 %v732, %v927
      %v929 = vpop.f32.mrb[0].mxu0
      %930 = vmatprep.mubr.f32.mxu0 0.0
      %931 = vmatmul.mubr.f32.gmra.mrb[0].mxu0 %v792
      %v932 = vpop.f32.mrb[0].mxu0
      %v933 = vadd.f32 %v737, %v932
      %v934 = vpop.f32.mrb[0].mxu0
      %935 = vmatprep.mubr.f32.mxu0 0.0
      %936 = vmatmul.mubr.f32.gmra.mrb[0].mxu0 %v795
      %v937 = vpop.f32.mrb[0].mxu0
      %v938 = vadd.f32 %v742, %v937
      %v939 = vpop.f32.mrb[0].mxu0
      %940 = vmatprep.mubr.f32.mxu0 0.0
      %941 = vmatmul.mubr.f32.gmra.mrb[0].mxu0 %v798
      %v942 = vpop.f32.mrb[0].mxu0
      %v943 = vadd.f32 %v747, %v942
      %v944 = vpop.f32.mrb[0].mxu0
      %945 = vmatprep.mubr.f32.mxu0 0.0
      %946 = vmatmul.mubr.f32.gmra.mrb[0].mxu0 %v801
      %v947 = vpop.f32.mrb[0].mxu0
      %v948 = vadd.f32 %v752, %v947
      %v949 = vpop.f32.mrb[0].mxu0
      %950 = vdwg.mxu0
      %v951 = vld [vmem:[#allocation2 + $0x2] sm:$0xff]
      %v952 = vld [vmem:[#allocation2 + $0xa] sm:$0xff]
      %v953 = vld [vmem:[#allocation2 + $0x1a] sm:$0xff]
      %v954 = vld [vmem:[#allocation2 + $0x22] sm:$0xff]
      %v955 = vld [vmem:[#allocation2 + $0x32] sm:$0xff]
      %v956 = vld [vmem:[#allocation2 + $0x3a] sm:$0xff]
      %v957 = vld [vmem:[#allocation2 + $0x4a] sm:$0xff]
      %v958 = vld [vmem:[#allocation2 + $0x52] sm:$0xff]
      %v959 = vld [vmem:[#allocation2 + $0x62] sm:$0xff]
      %v960 = vld [vmem:[#allocation2 + $0x6a] sm:$0xff]
      %v961 = vld [vmem:[#allocation2 + $0x7a] sm:$0xff]
      %v962 = vld [vmem:[#allocation2 + $0x82] sm:$0xff]
      %v963 = vld [vmem:[#allocation2 + $0x92] sm:$0xff]
      %v964 = vld [vmem:[#allocation2 + $0x9a] sm:$0xff]
      %v965 = vld [vmem:[#allocation2 + $0xaa] sm:$0xff]
      %v966 = vld [vmem:[#allocation2 + $0xb2] sm:$0xff]
      %s967 = scalar_lea.vmem %s3, 8
      %v968 = vld [vmem:[%s967] sm:$0xf]
      %v970 = vsel %vm441, %v951, 0
      %v973 = vsel %vm441, %v952, 0
      %v976 = vsel %vm441, %v953, 0
      %v979 = vsel %vm441, %v954, 0
      %v982 = vsel %vm441, %v955, 0
      %v985 = vsel %vm441, %v956, 0
      %v988 = vsel %vm441, %v957, 0
      %v991 = vsel %vm441, %v958, 0
      %v994 = vsel %vm441, %v959, 0
      %v997 = vsel %vm441, %v960, 0
      %v1000 = vsel %vm441, %v961, 0
      %v1003 = vsel %vm441, %v962, 0
      %v1006 = vsel %vm441, %v963, 0
      %v1009 = vsel %vm441, %v964, 0
      %v1012 = vsel %vm441, %v965, 0
      %v1015 = vsel %vm441, %v966, 0
      %v1018 = vsel %vm606, %v968, 0
      %1020 = vmatprep.subr.mxu0 0.0
      %1021 = vmatpush1.msra.mxu0 %v1018
      %1022 = vmatprep.subr.mxu0 0.0
      %1023 = vmatpush1.msra.mxu0 0.0
      %1024 = vmatprep.subr.mxu0 0.0
      %1025 = vmatpush1.msra.mxu0 0.0
      %1026 = vmatprep.subr.mxu0 0.0
      %1027 = vmatpush1.msra.mxu0 0.0
      %1028 = vmatprep.subr.mxu0 0.0
      %1029 = vmatpush1.msra.mxu0 0.0
      %1030 = vmatprep.subr.mxu0 0.0
      %1031 = vmatpush1.msra.mxu0 0.0
      %1032 = vmatprep.subr.mxu0 0.0
      %1033 = vmatpush1.msra.mxu0 0.0
      %1034 = vmatprep.subr.mxu0 0.0
      %1035 = vmatpush1.msra.mxu0 0.0
      %1036 = vmatprep.subr.mxu0 0.0
      %1037 = vmatpush1.msra.mxu0 0.0
      %1038 = vmatprep.subr.mxu0 0.0
      %1039 = vmatpush1.msra.mxu0 0.0
      %1040 = vmatprep.subr.mxu0 0.0
      %1041 = vmatpush1.msra.mxu0 0.0
      %1042 = vmatprep.subr.mxu0 0.0
      %1043 = vmatpush1.msra.mxu0 0.0
      %1044 = vmatprep.subr.mxu0 0.0
      %1045 = vmatpush1.msra.mxu0 0.0
      %1046 = vmatprep.subr.mxu0 0.0
      %1047 = vmatpush1.msra.mxu0 0.0
      %1048 = vmatprep.subr.mxu0 0.0
      %1049 = vmatpush1.msra.mxu0 0.0
      %1050 = vmatprep.subr.mxu0 0.0
      %1051 = vmatpush1.msra.mxu0 0.0
      %1052 = vmatprep.subr.mxu0 0.0
      %1053 = vmatpush1.msra.mxu0 0.0
      %1054 = vmatprep.subr.mxu0 0.0
      %1055 = vmatpush1.msra.mxu0 0.0
      %1056 = vmatprep.subr.mxu0 0.0
      %1057 = vmatpush1.msra.mxu0 0.0
      %1058 = vmatprep.subr.mxu0 0.0
      %1059 = vmatpush1.msra.mxu0 0.0
      %1060 = vmatprep.subr.mxu0 0.0
      %1061 = vmatpush1.msra.mxu0 0.0
      %1062 = vmatprep.subr.mxu0 0.0
      %1063 = vmatpush1.msra.mxu0 0.0
      %1064 = vmatprep.subr.mxu0 0.0
      %1065 = vmatpush1.msra.mxu0 0.0
      %1066 = vmatprep.subr.mxu0 0.0
      %1067 = vmatpush1.msra.mxu0 0.0
      %1068 = vmatprep.subr.mxu0 0.0
      %1069 = vmatpush1.msra.mxu0 0.0
      %1070 = vmatprep.subr.mxu0 0.0
      %1071 = vmatpush1.msra.mxu0 0.0
      %1072 = vmatprep.subr.mxu0 0.0
      %1073 = vmatpush1.msra.mxu0 0.0
      %1074 = vmatprep.subr.mxu0 0.0
      %1075 = vmatpush1.msra.mxu0 0.0
      %1076 = vmatprep.subr.mxu0 0.0
      %1077 = vmatpush1.msra.mxu0 0.0
      %1078 = vmatprep.subr.mxu0 0.0
      %1079 = vmatpush1.msra.mxu0 0.0
      %1080 = vmatprep.subr.mxu0 0.0
      %1081 = vmatpush1.msra.mxu0 0.0
      %1082 = vmatprep.subr.mxu0 0.0
      %1083 = vmatpush1.msra.mxu0 0.0
      %1084 = vmatprep.mubr.f32.mxu0 0.0
      %1085 = vmatmul.mubr.f32.gmra.mrb[0].mxu0 %v970
      %v1086 = vpop.f32.mrb[0].mxu0
      %v1087 = vadd.f32 0.0, %v1086
      %v1088 = vpop.f32.mrb[0].mxu0
      %1089 = vmatprep.mubr.f32.mxu0 0.0
      %1090 = vmatmul.mubr.f32.gmra.mrb[0].mxu0 %v973
      %v1091 = vpop.f32.mrb[0].mxu0
      %v1092 = vadd.f32 0.0, %v1091
      %v1093 = vpop.f32.mrb[0].mxu0
      %1094 = vmatprep.mubr.f32.mxu0 0.0
      %1095 = vmatmul.mubr.f32.gmra.mrb[0].mxu0 %v976
      %v1096 = vpop.f32.mrb[0].mxu0
      %v1097 = vadd.f32 0.0, %v1096
      %v1098 = vpop.f32.mrb[0].mxu0
      %1099 = vmatprep.mubr.f32.mxu0 0.0
      %1100 = vmatmul.mubr.f32.gmra.mrb[0].mxu0 %v979
      %v1101 = vpop.f32.mrb[0].mxu0
      %v1102 = vadd.f32 0.0, %v1101
      %v1103 = vpop.f32.mrb[0].mxu0
      %1104 = vmatprep.mubr.f32.mxu0 0.0
      %1105 = vmatmul.mubr.f32.gmra.mrb[0].mxu0 %v982
      %v1106 = vpop.f32.mrb[0].mxu0
      %v1107 = vadd.f32 0.0, %v1106
      %v1108 = vpop.f32.mrb[0].mxu0
      %1109 = vmatprep.mubr.f32.mxu0 0.0
      %1110 = vmatmul.mubr.f32.gmra.mrb[0].mxu0 %v985
      %v1111 = vpop.f32.mrb[0].mxu0
      %v1112 = vadd.f32 0.0, %v1111
      %v1113 = vpop.f32.mrb[0].mxu0
      %1114 = vmatprep.mubr.f32.mxu0 0.0
      %1115 = vmatmul.mubr.f32.gmra.mrb[0].mxu0 %v988
      %v1116 = vpop.f32.mrb[0].mxu0
      %v1117 = vadd.f32 0.0, %v1116
      %v1118 = vpop.f32.mrb[0].mxu0
      %1119 = vmatprep.mubr.f32.mxu0 0.0
      %1120 = vmatmul.mubr.f32.gmra.mrb[0].mxu0 %v991
      %v1121 = vpop.f32.mrb[0].mxu0
      %v1122 = vadd.f32 0.0, %v1121
      %v1123 = vpop.f32.mrb[0].mxu0
      %1124 = vmatprep.mubr.f32.mxu0 0.0
      %1125 = vmatmul.mubr.f32.gmra.mrb[0].mxu0 %v994
      %v1126 = vpop.f32.mrb[0].mxu0
      %v1127 = vadd.f32 0.0, %v1126
      %v1128 = vpop.f32.mrb[0].mxu0
      %1129 = vmatprep.mubr.f32.mxu0 0.0
      %1130 = vmatmul.mubr.f32.gmra.mrb[0].mxu0 %v997
      %v1131 = vpop.f32.mrb[0].mxu0
      %v1132 = vadd.f32 0.0, %v1131
      %v1133 = vpop.f32.mrb[0].mxu0
      %1134 = vmatprep.mubr.f32.mxu0 0.0
      %1135 = vmatmul.mubr.f32.gmra.mrb[0].mxu0 %v1000
      %v1136 = vpop.f32.mrb[0].mxu0
      %v1137 = vadd.f32 0.0, %v1136
      %v1138 = vpop.f32.mrb[0].mxu0
      %1139 = vmatprep.mubr.f32.mxu0 0.0
      %1140 = vmatmul.mubr.f32.gmra.mrb[0].mxu0 %v1003
      %v1141 = vpop.f32.mrb[0].mxu0
      %v1142 = vadd.f32 0.0, %v1141
      %v1143 = vpop.f32.mrb[0].mxu0
      %1144 = vmatprep.mubr.f32.mxu0 0.0
      %1145 = vmatmul.mubr.f32.gmra.mrb[0].mxu0 %v1006
      %v1146 = vpop.f32.mrb[0].mxu0
      %v1147 = vadd.f32 0.0, %v1146
      %v1148 = vpop.f32.mrb[0].mxu0
      %1149 = vmatprep.mubr.f32.mxu0 0.0
      %1150 = vmatmul.mubr.f32.gmra.mrb[0].mxu0 %v1009
      %v1151 = vpop.f32.mrb[0].mxu0
      %v1152 = vadd.f32 0.0, %v1151
      %v1153 = vpop.f32.mrb[0].mxu0
      %1154 = vmatprep.mubr.f32.mxu0 0.0
      %1155 = vmatmul.mubr.f32.gmra.mrb[0].mxu0 %v1012
      %v1156 = vpop.f32.mrb[0].mxu0
      %v1157 = vadd.f32 0.0, %v1156
      %v1158 = vpop.f32.mrb[0].mxu0
      %1159 = vmatprep.mubr.f32.mxu0 0.0
      %1160 = vmatmul.mubr.f32.gmra.mrb[0].mxu0 %v1015
      %v1161 = vpop.f32.mrb[0].mxu0
      %v1162 = vadd.f32 0.0, %v1161
      %v1163 = vpop.f32.mrb[0].mxu0
      %1164 = vdwg.mxu0
      %v1165 = vadd.f32 %v873, %v1087
      %v1166 = vadd.f32 %v878, %v1092
      %v1167 = vadd.f32 %v883, %v1097
      %v1168 = vadd.f32 %v888, %v1102
      %v1169 = vadd.f32 %v893, %v1107
      %v1170 = vadd.f32 %v898, %v1112
      %v1171 = vadd.f32 %v903, %v1117
      %v1172 = vadd.f32 %v908, %v1122
      %v1173 = vadd.f32 %v913, %v1127
      %v1174 = vadd.f32 %v918, %v1132
      %v1175 = vadd.f32 %v923, %v1137
      %v1176 = vadd.f32 %v928, %v1142
      %v1177 = vadd.f32 %v933, %v1147
      %v1178 = vadd.f32 %v938, %v1152
      %v1179 = vadd.f32 %v943, %v1157
      %v1180 = vadd.f32 %v948, %v1162
      %v1181 = vld [vmem:[%s489] sm:$0xff]
      %v1182 = vld [vmem:[%s489 + $0x8] sm:$0xff]
      %v1183 = vld [vmem:[%s489 + $0x18] sm:$0xff]
      %v1184 = vld [vmem:[%s489 + $0x20] sm:$0xff]
      %v1185 = vld [vmem:[%s489 + $0x30] sm:$0xff]
      %v1186 = vld [vmem:[%s489 + $0x38] sm:$0xff]
      %v1187 = vld [vmem:[%s489 + $0x48] sm:$0xff]
      %v1188 = vld [vmem:[%s489 + $0x50] sm:$0xff]
      %v1189 = vld [vmem:[%s489 + $0x60] sm:$0xff]
      %v1190 = vld [vmem:[%s489 + $0x68] sm:$0xff]
      %v1191 = vld [vmem:[%s489 + $0x78] sm:$0xff]
      %v1192 = vld [vmem:[%s489 + $0x80] sm:$0xff]
      %v1193 = vld [vmem:[%s489 + $0x90] sm:$0xff]
      %v1194 = vld [vmem:[%s489 + $0x98] sm:$0xff]
      %v1195 = vld [vmem:[%s489 + $0xa8] sm:$0xff]
      %v1196 = vld [vmem:[%s489 + $0xb0] sm:$0xff]
      %s1197 = scalar_lea.vmem %s3, 12
      %v1198 = vld [vmem:[%s1197] sm:$0xf]
      %v1200 = vsel %vm441, %v1181, 0
      %v1203 = vsel %vm441, %v1182, 0
      %v1206 = vsel %vm441, %v1183, 0
      %v1209 = vsel %vm441, %v1184, 0
      %v1212 = vsel %vm441, %v1185, 0
      %v1215 = vsel %vm441, %v1186, 0
      %v1218 = vsel %vm441, %v1187, 0
      %v1221 = vsel %vm441, %v1188, 0
      %v1224 = vsel %vm441, %v1189, 0
      %v1227 = vsel %vm441, %v1190, 0
      %v1230 = vsel %vm441, %v1191, 0
      %v1233 = vsel %vm441, %v1192, 0
      %v1236 = vsel %vm441, %v1193, 0
      %v1239 = vsel %vm441, %v1194, 0
      %v1242 = vsel %vm441, %v1195, 0
      %v1245 = vsel %vm441, %v1196, 0
      %v1248 = vsel %vm606, %v1198, 0
      %1250 = vmatprep.subr.mxu0 0.0
      %1251 = vmatpush1.msra.mxu0 %v1248
      %1252 = vmatprep.subr.mxu0 0.0
      %1253 = vmatpush1.msra.mxu0 0.0
      %1254 = vmatprep.subr.mxu0 0.0
      %1255 = vmatpush1.msra.mxu0 0.0
      %1256 = vmatprep.subr.mxu0 0.0
      %1257 = vmatpush1.msra.mxu0 0.0
      %1258 = vmatprep.subr.mxu0 0.0
      %1259 = vmatpush1.msra.mxu0 0.0
      %1260 = vmatprep.subr.mxu0 0.0
      %1261 = vmatpush1.msra.mxu0 0.0
      %1262 = vmatprep.subr.mxu0 0.0
      %1263 = vmatpush1.msra.mxu0 0.0
      %1264 = vmatprep.subr.mxu0 0.0
      %1265 = vmatpush1.msra.mxu0 0.0
      %1266 = vmatprep.subr.mxu0 0.0
      %1267 = vmatpush1.msra.mxu0 0.0
      %1268 = vmatprep.subr.mxu0 0.0
      %1269 = vmatpush1.msra.mxu0 0.0
      %1270 = vmatprep.subr.mxu0 0.0
      %1271 = vmatpush1.msra.mxu0 0.0
      %1272 = vmatprep.subr.mxu0 0.0
      %1273 = vmatpush1.msra.mxu0 0.0
      %1274 = vmatprep.subr.mxu0 0.0
      %1275 = vmatpush1.msra.mxu0 0.0
      %1276 = vmatprep.subr.mxu0 0.0
      %1277 = vmatpush1.msra.mxu0 0.0
      %1278 = vmatprep.subr.mxu0 0.0
      %1279 = vmatpush1.msra.mxu0 0.0
      %1280 = vmatprep.subr.mxu0 0.0
      %1281 = vmatpush1.msra.mxu0 0.0
      %1282 = vmatprep.subr.mxu0 0.0
      %1283 = vmatpush1.msra.mxu0 0.0
      %1284 = vmatprep.subr.mxu0 0.0
      %1285 = vmatpush1.msra.mxu0 0.0
      %1286 = vmatprep.subr.mxu0 0.0
      %1287 = vmatpush1.msra.mxu0 0.0
      %1288 = vmatprep.subr.mxu0 0.0
      %1289 = vmatpush1.msra.mxu0 0.0
      %1290 = vmatprep.subr.mxu0 0.0
      %1291 = vmatpush1.msra.mxu0 0.0
      %1292 = vmatprep.subr.mxu0 0.0
      %1293 = vmatpush1.msra.mxu0 0.0
      %1294 = vmatprep.subr.mxu0 0.0
      %1295 = vmatpush1.msra.mxu0 0.0
      %1296 = vmatprep.subr.mxu0 0.0
      %1297 = vmatpush1.msra.mxu0 0.0
      %1298 = vmatprep.subr.mxu0 0.0
      %1299 = vmatpush1.msra.mxu0 0.0
      %1300 = vmatprep.subr.mxu0 0.0
      %1301 = vmatpush1.msra.mxu0 0.0
      %1302 = vmatprep.subr.mxu0 0.0
      %1303 = vmatpush1.msra.mxu0 0.0
      %1304 = vmatprep.subr.mxu0 0.0
      %1305 = vmatpush1.msra.mxu0 0.0
      %1306 = vmatprep.subr.mxu0 0.0
      %1307 = vmatpush1.msra.mxu0 0.0
      %1308 = vmatprep.subr.mxu0 0.0
      %1309 = vmatpush1.msra.mxu0 0.0
      %1310 = vmatprep.subr.mxu0 0.0
      %1311 = vmatpush1.msra.mxu0 0.0
      %1312 = vmatprep.subr.mxu0 0.0
      %1313 = vmatpush1.msra.mxu0 0.0
      %1314 = vmatprep.mubr.f32.mxu0 0.0
      %1315 = vmatmul.mubr.f32.gmra.mrb[0].mxu0 %v1200
      %v1316 = vpop.f32.mrb[0].mxu0
      %v1317 = vadd.f32 0.0, %v1316
      %v1318 = vpop.f32.mrb[0].mxu0
      %1319 = vmatprep.mubr.f32.mxu0 0.0
      %1320 = vmatmul.mubr.f32.gmra.mrb[0].mxu0 %v1203
      %v1321 = vpop.f32.mrb[0].mxu0
      %v1322 = vadd.f32 0.0, %v1321
      %v1323 = vpop.f32.mrb[0].mxu0
      %1324 = vmatprep.mubr.f32.mxu0 0.0
      %1325 = vmatmul.mubr.f32.gmra.mrb[0].mxu0 %v1206
      %v1326 = vpop.f32.mrb[0].mxu0
      %v1327 = vadd.f32 0.0, %v1326
      %v1328 = vpop.f32.mrb[0].mxu0
      %1329 = vmatprep.mubr.f32.mxu0 0.0
      %1330 = vmatmul.mubr.f32.gmra.mrb[0].mxu0 %v1209
      %v1331 = vpop.f32.mrb[0].mxu0
      %v1332 = vadd.f32 0.0, %v1331
      %v1333 = vpop.f32.mrb[0].mxu0
      %1334 = vmatprep.mubr.f32.mxu0 0.0
      %1335 = vmatmul.mubr.f32.gmra.mrb[0].mxu0 %v1212
      %v1336 = vpop.f32.mrb[0].mxu0
      %v1337 = vadd.f32 0.0, %v1336
      %v1338 = vpop.f32.mrb[0].mxu0
      %1339 = vmatprep.mubr.f32.mxu0 0.0
      %1340 = vmatmul.mubr.f32.gmra.mrb[0].mxu0 %v1215
      %v1341 = vpop.f32.mrb[0].mxu0
      %v1342 = vadd.f32 0.0, %v1341
      %v1343 = vpop.f32.mrb[0].mxu0
      %1344 = vmatprep.mubr.f32.mxu0 0.0
      %1345 = vmatmul.mubr.f32.gmra.mrb[0].mxu0 %v1218
      %v1346 = vpop.f32.mrb[0].mxu0
      %v1347 = vadd.f32 0.0, %v1346
      %v1348 = vpop.f32.mrb[0].mxu0
      %1349 = vmatprep.mubr.f32.mxu0 0.0
      %1350 = vmatmul.mubr.f32.gmra.mrb[0].mxu0 %v1221
      %v1351 = vpop.f32.mrb[0].mxu0
      %v1352 = vadd.f32 0.0, %v1351
      %v1353 = vpop.f32.mrb[0].mxu0
      %1354 = vmatprep.mubr.f32.mxu0 0.0
      %1355 = vmatmul.mubr.f32.gmra.mrb[0].mxu0 %v1224
      %v1356 = vpop.f32.mrb[0].mxu0
      %v1357 = vadd.f32 0.0, %v1356
      %v1358 = vpop.f32.mrb[0].mxu0
      %1359 = vmatprep.mubr.f32.mxu0 0.0
      %1360 = vmatmul.mubr.f32.gmra.mrb[0].mxu0 %v1227
      %v1361 = vpop.f32.mrb[0].mxu0
      %v1362 = vadd.f32 0.0, %v1361
      %v1363 = vpop.f32.mrb[0].mxu0
      %1364 = vmatprep.mubr.f32.mxu0 0.0
      %1365 = vmatmul.mubr.f32.gmra.mrb[0].mxu0 %v1230
      %v1366 = vpop.f32.mrb[0].mxu0
      %v1367 = vadd.f32 0.0, %v1366
      %v1368 = vpop.f32.mrb[0].mxu0
      %1369 = vmatprep.mubr.f32.mxu0 0.0
      %1370 = vmatmul.mubr.f32.gmra.mrb[0].mxu0 %v1233
      %v1371 = vpop.f32.mrb[0].mxu0
      %v1372 = vadd.f32 0.0, %v1371
      %v1373 = vpop.f32.mrb[0].mxu0
      %1374 = vmatprep.mubr.f32.mxu0 0.0
      %1375 = vmatmul.mubr.f32.gmra.mrb[0].mxu0 %v1236
      %v1376 = vpop.f32.mrb[0].mxu0
      %v1377 = vadd.f32 0.0, %v1376
      %v1378 = vpop.f32.mrb[0].mxu0
      %1379 = vmatprep.mubr.f32.mxu0 0.0
      %1380 = vmatmul.mubr.f32.gmra.mrb[0].mxu0 %v1239
      %v1381 = vpop.f32.mrb[0].mxu0
      %v1382 = vadd.f32 0.0, %v1381
      %v1383 = vpop.f32.mrb[0].mxu0
      %1384 = vmatprep.mubr.f32.mxu0 0.0
      %1385 = vmatmul.mubr.f32.gmra.mrb[0].mxu0 %v1242
      %v1386 = vpop.f32.mrb[0].mxu0
      %v1387 = vadd.f32 0.0, %v1386
      %v1388 = vpop.f32.mrb[0].mxu0
      %1389 = vmatprep.mubr.f32.mxu0 0.0
      %1390 = vmatmul.mubr.f32.gmra.mrb[0].mxu0 %v1245
      %v1391 = vpop.f32.mrb[0].mxu0
      %v1392 = vadd.f32 0.0, %v1391
      %v1393 = vpop.f32.mrb[0].mxu0
      %1394 = vdwg.mxu0
      %v1395 = vadd.f32 %v1165, %v1317
      %v1396 = vadd.f32 %v1166, %v1322
      %v1397 = vadd.f32 %v1167, %v1327
      %v1398 = vadd.f32 %v1168, %v1332
      %v1399 = vadd.f32 %v1169, %v1337
      %v1400 = vadd.f32 %v1170, %v1342
      %v1401 = vadd.f32 %v1171, %v1347
      %v1402 = vadd.f32 %v1172, %v1352
      %v1403 = vadd.f32 %v1173, %v1357
      %v1404 = vadd.f32 %v1174, %v1362
      %v1405 = vadd.f32 %v1175, %v1367
      %v1406 = vadd.f32 %v1176, %v1372
      %v1407 = vadd.f32 %v1177, %v1377
      %v1408 = vadd.f32 %v1178, %v1382
      %v1409 = vadd.f32 %v1179, %v1387
      %v1410 = vadd.f32 %v1180, %v1392
      %v1411 = vld [vmem:[%s489 + $0x1] sm:$0xff]
      %v1412 = vld [vmem:[%s489 + $0x9] sm:$0xff]
      %v1413 = vld [vmem:[%s489 + $0x19] sm:$0xff]
      %v1414 = vld [vmem:[%s489 + $0x21] sm:$0xff]
      %v1415 = vld [vmem:[%s489 + $0x31] sm:$0xff]
      %v1416 = vld [vmem:[%s489 + $0x39] sm:$0xff]
      %v1417 = vld [vmem:[%s489 + $0x49] sm:$0xff]
      %v1418 = vld [vmem:[%s489 + $0x51] sm:$0xff]
      %v1419 = vld [vmem:[%s489 + $0x61] sm:$0xff]
      %v1420 = vld [vmem:[%s489 + $0x69] sm:$0xff]
      %v1421 = vld [vmem:[%s489 + $0x79] sm:$0xff]
      %v1422 = vld [vmem:[%s489 + $0x81] sm:$0xff]
      %v1423 = vld [vmem:[%s489 + $0x91] sm:$0xff]
      %v1424 = vld [vmem:[%s489 + $0x99] sm:$0xff]
      %v1425 = vld [vmem:[%s489 + $0xa9] sm:$0xff]
      %v1426 = vld [vmem:[%s489 + $0xb1] sm:$0xff]
      %s1427 = scalar_lea.vmem %s3, 16
      %v1428 = vld [vmem:[%s1427] sm:$0xf]
      %v1430 = vsel %vm441, %v1411, 0
      %v1433 = vsel %vm441, %v1412, 0
      %v1436 = vsel %vm441, %v1413, 0
      %v1439 = vsel %vm441, %v1414, 0
      %v1442 = vsel %vm441, %v1415, 0
      %v1445 = vsel %vm441, %v1416, 0
      %v1448 = vsel %vm441, %v1417, 0
      %v1451 = vsel %vm441, %v1418, 0
      %v1454 = vsel %vm441, %v1419, 0
      %v1457 = vsel %vm441, %v1420, 0
      %v1460 = vsel %vm441, %v1421, 0
      %v1463 = vsel %vm441, %v1422, 0
      %v1466 = vsel %vm441, %v1423, 0
      %v1469 = vsel %vm441, %v1424, 0
      %v1472 = vsel %vm441, %v1425, 0
      %v1475 = vsel %vm441, %v1426, 0
      %v1478 = vsel %vm606, %v1428, 0
      %1480 = vmatprep.subr.mxu0 0.0
      %1481 = vmatpush1.msra.mxu0 %v1478
      %1482 = vmatprep.subr.mxu0 0.0
      %1483 = vmatpush1.msra.mxu0 0.0
      %1484 = vmatprep.subr.mxu0 0.0
      %1485 = vmatpush1.msra.mxu0 0.0
      %1486 = vmatprep.subr.mxu0 0.0
      %1487 = vmatpush1.msra.mxu0 0.0
      %1488 = vmatprep.subr.mxu0 0.0
      %1489 = vmatpush1.msra.mxu0 0.0
      %1490 = vmatprep.subr.mxu0 0.0
      %1491 = vmatpush1.msra.mxu0 0.0
      %1492 = vmatprep.subr.mxu0 0.0
      %1493 = vmatpush1.msra.mxu0 0.0
      %1494 = vmatprep.subr.mxu0 0.0
      %1495 = vmatpush1.msra.mxu0 0.0
      %1496 = vmatprep.subr.mxu0 0.0
      %1497 = vmatpush1.msra.mxu0 0.0
      %1498 = vmatprep.subr.mxu0 0.0
      %1499 = vmatpush1.msra.mxu0 0.0
      %1500 = vmatprep.subr.mxu0 0.0
      %1501 = vmatpush1.msra.mxu0 0.0
      %1502 = vmatprep.subr.mxu0 0.0
      %1503 = vmatpush1.msra.mxu0 0.0
      %1504 = vmatprep.subr.mxu0 0.0
      %1505 = vmatpush1.msra.mxu0 0.0
      %1506 = vmatprep.subr.mxu0 0.0
      %1507 = vmatpush1.msra.mxu0 0.0
      %1508 = vmatprep.subr.mxu0 0.0
      %1509 = vmatpush1.msra.mxu0 0.0
      %1510 = vmatprep.subr.mxu0 0.0
      %1511 = vmatpush1.msra.mxu0 0.0
      %1512 = vmatprep.subr.mxu0 0.0
      %1513 = vmatpush1.msra.mxu0 0.0
      %1514 = vmatprep.subr.mxu0 0.0
      %1515 = vmatpush1.msra.mxu0 0.0
      %1516 = vmatprep.subr.mxu0 0.0
      %1517 = vmatpush1.msra.mxu0 0.0
      %1518 = vmatprep.subr.mxu0 0.0
      %1519 = vmatpush1.msra.mxu0 0.0
      %1520 = vmatprep.subr.mxu0 0.0
      %1521 = vmatpush1.msra.mxu0 0.0
      %1522 = vmatprep.subr.mxu0 0.0
      %1523 = vmatpush1.msra.mxu0 0.0
      %1524 = vmatprep.subr.mxu0 0.0
      %1525 = vmatpush1.msra.mxu0 0.0
      %1526 = vmatprep.subr.mxu0 0.0
      %1527 = vmatpush1.msra.mxu0 0.0
      %1528 = vmatprep.subr.mxu0 0.0
      %1529 = vmatpush1.msra.mxu0 0.0
      %1530 = vmatprep.subr.mxu0 0.0
      %1531 = vmatpush1.msra.mxu0 0.0
      %1532 = vmatprep.subr.mxu0 0.0
      %1533 = vmatpush1.msra.mxu0 0.0
      %1534 = vmatprep.subr.mxu0 0.0
      %1535 = vmatpush1.msra.mxu0 0.0
      %1536 = vmatprep.subr.mxu0 0.0
      %1537 = vmatpush1.msra.mxu0 0.0
      %1538 = vmatprep.subr.mxu0 0.0
      %1539 = vmatpush1.msra.mxu0 0.0
      %1540 = vmatprep.subr.mxu0 0.0
      %1541 = vmatpush1.msra.mxu0 0.0
      %1542 = vmatprep.subr.mxu0 0.0
      %1543 = vmatpush1.msra.mxu0 0.0
      %1544 = vmatprep.mubr.f32.mxu0 0.0
      %1545 = vmatmul.mubr.f32.gmra.mrb[0].mxu0 %v1430
      %v1546 = vpop.f32.mrb[0].mxu0
      %v1547 = vadd.f32 0.0, %v1546
      %v1548 = vpop.f32.mrb[0].mxu0
      %1549 = vmatprep.mubr.f32.mxu0 0.0
      %1550 = vmatmul.mubr.f32.gmra.mrb[0].mxu0 %v1433
      %v1551 = vpop.f32.mrb[0].mxu0
      %v1552 = vadd.f32 0.0, %v1551
      %v1553 = vpop.f32.mrb[0].mxu0
      %1554 = vmatprep.mubr.f32.mxu0 0.0
      %1555 = vmatmul.mubr.f32.gmra.mrb[0].mxu0 %v1436
      %v1556 = vpop.f32.mrb[0].mxu0
      %v1557 = vadd.f32 0.0, %v1556
      %v1558 = vpop.f32.mrb[0].mxu0
      %1559 = vmatprep.mubr.f32.mxu0 0.0
      %1560 = vmatmul.mubr.f32.gmra.mrb[0].mxu0 %v1439
      %v1561 = vpop.f32.mrb[0].mxu0
      %v1562 = vadd.f32 0.0, %v1561
      %v1563 = vpop.f32.mrb[0].mxu0
      %1564 = vmatprep.mubr.f32.mxu0 0.0
      %1565 = vmatmul.mubr.f32.gmra.mrb[0].mxu0 %v1442
      %v1566 = vpop.f32.mrb[0].mxu0
      %v1567 = vadd.f32 0.0, %v1566
      %v1568 = vpop.f32.mrb[0].mxu0
      %1569 = vmatprep.mubr.f32.mxu0 0.0
      %1570 = vmatmul.mubr.f32.gmra.mrb[0].mxu0 %v1445
      %v1571 = vpop.f32.mrb[0].mxu0
      %v1572 = vadd.f32 0.0, %v1571
      %v1573 = vpop.f32.mrb[0].mxu0
      %1574 = vmatprep.mubr.f32.mxu0 0.0
      %1575 = vmatmul.mubr.f32.gmra.mrb[0].mxu0 %v1448
      %v1576 = vpop.f32.mrb[0].mxu0
      %v1577 = vadd.f32 0.0, %v1576
      %v1578 = vpop.f32.mrb[0].mxu0
      %1579 = vmatprep.mubr.f32.mxu0 0.0
      %1580 = vmatmul.mubr.f32.gmra.mrb[0].mxu0 %v1451
      %v1581 = vpop.f32.mrb[0].mxu0
      %v1582 = vadd.f32 0.0, %v1581
      %v1583 = vpop.f32.mrb[0].mxu0
      %1584 = vmatprep.mubr.f32.mxu0 0.0
      %1585 = vmatmul.mubr.f32.gmra.mrb[0].mxu0 %v1454
      %v1586 = vpop.f32.mrb[0].mxu0
      %v1587 = vadd.f32 0.0, %v1586
      %v1588 = vpop.f32.mrb[0].mxu0
      %1589 = vmatprep.mubr.f32.mxu0 0.0
      %1590 = vmatmul.mubr.f32.gmra.mrb[0].mxu0 %v1457
      %v1591 = vpop.f32.mrb[0].mxu0
      %v1592 = vadd.f32 0.0, %v1591
      %v1593 = vpop.f32.mrb[0].mxu0
      %1594 = vmatprep.mubr.f32.mxu0 0.0
      %1595 = vmatmul.mubr.f32.gmra.mrb[0].mxu0 %v1460
      %v1596 = vpop.f32.mrb[0].mxu0
      %v1597 = vadd.f32 0.0, %v1596
      %v1598 = vpop.f32.mrb[0].mxu0
      %1599 = vmatprep.mubr.f32.mxu0 0.0
      %1600 = vmatmul.mubr.f32.gmra.mrb[0].mxu0 %v1463
      %v1601 = vpop.f32.mrb[0].mxu0
      %v1602 = vadd.f32 0.0, %v1601
      %v1603 = vpop.f32.mrb[0].mxu0
      %1604 = vmatprep.mubr.f32.mxu0 0.0
      %1605 = vmatmul.mubr.f32.gmra.mrb[0].mxu0 %v1466
      %v1606 = vpop.f32.mrb[0].mxu0
      %v1607 = vadd.f32 0.0, %v1606
      %v1608 = vpop.f32.mrb[0].mxu0
      %1609 = vmatprep.mubr.f32.mxu0 0.0
      %1610 = vmatmul.mubr.f32.gmra.mrb[0].mxu0 %v1469
      %v1611 = vpop.f32.mrb[0].mxu0
      %v1612 = vadd.f32 0.0, %v1611
      %v1613 = vpop.f32.mrb[0].mxu0
      %1614 = vmatprep.mubr.f32.mxu0 0.0
      %1615 = vmatmul.mubr.f32.gmra.mrb[0].mxu0 %v1472
      %v1616 = vpop.f32.mrb[0].mxu0
      %v1617 = vadd.f32 0.0, %v1616
      %v1618 = vpop.f32.mrb[0].mxu0
      %1619 = vmatprep.mubr.f32.mxu0 0.0
      %1620 = vmatmul.mubr.f32.gmra.mrb[0].mxu0 %v1475
      %v1621 = vpop.f32.mrb[0].mxu0
      %v1622 = vadd.f32 0.0, %v1621
      %v1623 = vpop.f32.mrb[0].mxu0
      %1624 = vdwg.mxu0
      %v1625 = vadd.f32 %v1395, %v1547
      %v1626 = vadd.f32 %v1396, %v1552
      %v1627 = vadd.f32 %v1397, %v1557
      %v1628 = vadd.f32 %v1398, %v1562
      %v1629 = vadd.f32 %v1399, %v1567
      %v1630 = vadd.f32 %v1400, %v1572
      %v1631 = vadd.f32 %v1401, %v1577
      %v1632 = vadd.f32 %v1402, %v1582
      %v1633 = vadd.f32 %v1403, %v1587
      %v1634 = vadd.f32 %v1404, %v1592
      %v1635 = vadd.f32 %v1405, %v1597
      %v1636 = vadd.f32 %v1406, %v1602
      %v1637 = vadd.f32 %v1407, %v1607
      %v1638 = vadd.f32 %v1408, %v1612
      %v1639 = vadd.f32 %v1409, %v1617
      %v1640 = vadd.f32 %v1410, %v1622
      %v1641 = vld [vmem:[%s489 + $0x2] sm:$0xff]
      %v1642 = vld [vmem:[%s489 + $0xa] sm:$0xff]
      %v1643 = vld [vmem:[%s489 + $0x1a] sm:$0xff]
      %v1644 = vld [vmem:[%s489 + $0x22] sm:$0xff]
      %v1645 = vld [vmem:[%s489 + $0x32] sm:$0xff]
      %v1646 = vld [vmem:[%s489 + $0x3a] sm:$0xff]
      %v1647 = vld [vmem:[%s489 + $0x4a] sm:$0xff]
      %v1648 = vld [vmem:[%s489 + $0x52] sm:$0xff]
      %v1649 = vld [vmem:[%s489 + $0x62] sm:$0xff]
      %v1650 = vld [vmem:[%s489 + $0x6a] sm:$0xff]
      %v1651 = vld [vmem:[%s489 + $0x7a] sm:$0xff]
      %v1652 = vld [vmem:[%s489 + $0x82] sm:$0xff]
      %v1653 = vld [vmem:[%s489 + $0x92] sm:$0xff]
      %v1654 = vld [vmem:[%s489 + $0x9a] sm:$0xff]
      %v1655 = vld [vmem:[%s489 + $0xaa] sm:$0xff]
      %v1656 = vld [vmem:[%s489 + $0xb2] sm:$0xff]
      %s1657 = scalar_lea.vmem %s3, 20
      %v1658 = vld [vmem:[%s1657] sm:$0xf]
      %v1660 = vsel %vm441, %v1641, 0
      %v1663 = vsel %vm441, %v1642, 0
      %v1666 = vsel %vm441, %v1643, 0
      %v1669 = vsel %vm441, %v1644, 0
      %v1672 = vsel %vm441, %v1645, 0
      %v1675 = vsel %vm441, %v1646, 0
      %v1678 = vsel %vm441, %v1647, 0
      %v1681 = vsel %vm441, %v1648, 0
      %v1684 = vsel %vm441, %v1649, 0
      %v1687 = vsel %vm441, %v1650, 0
      %v1690 = vsel %vm441, %v1651, 0
      %v1693 = vsel %vm441, %v1652, 0
      %v1696 = vsel %vm441, %v1653, 0
      %v1699 = vsel %vm441, %v1654, 0
      %v1702 = vsel %vm441, %v1655, 0
      %v1705 = vsel %vm441, %v1656, 0
      %v1708 = vsel %vm606, %v1658, 0
      %1710 = vmatprep.subr.mxu0 0.0
      %1711 = vmatpush1.msra.mxu0 %v1708
      %1712 = vmatprep.subr.mxu0 0.0
      %1713 = vmatpush1.msra.mxu0 0.0
      %1714 = vmatprep.subr.mxu0 0.0
      %1715 = vmatpush1.msra.mxu0 0.0
      %1716 = vmatprep.subr.mxu0 0.0
      %1717 = vmatpush1.msra.mxu0 0.0
      %1718 = vmatprep.subr.mxu0 0.0
      %1719 = vmatpush1.msra.mxu0 0.0
      %1720 = vmatprep.subr.mxu0 0.0
      %1721 = vmatpush1.msra.mxu0 0.0
      %1722 = vmatprep.subr.mxu0 0.0
      %1723 = vmatpush1.msra.mxu0 0.0
      %1724 = vmatprep.subr.mxu0 0.0
      %1725 = vmatpush1.msra.mxu0 0.0
      %1726 = vmatprep.subr.mxu0 0.0
      %1727 = vmatpush1.msra.mxu0 0.0
      %1728 = vmatprep.subr.mxu0 0.0
      %1729 = vmatpush1.msra.mxu0 0.0
      %1730 = vmatprep.subr.mxu0 0.0
      %1731 = vmatpush1.msra.mxu0 0.0
      %1732 = vmatprep.subr.mxu0 0.0
      %1733 = vmatpush1.msra.mxu0 0.0
      %1734 = vmatprep.subr.mxu0 0.0
      %1735 = vmatpush1.msra.mxu0 0.0
      %1736 = vmatprep.subr.mxu0 0.0
      %1737 = vmatpush1.msra.mxu0 0.0
      %1738 = vmatprep.subr.mxu0 0.0
      %1739 = vmatpush1.msra.mxu0 0.0
      %1740 = vmatprep.subr.mxu0 0.0
      %1741 = vmatpush1.msra.mxu0 0.0
      %1742 = vmatprep.subr.mxu0 0.0
      %1743 = vmatpush1.msra.mxu0 0.0
      %1744 = vmatprep.subr.mxu0 0.0
      %1745 = vmatpush1.msra.mxu0 0.0
      %1746 = vmatprep.subr.mxu0 0.0
      %1747 = vmatpush1.msra.mxu0 0.0
      %1748 = vmatprep.subr.mxu0 0.0
      %1749 = vmatpush1.msra.mxu0 0.0
      %1750 = vmatprep.subr.mxu0 0.0
      %1751 = vmatpush1.msra.mxu0 0.0
      %1752 = vmatprep.subr.mxu0 0.0
      %1753 = vmatpush1.msra.mxu0 0.0
      %1754 = vmatprep.subr.mxu0 0.0
      %1755 = vmatpush1.msra.mxu0 0.0
      %1756 = vmatprep.subr.mxu0 0.0
      %1757 = vmatpush1.msra.mxu0 0.0
      %1758 = vmatprep.subr.mxu0 0.0
      %1759 = vmatpush1.msra.mxu0 0.0
      %1760 = vmatprep.subr.mxu0 0.0
      %1761 = vmatpush1.msra.mxu0 0.0
      %1762 = vmatprep.subr.mxu0 0.0
      %1763 = vmatpush1.msra.mxu0 0.0
      %1764 = vmatprep.subr.mxu0 0.0
      %1765 = vmatpush1.msra.mxu0 0.0
      %1766 = vmatprep.subr.mxu0 0.0
      %1767 = vmatpush1.msra.mxu0 0.0
      %1768 = vmatprep.subr.mxu0 0.0
      %1769 = vmatpush1.msra.mxu0 0.0
      %1770 = vmatprep.subr.mxu0 0.0
      %1771 = vmatpush1.msra.mxu0 0.0
      %1772 = vmatprep.subr.mxu0 0.0
      %1773 = vmatpush1.msra.mxu0 0.0
      %1774 = vmatprep.mubr.f32.mxu0 0.0
      %1775 = vmatmul.mubr.f32.gmra.mrb[0].mxu0 %v1660
      %v1776 = vpop.f32.mrb[0].mxu0
      %v1777 = vadd.f32 0.0, %v1776
      %v1778 = vpop.f32.mrb[0].mxu0
      %1779 = vmatprep.mubr.f32.mxu0 0.0
      %1780 = vmatmul.mubr.f32.gmra.mrb[0].mxu0 %v1663
      %v1781 = vpop.f32.mrb[0].mxu0
      %v1782 = vadd.f32 0.0, %v1781
      %v1783 = vpop.f32.mrb[0].mxu0
      %1784 = vmatprep.mubr.f32.mxu0 0.0
      %1785 = vmatmul.mubr.f32.gmra.mrb[0].mxu0 %v1666
      %v1786 = vpop.f32.mrb[0].mxu0
      %v1787 = vadd.f32 0.0, %v1786
      %v1788 = vpop.f32.mrb[0].mxu0
      %1789 = vmatprep.mubr.f32.mxu0 0.0
      %1790 = vmatmul.mubr.f32.gmra.mrb[0].mxu0 %v1669
      %v1791 = vpop.f32.mrb[0].mxu0
      %v1792 = vadd.f32 0.0, %v1791
      %v1793 = vpop.f32.mrb[0].mxu0
      %1794 = vmatprep.mubr.f32.mxu0 0.0
      %1795 = vmatmul.mubr.f32.gmra.mrb[0].mxu0 %v1672
      %v1796 = vpop.f32.mrb[0].mxu0
      %v1797 = vadd.f32 0.0, %v1796
      %v1798 = vpop.f32.mrb[0].mxu0
      %1799 = vmatprep.mubr.f32.mxu0 0.0
      %1800 = vmatmul.mubr.f32.gmra.mrb[0].mxu0 %v1675
      %v1801 = vpop.f32.mrb[0].mxu0
      %v1802 = vadd.f32 0.0, %v1801
      %v1803 = vpop.f32.mrb[0].mxu0
      %1804 = vmatprep.mubr.f32.mxu0 0.0
      %1805 = vmatmul.mubr.f32.gmra.mrb[0].mxu0 %v1678
      %v1806 = vpop.f32.mrb[0].mxu0
      %v1807 = vadd.f32 0.0, %v1806
      %v1808 = vpop.f32.mrb[0].mxu0
      %1809 = vmatprep.mubr.f32.mxu0 0.0
      %1810 = vmatmul.mubr.f32.gmra.mrb[0].mxu0 %v1681
      %v1811 = vpop.f32.mrb[0].mxu0
      %v1812 = vadd.f32 0.0, %v1811
      %v1813 = vpop.f32.mrb[0].mxu0
      %1814 = vmatprep.mubr.f32.mxu0 0.0
      %1815 = vmatmul.mubr.f32.gmra.mrb[0].mxu0 %v1684
      %v1816 = vpop.f32.mrb[0].mxu0
      %v1817 = vadd.f32 0.0, %v1816
      %v1818 = vpop.f32.mrb[0].mxu0
      %1819 = vmatprep.mubr.f32.mxu0 0.0
      %1820 = vmatmul.mubr.f32.gmra.mrb[0].mxu0 %v1687
      %v1821 = vpop.f32.mrb[0].mxu0
      %v1822 = vadd.f32 0.0, %v1821
      %v1823 = vpop.f32.mrb[0].mxu0
      %1824 = vmatprep.mubr.f32.mxu0 0.0
      %1825 = vmatmul.mubr.f32.gmra.mrb[0].mxu0 %v1690
      %v1826 = vpop.f32.mrb[0].mxu0
      %v1827 = vadd.f32 0.0, %v1826
      %v1828 = vpop.f32.mrb[0].mxu0
      %1829 = vmatprep.mubr.f32.mxu0 0.0
      %1830 = vmatmul.mubr.f32.gmra.mrb[0].mxu0 %v1693
      %v1831 = vpop.f32.mrb[0].mxu0
      %v1832 = vadd.f32 0.0, %v1831
      %v1833 = vpop.f32.mrb[0].mxu0
      %1834 = vmatprep.mubr.f32.mxu0 0.0
      %1835 = vmatmul.mubr.f32.gmra.mrb[0].mxu0 %v1696
      %v1836 = vpop.f32.mrb[0].mxu0
      %v1837 = vadd.f32 0.0, %v1836
      %v1838 = vpop.f32.mrb[0].mxu0
      %1839 = vmatprep.mubr.f32.mxu0 0.0
      %1840 = vmatmul.mubr.f32.gmra.mrb[0].mxu0 %v1699
      %v1841 = vpop.f32.mrb[0].mxu0
      %v1842 = vadd.f32 0.0, %v1841
      %v1843 = vpop.f32.mrb[0].mxu0
      %1844 = vmatprep.mubr.f32.mxu0 0.0
      %1845 = vmatmul.mubr.f32.gmra.mrb[0].mxu0 %v1702
      %v1846 = vpop.f32.mrb[0].mxu0
      %v1847 = vadd.f32 0.0, %v1846
      %v1848 = vpop.f32.mrb[0].mxu0
      %1849 = vmatprep.mubr.f32.mxu0 0.0
      %1850 = vmatmul.mubr.f32.gmra.mrb[0].mxu0 %v1705
      %v1851 = vpop.f32.mrb[0].mxu0
      %v1852 = vadd.f32 0.0, %v1851
      %v1853 = vpop.f32.mrb[0].mxu0
      %1854 = vdwg.mxu0
      %v1855 = vadd.f32 %v1625, %v1777
      %v1856 = vadd.f32 %v1626, %v1782
      %v1857 = vadd.f32 %v1627, %v1787
      %v1858 = vadd.f32 %v1628, %v1792
      %v1859 = vadd.f32 %v1629, %v1797
      %v1860 = vadd.f32 %v1630, %v1802
      %v1861 = vadd.f32 %v1631, %v1807
      %v1862 = vadd.f32 %v1632, %v1812
      %v1863 = vadd.f32 %v1633, %v1817
      %v1864 = vadd.f32 %v1634, %v1822
      %v1865 = vadd.f32 %v1635, %v1827
      %v1866 = vadd.f32 %v1636, %v1832
      %v1867 = vadd.f32 %v1637, %v1837
      %v1868 = vadd.f32 %v1638, %v1842
      %v1869 = vadd.f32 %v1639, %v1847
      %v1870 = vadd.f32 %v1640, %v1852
      %s1871 = scalar_lea.vmem [#allocation2], 48
      %v1872 = vld [vmem:[%s1871] sm:$0xff]
      %v1873 = vld [vmem:[%s1871 + $0x8] sm:$0xff]
      %v1874 = vld [vmem:[%s1871 + $0x18] sm:$0xff]
      %v1875 = vld [vmem:[%s1871 + $0x20] sm:$0xff]
      %v1876 = vld [vmem:[%s1871 + $0x30] sm:$0xff]
      %v1877 = vld [vmem:[%s1871 + $0x38] sm:$0xff]
      %v1878 = vld [vmem:[%s1871 + $0x48] sm:$0xff]
      %v1879 = vld [vmem:[%s1871 + $0x50] sm:$0xff]
      %v1880 = vld [vmem:[%s1871 + $0x60] sm:$0xff]
      %v1881 = vld [vmem:[%s1871 + $0x68] sm:$0xff]
      %v1882 = vld [vmem:[%s1871 + $0x78] sm:$0xff]
      %v1883 = vld [vmem:[%s1871 + $0x80] sm:$0xff]
      %v1884 = vld [vmem:[%s1871 + $0x90] sm:$0xff]
      %v1885 = vld [vmem:[%s1871 + $0x98] sm:$0xff]
      %v1886 = vld [vmem:[%s1871 + $0xa8] sm:$0xff]
      %v1887 = vld [vmem:[%s1871 + $0xb0] sm:$0xff]
      %s1888 = scalar_lea.vmem %s3, 24
      %v1889 = vld [vmem:[%s1888] sm:$0xf]
      %v1891 = vsel %vm441, %v1872, 0
      %v1894 = vsel %vm441, %v1873, 0
      %v1897 = vsel %vm441, %v1874, 0
      %v1900 = vsel %vm441, %v1875, 0
      %v1903 = vsel %vm441, %v1876, 0
      %v1906 = vsel %vm441, %v1877, 0
      %v1909 = vsel %vm441, %v1878, 0
      %v1912 = vsel %vm441, %v1879, 0
      %v1915 = vsel %vm441, %v1880, 0
      %v1918 = vsel %vm441, %v1881, 0
      %v1921 = vsel %vm441, %v1882, 0
      %v1924 = vsel %vm441, %v1883, 0
      %v1927 = vsel %vm441, %v1884, 0
      %v1930 = vsel %vm441, %v1885, 0
      %v1933 = vsel %vm441, %v1886, 0
      %v1936 = vsel %vm441, %v1887, 0
      %v1939 = vsel %vm606, %v1889, 0
      %1941 = vmatprep.subr.mxu0 0.0
      %1942 = vmatpush1.msra.mxu0 %v1939
      %1943 = vmatprep.subr.mxu0 0.0
      %1944 = vmatpush1.msra.mxu0 0.0
      %1945 = vmatprep.subr.mxu0 0.0
      %1946 = vmatpush1.msra.mxu0 0.0
      %1947 = vmatprep.subr.mxu0 0.0
      %1948 = vmatpush1.msra.mxu0 0.0
      %1949 = vmatprep.subr.mxu0 0.0
      %1950 = vmatpush1.msra.mxu0 0.0
      %1951 = vmatprep.subr.mxu0 0.0
      %1952 = vmatpush1.msra.mxu0 0.0
      %1953 = vmatprep.subr.mxu0 0.0
      %1954 = vmatpush1.msra.mxu0 0.0
      %1955 = vmatprep.subr.mxu0 0.0
      %1956 = vmatpush1.msra.mxu0 0.0
      %1957 = vmatprep.subr.mxu0 0.0
      %1958 = vmatpush1.msra.mxu0 0.0
      %1959 = vmatprep.subr.mxu0 0.0
      %1960 = vmatpush1.msra.mxu0 0.0
      %1961 = vmatprep.subr.mxu0 0.0
      %1962 = vmatpush1.msra.mxu0 0.0
      %1963 = vmatprep.subr.mxu0 0.0
      %1964 = vmatpush1.msra.mxu0 0.0
      %1965 = vmatprep.subr.mxu0 0.0
      %1966 = vmatpush1.msra.mxu0 0.0
      %1967 = vmatprep.subr.mxu0 0.0
      %1968 = vmatpush1.msra.mxu0 0.0
      %1969 = vmatprep.subr.mxu0 0.0
      %1970 = vmatpush1.msra.mxu0 0.0
      %1971 = vmatprep.subr.mxu0 0.0
      %1972 = vmatpush1.msra.mxu0 0.0
      %1973 = vmatprep.subr.mxu0 0.0
      %1974 = vmatpush1.msra.mxu0 0.0
      %1975 = vmatprep.subr.mxu0 0.0
      %1976 = vmatpush1.msra.mxu0 0.0
      %1977 = vmatprep.subr.mxu0 0.0
      %1978 = vmatpush1.msra.mxu0 0.0
      %1979 = vmatprep.subr.mxu0 0.0
      %1980 = vmatpush1.msra.mxu0 0.0
      %1981 = vmatprep.subr.mxu0 0.0
      %1982 = vmatpush1.msra.mxu0 0.0
      %1983 = vmatprep.subr.mxu0 0.0
      %1984 = vmatpush1.msra.mxu0 0.0
      %1985 = vmatprep.subr.mxu0 0.0
      %1986 = vmatpush1.msra.mxu0 0.0
      %1987 = vmatprep.subr.mxu0 0.0
      %1988 = vmatpush1.msra.mxu0 0.0
      %1989 = vmatprep.subr.mxu0 0.0
      %1990 = vmatpush1.msra.mxu0 0.0
      %1991 = vmatprep.subr.mxu0 0.0
      %1992 = vmatpush1.msra.mxu0 0.0
      %1993 = vmatprep.subr.mxu0 0.0
      %1994 = vmatpush1.msra.mxu0 0.0
      %1995 = vmatprep.subr.mxu0 0.0
      %1996 = vmatpush1.msra.mxu0 0.0
      %1997 = vmatprep.subr.mxu0 0.0
      %1998 = vmatpush1.msra.mxu0 0.0
      %1999 = vmatprep.subr.mxu0 0.0
      %2000 = vmatpush1.msra.mxu0 0.0
      %2001 = vmatprep.subr.mxu0 0.0
      %2002 = vmatpush1.msra.mxu0 0.0
      %2003 = vmatprep.subr.mxu0 0.0
      %2004 = vmatpush1.msra.mxu0 0.0
      %2005 = vmatprep.mubr.f32.mxu0 0.0
      %2006 = vmatmul.mubr.f32.gmra.mrb[0].mxu0 %v1891
      %v2007 = vpop.f32.mrb[0].mxu0
      %v2008 = vadd.f32 0.0, %v2007
      %v2009 = vpop.f32.mrb[0].mxu0
      %2010 = vmatprep.mubr.f32.mxu0 0.0
      %2011 = vmatmul.mubr.f32.gmra.mrb[0].mxu0 %v1894
      %v2012 = vpop.f32.mrb[0].mxu0
      %v2013 = vadd.f32 0.0, %v2012
      %v2014 = vpop.f32.mrb[0].mxu0
      %2015 = vmatprep.mubr.f32.mxu0 0.0
      %2016 = vmatmul.mubr.f32.gmra.mrb[0].mxu0 %v1897
      %v2017 = vpop.f32.mrb[0].mxu0
      %v2018 = vadd.f32 0.0, %v2017
      %v2019 = vpop.f32.mrb[0].mxu0
      %2020 = vmatprep.mubr.f32.mxu0 0.0
      %2021 = vmatmul.mubr.f32.gmra.mrb[0].mxu0 %v1900
      %v2022 = vpop.f32.mrb[0].mxu0
      %v2023 = vadd.f32 0.0, %v2022
      %v2024 = vpop.f32.mrb[0].mxu0
      %2025 = vmatprep.mubr.f32.mxu0 0.0
      %2026 = vmatmul.mubr.f32.gmra.mrb[0].mxu0 %v1903
      %v2027 = vpop.f32.mrb[0].mxu0
      %v2028 = vadd.f32 0.0, %v2027
      %v2029 = vpop.f32.mrb[0].mxu0
      %2030 = vmatprep.mubr.f32.mxu0 0.0
      %2031 = vmatmul.mubr.f32.gmra.mrb[0].mxu0 %v1906
      %v2032 = vpop.f32.mrb[0].mxu0
      %v2033 = vadd.f32 0.0, %v2032
      %v2034 = vpop.f32.mrb[0].mxu0
      %2035 = vmatprep.mubr.f32.mxu0 0.0
      %2036 = vmatmul.mubr.f32.gmra.mrb[0].mxu0 %v1909
      %v2037 = vpop.f32.mrb[0].mxu0
      %v2038 = vadd.f32 0.0, %v2037
      %v2039 = vpop.f32.mrb[0].mxu0
      %2040 = vmatprep.mubr.f32.mxu0 0.0
      %2041 = vmatmul.mubr.f32.gmra.mrb[0].mxu0 %v1912
      %v2042 = vpop.f32.mrb[0].mxu0
      %v2043 = vadd.f32 0.0, %v2042
      %v2044 = vpop.f32.mrb[0].mxu0
      %2045 = vmatprep.mubr.f32.mxu0 0.0
      %2046 = vmatmul.mubr.f32.gmra.mrb[0].mxu0 %v1915
      %v2047 = vpop.f32.mrb[0].mxu0
      %v2048 = vadd.f32 0.0, %v2047
      %v2049 = vpop.f32.mrb[0].mxu0
      %2050 = vmatprep.mubr.f32.mxu0 0.0
      %2051 = vmatmul.mubr.f32.gmra.mrb[0].mxu0 %v1918
      %v2052 = vpop.f32.mrb[0].mxu0
      %v2053 = vadd.f32 0.0, %v2052
      %v2054 = vpop.f32.mrb[0].mxu0
      %2055 = vmatprep.mubr.f32.mxu0 0.0
      %2056 = vmatmul.mubr.f32.gmra.mrb[0].mxu0 %v1921
      %v2057 = vpop.f32.mrb[0].mxu0
      %v2058 = vadd.f32 0.0, %v2057
      %v2059 = vpop.f32.mrb[0].mxu0
      %2060 = vmatprep.mubr.f32.mxu0 0.0
      %2061 = vmatmul.mubr.f32.gmra.mrb[0].mxu0 %v1924
      %v2062 = vpop.f32.mrb[0].mxu0
      %v2063 = vadd.f32 0.0, %v2062
      %v2064 = vpop.f32.mrb[0].mxu0
      %2065 = vmatprep.mubr.f32.mxu0 0.0
      %2066 = vmatmul.mubr.f32.gmra.mrb[0].mxu0 %v1927
      %v2067 = vpop.f32.mrb[0].mxu0
      %v2068 = vadd.f32 0.0, %v2067
      %v2069 = vpop.f32.mrb[0].mxu0
      %2070 = vmatprep.mubr.f32.mxu0 0.0
      %2071 = vmatmul.mubr.f32.gmra.mrb[0].mxu0 %v1930
      %v2072 = vpop.f32.mrb[0].mxu0
      %v2073 = vadd.f32 0.0, %v2072
      %v2074 = vpop.f32.mrb[0].mxu0
      %2075 = vmatprep.mubr.f32.mxu0 0.0
      %2076 = vmatmul.mubr.f32.gmra.mrb[0].mxu0 %v1933
      %v2077 = vpop.f32.mrb[0].mxu0
      %v2078 = vadd.f32 0.0, %v2077
      %v2079 = vpop.f32.mrb[0].mxu0
      %2080 = vmatprep.mubr.f32.mxu0 0.0
      %2081 = vmatmul.mubr.f32.gmra.mrb[0].mxu0 %v1936
      %v2082 = vpop.f32.mrb[0].mxu0
      %v2083 = vadd.f32 0.0, %v2082
      %v2084 = vpop.f32.mrb[0].mxu0
      %2085 = vdwg.mxu0
      %v2086 = vadd.f32 %v1855, %v2008
      %v2087 = vadd.f32 %v1856, %v2013
      %v2088 = vadd.f32 %v1857, %v2018
      %v2089 = vadd.f32 %v1858, %v2023
      %v2090 = vadd.f32 %v1859, %v2028
      %v2091 = vadd.f32 %v1860, %v2033
      %v2092 = vadd.f32 %v1861, %v2038
      %v2093 = vadd.f32 %v1862, %v2043
      %v2094 = vadd.f32 %v1863, %v2048
      %v2095 = vadd.f32 %v1864, %v2053
      %v2096 = vadd.f32 %v1865, %v2058
      %v2097 = vadd.f32 %v1866, %v2063
      %v2098 = vadd.f32 %v1867, %v2068
      %v2099 = vadd.f32 %v1868, %v2073
      %v2100 = vadd.f32 %v1869, %v2078
      %v2101 = vadd.f32 %v1870, %v2083
      %v2102 = vld [vmem:[%s1871 + $0x1] sm:$0xff]
      %v2103 = vld [vmem:[%s1871 + $0x9] sm:$0xff]
      %v2104 = vld [vmem:[%s1871 + $0x19] sm:$0xff]
      %v2105 = vld [vmem:[%s1871 + $0x21] sm:$0xff]
      %v2106 = vld [vmem:[%s1871 + $0x31] sm:$0xff]
      %v2107 = vld [vmem:[%s1871 + $0x39] sm:$0xff]
      %v2108 = vld [vmem:[%s1871 + $0x49] sm:$0xff]
      %v2109 = vld [vmem:[%s1871 + $0x51] sm:$0xff]
      %v2110 = vld [vmem:[%s1871 + $0x61] sm:$0xff]
      %v2111 = vld [vmem:[%s1871 + $0x69] sm:$0xff]
      %v2112 = vld [vmem:[%s1871 + $0x79] sm:$0xff]
      %v2113 = vld [vmem:[%s1871 + $0x81] sm:$0xff]
      %v2114 = vld [vmem:[%s1871 + $0x91] sm:$0xff]
      %v2115 = vld [vmem:[%s1871 + $0x99] sm:$0xff]
      %v2116 = vld [vmem:[%s1871 + $0xa9] sm:$0xff]
      %v2117 = vld [vmem:[%s1871 + $0xb1] sm:$0xff]
      %s2118 = scalar_lea.vmem %s3, 28
      %v2119 = vld [vmem:[%s2118] sm:$0xf]
      %v2121 = vsel %vm441, %v2102, 0
      %v2124 = vsel %vm441, %v2103, 0
      %v2127 = vsel %vm441, %v2104, 0
      %v2130 = vsel %vm441, %v2105, 0
      %v2133 = vsel %vm441, %v2106, 0
      %v2136 = vsel %vm441, %v2107, 0
      %v2139 = vsel %vm441, %v2108, 0
      %v2142 = vsel %vm441, %v2109, 0
      %v2145 = vsel %vm441, %v2110, 0
      %v2148 = vsel %vm441, %v2111, 0
      %v2151 = vsel %vm441, %v2112, 0
      %v2154 = vsel %vm441, %v2113, 0
      %v2157 = vsel %vm441, %v2114, 0
      %v2160 = vsel %vm441, %v2115, 0
      %v2163 = vsel %vm441, %v2116, 0
      %v2166 = vsel %vm441, %v2117, 0
      %v2169 = vsel %vm606, %v2119, 0
      %2171 = vmatprep.subr.mxu0 0.0
      %2172 = vmatpush1.msra.mxu0 %v2169
      %2173 = vmatprep.subr.mxu0 0.0
      %2174 = vmatpush1.msra.mxu0 0.0
      %2175 = vmatprep.subr.mxu0 0.0
      %2176 = vmatpush1.msra.mxu0 0.0
      %2177 = vmatprep.subr.mxu0 0.0
      %2178 = vmatpush1.msra.mxu0 0.0
      %2179 = vmatprep.subr.mxu0 0.0
      %2180 = vmatpush1.msra.mxu0 0.0
      %2181 = vmatprep.subr.mxu0 0.0
      %2182 = vmatpush1.msra.mxu0 0.0
      %2183 = vmatprep.subr.mxu0 0.0
      %2184 = vmatpush1.msra.mxu0 0.0
      %2185 = vmatprep.subr.mxu0 0.0
      %2186 = vmatpush1.msra.mxu0 0.0
      %2187 = vmatprep.subr.mxu0 0.0
      %2188 = vmatpush1.msra.mxu0 0.0
      %2189 = vmatprep.subr.mxu0 0.0
      %2190 = vmatpush1.msra.mxu0 0.0
      %2191 = vmatprep.subr.mxu0 0.0
      %2192 = vmatpush1.msra.mxu0 0.0
      %2193 = vmatprep.subr.mxu0 0.0
      %2194 = vmatpush1.msra.mxu0 0.0
      %2195 = vmatprep.subr.mxu0 0.0
      %2196 = vmatpush1.msra.mxu0 0.0
      %2197 = vmatprep.subr.mxu0 0.0
      %2198 = vmatpush1.msra.mxu0 0.0
      %2199 = vmatprep.subr.mxu0 0.0
      %2200 = vmatpush1.msra.mxu0 0.0
      %2201 = vmatprep.subr.mxu0 0.0
      %2202 = vmatpush1.msra.mxu0 0.0
      %2203 = vmatprep.subr.mxu0 0.0
      %2204 = vmatpush1.msra.mxu0 0.0
      %2205 = vmatprep.subr.mxu0 0.0
      %2206 = vmatpush1.msra.mxu0 0.0
      %2207 = vmatprep.subr.mxu0 0.0
      %2208 = vmatpush1.msra.mxu0 0.0
      %2209 = vmatprep.subr.mxu0 0.0
      %2210 = vmatpush1.msra.mxu0 0.0
      %2211 = vmatprep.subr.mxu0 0.0
      %2212 = vmatpush1.msra.mxu0 0.0
      %2213 = vmatprep.subr.mxu0 0.0
      %2214 = vmatpush1.msra.mxu0 0.0
      %2215 = vmatprep.subr.mxu0 0.0
      %2216 = vmatpush1.msra.mxu0 0.0
      %2217 = vmatprep.subr.mxu0 0.0
      %2218 = vmatpush1.msra.mxu0 0.0
      %2219 = vmatprep.subr.mxu0 0.0
      %2220 = vmatpush1.msra.mxu0 0.0
      %2221 = vmatprep.subr.mxu0 0.0
      %2222 = vmatpush1.msra.mxu0 0.0
      %2223 = vmatprep.subr.mxu0 0.0
      %2224 = vmatpush1.msra.mxu0 0.0
      %2225 = vmatprep.subr.mxu0 0.0
      %2226 = vmatpush1.msra.mxu0 0.0
      %2227 = vmatprep.subr.mxu0 0.0
      %2228 = vmatpush1.msra.mxu0 0.0
      %2229 = vmatprep.subr.mxu0 0.0
      %2230 = vmatpush1.msra.mxu0 0.0
      %2231 = vmatprep.subr.mxu0 0.0
      %2232 = vmatpush1.msra.mxu0 0.0
      %2233 = vmatprep.subr.mxu0 0.0
      %2234 = vmatpush1.msra.mxu0 0.0
      %2235 = vmatprep.mubr.f32.mxu0 0.0
      %2236 = vmatmul.mubr.f32.gmra.mrb[0].mxu0 %v2121
      %v2237 = vpop.f32.mrb[0].mxu0
      %v2238 = vadd.f32 0.0, %v2237
      %v2239 = vpop.f32.mrb[0].mxu0
      %2240 = vmatprep.mubr.f32.mxu0 0.0
      %2241 = vmatmul.mubr.f32.gmra.mrb[0].mxu0 %v2124
      %v2242 = vpop.f32.mrb[0].mxu0
      %v2243 = vadd.f32 0.0, %v2242
      %v2244 = vpop.f32.mrb[0].mxu0
      %2245 = vmatprep.mubr.f32.mxu0 0.0
      %2246 = vmatmul.mubr.f32.gmra.mrb[0].mxu0 %v2127
      %v2247 = vpop.f32.mrb[0].mxu0
      %v2248 = vadd.f32 0.0, %v2247
      %v2249 = vpop.f32.mrb[0].mxu0
      %2250 = vmatprep.mubr.f32.mxu0 0.0
      %2251 = vmatmul.mubr.f32.gmra.mrb[0].mxu0 %v2130
      %v2252 = vpop.f32.mrb[0].mxu0
      %v2253 = vadd.f32 0.0, %v2252
      %v2254 = vpop.f32.mrb[0].mxu0
      %2255 = vmatprep.mubr.f32.mxu0 0.0
      %2256 = vmatmul.mubr.f32.gmra.mrb[0].mxu0 %v2133
      %v2257 = vpop.f32.mrb[0].mxu0
      %v2258 = vadd.f32 0.0, %v2257
      %v2259 = vpop.f32.mrb[0].mxu0
      %2260 = vmatprep.mubr.f32.mxu0 0.0
      %2261 = vmatmul.mubr.f32.gmra.mrb[0].mxu0 %v2136
      %v2262 = vpop.f32.mrb[0].mxu0
      %v2263 = vadd.f32 0.0, %v2262
      %v2264 = vpop.f32.mrb[0].mxu0
      %2265 = vmatprep.mubr.f32.mxu0 0.0
      %2266 = vmatmul.mubr.f32.gmra.mrb[0].mxu0 %v2139
      %v2267 = vpop.f32.mrb[0].mxu0
      %v2268 = vadd.f32 0.0, %v2267
      %v2269 = vpop.f32.mrb[0].mxu0
      %2270 = vmatprep.mubr.f32.mxu0 0.0
      %2271 = vmatmul.mubr.f32.gmra.mrb[0].mxu0 %v2142
      %v2272 = vpop.f32.mrb[0].mxu0
      %v2273 = vadd.f32 0.0, %v2272
      %v2274 = vpop.f32.mrb[0].mxu0
      %2275 = vmatprep.mubr.f32.mxu0 0.0
      %2276 = vmatmul.mubr.f32.gmra.mrb[0].mxu0 %v2145
      %v2277 = vpop.f32.mrb[0].mxu0
      %v2278 = vadd.f32 0.0, %v2277
      %v2279 = vpop.f32.mrb[0].mxu0
      %2280 = vmatprep.mubr.f32.mxu0 0.0
      %2281 = vmatmul.mubr.f32.gmra.mrb[0].mxu0 %v2148
      %v2282 = vpop.f32.mrb[0].mxu0
      %v2283 = vadd.f32 0.0, %v2282
      %v2284 = vpop.f32.mrb[0].mxu0
      %2285 = vmatprep.mubr.f32.mxu0 0.0
      %2286 = vmatmul.mubr.f32.gmra.mrb[0].mxu0 %v2151
      %v2287 = vpop.f32.mrb[0].mxu0
      %v2288 = vadd.f32 0.0, %v2287
      %v2289 = vpop.f32.mrb[0].mxu0
      %2290 = vmatprep.mubr.f32.mxu0 0.0
      %2291 = vmatmul.mubr.f32.gmra.mrb[0].mxu0 %v2154
      %v2292 = vpop.f32.mrb[0].mxu0
      %v2293 = vadd.f32 0.0, %v2292
      %v2294 = vpop.f32.mrb[0].mxu0
      %2295 = vmatprep.mubr.f32.mxu0 0.0
      %2296 = vmatmul.mubr.f32.gmra.mrb[0].mxu0 %v2157
      %v2297 = vpop.f32.mrb[0].mxu0
      %v2298 = vadd.f32 0.0, %v2297
      %v2299 = vpop.f32.mrb[0].mxu0
      %2300 = vmatprep.mubr.f32.mxu0 0.0
      %2301 = vmatmul.mubr.f32.gmra.mrb[0].mxu0 %v2160
      %v2302 = vpop.f32.mrb[0].mxu0
      %v2303 = vadd.f32 0.0, %v2302
      %v2304 = vpop.f32.mrb[0].mxu0
      %2305 = vmatprep.mubr.f32.mxu0 0.0
      %2306 = vmatmul.mubr.f32.gmra.mrb[0].mxu0 %v2163
      %v2307 = vpop.f32.mrb[0].mxu0
      %v2308 = vadd.f32 0.0, %v2307
      %v2309 = vpop.f32.mrb[0].mxu0
      %2310 = vmatprep.mubr.f32.mxu0 0.0
      %2311 = vmatmul.mubr.f32.gmra.mrb[0].mxu0 %v2166
      %v2312 = vpop.f32.mrb[0].mxu0
      %v2313 = vadd.f32 0.0, %v2312
      %v2314 = vpop.f32.mrb[0].mxu0
      %2315 = vdwg.mxu0
      %v2316 = vadd.f32 %v2086, %v2238
      %v2317 = vadd.f32 %v2087, %v2243
      %v2318 = vadd.f32 %v2088, %v2248
      %v2319 = vadd.f32 %v2089, %v2253
      %v2320 = vadd.f32 %v2090, %v2258
      %v2321 = vadd.f32 %v2091, %v2263
      %v2322 = vadd.f32 %v2092, %v2268
      %v2323 = vadd.f32 %v2093, %v2273
      %v2324 = vadd.f32 %v2094, %v2278
      %v2325 = vadd.f32 %v2095, %v2283
      %v2326 = vadd.f32 %v2096, %v2288
      %v2327 = vadd.f32 %v2097, %v2293
      %v2328 = vadd.f32 %v2098, %v2298
      %v2329 = vadd.f32 %v2099, %v2303
      %v2330 = vadd.f32 %v2100, %v2308
      %v2331 = vadd.f32 %v2101, %v2313
      %v2332 = vld [vmem:[%s1871 + $0x2] sm:$0xff]
      %v2333 = vld [vmem:[%s1871 + $0xa] sm:$0xff]
      %v2334 = vld [vmem:[%s1871 + $0x1a] sm:$0xff]
      %v2335 = vld [vmem:[%s1871 + $0x22] sm:$0xff]
      %v2336 = vld [vmem:[%s1871 + $0x32] sm:$0xff]
      %v2337 = vld [vmem:[%s1871 + $0x3a] sm:$0xff]
      %v2338 = vld [vmem:[%s1871 + $0x4a] sm:$0xff]
      %v2339 = vld [vmem:[%s1871 + $0x52] sm:$0xff]
      %v2340 = vld [vmem:[%s1871 + $0x62] sm:$0xff]
      %v2341 = vld [vmem:[%s1871 + $0x6a] sm:$0xff]
      %v2342 = vld [vmem:[%s1871 + $0x7a] sm:$0xff]
      %v2343 = vld [vmem:[%s1871 + $0x82] sm:$0xff]
      %v2344 = vld [vmem:[%s1871 + $0x92] sm:$0xff]
      %v2345 = vld [vmem:[%s1871 + $0x9a] sm:$0xff]
      %v2346 = vld [vmem:[%s1871 + $0xaa] sm:$0xff]
      %v2347 = vld [vmem:[%s1871 + $0xb2] sm:$0xff]
      %s2348 = scalar_lea.vmem %s3, 32
      %v2349 = vld [vmem:[%s2348] sm:$0xf]
      %v2351 = vsel %vm441, %v2332, 0
      %v2354 = vsel %vm441, %v2333, 0
      %v2357 = vsel %vm441, %v2334, 0
      %v2360 = vsel %vm441, %v2335, 0
      %v2363 = vsel %vm441, %v2336, 0
      %v2366 = vsel %vm441, %v2337, 0
      %v2369 = vsel %vm441, %v2338, 0
      %v2372 = vsel %vm441, %v2339, 0
      %v2375 = vsel %vm441, %v2340, 0
      %v2378 = vsel %vm441, %v2341, 0
      %v2381 = vsel %vm441, %v2342, 0
      %v2384 = vsel %vm441, %v2343, 0
      %v2387 = vsel %vm441, %v2344, 0
      %v2390 = vsel %vm441, %v2345, 0
      %v2393 = vsel %vm441, %v2346, 0
      %v2396 = vsel %vm441, %v2347, 0
      %v2399 = vsel %vm606, %v2349, 0
      %2401 = vmatprep.subr.mxu0 0.0
      %2402 = vmatpush1.msra.mxu0 %v2399
      %2403 = vmatprep.subr.mxu0 0.0
      %2404 = vmatpush1.msra.mxu0 0.0
      %2405 = vmatprep.subr.mxu0 0.0
      %2406 = vmatpush1.msra.mxu0 0.0
      %2407 = vmatprep.subr.mxu0 0.0
      %2408 = vmatpush1.msra.mxu0 0.0
      %2409 = vmatprep.subr.mxu0 0.0
      %2410 = vmatpush1.msra.mxu0 0.0
      %2411 = vmatprep.subr.mxu0 0.0
      %2412 = vmatpush1.msra.mxu0 0.0
      %2413 = vmatprep.subr.mxu0 0.0
      %2414 = vmatpush1.msra.mxu0 0.0
      %2415 = vmatprep.subr.mxu0 0.0
      %2416 = vmatpush1.msra.mxu0 0.0
      %2417 = vmatprep.subr.mxu0 0.0
      %2418 = vmatpush1.msra.mxu0 0.0
      %2419 = vmatprep.subr.mxu0 0.0
      %2420 = vmatpush1.msra.mxu0 0.0
      %2421 = vmatprep.subr.mxu0 0.0
      %2422 = vmatpush1.msra.mxu0 0.0
      %2423 = vmatprep.subr.mxu0 0.0
      %2424 = vmatpush1.msra.mxu0 0.0
      %2425 = vmatprep.subr.mxu0 0.0
      %2426 = vmatpush1.msra.mxu0 0.0
      %2427 = vmatprep.subr.mxu0 0.0
      %2428 = vmatpush1.msra.mxu0 0.0
      %2429 = vmatprep.subr.mxu0 0.0
      %2430 = vmatpush1.msra.mxu0 0.0
      %2431 = vmatprep.subr.mxu0 0.0
      %2432 = vmatpush1.msra.mxu0 0.0
      %2433 = vmatprep.subr.mxu0 0.0
      %2434 = vmatpush1.msra.mxu0 0.0
      %2435 = vmatprep.subr.mxu0 0.0
      %2436 = vmatpush1.msra.mxu0 0.0
      %2437 = vmatprep.subr.mxu0 0.0
      %2438 = vmatpush1.msra.mxu0 0.0
      %2439 = vmatprep.subr.mxu0 0.0
      %2440 = vmatpush1.msra.mxu0 0.0
      %2441 = vmatprep.subr.mxu0 0.0
      %2442 = vmatpush1.msra.mxu0 0.0
      %2443 = vmatprep.subr.mxu0 0.0
      %2444 = vmatpush1.msra.mxu0 0.0
      %2445 = vmatprep.subr.mxu0 0.0
      %2446 = vmatpush1.msra.mxu0 0.0
      %2447 = vmatprep.subr.mxu0 0.0
      %2448 = vmatpush1.msra.mxu0 0.0
      %2449 = vmatprep.subr.mxu0 0.0
      %2450 = vmatpush1.msra.mxu0 0.0
      %2451 = vmatprep.subr.mxu0 0.0
      %2452 = vmatpush1.msra.mxu0 0.0
      %2453 = vmatprep.subr.mxu0 0.0
      %2454 = vmatpush1.msra.mxu0 0.0
      %2455 = vmatprep.subr.mxu0 0.0
      %2456 = vmatpush1.msra.mxu0 0.0
      %2457 = vmatprep.subr.mxu0 0.0
      %2458 = vmatpush1.msra.mxu0 0.0
      %2459 = vmatprep.subr.mxu0 0.0
      %2460 = vmatpush1.msra.mxu0 0.0
      %2461 = vmatprep.subr.mxu0 0.0
      %2462 = vmatpush1.msra.mxu0 0.0
      %2463 = vmatprep.subr.mxu0 0.0
      %2464 = vmatpush1.msra.mxu0 0.0
      %2465 = vmatprep.mubr.f32.mxu0 0.0
      %2466 = vmatmul.mubr.f32.gmra.mrb[0].mxu0 %v2351
      %v2467 = vpop.f32.mrb[0].mxu0
      %v2468 = vadd.f32 0.0, %v2467
      %v2469 = vpop.f32.mrb[0].mxu0
      %2470 = vmatprep.mubr.f32.mxu0 0.0
      %2471 = vmatmul.mubr.f32.gmra.mrb[0].mxu0 %v2354
      %v2472 = vpop.f32.mrb[0].mxu0
      %v2473 = vadd.f32 0.0, %v2472
      %v2474 = vpop.f32.mrb[0].mxu0
      %2475 = vmatprep.mubr.f32.mxu0 0.0
      %2476 = vmatmul.mubr.f32.gmra.mrb[0].mxu0 %v2357
      %v2477 = vpop.f32.mrb[0].mxu0
      %v2478 = vadd.f32 0.0, %v2477
      %v2479 = vpop.f32.mrb[0].mxu0
      %2480 = vmatprep.mubr.f32.mxu0 0.0
      %2481 = vmatmul.mubr.f32.gmra.mrb[0].mxu0 %v2360
      %v2482 = vpop.f32.mrb[0].mxu0
      %v2483 = vadd.f32 0.0, %v2482
      %v2484 = vpop.f32.mrb[0].mxu0
      %2485 = vmatprep.mubr.f32.mxu0 0.0
      %2486 = vmatmul.mubr.f32.gmra.mrb[0].mxu0 %v2363
      %v2487 = vpop.f32.mrb[0].mxu0
      %v2488 = vadd.f32 0.0, %v2487
      %v2489 = vpop.f32.mrb[0].mxu0
      %2490 = vmatprep.mubr.f32.mxu0 0.0
      %2491 = vmatmul.mubr.f32.gmra.mrb[0].mxu0 %v2366
      %v2492 = vpop.f32.mrb[0].mxu0
      %v2493 = vadd.f32 0.0, %v2492
      %v2494 = vpop.f32.mrb[0].mxu0
      %2495 = vmatprep.mubr.f32.mxu0 0.0
      %2496 = vmatmul.mubr.f32.gmra.mrb[0].mxu0 %v2369
      %v2497 = vpop.f32.mrb[0].mxu0
      %v2498 = vadd.f32 0.0, %v2497
      %v2499 = vpop.f32.mrb[0].mxu0
      %2500 = vmatprep.mubr.f32.mxu0 0.0
      %2501 = vmatmul.mubr.f32.gmra.mrb[0].mxu0 %v2372
      %v2502 = vpop.f32.mrb[0].mxu0
      %v2503 = vadd.f32 0.0, %v2502
      %v2504 = vpop.f32.mrb[0].mxu0
      %2505 = vmatprep.mubr.f32.mxu0 0.0
      %2506 = vmatmul.mubr.f32.gmra.mrb[0].mxu0 %v2375
      %v2507 = vpop.f32.mrb[0].mxu0
      %v2508 = vadd.f32 0.0, %v2507
      %v2509 = vpop.f32.mrb[0].mxu0
      %2510 = vmatprep.mubr.f32.mxu0 0.0
      %2511 = vmatmul.mubr.f32.gmra.mrb[0].mxu0 %v2378
      %v2512 = vpop.f32.mrb[0].mxu0
      %v2513 = vadd.f32 0.0, %v2512
      %v2514 = vpop.f32.mrb[0].mxu0
      %2515 = vmatprep.mubr.f32.mxu0 0.0
      %2516 = vmatmul.mubr.f32.gmra.mrb[0].mxu0 %v2381
      %v2517 = vpop.f32.mrb[0].mxu0
      %v2518 = vadd.f32 0.0, %v2517
      %v2519 = vpop.f32.mrb[0].mxu0
      %2520 = vmatprep.mubr.f32.mxu0 0.0
      %2521 = vmatmul.mubr.f32.gmra.mrb[0].mxu0 %v2384
      %v2522 = vpop.f32.mrb[0].mxu0
      %v2523 = vadd.f32 0.0, %v2522
      %v2524 = vpop.f32.mrb[0].mxu0
      %2525 = vmatprep.mubr.f32.mxu0 0.0
      %2526 = vmatmul.mubr.f32.gmra.mrb[0].mxu0 %v2387
      %v2527 = vpop.f32.mrb[0].mxu0
      %v2528 = vadd.f32 0.0, %v2527
      %v2529 = vpop.f32.mrb[0].mxu0
      %2530 = vmatprep.mubr.f32.mxu0 0.0
      %2531 = vmatmul.mubr.f32.gmra.mrb[0].mxu0 %v2390
      %v2532 = vpop.f32.mrb[0].mxu0
      %v2533 = vadd.f32 0.0, %v2532
      %v2534 = vpop.f32.mrb[0].mxu0
      %2535 = vmatprep.mubr.f32.mxu0 0.0
      %2536 = vmatmul.mubr.f32.gmra.mrb[0].mxu0 %v2393
      %v2537 = vpop.f32.mrb[0].mxu0
      %v2538 = vadd.f32 0.0, %v2537
      %v2539 = vpop.f32.mrb[0].mxu0
      %2540 = vmatprep.mubr.f32.mxu0 0.0
      %2541 = vmatmul.mubr.f32.gmra.mrb[0].mxu0 %v2396
      %v2542 = vpop.f32.mrb[0].mxu0
      %v2543 = vadd.f32 0.0, %v2542
      %v2544 = vpop.f32.mrb[0].mxu0
      %2545 = vdwg.mxu0
      %v2546 = vadd.f32 %v2316, %v2468
      %v2547 = vadd.f32 %v2317, %v2473
      %v2548 = vadd.f32 %v2318, %v2478
      %v2549 = vadd.f32 %v2319, %v2483
      %v2550 = vadd.f32 %v2320, %v2488
      %v2551 = vadd.f32 %v2321, %v2493
      %v2552 = vadd.f32 %v2322, %v2498
      %v2553 = vadd.f32 %v2323, %v2503
      %v2554 = vadd.f32 %v2324, %v2508
      %v2555 = vadd.f32 %v2325, %v2513
      %v2556 = vadd.f32 %v2326, %v2518
      %v2557 = vadd.f32 %v2327, %v2523
      %v2558 = vadd.f32 %v2328, %v2528
      %v2559 = vadd.f32 %v2329, %v2533
      %v2560 = vadd.f32 %v2330, %v2538
      %v2561 = vadd.f32 %v2331, %v2543
      %v2562 = vld [vmem:[%s4] sm:$0x1]
      %v2564 = vlaneseq
      %v2565 = vshrl.u32 %v2564, 7
      %v2566 = vsub.s32 0, %v2565
      %v2567 = vrot.slane %v2562, %v2566
      %v2569 = vadd.f32 %v2546, %v2567
      %v2570 = vadd.f32 %v2547, %v2567
      %v2571 = vadd.f32 %v2548, %v2567
      %v2572 = vadd.f32 %v2549, %v2567
      %v2573 = vadd.f32 %v2550, %v2567
      %v2574 = vadd.f32 %v2551, %v2567
      %v2575 = vadd.f32 %v2552, %v2567
      %v2576 = vadd.f32 %v2553, %v2567
      %v2577 = vadd.f32 %v2554, %v2567
      %v2578 = vadd.f32 %v2555, %v2567
      %v2579 = vadd.f32 %v2556, %v2567
      %v2580 = vadd.f32 %v2557, %v2567
      %v2581 = vadd.f32 %v2558, %v2567
      %v2582 = vadd.f32 %v2559, %v2567
      %v2583 = vadd.f32 %v2560, %v2567
      %v2584 = vadd.f32 %v2561, %v2567
      %2585 = vst.msk [vmem:[%s431] sm:$0xff] %vm441, %v2569
      %2586 = vst.msk [vmem:[%s431 + $0x8] sm:$0xff] %vm441, %v2570
      %2587 = vst.msk [vmem:[%s431 + $0x10] sm:$0xff] %vm441, %v2571
      %2588 = vst.msk [vmem:[%s431 + $0x18] sm:$0xff] %vm441, %v2572
      %2589 = vst.msk [vmem:[%s431 + $0x20] sm:$0xff] %vm441, %v2573
      %2590 = vst.msk [vmem:[%s431 + $0x28] sm:$0xff] %vm441, %v2574
      %2591 = vst.msk [vmem:[%s431 + $0x30] sm:$0xff] %vm441, %v2575
      %2592 = vst.msk [vmem:[%s431 + $0x38] sm:$0xff] %vm441, %v2576
      %2593 = vst.msk [vmem:[%s431 + $0x40] sm:$0xff] %vm441, %v2577
      %2594 = vst.msk [vmem:[%s431 + $0x48] sm:$0xff] %vm441, %v2578
      %2595 = vst.msk [vmem:[%s431 + $0x50] sm:$0xff] %vm441, %v2579
      %2596 = vst.msk [vmem:[%s431 + $0x58] sm:$0xff] %vm441, %v2580
      %2597 = vst.msk [vmem:[%s431 + $0x60] sm:$0xff] %vm441, %v2581
      %2598 = vst.msk [vmem:[%s431 + $0x68] sm:$0xff] %vm441, %v2582
      %2599 = vst.msk [vmem:[%s431 + $0x70] sm:$0xff] %vm441, %v2583
      %2600 = vst.msk [vmem:[%s431 + $0x78] sm:$0xff] %vm441, %v2584
      %v2601 = vsel %vm441, %v2569, 0.0
      %v2602 = vsel %vm441, %v2570, 0.0
      %v2603 = vadd.f32 %v2601, %v2602
      %v2604 = vsel %vm441, %v2571, 0.0
      %v2605 = vadd.f32 %v2603, %v2604
      %v2606 = vsel %vm441, %v2572, 0.0
      %v2607 = vadd.f32 %v2605, %v2606
      %v2608 = vsel %vm441, %v2573, 0.0
      %v2609 = vadd.f32 %v2607, %v2608
      %v2610 = vsel %vm441, %v2574, 0.0
      %v2611 = vadd.f32 %v2609, %v2610
      %v2612 = vsel %vm441, %v2575, 0.0
      %v2613 = vadd.f32 %v2611, %v2612
      %v2614 = vsel %vm441, %v2576, 0.0
      %v2615 = vadd.f32 %v2613, %v2614
      %v2616 = vsel %vm441, %v2577, 0.0
      %v2617 = vadd.f32 %v2615, %v2616
      %v2618 = vsel %vm441, %v2578, 0.0
      %v2619 = vadd.f32 %v2617, %v2618
      %v2620 = vsel %vm441, %v2579, 0.0
      %v2621 = vadd.f32 %v2619, %v2620
      %v2622 = vsel %vm441, %v2580, 0.0
      %v2623 = vadd.f32 %v2621, %v2622
      %v2624 = vsel %vm441, %v2581, 0.0
      %v2625 = vadd.f32 %v2623, %v2624
      %v2626 = vsel %vm441, %v2582, 0.0
      %v2627 = vadd.f32 %v2625, %v2626
      %v2628 = vsel %vm441, %v2583, 0.0
      %v2629 = vadd.f32 %v2627, %v2628
      %v2630 = vsel %vm441, %v2584, 0.0
      %v2631 = vadd.f32 %v2629, %v2630
      %v2632 = vrot.slane %v2631, 4
      %v2633 = vadd.f32 %v2631, %v2632
      %v2634 = vrot.slane %v2633, 2
      %v2635 = vadd.f32 %v2633, %v2634
      %v2636 = vrot.slane %v2635, 1
      %v2637 = vadd.f32 %v2635, %v2636
      %vm2638 = vcmask 24576
      %2639 = vst.msk [vmem:[%s440] sm:$0x1] %vm2638, %v2637
      %v2640 = vmul.f32 %v2569, %v2569
      %v2641 = vmul.f32 %v2570, %v2570
      %v2642 = vmul.f32 %v2571, %v2571
      %v2643 = vmul.f32 %v2572, %v2572
      %v2644 = vmul.f32 %v2573, %v2573
      %v2645 = vmul.f32 %v2574, %v2574
      %v2646 = vmul.f32 %v2575, %v2575
      %v2647 = vmul.f32 %v2576, %v2576
      %v2648 = vmul.f32 %v2577, %v2577
      %v2649 = vmul.f32 %v2578, %v2578
      %v2650 = vmul.f32 %v2579, %v2579
      %v2651 = vmul.f32 %v2580, %v2580
      %v2652 = vmul.f32 %v2581, %v2581
      %v2653 = vmul.f32 %v2582, %v2582
      %v2654 = vmul.f32 %v2583, %v2583
      %v2655 = vmul.f32 %v2584, %v2584
      %v2656 = vsel %vm441, %v2640, 0.0
      %v2657 = vsel %vm441, %v2641, 0.0
      %v2658 = vadd.f32 %v2656, %v2657
      %v2659 = vsel %vm441, %v2642, 0.0
      %v2660 = vadd.f32 %v2658, %v2659
      %v2661 = vsel %vm441, %v2643, 0.0
      %v2662 = vadd.f32 %v2660, %v2661
      %v2663 = vsel %vm441, %v2644, 0.0
      %v2664 = vadd.f32 %v2662, %v2663
      %v2665 = vsel %vm441, %v2645, 0.0
      %v2666 = vadd.f32 %v2664, %v2665
      %v2667 = vsel %vm441, %v2646, 0.0
      %v2668 = vadd.f32 %v2666, %v2667
      %v2669 = vsel %vm441, %v2647, 0.0
      %v2670 = vadd.f32 %v2668, %v2669
      %v2671 = vsel %vm441, %v2648, 0.0
      %v2672 = vadd.f32 %v2670, %v2671
      %v2673 = vsel %vm441, %v2649, 0.0
      %v2674 = vadd.f32 %v2672, %v2673
      %v2675 = vsel %vm441, %v2650, 0.0
      %v2676 = vadd.f32 %v2674, %v2675
      %v2677 = vsel %vm441, %v2651, 0.0
      %v2678 = vadd.f32 %v2676, %v2677
      %v2679 = vsel %vm441, %v2652, 0.0
      %v2680 = vadd.f32 %v2678, %v2679
      %v2681 = vsel %vm441, %v2653, 0.0
      %v2682 = vadd.f32 %v2680, %v2681
      %v2683 = vsel %vm441, %v2654, 0.0
      %v2684 = vadd.f32 %v2682, %v2683
      %v2685 = vsel %vm441, %v2655, 0.0
      %v2686 = vadd.f32 %v2684, %v2685
      %v2687 = vrot.slane %v2686, 4
      %v2688 = vadd.f32 %v2686, %v2687
      %v2689 = vrot.slane %v2688, 2
      %v2690 = vadd.f32 %v2688, %v2689
      %v2691 = vrot.slane %v2690, 1
      %v2692 = vadd.f32 %v2690, %v2691
      %2693 = vst.msk [vmem:[%s440 + $0x1] sm:$0x1] %vm2638, %v2692
      %s2694 = smul.u32 8, %s23
      %p2695 = scmp.lt.s32.totalorder %s22, 1
      %s2696 = scalar_select %p2695, %s22, 1
      %p2697 = scmp.lt.s32.totalorder %s2694, 15
      %s2698 = scalar_select %p2697, %s2694, 15
      %s2699 = smul.addr %s2698, 2
      %s2700 = smul.addr %s2696, 32
      %s2701 = sadd.s32 %s2699, %s2700
      %s2702 = smul.addr %s2701, 8
      %s2703 = scalar_lea.vmem %s5, %s2702
      %p2704 = scmp.lt.s32.totalorder %s22, 1
      %s2705 = scalar_select %p2704, %s22, 1
      %p2706 = scmp.lt.s32.totalorder %s23, 1
      %s2707 = scalar_select %p2706, %s23, 1
      %s2708 = smul.addr %s2705, 2
      %s2709 = sadd.s32 %s2707, %s2708
      %s2710 = smul.addr %s2709, 2
      %s2711 = scalar_lea.vmem %s6, %s2710
      // Predicated region
      $region49: #{encoder_block.3} parent=39 // pred_check
        %p2712 = pneg %p192
      $region50: #{encoder_block.3} parent=39 // pred_check_branch
        %2714 = sbr.rel (%p2712) target = $region52
      $region51: #{encoder_block.3} parent=39 // pred_region
        %s2715 = smul.u32 8, %s23
      $region52: #{encoder_block.3} parent=39 // pred_fallthru
        _
      // Predicated region
      $region53: #{encoder_block.3} parent=39 // pred_check
        %p2716 = pneg %p220
      $region54: #{encoder_block.3} parent=39 // pred_check_branch
        %2718 = sbr.rel (%p2716) target = $region56
      $region55: #{encoder_block.3} parent=39 // pred_region
        _
      $region56: #{encoder_block.3} parent=39 // pred_fallthru
        _
    $region40: #{encoder_block.3} parent=5 // pred_fallthru
      _
    %p2719 = scmp.le.s32.totalorder 2, %s13
    // Predicated region
    $region57: #{encoder_block.3} parent=5 // pred_check
      %p2720 = pneg %p2719
    $region58: #{encoder_block.3} parent=5 // pred_check_branch
      %2722 = sbr.rel (%p2720) target = $region60
    $region59: #{encoder_block.3} parent=5 // pred_region
      %s2723 = ssub.s32 %s13, 2
      // Predicated region
      $region61: #{encoder_block.3} parent=59 // pred_check
        %p2724 = pneg %p198
      $region62: #{encoder_block.3} parent=59 // pred_check_branch
        %2726 = sbr.rel (%p2724) target = $region64
      $region63: #{encoder_block.3} parent=59 // pred_region
        %s2727 = smul.u32 8, %s25
        %p2728 = scmp.lt.s32.totalorder %s24, 1
        %s2729 = scalar_select %p2728, %s24, 1
        %p2730 = scmp.lt.s32.totalorder %s2727, 15
        %s2731 = scalar_select %p2730, %s2727, 15
        %s2732 = smul.addr %s2731, 2
        %s2733 = smul.addr %s2729, 32
        %s2734 = sadd.s32 %s2732, %s2733
        %s2735 = smul.addr %s2734, 8
        %s2736 = scalar_lea.vmem %s5, %s2735
      $region64: #{encoder_block.3} parent=59 // pred_fallthru
        _
      // Predicated region
      $region65: #{encoder_block.3} parent=59 // pred_check
        %p2737 = pneg %p226
      $region66: #{encoder_block.3} parent=59 // pred_check_branch
        %2739 = sbr.rel (%p2737) target = $region68
      $region67: #{encoder_block.3} parent=59 // pred_region
        %p2740 = scmp.lt.s32.totalorder %s24, 1
        %s2741 = scalar_select %p2740, %s24, 1
        %p2742 = scmp.lt.s32.totalorder %s25, 1
        %s2743 = scalar_select %p2742, %s25, 1
        %s2744 = smul.addr %s2741, 2
        %s2745 = sadd.s32 %s2743, %s2744
        %s2746 = smul.addr %s2745, 2
        %s2747 = scalar_lea.vmem %s6, %s2746
      $region68: #{encoder_block.3} parent=59 // pred_fallthru
        _
    $region60: #{encoder_block.3} parent=5 // pred_fallthru
      _
  $region6: #{encoder_block.3} parent=0 // loop_footer
    %s17 = sadd.s32 1, %s13
  $region7: #{encoder_block.3} parent=0 // loop_footer_branch
    %12 = sbr.rel target = $region3
  $region8: #{encoder_block.3} parent=0 // loop_exit
    _

// kernel: encoder_block.4
$region0: #{encoder_block.4}
  #allocation0 [shape = 'u32[]', space=smem, size = 0x4, offset = 0x4, fixed_abs, tag = 'smem constant byte address 0x4 - core index']
  #allocation1 [shape = 'u32[144,128]{1,0:T(1,128)}', space=vmem, size = 0x12000, scoped, tag = 'internal scratch']
  #allocation2 [shape = 'f32[10,18,4]{2,1,0:T(8,128)}', space=vmem, size = 0x1e000, scoped, tag = 'scratch operand']
  #allocation3 [shape = 'f32[1,1]{1,0:T(1,128)S(6)}', space=smem, size = 0x200, scoped, tag = 'scoped memory for encoder_block.4']
  %s0 = inlined_call_operand.vmem [shape: f32[2,16,16,4], index: 0, kind: input, shape index: {}, may-alias: {0,1,2}]
  %s1 = inlined_call_operand.vmem [shape: f32[2,16,16,4], index: 1, kind: input, shape index: {}, may-alias: {0,1,2}]
  %s2 = inlined_call_operand.vmem [shape: f32[2,16,16,4], index: 2, kind: input, shape index: {}, may-alias: {0,1,2}]
  %s3 = inlined_call_operand.vmem [shape: f32[1,4], index: 3, kind: input, shape index: {}]
  %s4 = inlined_call_operand.vmem [shape: f32[1,4], index: 4, kind: input, shape index: {}]
  %s5 = inlined_call_operand.<no memory space> [shape: f32[1,1], index: 5, kind: input, shape index: {}]
  %s6 = inlined_call_operand.vmem [shape: f32[9,4,4], index: 6, kind: input, shape index: {}]
  %s7 = inlined_call_operand.vmem [shape: f32[1,4], index: 7, kind: input, shape index: {}]
  %s8 = inlined_call_operand.vmem [shape: f32[2,16,16,4], index: 8, kind: input, shape index: {}]
  %s9 = inlined_call_operand.vmem [shape: f32[2,16,16,4], index: 9, kind: output, shape index: {0}]
  %s10 = inlined_call_operand.vmem [shape: f32[2,2,2,4], index: 10, kind: output, shape index: {1}]
  %11 = xla_tuple %s9, %s10
  %s12 = sld [smem:[#allocation0]]
  $region85: #{encoder_block.4} parent=0
    _
  %s14 = ssub.s32 1, %s12
  %s15 = scalar_select 0, %s14, %s12
  %16 = sst [smem:[#allocation3]] %s5
  loop: start=0, step=1, limit=6
  $region2: #{encoder_block.4} parent=0 // loop_pre_header
    _
  $region3: #{encoder_block.4} parent=0 // loop_header
    %s18 = sphi 0, %s22
    %p19 = scmp.ge.s32.totalorder %s18, 6
    %s25 = sphi 0, %s37
    %s26 = sphi 0, %s33
    %s27 = sphi 0, %s25
    %s28 = sphi 0, %s26
    %s29 = sphi 0, %s27
    %s30 = sphi 0, %s28
    %s42 = sphi 0, %s44
    %s45 = sphi 0, %s42
    %s46 = sphi 0, %s45
    %s62 = sphi 0, %s46
    %s78 = sphi 0, %s80
    %s81 = sphi 0, %s78
    %s82 = sphi 0, %s81
    %s98 = sphi 0, %s82
    %s114 = sphi 0, %s116
    %s117 = sphi 0, %s114
    %s118 = sphi 0, %s117
    %s134 = sphi 0, %s118
    %s138 = sphi 0, %s138
    %s140 = sphi 0, %s138
    %s141 = sphi 0, %s140
    %s155 = sphi 0, %s141
    %s159 = sphi 0, %s159
    %s161 = sphi 0, %s159
    %s162 = sphi 0, %s161
    %s176 = sphi 0, %s162
    %s180 = sphi 0, %s180
    %s182 = sphi 0, %s180
    %s183 = sphi 0, %s182
    %s197 = sphi 0, %s183
    %s201 = sphi 0, %s201
    %s203 = sphi 0, %s201
    %s204 = sphi 0, %s203
    %s218 = sphi 0, %s204
    %s222 = sphi 0, %s222
    %s224 = sphi 0, %s222
    %s225 = sphi 0, %s224
    %s239 = sphi 0, %s225
    %s247 = sphi 0, %s249
    %s250 = sphi 0, %s247
    %s251 = sphi 0, %s250
    %s267 = sphi 0, %s251
    %s275 = sphi 0, %s277
    %s278 = sphi 0, %s275
    %s279 = sphi 0, %s278
    %s295 = sphi 0, %s279
    %s303 = sphi 0, %s305
    %s306 = sphi 0, %s303
    %s307 = sphi 0, %s306
    %s323 = sphi 0, %s307
  $region4: #{encoder_block.4} parent=0 // loop_header_branch
    %21 = sbr.rel (%p19) target = $region8
  $region5: #{encoder_block.4} parent=0 // loop_body
    %s23 = ssub.s32 %s18, 1
    %s24 = ssub.s32 %s18, 2
    %s31 = sadd.s32 1, %s26
    %p32 = scmp.ge.s32.totalorder %s31, 2
    %s33 = scalar_select %p32, 0, %s31
    %s34 = sadd.s32 1, %s25
    %s35 = scalar_select %p32, %s34, %s25
    %p36 = scmp.ge.s32.totalorder %s35, 2
    %s37 = scalar_select %p36, 0, %s35
    %s38 = ssub.s32 %s25, %s37
    %s39 = ssub.s32 %s26, %s33
    %s40 = sor.u32 %s38, %s39
    %p41 = scmp.eq.s32.totalorder %s40, 0
    %s43 = sadd.s32 %s42, 1
    %s44 = scalar_select %p41, %s42, %s43
    %p47 = pneg %p41
    %p48 = scmp.eq.s32.totalorder %s18, 3
    %p49 = por %p47, %p48
    %p50 = scmp.ne.s32.totalorder %s42, %s45
    %p51 = scmp.eq.s32.totalorder %s18, 0
    %p52 = por %p50, %p51
    %p53 = scmp.ne.s32.totalorder %s42, %s45
    %p54 = scmp.eq.s32.totalorder %s23, 3
    %p55 = por %p53, %p54
    %p56 = scmp.ne.s32.totalorder %s45, %s46
    %p57 = scmp.eq.s32.totalorder %s23, 0
    %p58 = por %p56, %p57
    %p59 = scmp.ne.s32.totalorder %s45, %s46
    %p60 = scmp.eq.s32.totalorder %s24, 3
    %p61 = por %p59, %p60
    %p63 = scmp.ne.s32.totalorder %s46, %s62
    %p64 = scmp.eq.s32.totalorder %s24, 0
    %p65 = por %p63, %p64
    %s66 = smul.u32 %s26, 8
    %s67 = ssub.s32 %s66, 1
    %p68 = scmp.gt.s32.totalorder %s67, 0
    %s69 = scalar_select %p68, %s67, 0
    %s70 = smul.u32 %s33, 8
    %s71 = ssub.s32 %s70, 1
    %p72 = scmp.gt.s32.totalorder %s71, 0
    %s73 = scalar_select %p72, %s71, 0
    %s74 = ssub.s32 %s25, %s37
    %s75 = ssub.s32 %s69, %s73
    %s76 = sor.u32 %s74, %s75
    %p77 = scmp.eq.s32.totalorder %s76, 0
    %s79 = sadd.s32 %s78, 1
    %s80 = scalar_select %p77, %s78, %s79
    %p83 = pneg %p77
    %p84 = scmp.eq.s32.totalorder %s18, 3
    %p85 = por %p83, %p84
    %p86 = scmp.ne.s32.totalorder %s78, %s81
    %p87 = scmp.eq.s32.totalorder %s18, 0
    %p88 = por %p86, %p87
    %p89 = scmp.ne.s32.totalorder %s78, %s81
    %p90 = scmp.eq.s32.totalorder %s23, 3
    %p91 = por %p89, %p90
    %p92 = scmp.ne.s32.totalorder %s81, %s82
    %p93 = scmp.eq.s32.totalorder %s23, 0
    %p94 = por %p92, %p93
    %p95 = scmp.ne.s32.totalorder %s81, %s82
    %p96 = scmp.eq.s32.totalorder %s24, 3
    %p97 = por %p95, %p96
    %p99 = scmp.ne.s32.totalorder %s82, %s98
    %p100 = scmp.eq.s32.totalorder %s24, 0
    %p101 = por %p99, %p100
    %s102 = sadd.s32 %s26, 1
    %s103 = smul.u32 %s102, 8
    %p104 = scmp.lt.s32.totalorder %s103, 15
    %s105 = scalar_select %p104, %s103, 15
    %s106 = sadd.s32 %s33, 1
    %s107 = smul.u32 %s106, 8
    %p108 = scmp.lt.s32.totalorder %s107, 15
    %s109 = scalar_select %p108, %s107, 15
    %s110 = ssub.s32 %s25, %s37
    %s111 = ssub.s32 %s105, %s109
    %s112 = sor.u32 %s110, %s111
    %p113 = scmp.eq.s32.totalorder %s112, 0
    %s115 = sadd.s32 %s114, 1
    %s116 = scalar_select %p113, %s114, %s115
    %p119 = pneg %p113
    %p120 = scmp.eq.s32.totalorder %s18, 3
    %p121 = por %p119, %p120
    %p122 = scmp.ne.s32.totalorder %s114, %s117
    %p123 = scmp.eq.s32.totalorder %s18, 0
    %p124 = por %p122, %p123
    %p125 = scmp.ne.s32.totalorder %s114, %s117
    %p126 = scmp.eq.s32.totalorder %s23, 3
    %p127 = por %p125, %p126
    %p128 = scmp.ne.s32.totalorder %s117, %s118
    %p129 = scmp.eq.s32.totalorder %s23, 0
    %p130 = por %p128, %p129
    %p131 = scmp.ne.s32.totalorder %s117, %s118
    %p132 = scmp.eq.s32.totalorder %s24, 3
    %p133 = por %p131, %p132
    %p135 = scmp.ne.s32.totalorder %s118, %s134
    %p136 = scmp.eq.s32.totalorder %s24, 0
    %p137 = por %p135, %p136
    %s139 = sadd.s32 %s138, 1
    %p142 = scmp.eq.s32.totalorder %s18, 3
    %p143 = scmp.ne.s32.totalorder %s138, %s140
    %p144 = scmp.eq.s32.totalorder %s18, 0
    %p145 = por %p143, %p144
    %p146 = scmp.ne.s32.totalorder %s138, %s140
    %p147 = scmp.eq.s32.totalorder %s23, 3
    %p148 = por %p146, %p147
    %p149 = scmp.ne.s32.totalorder %s140, %s141
    %p150 = scmp.eq.s32.totalorder %s23, 0
    %p151 = por %p149, %p150
    %p152 = scmp.ne.s32.totalorder %s140, %s141
    %p153 = scmp.eq.s32.totalorder %s24, 3
    %p154 = por %p152, %p153
    %p156 = scmp.ne.s32.totalorder %s141, %s155
    %p157 = scmp.eq.s32.totalorder %s24, 0
    %p158 = por %p156, %p157
    %s160 = sadd.s32 %s159, 1
    %p163 = scmp.eq.s32.totalorder %s18, 3
    %p164 = scmp.ne.s32.totalorder %s159, %s161
    %p165 = scmp.eq.s32.totalorder %s18, 0
    %p166 = por %p164, %p165
    %p167 = scmp.ne.s32.totalorder %s159, %s161
    %p168 = scmp.eq.s32.totalorder %s23, 3
    %p169 = por %p167, %p168
    %p170 = scmp.ne.s32.totalorder %s161, %s162
    %p171 = scmp.eq.s32.totalorder %s23, 0
    %p172 = por %p170, %p171
    %p173 = scmp.ne.s32.totalorder %s161, %s162
    %p174 = scmp.eq.s32.totalorder %s24, 3
    %p175 = por %p173, %p174
    %p177 = scmp.ne.s32.totalorder %s162, %s176
    %p178 = scmp.eq.s32.totalorder %s24, 0
    %p179 = por %p177, %p178
    %s181 = sadd.s32 %s180, 1
    %p184 = scmp.eq.s32.totalorder %s18, 3
    %p185 = scmp.ne.s32.totalorder %s180, %s182
    %p186 = scmp.eq.s32.totalorder %s18, 0
    %p187 = por %p185, %p186
    %p188 = scmp.ne.s32.totalorder %s180, %s182
    %p189 = scmp.eq.s32.totalorder %s23, 3
    %p190 = por %p188, %p189
    %p191 = scmp.ne.s32.totalorder %s182, %s183
    %p192 = scmp.eq.s32.totalorder %s23, 0
    %p193 = por %p191, %p192
    %p194 = scmp.ne.s32.totalorder %s182, %s183
    %p195 = scmp.eq.s32.totalorder %s24, 3
    %p196 = por %p194, %p195
    %p198 = scmp.ne.s32.totalorder %s183, %s197
    %p199 = scmp.eq.s32.totalorder %s24, 0
    %p200 = por %p198, %p199
    %s202 = sadd.s32 %s201, 1
    %p205 = scmp.eq.s32.totalorder %s18, 3
    %p206 = scmp.ne.s32.totalorder %s201, %s203
    %p207 = scmp.eq.s32.totalorder %s18, 0
    %p208 = por %p206, %p207
    %p209 = scmp.ne.s32.totalorder %s201, %s203
    %p210 = scmp.eq.s32.totalorder %s23, 3
    %p211 = por %p209, %p210
    %p212 = scmp.ne.s32.totalorder %s203, %s204
    %p213 = scmp.eq.s32.totalorder %s23, 0
    %p214 = por %p212, %p213
    %p215 = scmp.ne.s32.totalorder %s203, %s204
    %p216 = scmp.eq.s32.totalorder %s24, 3
    %p217 = por %p215, %p216
    %p219 = scmp.ne.s32.totalorder %s204, %s218
    %p220 = scmp.eq.s32.totalorder %s24, 0
    %p221 = por %p219, %p220
    %s223 = sadd.s32 %s222, 1
    %p226 = scmp.eq.s32.totalorder %s18, 3
    %p227 = scmp.ne.s32.totalorder %s222, %s224
    %p228 = scmp.eq.s32.totalorder %s18, 0
    %p229 = por %p227, %p228
    %p230 = scmp.ne.s32.totalorder %s222, %s224
    %p231 = scmp.eq.s32.totalorder %s23, 3
    %p232 = por %p230, %p231
    %p233 = scmp.ne.s32.totalorder %s224, %s225
    %p234 = scmp.eq.s32.totalorder %s23, 0
    %p235 = por %p233, %p234
    %p236 = scmp.ne.s32.totalorder %s224, %s225
    %p237 = scmp.eq.s32.totalorder %s24, 3
    %p238 = por %p236, %p237
    %p240 = scmp.ne.s32.totalorder %s225, %s239
    %p241 = scmp.eq.s32.totalorder %s24, 0
    %p242 = por %p240, %p241
    %s243 = ssub.s32 %s25, %s37
    %s244 = ssub.s32 %s26, %s33
    %s245 = sor.u32 %s243, %s244
    %p246 = scmp.eq.s32.totalorder %s245, 0
    %s248 = sadd.s32 %s247, 1
    %s249 = scalar_select %p246, %s247, %s248
    %p252 = pneg %p246
    %p253 = scmp.eq.s32.totalorder %s18, 3
    %p254 = por %p252, %p253
    %p255 = scmp.ne.s32.totalorder %s247, %s250
    %p256 = scmp.eq.s32.totalorder %s18, 0
    %p257 = por %p255, %p256
    %p258 = scmp.ne.s32.totalorder %s247, %s250
    %p259 = scmp.eq.s32.totalorder %s23, 3
    %p260 = por %p258, %p259
    %p261 = scmp.ne.s32.totalorder %s250, %s251
    %p262 = scmp.eq.s32.totalorder %s23, 0
    %p263 = por %p261, %p262
    %p264 = scmp.ne.s32.totalorder %s250, %s251
    %p265 = scmp.eq.s32.totalorder %s24, 3
    %p266 = por %p264, %p265
    %p268 = scmp.ne.s32.totalorder %s251, %s267
    %p269 = scmp.eq.s32.totalorder %s24, 0
    %p270 = por %p268, %p269
    %s271 = ssub.s32 %s25, %s37
    %s272 = ssub.s32 %s26, %s33
    %s273 = sor.u32 %s271, %s272
    %p274 = scmp.eq.s32.totalorder %s273, 0
    %s276 = sadd.s32 %s275, 1
    %s277 = scalar_select %p274, %s275, %s276
    %p280 = pneg %p274
    %p281 = scmp.eq.s32.totalorder %s18, 3
    %p282 = por %p280, %p281
    %p283 = scmp.ne.s32.totalorder %s275, %s278
    %p284 = scmp.eq.s32.totalorder %s18, 0
    %p285 = por %p283, %p284
    %p286 = scmp.ne.s32.totalorder %s275, %s278
    %p287 = scmp.eq.s32.totalorder %s23, 3
    %p288 = por %p286, %p287
    %p289 = scmp.ne.s32.totalorder %s278, %s279
    %p290 = scmp.eq.s32.totalorder %s23, 0
    %p291 = por %p289, %p290
    %p292 = scmp.ne.s32.totalorder %s278, %s279
    %p293 = scmp.eq.s32.totalorder %s24, 3
    %p294 = por %p292, %p293
    %p296 = scmp.ne.s32.totalorder %s279, %s295
    %p297 = scmp.eq.s32.totalorder %s24, 0
    %p298 = por %p296, %p297
    %s299 = ssub.s32 %s25, %s37
    %s300 = ssub.s32 %s26, %s33
    %s301 = sor.u32 %s299, %s300
    %p302 = scmp.eq.s32.totalorder %s301, 0
    %s304 = sadd.s32 %s303, 1
    %s305 = scalar_select %p302, %s303, %s304
    %p308 = pneg %p302
    %p309 = scmp.eq.s32.totalorder %s18, 3
    %p310 = por %p308, %p309
    %p311 = scmp.ne.s32.totalorder %s303, %s306
    %p312 = scmp.eq.s32.totalorder %s18, 0
    %p313 = por %p311, %p312
    %p314 = scmp.ne.s32.totalorder %s303, %s306
    %p315 = scmp.eq.s32.totalorder %s23, 3
    %p316 = por %p314, %p315
    %p317 = scmp.ne.s32.totalorder %s306, %s307
    %p318 = scmp.eq.s32.totalorder %s23, 0
    %p319 = por %p317, %p318
    %p320 = scmp.ne.s32.totalorder %s306, %s307
    %p321 = scmp.eq.s32.totalorder %s24, 3
    %p322 = por %p320, %p321
    %p324 = scmp.ne.s32.totalorder %s307, %s323
    %p325 = scmp.eq.s32.totalorder %s24, 0
    %p326 = por %p324, %p325
    %p327 = scmp.le.s32.totalorder 1, %s18
    %p328 = scmp.lt.s32.totalorder %s18, 5
    %p329 = pnand %p327, %p328
    %p330 = pneg %p329
    // Predicated region
    $region9: #{encoder_block.4} parent=5 // pred_check
      _
    $region10: #{encoder_block.4} parent=5 // pred_check_branch
      %332 = sbr.rel (%p329) target = $region12
    $region11: #{encoder_block.4} parent=5 // pred_region
      %s333 = ssub.s32 %s18, 1
      // Predicated region
      $region13: #{encoder_block.4} parent=11 // pred_check
        %p334 = pneg %p151
      $region14: #{encoder_block.4} parent=11 // pred_check_branch
        %336 = sbr.rel (%p334) target = $region16
      $region15: #{encoder_block.4} parent=11 // pred_region
        _
      $region16: #{encoder_block.4} parent=11 // pred_fallthru
        _
      // Predicated region
      $region17: #{encoder_block.4} parent=11 // pred_check
        %p337 = pneg %p172
      $region18: #{encoder_block.4} parent=11 // pred_check_branch
        %339 = sbr.rel (%p337) target = $region20
      $region19: #{encoder_block.4} parent=11 // pred_region
        _
      $region20: #{encoder_block.4} parent=11 // pred_fallthru
        _
      // Predicated region
      $region21: #{encoder_block.4} parent=11 // pred_check
        %p340 = pneg %p193
      $region22: #{encoder_block.4} parent=11 // pred_check_branch
        %342 = sbr.rel (%p340) target = $region24
      $region23: #{encoder_block.4} parent=11 // pred_region
        _
      $region24: #{encoder_block.4} parent=11 // pred_fallthru
        _
      // Predicated region
      $region25: #{encoder_block.4} parent=11 // pred_check
        %p343 = pneg %p214
      $region26: #{encoder_block.4} parent=11 // pred_check_branch
        %345 = sbr.rel (%p343) target = $region28
      $region27: #{encoder_block.4} parent=11 // pred_region
        _
      $region28: #{encoder_block.4} parent=11 // pred_fallthru
        _
      // Predicated region
      $region29: #{encoder_block.4} parent=11 // pred_check
        %p346 = pneg %p235
      $region30: #{encoder_block.4} parent=11 // pred_check_branch
        %348 = sbr.rel (%p346) target = $region32
      $region31: #{encoder_block.4} parent=11 // pred_region
        _
      $region32: #{encoder_block.4} parent=11 // pred_fallthru
        _
    $region12: #{encoder_block.4} parent=5 // pred_fallthru
      _
    %p349 = scmp.lt.s32.totalorder %s18, 4
    // Predicated region
    $region33: #{encoder_block.4} parent=5 // pred_check
      %p350 = pneg %p349
    $region34: #{encoder_block.4} parent=5 // pred_check_branch
      %352 = sbr.rel (%p350) target = $region36
    $region35: #{encoder_block.4} parent=5 // pred_region
      // Predicated region
      $region37: #{encoder_block.4} parent=35 // pred_check
        %p353 = pneg %p52
      $region38: #{encoder_block.4} parent=35 // pred_check_branch
        %355 = sbr.rel (%p353) target = $region40
      $region39: #{encoder_block.4} parent=35 // pred_region
        %s356 = smul.u32 8, %s26
        %p357 = scmp.lt.s32.totalorder %s25, 1
        %s358 = scalar_select %p357, %s25, 1
        %p359 = scmp.lt.s32.totalorder %s356, 15
        %s360 = scalar_select %p359, %s356, 15
        %s361 = smul.addr %s360, 2
        %s362 = smul.addr %s358, 32
        %s363 = sadd.s32 %s361, %s362
        %s364 = smul.addr %s363, 8
        %s365 = scalar_lea.vmem %s0, %s364
        %s366 = smul.u32 8, %s26
      $region40: #{encoder_block.4} parent=35 // pred_fallthru
        _
      // Predicated region
      $region41: #{encoder_block.4} parent=35 // pred_check
        %p367 = pneg %p88
      $region42: #{encoder_block.4} parent=35 // pred_check_branch
        %369 = sbr.rel (%p367) target = $region44
      $region43: #{encoder_block.4} parent=35 // pred_region
        %s370 = smul.u32 %s26, 8
        %s371 = ssub.s32 %s370, 1
        %p372 = scmp.gt.s32.totalorder %s371, 0
        %s373 = scalar_select %p372, %s371, 0
        %p374 = scmp.lt.s32.totalorder %s25, 1
        %s375 = scalar_select %p374, %s25, 1
        %p376 = scmp.lt.s32.totalorder %s373, 15
        %s377 = scalar_select %p376, %s373, 15
        %s378 = smul.addr %s377, 2
        %s379 = smul.addr %s375, 32
        %s380 = sadd.s32 %s378, %s379
        %s381 = smul.addr %s380, 8
        %s382 = scalar_lea.vmem %s1, %s381
        %s383 = smul.u32 %s26, 8
        %s384 = ssub.s32 %s383, 1
        %p385 = scmp.gt.s32.totalorder %s384, 0
        %s386 = scalar_select %p385, %s384, 0
      $region44: #{encoder_block.4} parent=35 // pred_fallthru
        _
      // Predicated region
      $region45: #{encoder_block.4} parent=35 // pred_check
        %p387 = pneg %p124
      $region46: #{encoder_block.4} parent=35 // pred_check_branch
        %389 = sbr.rel (%p387) target = $region48
      $region47: #{encoder_block.4} parent=35 // pred_region
        %s390 = sadd.s32 %s26, 1
        %s391 = smul.u32 %s390, 8
        %p392 = scmp.lt.s32.totalorder %s391, 15
        %s393 = scalar_select %p392, %s391, 15
        %p394 = scmp.lt.s32.totalorder %s25, 1
        %s395 = scalar_select %p394, %s25, 1
        %p396 = scmp.lt.s32.totalorder %s393, 15
        %s397 = scalar_select %p396, %s393, 15
        %s398 = smul.addr %s397, 2
        %s399 = smul.addr %s395, 32
        %s400 = sadd.s32 %s398, %s399
        %s401 = smul.addr %s400, 8
        %s402 = scalar_lea.vmem %s2, %s401
        %s403 = sadd.s32 %s26, 1
        %s404 = smul.u32 %s403, 8
        %p405 = scmp.lt.s32.totalorder %s404, 15
        %s406 = scalar_select %p405, %s404, 15
      $region48: #{encoder_block.4} parent=35 // pred_fallthru
        _
      // Predicated region
      $region49: #{encoder_block.4} parent=35 // pred_check
        %p407 = pneg %p257
      $region50: #{encoder_block.4} parent=35 // pred_check_branch
        %409 = sbr.rel (%p407) target = $region52
      $region51: #{encoder_block.4} parent=35 // pred_region
        %s410 = smul.u32 8, %s26
        %p411 = scmp.lt.s32.totalorder %s25, 1
        %s412 = scalar_select %p411, %s25, 1
        %p413 = scmp.lt.s32.totalorder %s410, 15
        %s414 = scalar_select %p413, %s410, 15
        %s415 = smul.addr %s414, 2
        %s416 = smul.addr %s412, 32
        %s417 = sadd.s32 %s415, %s416
        %s418 = smul.addr %s417, 8
        %s419 = scalar_lea.vmem %s8, %s418
        %s420 = smul.u32 8, %s26
      $region52: #{encoder_block.4} parent=35 // pred_fallthru
        _
    $region36: #{encoder_block.4} parent=5 // pred_fallthru
      _
    %p421 = scmp.le.s32.totalorder 1, %s18
    %p422 = scmp.lt.s32.totalorder %s18, 5
    %p423 = pnand %p421, %p422
    %p424 = pneg %p423
    // Predicated region
    $region53: #{encoder_block.4} parent=5 // pred_check
      _
    $region54: #{encoder_block.4} parent=5 // pred_check_branch
      %426 = sbr.rel (%p423) target = $region56
    $region55: #{encoder_block.4} parent=5 // pred_region
      %s427 = ssub.s32 %s18, 1
      %s428 = smul.u32 8, %s28
      %p429 = scmp.lt.s32.totalorder %s27, 1
      %s430 = scalar_select %p429, %s27, 1
      %p431 = scmp.lt.s32.totalorder %s428, 15
      %s432 = scalar_select %p431, %s428, 15
      %s433 = smul.addr %s432, 2
      %s434 = smul.addr %s430, 32
      %s435 = sadd.s32 %s433, %s434
      %s436 = smul.addr %s435, 8
      %s437 = scalar_lea.vmem %s0, %s436
      %p438 = pneg %p58
      %p439 = pneg %p55
      %s440 = smul.u32 %s28, 8
      %s441 = ssub.s32 %s440, 1
      %p442 = scmp.gt.s32.totalorder %s441, 0
      %s443 = scalar_select %p442, %s441, 0
      %p444 = scmp.lt.s32.totalorder %s27, 1
      %s445 = scalar_select %p444, %s27, 1
      %p446 = scmp.lt.s32.totalorder %s443, 15
      %s447 = scalar_select %p446, %s443, 15
      %s448 = smul.addr %s447, 2
      %s449 = smul.addr %s445, 32
      %s450 = sadd.s32 %s448, %s449
      %s451 = smul.addr %s450, 8
      %s452 = scalar_lea.vmem %s1, %s451
      %p453 = pneg %p94
      %p454 = pneg %p91
      %s455 = sadd.s32 %s28, 1
      %s456 = smul.u32 %s455, 8
      %p457 = scmp.lt.s32.totalorder %s456, 15
      %s458 = scalar_select %p457, %s456, 15
      %p459 = scmp.lt.s32.totalorder %s27, 1
      %s460 = scalar_select %p459, %s27, 1
      %p461 = scmp.lt.s32.totalorder %s458, 15
      %s462 = scalar_select %p461, %s458, 15
      %s463 = smul.addr %s462, 2
      %s464 = smul.addr %s460, 32
      %s465 = sadd.s32 %s463, %s464
      %s466 = smul.addr %s465, 8
      %s467 = scalar_lea.vmem %s2, %s466
      %p468 = pneg %p130
      %p469 = pneg %p127
      %p470 = pneg %p151
      %p471 = pneg %p148
      %p472 = pneg %p172
      %p473 = pneg %p169
      %p474 = pneg %p193
      %p475 = pneg %p190
      %p476 = pneg %p214
      %p477 = pneg %p211
      %p478 = pneg %p235
      %p479 = pneg %p232
      %s480 = smul.u32 8, %s28
      %p481 = scmp.lt.s32.totalorder %s27, 1
      %s482 = scalar_select %p481, %s27, 1
      %p483 = scmp.lt.s32.totalorder %s480, 15
      %s484 = scalar_select %p483, %s480, 15
      %s485 = smul.addr %s484, 2
      %s486 = smul.addr %s482, 32
      %s487 = sadd.s32 %s485, %s486
      %s488 = smul.addr %s487, 8
      %s489 = scalar_lea.vmem %s8, %s488
      %p490 = pneg %p263
      %p491 = pneg %p260
      %p492 = pneg %p291
      %p493 = pneg %p288
      %s494 = smul.u32 8, %s28
      %p495 = scmp.lt.s32.totalorder %s27, 1
      %s496 = scalar_select %p495, %s27, 1
      %p497 = scmp.lt.s32.totalorder %s494, 15
      %s498 = scalar_select %p497, %s494, 15
      %s499 = smul.addr %s498, 2
      %s500 = smul.addr %s496, 32
      %s501 = sadd.s32 %s499, %s500
      %s502 = smul.addr %s501, 8
      %s503 = scalar_lea.vmem %s9, %s502
      %p504 = pneg %p319
      %p505 = pneg %p316
      %p506 = scmp.lt.s32.totalorder %s27, 1
      %s507 = scalar_select %p506, %s27, 1
      %p508 = scmp.lt.s32.totalorder %s28, 1
      %s509 = scalar_select %p508, %s28, 1
      %s510 = smul.addr %s507, 2
      %s511 = sadd.s32 %s509, %s510
      %s512 = smul.addr %s511, 2
      %s513 = scalar_lea.vmem %s10, %s512
      %s514 = smul.u32 8, %s28
      %p515 = scmp.lt.s32.totalorder %s27, 1
      %s516 = scalar_select %p515, %s27, 1
      %p517 = scmp.lt.s32.totalorder %s514, 15
      %s518 = scalar_select %p517, %s514, 15
      %s519 = smul.addr %s518, 2
      %s520 = smul.addr %s516, 32
      %s521 = sadd.s32 %s519, %s520
      %s522 = smul.addr %s521, 8
      %s523 = scalar_lea.vmem %s0, %s522
      %s524 = smul.u32 8, %s28
      %s525 = smul.u32 %s28, 8
      %s526 = ssub.s32 %s525, 1
      %p527 = scmp.gt.s32.totalorder %s526, 0
      %s528 = scalar_select %p527, %s526, 0
      %p529 = scmp.lt.s32.totalorder %s27, 1
      %s530 = scalar_select %p529, %s27, 1
      %p531 = scmp.lt.s32.totalorder %s528, 15
      %s532 = scalar_select %p531, %s528, 15
      %s533 = smul.addr %s532, 2
      %s534 = smul.addr %s530, 32
      %s535 = sadd.s32 %s533, %s534
      %s536 = smul.addr %s535, 8
      %s537 = scalar_lea.vmem %s1, %s536
      %s538 = smul.u32 %s28, 8
      %s539 = ssub.s32 %s538, 1
      %p540 = scmp.gt.s32.totalorder %s539, 0
      %s541 = scalar_select %p540, %s539, 0
      %s542 = sadd.s32 %s28, 1
      %s543 = smul.u32 %s542, 8
      %p544 = scmp.lt.s32.totalorder %s543, 15
      %s545 = scalar_select %p544, %s543, 15
      %p546 = scmp.lt.s32.totalorder %s27, 1
      %s547 = scalar_select %p546, %s27, 1
      %p548 = scmp.lt.s32.totalorder %s545, 15
      %s549 = scalar_select %p548, %s545, 15
      %s550 = smul.addr %s549, 2
      %s551 = smul.addr %s547, 32
      %s552 = sadd.s32 %s550, %s551
      %s553 = smul.addr %s552, 8
      %s554 = scalar_lea.vmem %s2, %s553
      %s555 = sadd.s32 %s28, 1
      %s556 = smul.u32 %s555, 8
      %p557 = scmp.lt.s32.totalorder %s556, 15
      %s558 = scalar_select %p557, %s556, 15
      %s559 = smul.u32 8, %s28
      %p560 = scmp.lt.s32.totalorder %s27, 1
      %s561 = scalar_select %p560, %s27, 1
      %p562 = scmp.lt.s32.totalorder %s559, 15
      %s563 = scalar_select %p562, %s559, 15
      %s564 = smul.addr %s563, 2
      %s565 = smul.addr %s561, 32
      %s566 = sadd.s32 %s564, %s565
      %s567 = smul.addr %s566, 8
      %s568 = scalar_lea.vmem %s8, %s567
      %s569 = smul.u32 8, %s28
      %s570 = smul.u32 8, %s28
      %p571 = scmp.lt.s32.totalorder %s27, 1
      %s572 = scalar_select %p571, %s27, 1
      %p573 = scmp.lt.s32.totalorder %s570, 15
      %s574 = scalar_select %p573, %s570, 15
      %s575 = smul.addr %s574, 2
      %s576 = smul.addr %s572, 32
      %s577 = sadd.s32 %s575, %s576
      %s578 = smul.addr %s577, 8
      %s579 = scalar_lea.vmem %s9, %s578
      %s580 = smul.u32 8, %s28
      %p581 = scmp.lt.s32.totalorder %s27, 1
      %s582 = scalar_select %p581, %s27, 1
      %p583 = scmp.lt.s32.totalorder %s28, 1
      %s584 = scalar_select %p583, %s28, 1
      %s585 = smul.addr %s582, 2
      %s586 = sadd.s32 %s584, %s585
      %s587 = smul.addr %s586, 2
      %s588 = scalar_lea.vmem %s10, %s587
      %s589 = sld [smem:[#allocation3]]
      %v590 = vld [vmem:[%s3] sm:$0x1]
      %v591 = vld [vmem:[%s4] sm:$0x1]
      %vm592 = vcmask 31744
      %593 = vst.msk [vmem:[#allocation2] sm:$0xff] %vm592, 0.0
      %594 = vst.msk [vmem:[#allocation2 + $0x8] sm:$0xff] %vm592, 0.0
      %vm595 = vcmask 25600
      %596 = vst.msk [vmem:[#allocation2 + $0x10] sm:$0x3] %vm595, 0.0
      %597 = vst.msk [vmem:[#allocation2 + $0x18] sm:$0xff] %vm592, 0.0
      %598 = vst.msk [vmem:[#allocation2 + $0x20] sm:$0xff] %vm592, 0.0
      %599 = vst.msk [vmem:[#allocation2 + $0x28] sm:$0x3] %vm595, 0.0
      %600 = vst.msk [vmem:[#allocation2 + $0x30] sm:$0xff] %vm592, 0.0
      %601 = vst.msk [vmem:[#allocation2 + $0x38] sm:$0xff] %vm592, 0.0
      %602 = vst.msk [vmem:[#allocation2 + $0x40] sm:$0x3] %vm595, 0.0
      %603 = vst.msk [vmem:[#allocation2 + $0x48] sm:$0xff] %vm592, 0.0
      %604 = vst.msk [vmem:[#allocation2 + $0x50] sm:$0xff] %vm592, 0.0
      %605 = vst.msk [vmem:[#allocation2 + $0x58] sm:$0x3] %vm595, 0.0
      %606 = vst.msk [vmem:[#allocation2 + $0x60] sm:$0xff] %vm592, 0.0
      %607 = vst.msk [vmem:[#allocation2 + $0x68] sm:$0xff] %vm592, 0.0
      %608 = vst.msk [vmem:[#allocation2 + $0x70] sm:$0x3] %vm595, 0.0
      %609 = vst.msk [vmem:[#allocation2 + $0x78] sm:$0xff] %vm592, 0.0
      %610 = vst.msk [vmem:[#allocation2 + $0x80] sm:$0xff] %vm592, 0.0
      %611 = vst.msk [vmem:[#allocation2 + $0x88] sm:$0x3] %vm595, 0.0
      %612 = vst.msk [vmem:[#allocation2 + $0x90] sm:$0xff] %vm592, 0.0
      %613 = vst.msk [vmem:[#allocation2 + $0x98] sm:$0xff] %vm592, 0.0
      %614 = vst.msk [vmem:[#allocation2 + $0xa0] sm:$0x3] %vm595, 0.0
      %615 = vst.msk [vmem:[#allocation2 + $0xa8] sm:$0xff] %vm592, 0.0
      %616 = vst.msk [vmem:[#allocation2 + $0xb0] sm:$0xff] %vm592, 0.0
      %617 = vst.msk [vmem:[#allocation2 + $0xb8] sm:$0x3] %vm595, 0.0
      %618 = vst.msk [vmem:[#allocation2 + $0xc0] sm:$0xff] %vm592, 0.0
      %619 = vst.msk [vmem:[#allocation2 + $0xc8] sm:$0xff] %vm592, 0.0
      %620 = vst.msk [vmem:[#allocation2 + $0xd0] sm:$0x3] %vm595, 0.0
      %621 = vst.msk [vmem:[#allocation2 + $0xd8] sm:$0xff] %vm592, 0.0
      %622 = vst.msk [vmem:[#allocation2 + $0xe0] sm:$0xff] %vm592, 0.0
      %623 = vst.msk [vmem:[#allocation2 + $0xe8] sm:$0x3] %vm595, 0.0
      %v624 = vld [vmem:[%s523] sm:$0xff]
      %v625 = vld [vmem:[%s523 + $0x8] sm:$0xff]
      %v626 = vld [vmem:[%s523 + $0x10] sm:$0xff]
      %v627 = vld [vmem:[%s523 + $0x18] sm:$0xff]
      %v628 = vld [vmem:[%s523 + $0x20] sm:$0xff]
      %v629 = vld [vmem:[%s523 + $0x28] sm:$0xff]
      %v630 = vld [vmem:[%s523 + $0x30] sm:$0xff]
      %v631 = vld [vmem:[%s523 + $0x38] sm:$0xff]
      %v632 = vld [vmem:[%s523 + $0x40] sm:$0xff]
      %v633 = vld [vmem:[%s523 + $0x48] sm:$0xff]
      %v634 = vld [vmem:[%s523 + $0x50] sm:$0xff]
      %v635 = vld [vmem:[%s523 + $0x58] sm:$0xff]
      %v636 = vld [vmem:[%s523 + $0x60] sm:$0xff]
      %v637 = vld [vmem:[%s523 + $0x68] sm:$0xff]
      %v638 = vld [vmem:[%s523 + $0x70] sm:$0xff]
      %v639 = vld [vmem:[%s523 + $0x78] sm:$0xff]
      %v641 = vlaneseq
      %v642 = vshrl.u32 %v641, 7
      %v643 = vsub.s32 0, %v642
      %v644 = vrot.slane %v590, %v643
      %v646 = vmul.f32 %v624, %v644
      %v647 = vmul.f32 %v625, %v644
      %v648 = vmul.f32 %v626, %v644
      %v649 = vmul.f32 %v627, %v644
      %v650 = vmul.f32 %v628, %v644
      %v651 = vmul.f32 %v629, %v644
      %v652 = vmul.f32 %v630, %v644
      %v653 = vmul.f32 %v631, %v644
      %v654 = vmul.f32 %v632, %v644
      %v655 = vmul.f32 %v633, %v644
      %v656 = vmul.f32 %v634, %v644
      %v657 = vmul.f32 %v635, %v644
      %v658 = vmul.f32 %v636, %v644
      %v659 = vmul.f32 %v637, %v644
      %v660 = vmul.f32 %v638, %v644
      %v661 = vmul.f32 %v639, %v644
      %v663 = vlaneseq
      %v664 = vshrl.u32 %v663, 7
      %v665 = vsub.s32 0, %v664
      %v666 = vrot.slane %v591, %v665
      %v668 = vadd.f32 %v646, %v666
      %v669 = vadd.f32 %v647, %v666
      %v670 = vadd.f32 %v648, %v666
      %v671 = vadd.f32 %v649, %v666
      %v672 = vadd.f32 %v650, %v666
      %v673 = vadd.f32 %v651, %v666
      %v674 = vadd.f32 %v652, %v666
      %v675 = vadd.f32 %v653, %v666
      %v676 = vadd.f32 %v654, %v666
      %v677 = vadd.f32 %v655, %v666
      %v678 = vadd.f32 %v656, %v666
      %v679 = vadd.f32 %v657, %v666
      %v680 = vadd.f32 %v658, %v666
      %v681 = vadd.f32 %v659, %v666
      %v682 = vadd.f32 %v660, %v666
      %v683 = vadd.f32 %v661, %v666
      %vm684 = vcmp.ge.f32.partialorder %v668, 0.0
      %vm685 = vcmp.ge.f32.partialorder %v669, 0.0
      %vm686 = vcmp.ge.f32.partialorder %v670, 0.0
      %vm687 = vcmp.ge.f32.partialorder %v671, 0.0
      %vm688 = vcmp.ge.f32.partialorder %v672, 0.0
      %vm689 = vcmp.ge.f32.partialorder %v673, 0.0
      %vm690 = vcmp.ge.f32.partialorder %v674, 0.0
      %vm691 = vcmp.ge.f32.partialorder %v675, 0.0
      %vm692 = vcmp.ge.f32.partialorder %v676, 0.0
      %vm693 = vcmp.ge.f32.partialorder %v677, 0.0
      %vm694 = vcmp.ge.f32.partialorder %v678, 0.0
      %vm695 = vcmp.ge.f32.partialorder %v679, 0.0
      %vm696 = vcmp.ge.f32.partialorder %v680, 0.0
      %vm697 = vcmp.ge.f32.partialorder %v681, 0.0
      %vm698 = vcmp.ge.f32.partialorder %v682, 0.0
      %vm699 = vcmp.ge.f32.partialorder %v683, 0.0
      %v700 = vstv %s589
      %v701 = vmul.f32 %v700, %v668
      %v702 = vmul.f32 %v700, %v669
      %v703 = vmul.f32 %v700, %v670
      %v704 = vmul.f32 %v700, %v671
      %v705 = vmul.f32 %v700, %v672
      %v706 = vmul.f32 %v700, %v673
      %v707 = vmul.f32 %v700, %v674
      %v708 = vmul.f32 %v700, %v675
      %v709 = vmul.f32 %v700, %v676
      %v710 = vmul.f32 %v700, %v677
      %v711 = vmul.f32 %v700, %v678
      %v712 = vmul.f32 %v700, %v679
      %v713 = vmul.f32 %v700, %v680
      %v714 = vmul.f32 %v700, %v681
      %v715 = vmul.f32 %v700, %v682
      %v716 = vmul.f32 %v700, %v683
      %v717 = vsel %vm684, %v668, %v701
      %v718 = vsel %vm685, %v669, %v702
      %v719 = vsel %vm686, %v670, %v703
      %v720 = vsel %vm687, %v671, %v704
      %v721 = vsel %vm688, %v672, %v705
      %v722 = vsel %vm689, %v673, %v706
      %v723 = vsel %vm690, %v674, %v707
      %v724 = vsel %vm691, %v675, %v708
      %v725 = vsel %vm692, %v676, %v709
      %v726 = vsel %vm693, %v677, %v710
      %v727 = vsel %vm694, %v678, %v711
      %v728 = vsel %vm695, %v679, %v712
      %v729 = vsel %vm696, %v680, %v713
      %v730 = vsel %vm697, %v681, %v714
      %v731 = vsel %vm698, %v682, %v715
      %v732 = vsel %vm699, %v683, %v716
      %s733 = scalar_lea.vmem [#allocation2], 24
      %734 = vst.msk [vmem:[%s733 + $0x1] sm:$0xff] %vm592, %v717
      %735 = vst.msk [vmem:[%s733 + $0x9] sm:$0xff] %vm592, %v718
      %736 = vst.msk [vmem:[%s733 + $0x19] sm:$0xff] %vm592, %v719
      %737 = vst.msk [vmem:[%s733 + $0x21] sm:$0xff] %vm592, %v720
      %738 = vst.msk [vmem:[%s733 + $0x31] sm:$0xff] %vm592, %v721
      %739 = vst.msk [vmem:[%s733 + $0x39] sm:$0xff] %vm592, %v722
      %740 = vst.msk [vmem:[%s733 + $0x49] sm:$0xff] %vm592, %v723
      %741 = vst.msk [vmem:[%s733 + $0x51] sm:$0xff] %vm592, %v724
      %742 = vst.msk [vmem:[%s733 + $0x61] sm:$0xff] %vm592, %v725
      %743 = vst.msk [vmem:[%s733 + $0x69] sm:$0xff] %vm592, %v726
      %744 = vst.msk [vmem:[%s733 + $0x79] sm:$0xff] %vm592, %v727
      %745 = vst.msk [vmem:[%s733 + $0x81] sm:$0xff] %vm592, %v728
      %746 = vst.msk [vmem:[%s733 + $0x91] sm:$0xff] %vm592, %v729
      %747 = vst.msk [vmem:[%s733 + $0x99] sm:$0xff] %vm592, %v730
      %748 = vst.msk [vmem:[%s733 + $0xa9] sm:$0xff] %vm592, %v731
      %749 = vst.msk [vmem:[%s733 + $0xb1] sm:$0xff] %vm592, %v732
      %p750 = scmp.gt.s32.totalorder %s28, 0
      // Predicated region
      $region57: #{encoder_block.4} parent=55 // pred_check
        %p751 = pneg %p750
      $region58: #{encoder_block.4} parent=55 // pred_check_branch
        %753 = sbr.rel (%p751) target = $region60
      $region59: #{encoder_block.4} parent=55 // pred_region
        %v754 = vld [vmem:[%s537] sm:$0xff]
        %v755 = vld [vmem:[%s537 + $0x8] sm:$0xff]
        %v756 = vmul.f32 %v754, %v644
        %v757 = vmul.f32 %v755, %v644
        %v758 = vadd.f32 %v756, %v666
        %v759 = vadd.f32 %v757, %v666
        %vm760 = vcmp.ge.f32.partialorder %v758, 0.0
        %vm761 = vcmp.ge.f32.partialorder %v759, 0.0
        %v762 = vmul.f32 %v700, %v758
        %v763 = vmul.f32 %v700, %v759
        %v764 = vsel %vm760, %v758, %v762
        %v765 = vsel %vm761, %v759, %v763
        %766 = vst.msk [vmem:[#allocation2 + $0x1] sm:$0xff] %vm592, %v764
        %767 = vst.msk [vmem:[#allocation2 + $0x9] sm:$0xff] %vm592, %v765
      $region60: #{encoder_block.4} parent=55 // pred_fallthru
        _
      %p768 = scmp.lt.s32.totalorder %s28, 1
      // Predicated region
      $region61: #{encoder_block.4} parent=55 // pred_check
        %p769 = pneg %p768
      $region62: #{encoder_block.4} parent=55 // pred_check_branch
        %771 = sbr.rel (%p769) target = $region64
      $region63: #{encoder_block.4} parent=55 // pred_region
        %v772 = vld [vmem:[%s554] sm:$0xff]
        %v773 = vld [vmem:[%s554 + $0x8] sm:$0xff]
        %v774 = vmul.f32 %v772, %v644
        %v775 = vmul.f32 %v773, %v644
        %v776 = vadd.f32 %v774, %v666
        %v777 = vadd.f32 %v775, %v666
        %vm778 = vcmp.ge.f32.partialorder %v776, 0.0
        %vm779 = vcmp.ge.f32.partialorder %v777, 0.0
        %v780 = vmul.f32 %v700, %v776
        %v781 = vmul.f32 %v700, %v777
        %v782 = vsel %vm778, %v776, %v780
        %v783 = vsel %vm779, %v777, %v781
        %s784 = scalar_lea.vmem [#allocation2], 216
        %785 = vst.msk [vmem:[%s784 + $0x1] sm:$0xff] %vm592, %v782
        %786 = vst.msk [vmem:[%s784 + $0x9] sm:$0xff] %vm592, %v783
      $region64: #{encoder_block.4} parent=55 // pred_fallthru
        _
      %v787 = vld [vmem:[#allocation2] sm:$0xff]
      %v788 = vld [vmem:[#allocation2 + $0x8] sm:$0xff]
      %v789 = vld [vmem:[#allocation2 + $0x18] sm:$0xff]
      %v790 = vld [vmem:[#allocation2 + $0x20] sm:$0xff]
      %v791 = vld [vmem:[#allocation2 + $0x30] sm:$0xff]
      %v792 = vld [vmem:[#allocation2 + $0x38] sm:$0xff]
      %v793 = vld [vmem:[#allocation2 + $0x48] sm:$0xff]
      %v794 = vld [vmem:[#allocation2 + $0x50] sm:$0xff]
      %v795 = vld [vmem:[#allocation2 + $0x60] sm:$0xff]
      %v796 = vld [vmem:[#allocation2 + $0x68] sm:$0xff]
      %v797 = vld [vmem:[#allocation2 + $0x78] sm:$0xff]
      %v798 = vld [vmem:[#allocation2 + $0x80] sm:$0xff]
      %v799 = vld [vmem:[#allocation2 + $0x90] sm:$0xff]
      %v800 = vld [vmem:[#allocation2 + $0x98] sm:$0xff]
      %v801 = vld [vmem:[#allocation2 + $0xa8] sm:$0xff]
      %v802 = vld [vmem:[#allocation2 + $0xb0] sm:$0xff]
      %v803 = vld [vmem:[%s6] sm:$0xf]
      %v804 = vld [vmem:[#allocation2 + $0x1] sm:$0xff]
      %v805 = vld [vmem:[#allocation2 + $0x9] sm:$0xff]
      %v806 = vld [vmem:[#allocation2 + $0x19] sm:$0xff]
      %v807 = vld [vmem:[#allocation2 + $0x21] sm:$0xff]
      %v808 = vld [vmem:[#allocation2 + $0x31] sm:$0xff]
      %v809 = vld [vmem:[#allocation2 + $0x39] sm:$0xff]
      %v810 = vld [vmem:[#allocation2 + $0x49] sm:$0xff]
      %v811 = vld [vmem:[#allocation2 + $0x51] sm:$0xff]
      %v812 = vld [vmem:[#allocation2 + $0x61] sm:$0xff]
      %v813 = vld [vmem:[#allocation2 + $0x69] sm:$0xff]
      %v814 = vld [vmem:[#allocation2 + $0x79] sm:$0xff]
      %v815 = vld [vmem:[#allocation2 + $0x81] sm:$0xff]
      %v816 = vld [vmem:[#allocation2 + $0x91] sm:$0xff]
      %v817 = vld [vmem:[#allocation2 + $0x99] sm:$0xff]
      %v818 = vld [vmem:[#allocation2 + $0xa9] sm:$0xff]
      %v819 = vld [vmem:[#allocation2 + $0xb1] sm:$0xff]
      %s820 = scalar_lea.vmem %s6, 4
      %v821 = vld [vmem:[%s820] sm:$0xf]
      %v823 = vsel %vm592, %v804, 0
      %v826 = vsel %vm592, %v805, 0
      %v829 = vsel %vm592, %v806, 0
      %v832 = vsel %vm592, %v807, 0
      %v835 = vsel %vm592, %v808, 0
      %v838 = vsel %vm592, %v809, 0
      %v841 = vsel %vm592, %v810, 0
      %v844 = vsel %vm592, %v811, 0
      %v847 = vsel %vm592, %v812, 0
      %v850 = vsel %vm592, %v813, 0
      %v853 = vsel %vm592, %v814, 0
      %v856 = vsel %vm592, %v815, 0
      %v859 = vsel %vm592, %v816, 0
      %v862 = vsel %vm592, %v817, 0
      %v865 = vsel %vm592, %v818, 0
      %v868 = vsel %vm592, %v819, 0
      %vm870 = vcmask 1043456
      %v872 = vsel %vm870, %v821, 0
      %874 = vmatprep.subr.mxu0 0.0
      %875 = vmatpush1.msra.mxu0 %v872
      %876 = vmatprep.subr.mxu0 0.0
      %877 = vmatpush1.msra.mxu0 0.0
      %878 = vmatprep.subr.mxu0 0.0
      %879 = vmatpush1.msra.mxu0 0.0
      %880 = vmatprep.subr.mxu0 0.0
      %881 = vmatpush1.msra.mxu0 0.0
      %882 = vmatprep.subr.mxu0 0.0
      %883 = vmatpush1.msra.mxu0 0.0
      %884 = vmatprep.subr.mxu0 0.0
      %885 = vmatpush1.msra.mxu0 0.0
      %886 = vmatprep.subr.mxu0 0.0
      %887 = vmatpush1.msra.mxu0 0.0
      %888 = vmatprep.subr.mxu0 0.0
      %889 = vmatpush1.msra.mxu0 0.0
      %890 = vmatprep.subr.mxu0 0.0
      %891 = vmatpush1.msra.mxu0 0.0
      %892 = vmatprep.subr.mxu0 0.0
      %893 = vmatpush1.msra.mxu0 0.0
      %894 = vmatprep.subr.mxu0 0.0
      %895 = vmatpush1.msra.mxu0 0.0
      %896 = vmatprep.subr.mxu0 0.0
      %897 = vmatpush1.msra.mxu0 0.0
      %898 = vmatprep.subr.mxu0 0.0
      %899 = vmatpush1.msra.mxu0 0.0
      %900 = vmatprep.subr.mxu0 0.0
      %901 = vmatpush1.msra.mxu0 0.0
      %902 = vmatprep.subr.mxu0 0.0
      %903 = vmatpush1.msra.mxu0 0.0
      %904 = vmatprep.subr.mxu0 0.0
      %905 = vmatpush1.msra.mxu0 0.0
      %906 = vmatprep.subr.mxu0 0.0
      %907 = vmatpush1.msra.mxu0 0.0
      %908 = vmatprep.subr.mxu0 0.0
      %909 = vmatpush1.msra.mxu0 0.0
      %910 = vmatprep.subr.mxu0 0.0
      %911 = vmatpush1.msra.mxu0 0.0
      %912 = vmatprep.subr.mxu0 0.0
      %913 = vmatpush1.msra.mxu0 0.0
      %914 = vmatprep.subr.mxu0 0.0
      %915 = vmatpush1.msra.mxu0 0.0
      %916 = vmatprep.subr.mxu0 0.0
      %917 = vmatpush1.msra.mxu0 0.0
      %918 = vmatprep.subr.mxu0 0.0
      %919 = vmatpush1.msra.mxu0 0.0
      %920 = vmatprep.subr.mxu0 0.0
      %921 = vmatpush1.msra.mxu0 0.0
      %922 = vmatprep.subr.mxu0 0.0
      %923 = vmatpush1.msra.mxu0 0.0
      %924 = vmatprep.subr.mxu0 0.0
      %925 = vmatpush1.msra.mxu0 0.0
      %926 = vmatprep.subr.mxu0 0.0
      %927 = vmatpush1.msra.mxu0 0.0
      %928 = vmatprep.subr.mxu0 0.0
      %929 = vmatpush1.msra.mxu0 0.0
      %930 = vmatprep.subr.mxu0 0.0
      %931 = vmatpush1.msra.mxu0 0.0
      %932 = vmatprep.subr.mxu0 0.0
      %933 = vmatpush1.msra.mxu0 0.0
      %934 = vmatprep.subr.mxu0 0.0
      %935 = vmatpush1.msra.mxu0 0.0
      %936 = vmatprep.subr.mxu0 0.0
      %937 = vmatpush1.msra.mxu0 0.0
      %938 = vmatprep.mubr.f32.mxu0 0.0
      %939 = vmatmul.mubr.f32.gmra.mrb[0].mxu0 %v823
      %v940 = vpop.f32.mrb[0].mxu0
      %v941 = vadd.f32 0.0, %v940
      %v942 = vpop.f32.mrb[0].mxu0
      %943 = vmatprep.mubr.f32.mxu0 0.0
      %944 = vmatmul.mubr.f32.gmra.mrb[0].mxu0 %v826
      %v945 = vpop.f32.mrb[0].mxu0
      %v946 = vadd.f32 0.0, %v945
      %v947 = vpop.f32.mrb[0].mxu0
      %948 = vmatprep.mubr.f32.mxu0 0.0
      %949 = vmatmul.mubr.f32.gmra.mrb[0].mxu0 %v829
      %v950 = vpop.f32.mrb[0].mxu0
      %v951 = vadd.f32 0.0, %v950
      %v952 = vpop.f32.mrb[0].mxu0
      %953 = vmatprep.mubr.f32.mxu0 0.0
      %954 = vmatmul.mubr.f32.gmra.mrb[0].mxu0 %v832
      %v955 = vpop.f32.mrb[0].mxu0
      %v956 = vadd.f32 0.0, %v955
      %v957 = vpop.f32.mrb[0].mxu0
      %958 = vmatprep.mubr.f32.mxu0 0.0
      %959 = vmatmul.mubr.f32.gmra.mrb[0].mxu0 %v835
      %v960 = vpop.f32.mrb[0].mxu0
      %v961 = vadd.f32 0.0, %v960
      %v962 = vpop.f32.mrb[0].mxu0
      %963 = vmatprep.mubr.f32.mxu0 0.0
      %964 = vmatmul.mubr.f32.gmra.mrb[0].mxu0 %v838
      %v965 = vpop.f32.mrb[0].mxu0
      %v966 = vadd.f32 0.0, %v965
      %v967 = vpop.f32.mrb[0].mxu0
      %968 = vmatprep.mubr.f32.mxu0 0.0
      %969 = vmatmul.mubr.f32.gmra.mrb[0].mxu0 %v841
      %v970 = vpop.f32.mrb[0].mxu0
      %v971 = vadd.f32 0.0, %v970
      %v972 = vpop.f32.mrb[0].mxu0
      %973 = vmatprep.mubr.f32.mxu0 0.0
      %974 = vmatmul.mubr.f32.gmra.mrb[0].mxu0 %v844
      %v975 = vpop.f32.mrb[0].mxu0
      %v976 = vadd.f32 0.0, %v975
      %v977 = vpop.f32.mrb[0].mxu0
      %978 = vmatprep.mubr.f32.mxu0 0.0
      %979 = vmatmul.mubr.f32.gmra.mrb[0].mxu0 %v847
      %v980 = vpop.f32.mrb[0].mxu0
      %v981 = vadd.f32 0.0, %v980
      %v982 = vpop.f32.mrb[0].mxu0
      %983 = vmatprep.mubr.f32.mxu0 0.0
      %984 = vmatmul.mubr.f32.gmra.mrb[0].mxu0 %v850
      %v985 = vpop.f32.mrb[0].mxu0
      %v986 = vadd.f32 0.0, %v985
      %v987 = vpop.f32.mrb[0].mxu0
      %988 = vmatprep.mubr.f32.mxu0 0.0
      %989 = vmatmul.mubr.f32.gmra.mrb[0].mxu0 %v853
      %v990 = vpop.f32.mrb[0].mxu0
      %v991 = vadd.f32 0.0, %v990
      %v992 = vpop.f32.mrb[0].mxu0
      %993 = vmatprep.mubr.f32.mxu0 0.0
      %994 = vmatmul.mubr.f32.gmra.mrb[0].mxu0 %v856
      %v995 = vpop.f32.mrb[0].mxu0
      %v996 = vadd.f32 0.0, %v995
      %v997 = vpop.f32.mrb[0].mxu0
      %998 = vmatprep.mubr.f32.mxu0 0.0
      %999 = vmatmul.mubr.f32.gmra.mrb[0].mxu0 %v859
      %v1000 = vpop.f32.mrb[0].mxu0
      %v1001 = vadd.f32 0.0, %v1000
      %v1002 = vpop.f32.mrb[0].mxu0
      %1003 = vmatprep.mubr.f32.mxu0 0.0
      %1004 = vmatmul.mubr.f32.gmra.mrb[0].mxu0 %v862
      %v1005 = vpop.f32.mrb[0].mxu0
      %v1006 = vadd.f32 0.0, %v1005
      %v1007 = vpop.f32.mrb[0].mxu0
      %1008 = vmatprep.mubr.f32.mxu0 0.0
      %1009 = vmatmul.mubr.f32.gmra.mrb[0].mxu0 %v865
      %v1010 = vpop.f32.mrb[0].mxu0
      %v1011 = vadd.f32 0.0, %v1010
      %v1012 = vpop.f32.mrb[0].mxu0
      %1013 = vmatprep.mubr.f32.mxu0 0.0
      %1014 = vmatmul.mubr.f32.gmra.mrb[0].mxu0 %v868
      %v1015 = vpop.f32.mrb[0].mxu0
      %v1016 = vadd.f32 0.0, %v1015
      %v1017 = vpop.f32.mrb[0].mxu0
      %1018 = vdwg.mxu0
      %v1020 = vsel %vm592, %v787, 0
      %v1023 = vsel %vm592, %v788, 0
      %v1026 = vsel %vm592, %v789, 0
      %v1029 = vsel %vm592, %v790, 0
      %v1032 = vsel %vm592, %v791, 0
      %v1035 = vsel %vm592, %v792, 0
      %v1038 = vsel %vm592, %v793, 0
      %v1041 = vsel %vm592, %v794, 0
      %v1044 = vsel %vm592, %v795, 0
      %v1047 = vsel %vm592, %v796, 0
      %v1050 = vsel %vm592, %v797, 0
      %v1053 = vsel %vm592, %v798, 0
      %v1056 = vsel %vm592, %v799, 0
      %v1059 = vsel %vm592, %v800, 0
      %v1062 = vsel %vm592, %v801, 0
      %v1065 = vsel %vm592, %v802, 0
      %v1068 = vsel %vm870, %v803, 0
      %1070 = vmatprep.subr.mxu0 0.0
      %1071 = vmatpush1.msra.mxu0 %v1068
      %1072 = vmatprep.subr.mxu0 0.0
      %1073 = vmatpush1.msra.mxu0 0.0
      %1074 = vmatprep.subr.mxu0 0.0
      %1075 = vmatpush1.msra.mxu0 0.0
      %1076 = vmatprep.subr.mxu0 0.0
      %1077 = vmatpush1.msra.mxu0 0.0
      %1078 = vmatprep.subr.mxu0 0.0
      %1079 = vmatpush1.msra.mxu0 0.0
      %1080 = vmatprep.subr.mxu0 0.0
      %1081 = vmatpush1.msra.mxu0 0.0
      %1082 = vmatprep.subr.mxu0 0.0
      %1083 = vmatpush1.msra.mxu0 0.0
      %1084 = vmatprep.subr.mxu0 0.0
      %1085 = vmatpush1.msra.mxu0 0.0
      %1086 = vmatprep.subr.mxu0 0.0
      %1087 = vmatpush1.msra.mxu0 0.0
      %1088 = vmatprep.subr.mxu0 0.0
      %1089 = vmatpush1.msra.mxu0 0.0
      %1090 = vmatprep.subr.mxu0 0.0
      %1091 = vmatpush1.msra.mxu0 0.0
      %1092 = vmatprep.subr.mxu0 0.0
      %1093 = vmatpush1.msra.mxu0 0.0
      %1094 = vmatprep.subr.mxu0 0.0
      %1095 = vmatpush1.msra.mxu0 0.0
      %1096 = vmatprep.subr.mxu0 0.0
      %1097 = vmatpush1.msra.mxu0 0.0
      %1098 = vmatprep.subr.mxu0 0.0
      %1099 = vmatpush1.msra.mxu0 0.0
      %1100 = vmatprep.subr.mxu0 0.0
      %1101 = vmatpush1.msra.mxu0 0.0
      %1102 = vmatprep.subr.mxu0 0.0
      %1103 = vmatpush1.msra.mxu0 0.0
      %1104 = vmatprep.subr.mxu0 0.0
      %1105 = vmatpush1.msra.mxu0 0.0
      %1106 = vmatprep.subr.mxu0 0.0
      %1107 = vmatpush1.msra.mxu0 0.0
      %1108 = vmatprep.subr.mxu0 0.0
      %1109 = vmatpush1.msra.mxu0 0.0
      %1110 = vmatprep.subr.mxu0 0.0
      %1111 = vmatpush1.msra.mxu0 0.0
      %1112 = vmatprep.subr.mxu0 0.0
      %1113 = vmatpush1.msra.mxu0 0.0
      %1114 = vmatprep.subr.mxu0 0.0
      %1115 = vmatpush1.msra.mxu0 0.0
      %1116 = vmatprep.subr.mxu0 0.0
      %1117 = vmatpush1.msra.mxu0 0.0
      %1118 = vmatprep.subr.mxu0 0.0
      %1119 = vmatpush1.msra.mxu0 0.0
      %1120 = vmatprep.subr.mxu0 0.0
      %1121 = vmatpush1.msra.mxu0 0.0
      %1122 = vmatprep.subr.mxu0 0.0
      %1123 = vmatpush1.msra.mxu0 0.0
      %1124 = vmatprep.subr.mxu0 0.0
      %1125 = vmatpush1.msra.mxu0 0.0
      %1126 = vmatprep.subr.mxu0 0.0
      %1127 = vmatpush1.msra.mxu0 0.0
      %1128 = vmatprep.subr.mxu0 0.0
      %1129 = vmatpush1.msra.mxu0 0.0
      %1130 = vmatprep.subr.mxu0 0.0
      %1131 = vmatpush1.msra.mxu0 0.0
      %1132 = vmatprep.subr.mxu0 0.0
      %1133 = vmatpush1.msra.mxu0 0.0
      %1134 = vmatprep.mubr.f32.mxu0 0.0
      %1135 = vmatmul.mubr.f32.gmra.mrb[0].mxu0 %v1020
      %v1136 = vpop.f32.mrb[0].mxu0
      %v1137 = vadd.f32 %v941, %v1136
      %v1138 = vpop.f32.mrb[0].mxu0
      %1139 = vmatprep.mubr.f32.mxu0 0.0
      %1140 = vmatmul.mubr.f32.gmra.mrb[0].mxu0 %v1023
      %v1141 = vpop.f32.mrb[0].mxu0
      %v1142 = vadd.f32 %v946, %v1141
      %v1143 = vpop.f32.mrb[0].mxu0
      %1144 = vmatprep.mubr.f32.mxu0 0.0
      %1145 = vmatmul.mubr.f32.gmra.mrb[0].mxu0 %v1026
      %v1146 = vpop.f32.mrb[0].mxu0
      %v1147 = vadd.f32 %v951, %v1146
      %v1148 = vpop.f32.mrb[0].mxu0
      %1149 = vmatprep.mubr.f32.mxu0 0.0
      %1150 = vmatmul.mubr.f32.gmra.mrb[0].mxu0 %v1029
      %v1151 = vpop.f32.mrb[0].mxu0
      %v1152 = vadd.f32 %v956, %v1151
      %v1153 = vpop.f32.mrb[0].mxu0
      %1154 = vmatprep.mubr.f32.mxu0 0.0
      %1155 = vmatmul.mubr.f32.gmra.mrb[0].mxu0 %v1032
      %v1156 = vpop.f32.mrb[0].mxu0
      %v1157 = vadd.f32 %v961, %v1156
      %v1158 = vpop.f32.mrb[0].mxu0
      %1159 = vmatprep.mubr.f32.mxu0 0.0
      %1160 = vmatmul.mubr.f32.gmra.mrb[0].mxu0 %v1035
      %v1161 = vpop.f32.mrb[0].mxu0
      %v1162 = vadd.f32 %v966, %v1161
      %v1163 = vpop.f32.mrb[0].mxu0
      %1164 = vmatprep.mubr.f32.mxu0 0.0
      %1165 = vmatmul.mubr.f32.gmra.mrb[0].mxu0 %v1038
      %v1166 = vpop.f32.mrb[0].mxu0
      %v1167 = vadd.f32 %v971, %v1166
      %v1168 = vpop.f32.mrb[0].mxu0
      %1169 = vmatprep.mubr.f32.mxu0 0.0
      %1170 = vmatmul.mubr.f32.gmra.mrb[0].mxu0 %v1041
      %v1171 = vpop.f32.mrb[0].mxu0
      %v1172 = vadd.f32 %v976, %v1171
      %v1173 = vpop.f32.mrb[0].mxu0
      %1174 = vmatprep.mubr.f32.mxu0 0.0
      %1175 = vmatmul.mubr.f32.gmra.mrb[0].mxu0 %v1044
      %v1176 = vpop.f32.mrb[0].mxu0
      %v1177 = vadd.f32 %v981, %v1176
      %v1178 = vpop.f32.mrb[0].mxu0
      %1179 = vmatprep.mubr.f32.mxu0 0.0
      %1180 = vmatmul.mubr.f32.gmra.mrb[0].mxu0 %v1047
      %v1181 = vpop.f32.mrb[0].mxu0
      %v1182 = vadd.f32 %v986, %v1181
      %v1183 = vpop.f32.mrb[0].mxu0
      %1184 = vmatprep.mubr.f32.mxu0 0.0
      %1185 = vmatmul.mubr.f32.gmra.mrb[0].mxu0 %v1050
      %v1186 = vpop.f32.mrb[0].mxu0
      %v1187 = vadd.f32 %v991, %v1186
      %v1188 = vpop.f32.mrb[0].mxu0
      %1189 = vmatprep.mubr.f32.mxu0 0.0
      %1190 = vmatmul.mubr.f32.gmra.mrb[0].mxu0 %v1053
      %v1191 = vpop.f32.mrb[0].mxu0
      %v1192 = vadd.f32 %v996, %v1191
      %v1193 = vpop.f32.mrb[0].mxu0
      %1194 = vmatprep.mubr.f32.mxu0 0.0
      %1195 = vmatmul.mubr.f32.gmra.mrb[0].mxu0 %v1056
      %v1196 = vpop.f32.mrb[0].mxu0
      %v1197 = vadd.f32 %v1001, %v1196
      %v1198 = vpop.f32.mrb[0].mxu0
      %1199 = vmatprep.mubr.f32.mxu0 0.0
      %1200 = vmatmul.mubr.f32.gmra.mrb[0].mxu0 %v1059
      %v1201 = vpop.f32.mrb[0].mxu0
      %v1202 = vadd.f32 %v1006, %v1201
      %v1203 = vpop.f32.mrb[0].mxu0
      %1204 = vmatprep.mubr.f32.mxu0 0.0
      %1205 = vmatmul.mubr.f32.gmra.mrb[0].mxu0 %v1062
      %v1206 = vpop.f32.mrb[0].mxu0
      %v1207 = vadd.f32 %v1011, %v1206
      %v1208 = vpop.f32.mrb[0].mxu0
      %1209 = vmatprep.mubr.f32.mxu0 0.0
      %1210 = vmatmul.mubr.f32.gmra.mrb[0].mxu0 %v1065
      %v1211 = vpop.f32.mrb[0].mxu0
      %v1212 = vadd.f32 %v1016, %v1211
      %v1213 = vpop.f32.mrb[0].mxu0
      %1214 = vdwg.mxu0
      %v1215 = vld [vmem:[#allocation2 + $0x2] sm:$0xff]
      %v1216 = vld [vmem:[#allocation2 + $0xa] sm:$0xff]
      %v1217 = vld [vmem:[#allocation2 + $0x1a] sm:$0xff]
      %v1218 = vld [vmem:[#allocation2 + $0x22] sm:$0xff]
      %v1219 = vld [vmem:[#allocation2 + $0x32] sm:$0xff]
      %v1220 = vld [vmem:[#allocation2 + $0x3a] sm:$0xff]
      %v1221 = vld [vmem:[#allocation2 + $0x4a] sm:$0xff]
      %v1222 = vld [vmem:[#allocation2 + $0x52] sm:$0xff]
      %v1223 = vld [vmem:[#allocation2 + $0x62] sm:$0xff]
      %v1224 = vld [vmem:[#allocation2 + $0x6a] sm:$0xff]
      %v1225 = vld [vmem:[#allocation2 + $0x7a] sm:$0xff]
      %v1226 = vld [vmem:[#allocation2 + $0x82] sm:$0xff]
      %v1227 = vld [vmem:[#allocation2 + $0x92] sm:$0xff]
      %v1228 = vld [vmem:[#allocation2 + $0x9a] sm:$0xff]
      %v1229 = vld [vmem:[#allocation2 + $0xaa] sm:$0xff]
      %v1230 = vld [vmem:[#allocation2 + $0xb2] sm:$0xff]
      %s1231 = scalar_lea.vmem %s6, 8
      %v1232 = vld [vmem:[%s1231] sm:$0xf]
      %v1234 = vsel %vm592, %v1215, 0
      %v1237 = vsel %vm592, %v1216, 0
      %v1240 = vsel %vm592, %v1217, 0
      %v1243 = vsel %vm592, %v1218, 0
      %v1246 = vsel %vm592, %v1219, 0
      %v1249 = vsel %vm592, %v1220, 0
      %v1252 = vsel %vm592, %v1221, 0
      %v1255 = vsel %vm592, %v1222, 0
      %v1258 = vsel %vm592, %v1223, 0
      %v1261 = vsel %vm592, %v1224, 0
      %v1264 = vsel %vm592, %v1225, 0
      %v1267 = vsel %vm592, %v1226, 0
      %v1270 = vsel %vm592, %v1227, 0
      %v1273 = vsel %vm592, %v1228, 0
      %v1276 = vsel %vm592, %v1229, 0
      %v1279 = vsel %vm592, %v1230, 0
      %v1282 = vsel %vm870, %v1232, 0
      %1284 = vmatprep.subr.mxu0 0.0
      %1285 = vmatpush1.msra.mxu0 %v1282
      %1286 = vmatprep.subr.mxu0 0.0
      %1287 = vmatpush1.msra.mxu0 0.0
      %1288 = vmatprep.subr.mxu0 0.0
      %1289 = vmatpush1.msra.mxu0 0.0
      %1290 = vmatprep.subr.mxu0 0.0
      %1291 = vmatpush1.msra.mxu0 0.0
      %1292 = vmatprep.subr.mxu0 0.0
      %1293 = vmatpush1.msra.mxu0 0.0
      %1294 = vmatprep.subr.mxu0 0.0
      %1295 = vmatpush1.msra.mxu0 0.0
      %1296 = vmatprep.subr.mxu0 0.0
      %1297 = vmatpush1.msra.mxu0 0.0
      %1298 = vmatprep.subr.mxu0 0.0
      %1299 = vmatpush1.msra.mxu0 0.0
      %1300 = vmatprep.subr.mxu0 0.0
      %1301 = vmatpush1.msra.mxu0 0.0
      %1302 = vmatprep.subr.mxu0 0.0
      %1303 = vmatpush1.msra.mxu0 0.0
      %1304 = vmatprep.subr.mxu0 0.0
      %1305 = vmatpush1.msra.mxu0 0.0
      %1306 = vmatprep.subr.mxu0 0.0
      %1307 = vmatpush1.msra.mxu0 0.0
      %1308 = vmatprep.subr.mxu0 0.0
      %1309 = vmatpush1.msra.mxu0 0.0
      %1310 = vmatprep.subr.mxu0 0.0
      %1311 = vmatpush1.msra.mxu0 0.0
      %1312 = vmatprep.subr.mxu0 0.0
      %1313 = vmatpush1.msra.mxu0 0.0
      %1314 = vmatprep.subr.mxu0 0.0
      %1315 = vmatpush1.msra.mxu0 0.0
      %1316 = vmatprep.subr.mxu0 0.0
      %1317 = vmatpush1.msra.mxu0 0.0
      %1318 = vmatprep.subr.mxu0 0.0
      %1319 = vmatpush1.msra.mxu0 0.0
      %1320 = vmatprep.subr.mxu0 0.0
      %1321 = vmatpush1.msra.mxu0 0.0
      %1322 = vmatprep.subr.mxu0 0.0
      %1323 = vmatpush1.msra.mxu0 0.0
      %1324 = vmatprep.subr.mxu0 0.0
      %1325 = vmatpush1.msra.mxu0 0.0
      %1326 = vmatprep.subr.mxu0 0.0
      %1327 = vmatpush1.msra.mxu0 0.0
      %1328 = vmatprep.subr.mxu0 0.0
      %1329 = vmatpush1.msra.mxu0 0.0
      %1330 = vmatprep.subr.mxu0 0.0
      %1331 = vmatpush1.msra.mxu0 0.0
      %1332 = vmatprep.subr.mxu0 0.0
      %1333 = vmatpush1.msra.mxu0 0.0
      %1334 = vmatprep.subr.mxu0 0.0
      %1335 = vmatpush1.msra.mxu0 0.0
      %1336 = vmatprep.subr.mxu0 0.0
      %1337 = vmatpush1.msra.mxu0 0.0
      %1338 = vmatprep.subr.mxu0 0.0
      %1339 = vmatpush1.msra.mxu0 0.0
      %1340 = vmatprep.subr.mxu0 0.0
      %1341 = vmatpush1.msra.mxu0 0.0
      %1342 = vmatprep.subr.mxu0 0.0
      %1343 = vmatpush1.msra.mxu0 0.0
      %1344 = vmatprep.subr.mxu0 0.0
      %1345 = vmatpush1.msra.mxu0 0.0
      %1346 = vmatprep.subr.mxu0 0.0
      %1347 = vmatpush1.msra.mxu0 0.0
      %1348 = vmatprep.mubr.f32.mxu0 0.0
      %1349 = vmatmul.mubr.f32.gmra.mrb[0].mxu0 %v1234
      %v1350 = vpop.f32.mrb[0].mxu0
      %v1351 = vadd.f32 0.0, %v1350
      %v1352 = vpop.f32.mrb[0].mxu0
      %1353 = vmatprep.mubr.f32.mxu0 0.0
      %1354 = vmatmul.mubr.f32.gmra.mrb[0].mxu0 %v1237
      %v1355 = vpop.f32.mrb[0].mxu0
      %v1356 = vadd.f32 0.0, %v1355
      %v1357 = vpop.f32.mrb[0].mxu0
      %1358 = vmatprep.mubr.f32.mxu0 0.0
      %1359 = vmatmul.mubr.f32.gmra.mrb[0].mxu0 %v1240
      %v1360 = vpop.f32.mrb[0].mxu0
      %v1361 = vadd.f32 0.0, %v1360
      %v1362 = vpop.f32.mrb[0].mxu0
      %1363 = vmatprep.mubr.f32.mxu0 0.0
      %1364 = vmatmul.mubr.f32.gmra.mrb[0].mxu0 %v1243
      %v1365 = vpop.f32.mrb[0].mxu0
      %v1366 = vadd.f32 0.0, %v1365
      %v1367 = vpop.f32.mrb[0].mxu0
      %1368 = vmatprep.mubr.f32.mxu0 0.0
      %1369 = vmatmul.mubr.f32.gmra.mrb[0].mxu0 %v1246
      %v1370 = vpop.f32.mrb[0].mxu0
      %v1371 = vadd.f32 0.0, %v1370
      %v1372 = vpop.f32.mrb[0].mxu0
      %1373 = vmatprep.mubr.f32.mxu0 0.0
      %1374 = vmatmul.mubr.f32.gmra.mrb[0].mxu0 %v1249
      %v1375 = vpop.f32.mrb[0].mxu0
      %v1376 = vadd.f32 0.0, %v1375
      %v1377 = vpop.f32.mrb[0].mxu0
      %1378 = vmatprep.mubr.f32.mxu0 0.0
      %1379 = vmatmul.mubr.f32.gmra.mrb[0].mxu0 %v1252
      %v1380 = vpop.f32.mrb[0].mxu0
      %v1381 = vadd.f32 0.0, %v1380
      %v1382 = vpop.f32.mrb[0].mxu0
      %1383 = vmatprep.mubr.f32.mxu0 0.0
      %1384 = vmatmul.mubr.f32.gmra.mrb[0].mxu0 %v1255
      %v1385 = vpop.f32.mrb[0].mxu0
      %v1386 = vadd.f32 0.0, %v1385
      %v1387 = vpop.f32.mrb[0].mxu0
      %1388 = vmatprep.mubr.f32.mxu0 0.0
      %1389 = vmatmul.mubr.f32.gmra.mrb[0].mxu0 %v1258
      %v1390 = vpop.f32.mrb[0].mxu0
      %v1391 = vadd.f32 0.0, %v1390
      %v1392 = vpop.f32.mrb[0].mxu0
      %1393 = vmatprep.mubr.f32.mxu0 0.0
      %1394 = vmatmul.mubr.f32.gmra.mrb[0].mxu0 %v1261
      %v1395 = vpop.f32.mrb[0].mxu0
      %v1396 = vadd.f32 0.0, %v1395
      %v1397 = vpop.f32.mrb[0].mxu0
      %1398 = vmatprep.mubr.f32.mxu0 0.0
      %1399 = vmatmul.mubr.f32.gmra.mrb[0].mxu0 %v1264
      %v1400 = vpop.f32.mrb[0].mxu0
      %v1401 = vadd.f32 0.0, %v1400
      %v1402 = vpop.f32.mrb[0].mxu0
      %1403 = vmatprep.mubr.f32.mxu0 0.0
      %1404 = vmatmul.mubr.f32.gmra.mrb[0].mxu0 %v1267
      %v1405 = vpop.f32.mrb[0].mxu0
      %v1406 = vadd.f32 0.0, %v1405
      %v1407 = vpop.f32.mrb[0].mxu0
      %1408 = vmatprep.mubr.f32.mxu0 0.0
      %1409 = vmatmul.mubr.f32.gmra.mrb[0].mxu0 %v1270
      %v1410 = vpop.f32.mrb[0].mxu0
      %v1411 = vadd.f32 0.0, %v1410
      %v1412 = vpop.f32.mrb[0].mxu0
      %1413 = vmatprep.mubr.f32.mxu0 0.0
      %1414 = vmatmul.mubr.f32.gmra.mrb[0].mxu0 %v1273
      %v1415 = vpop.f32.mrb[0].mxu0
      %v1416 = vadd.f32 0.0, %v1415
      %v1417 = vpop.f32.mrb[0].mxu0
      %1418 = vmatprep.mubr.f32.mxu0 0.0
      %1419 = vmatmul.mubr.f32.gmra.mrb[0].mxu0 %v1276
      %v1420 = vpop.f32.mrb[0].mxu0
      %v1421 = vadd.f32 0.0, %v1420
      %v1422 = vpop.f32.mrb[0].mxu0
      %1423 = vmatprep.mubr.f32.mxu0 0.0
      %1424 = vmatmul.mubr.f32.gmra.mrb[0].mxu0 %v1279
      %v1425 = vpop.f32.mrb[0].mxu0
      %v1426 = vadd.f32 0.0, %v1425
      %v1427 = vpop.f32.mrb[0].mxu0
      %1428 = vdwg.mxu0
      %v1429 = vadd.f32 %v1137, %v1351
      %v1430 = vadd.f32 %v1142, %v1356
      %v1431 = vadd.f32 %v1147, %v1361
      %v1432 = vadd.f32 %v1152, %v1366
      %v1433 = vadd.f32 %v1157, %v1371
      %v1434 = vadd.f32 %v1162, %v1376
      %v1435 = vadd.f32 %v1167, %v1381
      %v1436 = vadd.f32 %v1172, %v1386
      %v1437 = vadd.f32 %v1177, %v1391
      %v1438 = vadd.f32 %v1182, %v1396
      %v1439 = vadd.f32 %v1187, %v1401
      %v1440 = vadd.f32 %v1192, %v1406
      %v1441 = vadd.f32 %v1197, %v1411
      %v1442 = vadd.f32 %v1202, %v1416
      %v1443 = vadd.f32 %v1207, %v1421
      %v1444 = vadd.f32 %v1212, %v1426
      %v1445 = vld [vmem:[%s733] sm:$0xff]
      %v1446 = vld [vmem:[%s733 + $0x8] sm:$0xff]
      %v1447 = vld [vmem:[%s733 + $0x18] sm:$0xff]
      %v1448 = vld [vmem:[%s733 + $0x20] sm:$0xff]
      %v1449 = vld [vmem:[%s733 + $0x30] sm:$0xff]
      %v1450 = vld [vmem:[%s733 + $0x38] sm:$0xff]
      %v1451 = vld [vmem:[%s733 + $0x48] sm:$0xff]
      %v1452 = vld [vmem:[%s733 + $0x50] sm:$0xff]
      %v1453 = vld [vmem:[%s733 + $0x60] sm:$0xff]
      %v1454 = vld [vmem:[%s733 + $0x68] sm:$0xff]
      %v1455 = vld [vmem:[%s733 + $0x78] sm:$0xff]
      %v1456 = vld [vmem:[%s733 + $0x80] sm:$0xff]
      %v1457 = vld [vmem:[%s733 + $0x90] sm:$0xff]
      %v1458 = vld [vmem:[%s733 + $0x98] sm:$0xff]
      %v1459 = vld [vmem:[%s733 + $0xa8] sm:$0xff]
      %v1460 = vld [vmem:[%s733 + $0xb0] sm:$0xff]
      %s1461 = scalar_lea.vmem %s6, 12
      %v1462 = vld [vmem:[%s1461] sm:$0xf]
      %v1464 = vsel %vm592, %v1445, 0
      %v1467 = vsel %vm592, %v1446, 0
      %v1470 = vsel %vm592, %v1447, 0
      %v1473 = vsel %vm592, %v1448, 0
      %v1476 = vsel %vm592, %v1449, 0
      %v1479 = vsel %vm592, %v1450, 0
      %v1482 = vsel %vm592, %v1451, 0
      %v1485 = vsel %vm592, %v1452, 0
      %v1488 = vsel %vm592, %v1453, 0
      %v1491 = vsel %vm592, %v1454, 0
      %v1494 = vsel %vm592, %v1455, 0
      %v1497 = vsel %vm592, %v1456, 0
      %v1500 = vsel %vm592, %v1457, 0
      %v1503 = vsel %vm592, %v1458, 0
      %v1506 = vsel %vm592, %v1459, 0
      %v1509 = vsel %vm592, %v1460, 0
      %v1512 = vsel %vm870, %v1462, 0
      %1514 = vmatprep.subr.mxu0 0.0
      %1515 = vmatpush1.msra.mxu0 %v1512
      %1516 = vmatprep.subr.mxu0 0.0
      %1517 = vmatpush1.msra.mxu0 0.0
      %1518 = vmatprep.subr.mxu0 0.0
      %1519 = vmatpush1.msra.mxu0 0.0
      %1520 = vmatprep.subr.mxu0 0.0
      %1521 = vmatpush1.msra.mxu0 0.0
      %1522 = vmatprep.subr.mxu0 0.0
      %1523 = vmatpush1.msra.mxu0 0.0
      %1524 = vmatprep.subr.mxu0 0.0
      %1525 = vmatpush1.msra.mxu0 0.0
      %1526 = vmatprep.subr.mxu0 0.0
      %1527 = vmatpush1.msra.mxu0 0.0
      %1528 = vmatprep.subr.mxu0 0.0
      %1529 = vmatpush1.msra.mxu0 0.0
      %1530 = vmatprep.subr.mxu0 0.0
      %1531 = vmatpush1.msra.mxu0 0.0
      %1532 = vmatprep.subr.mxu0 0.0
      %1533 = vmatpush1.msra.mxu0 0.0
      %1534 = vmatprep.subr.mxu0 0.0
      %1535 = vmatpush1.msra.mxu0 0.0
      %1536 = vmatprep.subr.mxu0 0.0
      %1537 = vmatpush1.msra.mxu0 0.0
      %1538 = vmatprep.subr.mxu0 0.0
      %1539 = vmatpush1.msra.mxu0 0.0
      %1540 = vmatprep.subr.mxu0 0.0
      %1541 = vmatpush1.msra.mxu0 0.0
      %1542 = vmatprep.subr.mxu0 0.0
      %1543 = vmatpush1.msra.mxu0 0.0
      %1544 = vmatprep.subr.mxu0 0.0
      %1545 = vmatpush1.msra.mxu0 0.0
      %1546 = vmatprep.subr.mxu0 0.0
      %1547 = vmatpush1.msra.mxu0 0.0
      %1548 = vmatprep.subr.mxu0 0.0
      %1549 = vmatpush1.msra.mxu0 0.0
      %1550 = vmatprep.subr.mxu0 0.0
      %1551 = vmatpush1.msra.mxu0 0.0
      %1552 = vmatprep.subr.mxu0 0.0
      %1553 = vmatpush1.msra.mxu0 0.0
      %1554 = vmatprep.subr.mxu0 0.0
      %1555 = vmatpush1.msra.mxu0 0.0
      %1556 = vmatprep.subr.mxu0 0.0
      %1557 = vmatpush1.msra.mxu0 0.0
      %1558 = vmatprep.subr.mxu0 0.0
      %1559 = vmatpush1.msra.mxu0 0.0
      %1560 = vmatprep.subr.mxu0 0.0
      %1561 = vmatpush1.msra.mxu0 0.0
      %1562 = vmatprep.subr.mxu0 0.0
      %1563 = vmatpush1.msra.mxu0 0.0
      %1564 = vmatprep.subr.mxu0 0.0
      %1565 = vmatpush1.msra.mxu0 0.0
      %1566 = vmatprep.subr.mxu0 0.0
      %1567 = vmatpush1.msra.mxu0 0.0
      %1568 = vmatprep.subr.mxu0 0.0
      %1569 = vmatpush1.msra.mxu0 0.0
      %1570 = vmatprep.subr.mxu0 0.0
      %1571 = vmatpush1.msra.mxu0 0.0
      %1572 = vmatprep.subr.mxu0 0.0
      %1573 = vmatpush1.msra.mxu0 0.0
      %1574 = vmatprep.subr.mxu0 0.0
      %1575 = vmatpush1.msra.mxu0 0.0
      %1576 = vmatprep.subr.mxu0 0.0
      %1577 = vmatpush1.msra.mxu0 0.0
      %1578 = vmatprep.mubr.f32.mxu0 0.0
      %1579 = vmatmul.mubr.f32.gmra.mrb[0].mxu0 %v1464
      %v1580 = vpop.f32.mrb[0].mxu0
      %v1581 = vadd.f32 0.0, %v1580
      %v1582 = vpop.f32.mrb[0].mxu0
      %1583 = vmatprep.mubr.f32.mxu0 0.0
      %1584 = vmatmul.mubr.f32.gmra.mrb[0].mxu0 %v1467
      %v1585 = vpop.f32.mrb[0].mxu0
      %v1586 = vadd.f32 0.0, %v1585
      %v1587 = vpop.f32.mrb[0].mxu0
      %1588 = vmatprep.mubr.f32.mxu0 0.0
      %1589 = vmatmul.mubr.f32.gmra.mrb[0].mxu0 %v1470
      %v1590 = vpop.f32.mrb[0].mxu0
      %v1591 = vadd.f32 0.0, %v1590
      %v1592 = vpop.f32.mrb[0].mxu0
      %1593 = vmatprep.mubr.f32.mxu0 0.0
      %1594 = vmatmul.mubr.f32.gmra.mrb[0].mxu0 %v1473
      %v1595 = vpop.f32.mrb[0].mxu0
      %v1596 = vadd.f32 0.0, %v1595
      %v1597 = vpop.f32.mrb[0].mxu0
      %1598 = vmatprep.mubr.f32.mxu0 0.0
      %1599 = vmatmul.mubr.f32.gmra.mrb[0].mxu0 %v1476
      %v1600 = vpop.f32.mrb[0].mxu0
      %v1601 = vadd.f32 0.0, %v1600
      %v1602 = vpop.f32.mrb[0].mxu0
      %1603 = vmatprep.mubr.f32.mxu0 0.0
      %1604 = vmatmul.mubr.f32.gmra.mrb[0].mxu0 %v1479
      %v1605 = vpop.f32.mrb[0].mxu0
      %v1606 = vadd.f32 0.0, %v1605
      %v1607 = vpop.f32.mrb[0].mxu0
      %1608 = vmatprep.mubr.f32.mxu0 0.0
      %1609 = vmatmul.mubr.f32.gmra.mrb[0].mxu0 %v1482
      %v1610 = vpop.f32.mrb[0].mxu0
      %v1611 = vadd.f32 0.0, %v1610
      %v1612 = vpop.f32.mrb[0].mxu0
      %1613 = vmatprep.mubr.f32.mxu0 0.0
      %1614 = vmatmul.mubr.f32.gmra.mrb[0].mxu0 %v1485
      %v1615 = vpop.f32.mrb[0].mxu0
      %v1616 = vadd.f32 0.0, %v1615
      %v1617 = vpop.f32.mrb[0].mxu0
      %1618 = vmatprep.mubr.f32.mxu0 0.0
      %1619 = vmatmul.mubr.f32.gmra.mrb[0].mxu0 %v1488
      %v1620 = vpop.f32.mrb[0].mxu0
      %v1621 = vadd.f32 0.0, %v1620
      %v1622 = vpop.f32.mrb[0].mxu0
      %1623 = vmatprep.mubr.f32.mxu0 0.0
      %1624 = vmatmul.mubr.f32.gmra.mrb[0].mxu0 %v1491
      %v1625 = vpop.f32.mrb[0].mxu0
      %v1626 = vadd.f32 0.0, %v1625
      %v1627 = vpop.f32.mrb[0].mxu0
      %1628 = vmatprep.mubr.f32.mxu0 0.0
      %1629 = vmatmul.mubr.f32.gmra.mrb[0].mxu0 %v1494
      %v1630 = vpop.f32.mrb[0].mxu0
      %v1631 = vadd.f32 0.0, %v1630
      %v1632 = vpop.f32.mrb[0].mxu0
      %1633 = vmatprep.mubr.f32.mxu0 0.0
      %1634 = vmatmul.mubr.f32.gmra.mrb[0].mxu0 %v1497
      %v1635 = vpop.f32.mrb[0].mxu0
      %v1636 = vadd.f32 0.0, %v1635
      %v1637 = vpop.f32.mrb[0].mxu0
      %1638 = vmatprep.mubr.f32.mxu0 0.0
      %1639 = vmatmul.mubr.f32.gmra.mrb[0].mxu0 %v1500
      %v1640 = vpop.f32.mrb[0].mxu0
      %v1641 = vadd.f32 0.0, %v1640
      %v1642 = vpop.f32.mrb[0].mxu0
      %1643 = vmatprep.mubr.f32.mxu0 0.0
      %1644 = vmatmul.mubr.f32.gmra.mrb[0].mxu0 %v1503
      %v1645 = vpop.f32.mrb[0].mxu0
      %v1646 = vadd.f32 0.0, %v1645
      %v1647 = vpop.f32.mrb[0].mxu0
      %1648 = vmatprep.mubr.f32.mxu0 0.0
      %1649 = vmatmul.mubr.f32.gmra.mrb[0].mxu0 %v1506
      %v1650 = vpop.f32.mrb[0].mxu0
      %v1651 = vadd.f32 0.0, %v1650
      %v1652 = vpop.f32.mrb[0].mxu0
      %1653 = vmatprep.mubr.f32.mxu0 0.0
      %1654 = vmatmul.mubr.f32.gmra.mrb[0].mxu0 %v1509
      %v1655 = vpop.f32.mrb[0].mxu0
      %v1656 = vadd.f32 0.0, %v1655
      %v1657 = vpop.f32.mrb[0].mxu0
      %1658 = vdwg.mxu0
      %v1659 = vadd.f32 %v1429, %v1581
      %v1660 = vadd.f32 %v1430, %v1586
      %v1661 = vadd.f32 %v1431, %v1591
      %v1662 = vadd.f32 %v1432, %v1596
      %v1663 = vadd.f32 %v1433, %v1601
      %v1664 = vadd.f32 %v1434, %v1606
      %v1665 = vadd.f32 %v1435, %v1611
      %v1666 = vadd.f32 %v1436, %v1616
      %v1667 = vadd.f32 %v1437, %v1621
      %v1668 = vadd.f32 %v1438, %v1626
      %v1669 = vadd.f32 %v1439, %v1631
      %v1670 = vadd.f32 %v1440, %v1636
      %v1671 = vadd.f32 %v1441, %v1641
      %v1672 = vadd.f32 %v1442, %v1646
      %v1673 = vadd.f32 %v1443, %v1651
      %v1674 = vadd.f32 %v1444, %v1656
      %v1675 = vld [vmem:[%s733 + $0x1] sm:$0xff]
      %v1676 = vld [vmem:[%s733 + $0x9] sm:$0xff]
      %v1677 = vld [vmem:[%s733 + $0x19] sm:$0xff]
      %v1678 = vld [vmem:[%s733 + $0x21] sm:$0xff]
      %v1679 = vld [vmem:[%s733 + $0x31] sm:$0xff]
      %v1680 = vld [vmem:[%s733 + $0x39] sm:$0xff]
      %v1681 = vld [vmem:[%s733 + $0x49] sm:$0xff]
      %v1682 = vld [vmem:[%s733 + $0x51] sm:$0xff]
      %v1683 = vld [vmem:[%s733 + $0x61] sm:$0xff]
      %v1684 = vld [vmem:[%s733 + $0x69] sm:$0xff]
      %v1685 = vld [vmem:[%s733 + $0x79] sm:$0xff]
      %v1686 = vld [vmem:[%s733 + $0x81] sm:$0xff]
      %v1687 = vld [vmem:[%s733 + $0x91] sm:$0xff]
      %v1688 = vld [vmem:[%s733 + $0x99] sm:$0xff]
      %v1689 = vld [vmem:[%s733 + $0xa9] sm:$0xff]
      %v1690 = vld [vmem:[%s733 + $0xb1] sm:$0xff]
      %s1691 = scalar_lea.vmem %s6, 16
      %v1692 = vld [vmem:[%s1691] sm:$0xf]
      %v1694 = vsel %vm592, %v1675, 0
      %v1697 = vsel %vm592, %v1676, 0
      %v1700 = vsel %vm592, %v1677, 0
      %v1703 = vsel %vm592, %v1678, 0
      %v1706 = vsel %vm592, %v1679, 0
      %v1709 = vsel %vm592, %v1680, 0
      %v1712 = vsel %vm592, %v1681, 0
      %v1715 = vsel %vm592, %v1682, 0
      %v1718 = vsel %vm592, %v1683, 0
      %v1721 = vsel %vm592, %v1684, 0
      %v1724 = vsel %vm592, %v1685, 0
      %v1727 = vsel %vm592, %v1686, 0
      %v1730 = vsel %vm592, %v1687, 0
      %v1733 = vsel %vm592, %v1688, 0
      %v1736 = vsel %vm592, %v1689, 0
      %v1739 = vsel %vm592, %v1690, 0
      %v1742 = vsel %vm870, %v1692, 0
      %1744 = vmatprep.subr.mxu0 0.0
      %1745 = vmatpush1.msra.mxu0 %v1742
      %1746 = vmatprep.subr.mxu0 0.0
      %1747 = vmatpush1.msra.mxu0 0.0
      %1748 = vmatprep.subr.mxu0 0.0
      %1749 = vmatpush1.msra.mxu0 0.0
      %1750 = vmatprep.subr.mxu0 0.0
      %1751 = vmatpush1.msra.mxu0 0.0
      %1752 = vmatprep.subr.mxu0 0.0
      %1753 = vmatpush1.msra.mxu0 0.0
      %1754 = vmatprep.subr.mxu0 0.0
      %1755 = vmatpush1.msra.mxu0 0.0
      %1756 = vmatprep.subr.mxu0 0.0
      %1757 = vmatpush1.msra.mxu0 0.0
      %1758 = vmatprep.subr.mxu0 0.0
      %1759 = vmatpush1.msra.mxu0 0.0
      %1760 = vmatprep.subr.mxu0 0.0
      %1761 = vmatpush1.msra.mxu0 0.0
      %1762 = vmatprep.subr.mxu0 0.0
      %1763 = vmatpush1.msra.mxu0 0.0
      %1764 = vmatprep.subr.mxu0 0.0
      %1765 = vmatpush1.msra.mxu0 0.0
      %1766 = vmatprep.subr.mxu0 0.0
      %1767 = vmatpush1.msra.mxu0 0.0
      %1768 = vmatprep.subr.mxu0 0.0
      %1769 = vmatpush1.msra.mxu0 0.0
      %1770 = vmatprep.subr.mxu0 0.0
      %1771 = vmatpush1.msra.mxu0 0.0
      %1772 = vmatprep.subr.mxu0 0.0
      %1773 = vmatpush1.msra.mxu0 0.0
      %1774 = vmatprep.subr.mxu0 0.0
      %1775 = vmatpush1.msra.mxu0 0.0
      %1776 = vmatprep.subr.mxu0 0.0
      %1777 = vmatpush1.msra.mxu0 0.0
      %1778 = vmatprep.subr.mxu0 0.0
      %1779 = vmatpush1.msra.mxu0 0.0
      %1780 = vmatprep.subr.mxu0 0.0
      %1781 = vmatpush1.msra.mxu0 0.0
      %1782 = vmatprep.subr.mxu0 0.0
      %1783 = vmatpush1.msra.mxu0 0.0
      %1784 = vmatprep.subr.mxu0 0.0
      %1785 = vmatpush1.msra.mxu0 0.0
      %1786 = vmatprep.subr.mxu0 0.0
      %1787 = vmatpush1.msra.mxu0 0.0
      %1788 = vmatprep.subr.mxu0 0.0
      %1789 = vmatpush1.msra.mxu0 0.0
      %1790 = vmatprep.subr.mxu0 0.0
      %1791 = vmatpush1.msra.mxu0 0.0
      %1792 = vmatprep.subr.mxu0 0.0
      %1793 = vmatpush1.msra.mxu0 0.0
      %1794 = vmatprep.subr.mxu0 0.0
      %1795 = vmatpush1.msra.mxu0 0.0
      %1796 = vmatprep.subr.mxu0 0.0
      %1797 = vmatpush1.msra.mxu0 0.0
      %1798 = vmatprep.subr.mxu0 0.0
      %1799 = vmatpush1.msra.mxu0 0.0
      %1800 = vmatprep.subr.mxu0 0.0
      %1801 = vmatpush1.msra.mxu0 0.0
      %1802 = vmatprep.subr.mxu0 0.0
      %1803 = vmatpush1.msra.mxu0 0.0
      %1804 = vmatprep.subr.mxu0 0.0
      %1805 = vmatpush1.msra.mxu0 0.0
      %1806 = vmatprep.subr.mxu0 0.0
      %1807 = vmatpush1.msra.mxu0 0.0
      %1808 = vmatprep.mubr.f32.mxu0 0.0
      %1809 = vmatmul.mubr.f32.gmra.mrb[0].mxu0 %v1694
      %v1810 = vpop.f32.mrb[0].mxu0
      %v1811 = vadd.f32 0.0, %v1810
      %v1812 = vpop.f32.mrb[0].mxu0
      %1813 = vmatprep.mubr.f32.mxu0 0.0
      %1814 = vmatmul.mubr.f32.gmra.mrb[0].mxu0 %v1697
      %v1815 = vpop.f32.mrb[0].mxu0
      %v1816 = vadd.f32 0.0, %v1815
      %v1817 = vpop.f32.mrb[0].mxu0
      %1818 = vmatprep.mubr.f32.mxu0 0.0
      %1819 = vmatmul.mubr.f32.gmra.mrb[0].mxu0 %v1700
      %v1820 = vpop.f32.mrb[0].mxu0
      %v1821 = vadd.f32 0.0, %v1820
      %v1822 = vpop.f32.mrb[0].mxu0
      %1823 = vmatprep.mubr.f32.mxu0 0.0
      %1824 = vmatmul.mubr.f32.gmra.mrb[0].mxu0 %v1703
      %v1825 = vpop.f32.mrb[0].mxu0
      %v1826 = vadd.f32 0.0, %v1825
      %v1827 = vpop.f32.mrb[0].mxu0
      %1828 = vmatprep.mubr.f32.mxu0 0.0
      %1829 = vmatmul.mubr.f32.gmra.mrb[0].mxu0 %v1706
      %v1830 = vpop.f32.mrb[0].mxu0
      %v1831 = vadd.f32 0.0, %v1830
      %v1832 = vpop.f32.mrb[0].mxu0
      %1833 = vmatprep.mubr.f32.mxu0 0.0
      %1834 = vmatmul.mubr.f32.gmra.mrb[0].mxu0 %v1709
      %v1835 = vpop.f32.mrb[0].mxu0
      %v1836 = vadd.f32 0.0, %v1835
      %v1837 = vpop.f32.mrb[0].mxu0
      %1838 = vmatprep.mubr.f32.mxu0 0.0
      %1839 = vmatmul.mubr.f32.gmra.mrb[0].mxu0 %v1712
      %v1840 = vpop.f32.mrb[0].mxu0
      %v1841 = vadd.f32 0.0, %v1840
      %v1842 = vpop.f32.mrb[0].mxu0
      %1843 = vmatprep.mubr.f32.mxu0 0.0
      %1844 = vmatmul.mubr.f32.gmra.mrb[0].mxu0 %v1715
      %v1845 = vpop.f32.mrb[0].mxu0
      %v1846 = vadd.f32 0.0, %v1845
      %v1847 = vpop.f32.mrb[0].mxu0
      %1848 = vmatprep.mubr.f32.mxu0 0.0
      %1849 = vmatmul.mubr.f32.gmra.mrb[0].mxu0 %v1718
      %v1850 = vpop.f32.mrb[0].mxu0
      %v1851 = vadd.f32 0.0, %v1850
      %v1852 = vpop.f32.mrb[0].mxu0
      %1853 = vmatprep.mubr.f32.mxu0 0.0
      %1854 = vmatmul.mubr.f32.gmra.mrb[0].mxu0 %v1721
      %v1855 = vpop.f32.mrb[0].mxu0
      %v1856 = vadd.f32 0.0, %v1855
      %v1857 = vpop.f32.mrb[0].mxu0
      %1858 = vmatprep.mubr.f32.mxu0 0.0
      %1859 = vmatmul.mubr.f32.gmra.mrb[0].mxu0 %v1724
      %v1860 = vpop.f32.mrb[0].mxu0
      %v1861 = vadd.f32 0.0, %v1860
      %v1862 = vpop.f32.mrb[0].mxu0
      %1863 = vmatprep.mubr.f32.mxu0 0.0
      %1864 = vmatmul.mubr.f32.gmra.mrb[0].mxu0 %v1727
      %v1865 = vpop.f32.mrb[0].mxu0
      %v1866 = vadd.f32 0.0, %v1865
      %v1867 = vpop.f32.mrb[0].mxu0
      %1868 = vmatprep.mubr.f32.mxu0 0.0
      %1869 = vmatmul.mubr.f32.gmra.mrb[0].mxu0 %v1730
      %v1870 = vpop.f32.mrb[0].mxu0
      %v1871 = vadd.f32 0.0, %v1870
      %v1872 = vpop.f32.mrb[0].mxu0
      %1873 = vmatprep.mubr.f32.mxu0 0.0
      %1874 = vmatmul.mubr.f32.gmra.mrb[0].mxu0 %v1733
      %v1875 = vpop.f32.mrb[0].mxu0
      %v1876 = vadd.f32 0.0, %v1875
      %v1877 = vpop.f32.mrb[0].mxu0
      %1878 = vmatprep.mubr.f32.mxu0 0.0
      %1879 = vmatmul.mubr.f32.gmra.mrb[0].mxu0 %v1736
      %v1880 = vpop.f32.mrb[0].mxu0
      %v1881 = vadd.f32 0.0, %v1880
      %v1882 = vpop.f32.mrb[0].mxu0
      %1883 = vmatprep.mubr.f32.mxu0 0.0
      %1884 = vmatmul.mubr.f32.gmra.mrb[0].mxu0 %v1739
      %v1885 = vpop.f32.mrb[0].mxu0
      %v1886 = vadd.f32 0.0, %v1885
      %v1887 = vpop.f32.mrb[0].mxu0
      %1888 = vdwg.mxu0
      %v1889 = vadd.f32 %v1659, %v1811
      %v1890 = vadd.f32 %v1660, %v1816
      %v1891 = vadd.f32 %v1661, %v1821
      %v1892 = vadd.f32 %v1662, %v1826
      %v1893 = vadd.f32 %v1663, %v1831
      %v1894 = vadd.f32 %v1664, %v1836
      %v1895 = vadd.f32 %v1665, %v1841
      %v1896 = vadd.f32 %v1666, %v1846
      %v1897 = vadd.f32 %v1667, %v1851
      %v1898 = vadd.f32 %v1668, %v1856
      %v1899 = vadd.f32 %v1669, %v1861
      %v1900 = vadd.f32 %v1670, %v1866
      %v1901 = vadd.f32 %v1671, %v1871
      %v1902 = vadd.f32 %v1672, %v1876
      %v1903 = vadd.f32 %v1673, %v1881
      %v1904 = vadd.f32 %v1674, %v1886
      %v1905 = vld [vmem:[%s733 + $0x2] sm:$0xff]
      %v1906 = vld [vmem:[%s733 + $0xa] sm:$0xff]
      %v1907 = vld [vmem:[%s733 + $0x1a] sm:$0xff]
      %v1908 = vld [vmem:[%s733 + $0x22] sm:$0xff]
      %v1909 = vld [vmem:[%s733 + $0x32] sm:$0xff]
      %v1910 = vld [vmem:[%s733 + $0x3a] sm:$0xff]
      %v1911 = vld [vmem:[%s733 + $0x4a] sm:$0xff]
      %v1912 = vld [vmem:[%s733 + $0x52] sm:$0xff]
      %v1913 = vld [vmem:[%s733 + $0x62] sm:$0xff]
      %v1914 = vld [vmem:[%s733 + $0x6a] sm:$0xff]
      %v1915 = vld [vmem:[%s733 + $0x7a] sm:$0xff]
      %v1916 = vld [vmem:[%s733 + $0x82] sm:$0xff]
      %v1917 = vld [vmem:[%s733 + $0x92] sm:$0xff]
      %v1918 = vld [vmem:[%s733 + $0x9a] sm:$0xff]
      %v1919 = vld [vmem:[%s733 + $0xaa] sm:$0xff]
      %v1920 = vld [vmem:[%s733 + $0xb2] sm:$0xff]
      %s1921 = scalar_lea.vmem %s6, 20
      %v1922 = vld [vmem:[%s1921] sm:$0xf]
      %v1924 = vsel %vm592, %v1905, 0
      %v1927 = vsel %vm592, %v1906, 0
      %v1930 = vsel %vm592, %v1907, 0
      %v1933 = vsel %vm592, %v1908, 0
      %v1936 = vsel %vm592, %v1909, 0
      %v1939 = vsel %vm592, %v1910, 0
      %v1942 = vsel %vm592, %v1911, 0
      %v1945 = vsel %vm592, %v1912, 0
      %v1948 = vsel %vm592, %v1913, 0
      %v1951 = vsel %vm592, %v1914, 0
      %v1954 = vsel %vm592, %v1915, 0
      %v1957 = vsel %vm592, %v1916, 0
      %v1960 = vsel %vm592, %v1917, 0
      %v1963 = vsel %vm592, %v1918, 0
      %v1966 = vsel %vm592, %v1919, 0
      %v1969 = vsel %vm592, %v1920, 0
      %v1972 = vsel %vm870, %v1922, 0
      %1974 = vmatprep.subr.mxu0 0.0
      %1975 = vmatpush1.msra.mxu0 %v1972
      %1976 = vmatprep.subr.mxu0 0.0
      %1977 = vmatpush1.msra.mxu0 0.0
      %1978 = vmatprep.subr.mxu0 0.0
      %1979 = vmatpush1.msra.mxu0 0.0
      %1980 = vmatprep.subr.mxu0 0.0
      %1981 = vmatpush1.msra.mxu0 0.0
      %1982 = vmatprep.subr.mxu0 0.0
      %1983 = vmatpush1.msra.mxu0 0.0
      %1984 = vmatprep.subr.mxu0 0.0
      %1985 = vmatpush1.msra.mxu0 0.0
      %1986 = vmatprep.subr.mxu0 0.0
      %1987 = vmatpush1.msra.mxu0 0.0
      %1988 = vmatprep.subr.mxu0 0.0
      %1989 = vmatpush1.msra.mxu0 0.0
      %1990 = vmatprep.subr.mxu0 0.0
      %1991 = vmatpush1.msra.mxu0 0.0
      %1992 = vmatprep.subr.mxu0 0.0
      %1993 = vmatpush1.msra.mxu0 0.0
      %1994 = vmatprep.subr.mxu0 0.0
      %1995 = vmatpush1.msra.mxu0 0.0
      %1996 = vmatprep.subr.mxu0 0.0
      %1997 = vmatpush1.msra.mxu0 0.0
      %1998 = vmatprep.subr.mxu0 0.0
      %1999 = vmatpush1.msra.mxu0 0.0
      %2000 = vmatprep.subr.mxu0 0.0
      %2001 = vmatpush1.msra.mxu0 0.0
      %2002 = vmatprep.subr.mxu0 0.0
      %2003 = vmatpush1.msra.mxu0 0.0
      %2004 = vmatprep.subr.mxu0 0.0
      %2005 = vmatpush1.msra.mxu0 0.0
      %2006 = vmatprep.subr.mxu0 0.0
      %2007 = vmatpush1.msra.mxu0 0.0
      %2008 = vmatprep.subr.mxu0 0.0
      %2009 = vmatpush1.msra.mxu0 0.0
      %2010 = vmatprep.subr.mxu0 0.0
      %2011 = vmatpush1.msra.mxu0 0.0
      %2012 = vmatprep.subr.mxu0 0.0
      %2013 = vmatpush1.msra.mxu0 0.0
      %2014 = vmatprep.subr.mxu0 0.0
      %2015 = vmatpush1.msra.mxu0 0.0
      %2016 = vmatprep.subr.mxu0 0.0
      %2017 = vmatpush1.msra.mxu0 0.0
      %2018 = vmatprep.subr.mxu0 0.0
      %2019 = vmatpush1.msra.mxu0 0.0
      %2020 = vmatprep.subr.mxu0 0.0
      %2021 = vmatpush1.msra.mxu0 0.0
      %2022 = vmatprep.subr.mxu0 0.0
      %2023 = vmatpush1.msra.mxu0 0.0
      %2024 = vmatprep.subr.mxu0 0.0
      %2025 = vmatpush1.msra.mxu0 0.0
      %2026 = vmatprep.subr.mxu0 0.0
      %2027 = vmatpush1.msra.mxu0 0.0
      %2028 = vmatprep.subr.mxu0 0.0
      %2029 = vmatpush1.msra.mxu0 0.0
      %2030 = vmatprep.subr.mxu0 0.0
      %2031 = vmatpush1.msra.mxu0 0.0
      %2032 = vmatprep.subr.mxu0 0.0
      %2033 = vmatpush1.msra.mxu0 0.0
      %2034 = vmatprep.subr.mxu0 0.0
      %2035 = vmatpush1.msra.mxu0 0.0
      %2036 = vmatprep.subr.mxu0 0.0
      %2037 = vmatpush1.msra.mxu0 0.0
      %2038 = vmatprep.mubr.f32.mxu0 0.0
      %2039 = vmatmul.mubr.f32.gmra.mrb[0].mxu0 %v1924
      %v2040 = vpop.f32.mrb[0].mxu0
      %v2041 = vadd.f32 0.0, %v2040
      %v2042 = vpop.f32.mrb[0].mxu0
      %2043 = vmatprep.mubr.f32.mxu0 0.0
      %2044 = vmatmul.mubr.f32.gmra.mrb[0].mxu0 %v1927
      %v2045 = vpop.f32.mrb[0].mxu0
      %v2046 = vadd.f32 0.0, %v2045
      %v2047 = vpop.f32.mrb[0].mxu0
      %2048 = vmatprep.mubr.f32.mxu0 0.0
      %2049 = vmatmul.mubr.f32.gmra.mrb[0].mxu0 %v1930
      %v2050 = vpop.f32.mrb[0].mxu0
      %v2051 = vadd.f32 0.0, %v2050
      %v2052 = vpop.f32.mrb[0].mxu0
      %2053 = vmatprep.mubr.f32.mxu0 0.0
      %2054 = vmatmul.mubr.f32.gmra.mrb[0].mxu0 %v1933
      %v2055 = vpop.f32.mrb[0].mxu0
      %v2056 = vadd.f32 0.0, %v2055
      %v2057 = vpop.f32.mrb[0].mxu0
      %2058 = vmatprep.mubr.f32.mxu0 0.0
      %2059 = vmatmul.mubr.f32.gmra.mrb[0].mxu0 %v1936
      %v2060 = vpop.f32.mrb[0].mxu0
      %v2061 = vadd.f32 0.0, %v2060
      %v2062 = vpop.f32.mrb[0].mxu0
      %2063 = vmatprep.mubr.f32.mxu0 0.0
      %2064 = vmatmul.mubr.f32.gmra.mrb[0].mxu0 %v1939
      %v2065 = vpop.f32.mrb[0].mxu0
      %v2066 = vadd.f32 0.0, %v2065
      %v2067 = vpop.f32.mrb[0].mxu0
      %2068 = vmatprep.mubr.f32.mxu0 0.0
      %2069 = vmatmul.mubr.f32.gmra.mrb[0].mxu0 %v1942
      %v2070 = vpop.f32.mrb[0].mxu0
      %v2071 = vadd.f32 0.0, %v2070
      %v2072 = vpop.f32.mrb[0].mxu0
      %2073 = vmatprep.mubr.f32.mxu0 0.0
      %2074 = vmatmul.mubr.f32.gmra.mrb[0].mxu0 %v1945
      %v2075 = vpop.f32.mrb[0].mxu0
      %v2076 = vadd.f32 0.0, %v2075
      %v2077 = vpop.f32.mrb[0].mxu0
      %2078 = vmatprep.mubr.f32.mxu0 0.0
      %2079 = vmatmul.mubr.f32.gmra.mrb[0].mxu0 %v1948
      %v2080 = vpop.f32.mrb[0].mxu0
      %v2081 = vadd.f32 0.0, %v2080
      %v2082 = vpop.f32.mrb[0].mxu0
      %2083 = vmatprep.mubr.f32.mxu0 0.0
      %2084 = vmatmul.mubr.f32.gmra.mrb[0].mxu0 %v1951
      %v2085 = vpop.f32.mrb[0].mxu0
      %v2086 = vadd.f32 0.0, %v2085
      %v2087 = vpop.f32.mrb[0].mxu0
      %2088 = vmatprep.mubr.f32.mxu0 0.0
      %2089 = vmatmul.mubr.f32.gmra.mrb[0].mxu0 %v1954
      %v2090 = vpop.f32.mrb[0].mxu0
      %v2091 = vadd.f32 0.0, %v2090
      %v2092 = vpop.f32.mrb[0].mxu0
      %2093 = vmatprep.mubr.f32.mxu0 0.0
      %2094 = vmatmul.mubr.f32.gmra.mrb[0].mxu0 %v1957
      %v2095 = vpop.f32.mrb[0].mxu0
      %v2096 = vadd.f32 0.0, %v2095
      %v2097 = vpop.f32.mrb[0].mxu0
      %2098 = vmatprep.mubr.f32.mxu0 0.0
      %2099 = vmatmul.mubr.f32.gmra.mrb[0].mxu0 %v1960
      %v2100 = vpop.f32.mrb[0].mxu0
      %v2101 = vadd.f32 0.0, %v2100
      %v2102 = vpop.f32.mrb[0].mxu0
      %2103 = vmatprep.mubr.f32.mxu0 0.0
      %2104 = vmatmul.mubr.f32.gmra.mrb[0].mxu0 %v1963
      %v2105 = vpop.f32.mrb[0].mxu0
      %v2106 = vadd.f32 0.0, %v2105
      %v2107 = vpop.f32.mrb[0].mxu0
      %2108 = vmatprep.mubr.f32.mxu0 0.0
      %2109 = vmatmul.mubr.f32.gmra.mrb[0].mxu0 %v1966
      %v2110 = vpop.f32.mrb[0].mxu0
      %v2111 = vadd.f32 0.0, %v2110
      %v2112 = vpop.f32.mrb[0].mxu0
      %2113 = vmatprep.mubr.f32.mxu0 0.0
      %2114 = vmatmul.mubr.f32.gmra.mrb[0].mxu0 %v1969
      %v2115 = vpop.f32.mrb[0].mxu0
      %v2116 = vadd.f32 0.0, %v2115
      %v2117 = vpop.f32.mrb[0].mxu0
      %2118 = vdwg.mxu0
      %v2119 = vadd.f32 %v1889, %v2041
      %v2120 = vadd.f32 %v1890, %v2046
      %v2121 = vadd.f32 %v1891, %v2051
      %v2122 = vadd.f32 %v1892, %v2056
      %v2123 = vadd.f32 %v1893, %v2061
      %v2124 = vadd.f32 %v1894, %v2066
      %v2125 = vadd.f32 %v1895, %v2071
      %v2126 = vadd.f32 %v1896, %v2076
      %v2127 = vadd.f32 %v1897, %v2081
      %v2128 = vadd.f32 %v1898, %v2086
      %v2129 = vadd.f32 %v1899, %v2091
      %v2130 = vadd.f32 %v1900, %v2096
      %v2131 = vadd.f32 %v1901, %v2101
      %v2132 = vadd.f32 %v1902, %v2106
      %v2133 = vadd.f32 %v1903, %v2111
      %v2134 = vadd.f32 %v1904, %v2116
      %s2135 = scalar_lea.vmem [#allocation2], 48
      %v2136 = vld [vmem:[%s2135] sm:$0xff]
      %v2137 = vld [vmem:[%s2135 + $0x8] sm:$0xff]
      %v2138 = vld [vmem:[%s2135 + $0x18] sm:$0xff]
      %v2139 = vld [vmem:[%s2135 + $0x20] sm:$0xff]
      %v2140 = vld [vmem:[%s2135 + $0x30] sm:$0xff]
      %v2141 = vld [vmem:[%s2135 + $0x38] sm:$0xff]
      %v2142 = vld [vmem:[%s2135 + $0x48] sm:$0xff]
      %v2143 = vld [vmem:[%s2135 + $0x50] sm:$0xff]
      %v2144 = vld [vmem:[%s2135 + $0x60] sm:$0xff]
      %v2145 = vld [vmem:[%s2135 + $0x68] sm:$0xff]
      %v2146 = vld [vmem:[%s2135 + $0x78] sm:$0xff]
      %v2147 = vld [vmem:[%s2135 + $0x80] sm:$0xff]
      %v2148 = vld [vmem:[%s2135 + $0x90] sm:$0xff]
      %v2149 = vld [vmem:[%s2135 + $0x98] sm:$0xff]
      %v2150 = vld [vmem:[%s2135 + $0xa8] sm:$0xff]
      %v2151 = vld [vmem:[%s2135 + $0xb0] sm:$0xff]
      %s2152 = scalar_lea.vmem %s6, 24
      %v2153 = vld [vmem:[%s2152] sm:$0xf]
      %v2155 = vsel %vm592, %v2136, 0
      %v2158 = vsel %vm592, %v2137, 0
      %v2161 = vsel %vm592, %v2138, 0
      %v2164 = vsel %vm592, %v2139, 0
      %v2167 = vsel %vm592, %v2140, 0
      %v2170 = vsel %vm592, %v2141, 0
      %v2173 = vsel %vm592, %v2142, 0
      %v2176 = vsel %vm592, %v2143, 0
      %v2179 = vsel %vm592, %v2144, 0
      %v2182 = vsel %vm592, %v2145, 0
      %v2185 = vsel %vm592, %v2146, 0
      %v2188 = vsel %vm592, %v2147, 0
      %v2191 = vsel %vm592, %v2148, 0
      %v2194 = vsel %vm592, %v2149, 0
      %v2197 = vsel %vm592, %v2150, 0
      %v2200 = vsel %vm592, %v2151, 0
      %v2203 = vsel %vm870, %v2153, 0
      %2205 = vmatprep.subr.mxu0 0.0
      %2206 = vmatpush1.msra.mxu0 %v2203
      %2207 = vmatprep.subr.mxu0 0.0
      %2208 = vmatpush1.msra.mxu0 0.0
      %2209 = vmatprep.subr.mxu0 0.0
      %2210 = vmatpush1.msra.mxu0 0.0
      %2211 = vmatprep.subr.mxu0 0.0
      %2212 = vmatpush1.msra.mxu0 0.0
      %2213 = vmatprep.subr.mxu0 0.0
      %2214 = vmatpush1.msra.mxu0 0.0
      %2215 = vmatprep.subr.mxu0 0.0
      %2216 = vmatpush1.msra.mxu0 0.0
      %2217 = vmatprep.subr.mxu0 0.0
      %2218 = vmatpush1.msra.mxu0 0.0
      %2219 = vmatprep.subr.mxu0 0.0
      %2220 = vmatpush1.msra.mxu0 0.0
      %2221 = vmatprep.subr.mxu0 0.0
      %2222 = vmatpush1.msra.mxu0 0.0
      %2223 = vmatprep.subr.mxu0 0.0
      %2224 = vmatpush1.msra.mxu0 0.0
      %2225 = vmatprep.subr.mxu0 0.0
      %2226 = vmatpush1.msra.mxu0 0.0
      %2227 = vmatprep.subr.mxu0 0.0
      %2228 = vmatpush1.msra.mxu0 0.0
      %2229 = vmatprep.subr.mxu0 0.0
      %2230 = vmatpush1.msra.mxu0 0.0
      %2231 = vmatprep.subr.mxu0 0.0
      %2232 = vmatpush1.msra.mxu0 0.0
      %2233 = vmatprep.subr.mxu0 0.0
      %2234 = vmatpush1.msra.mxu0 0.0
      %2235 = vmatprep.subr.mxu0 0.0
      %2236 = vmatpush1.msra.mxu0 0.0
      %2237 = vmatprep.subr.mxu0 0.0
      %2238 = vmatpush1.msra.mxu0 0.0
      %2239 = vmatprep.subr.mxu0 0.0
      %2240 = vmatpush1.msra.mxu0 0.0
      %2241 = vmatprep.subr.mxu0 0.0
      %2242 = vmatpush1.msra.mxu0 0.0
      %2243 = vmatprep.subr.mxu0 0.0
      %2244 = vmatpush1.msra.mxu0 0.0
      %2245 = vmatprep.subr.mxu0 0.0
      %2246 = vmatpush1.msra.mxu0 0.0
      %2247 = vmatprep.subr.mxu0 0.0
      %2248 = vmatpush1.msra.mxu0 0.0
      %2249 = vmatprep.subr.mxu0 0.0
      %2250 = vmatpush1.msra.mxu0 0.0
      %2251 = vmatprep.subr.mxu0 0.0
      %2252 = vmatpush1.msra.mxu0 0.0
      %2253 = vmatprep.subr.mxu0 0.0
      %2254 = vmatpush1.msra.mxu0 0.0
      %2255 = vmatprep.subr.mxu0 0.0
      %2256 = vmatpush1.msra.mxu0 0.0
      %2257 = vmatprep.subr.mxu0 0.0
      %2258 = vmatpush1.msra.mxu0 0.0
      %2259 = vmatprep.subr.mxu0 0.0
      %2260 = vmatpush1.msra.mxu0 0.0
      %2261 = vmatprep.subr.mxu0 0.0
      %2262 = vmatpush1.msra.mxu0 0.0
      %2263 = vmatprep.subr.mxu0 0.0
      %2264 = vmatpush1.msra.mxu0 0.0
      %2265 = vmatprep.subr.mxu0 0.0
      %2266 = vmatpush1.msra.mxu0 0.0
      %2267 = vmatprep.subr.mxu0 0.0
      %2268 = vmatpush1.msra.mxu0 0.0
      %2269 = vmatprep.mubr.f32.mxu0 0.0
      %2270 = vmatmul.mubr.f32.gmra.mrb[0].mxu0 %v2155
      %v2271 = vpop.f32.mrb[0].mxu0
      %v2272 = vadd.f32 0.0, %v2271
      %v2273 = vpop.f32.mrb[0].mxu0
      %2274 = vmatprep.mubr.f32.mxu0 0.0
      %2275 = vmatmul.mubr.f32.gmra.mrb[0].mxu0 %v2158
      %v2276 = vpop.f32.mrb[0].mxu0
      %v2277 = vadd.f32 0.0, %v2276
      %v2278 = vpop.f32.mrb[0].mxu0
      %2279 = vmatprep.mubr.f32.mxu0 0.0
      %2280 = vmatmul.mubr.f32.gmra.mrb[0].mxu0 %v2161
      %v2281 = vpop.f32.mrb[0].mxu0
      %v2282 = vadd.f32 0.0, %v2281
      %v2283 = vpop.f32.mrb[0].mxu0
      %2284 = vmatprep.mubr.f32.mxu0 0.0
      %2285 = vmatmul.mubr.f32.gmra.mrb[0].mxu0 %v2164
      %v2286 = vpop.f32.mrb[0].mxu0
      %v2287 = vadd.f32 0.0, %v2286
      %v2288 = vpop.f32.mrb[0].mxu0
      %2289 = vmatprep.mubr.f32.mxu0 0.0
      %2290 = vmatmul.mubr.f32.gmra.mrb[0].mxu0 %v2167
      %v2291 = vpop.f32.mrb[0].mxu0
      %v2292 = vadd.f32 0.0, %v2291
      %v2293 = vpop.f32.mrb[0].mxu0
      %2294 = vmatprep.mubr.f32.mxu0 0.0
      %2295 = vmatmul.mubr.f32.gmra.mrb[0].mxu0 %v2170
      %v2296 = vpop.f32.mrb[0].mxu0
      %v2297 = vadd.f32 0.0, %v2296
      %v2298 = vpop.f32.mrb[0].mxu0
      %2299 = vmatprep.mubr.f32.mxu0 0.0
      %2300 = vmatmul.mubr.f32.gmra.mrb[0].mxu0 %v2173
      %v2301 = vpop.f32.mrb[0].mxu0
      %v2302 = vadd.f32 0.0, %v2301
      %v2303 = vpop.f32.mrb[0].mxu0
      %2304 = vmatprep.mubr.f32.mxu0 0.0
      %2305 = vmatmul.mubr.f32.gmra.mrb[0].mxu0 %v2176
      %v2306 = vpop.f32.mrb[0].mxu0
      %v2307 = vadd.f32 0.0, %v2306
      %v2308 = vpop.f32.mrb[0].mxu0
      %2309 = vmatprep.mubr.f32.mxu0 0.0
      %2310 = vmatmul.mubr.f32.gmra.mrb[0].mxu0 %v2179
      %v2311 = vpop.f32.mrb[0].mxu0
      %v2312 = vadd.f32 0.0, %v2311
      %v2313 = vpop.f32.mrb[0].mxu0
      %2314 = vmatprep.mubr.f32.mxu0 0.0
      %2315 = vmatmul.mubr.f32.gmra.mrb[0].mxu0 %v2182
      %v2316 = vpop.f32.mrb[0].mxu0
      %v2317 = vadd.f32 0.0, %v2316
      %v2318 = vpop.f32.mrb[0].mxu0
      %2319 = vmatprep.mubr.f32.mxu0 0.0
      %2320 = vmatmul.mubr.f32.gmra.mrb[0].mxu0 %v2185
      %v2321 = vpop.f32.mrb[0].mxu0
      %v2322 = vadd.f32 0.0, %v2321
      %v2323 = vpop.f32.mrb[0].mxu0
      %2324 = vmatprep.mubr.f32.mxu0 0.0
      %2325 = vmatmul.mubr.f32.gmra.mrb[0].mxu0 %v2188
      %v2326 = vpop.f32.mrb[0].mxu0
      %v2327 = vadd.f32 0.0, %v2326
      %v2328 = vpop.f32.mrb[0].mxu0
      %2329 = vmatprep.mubr.f32.mxu0 0.0
      %2330 = vmatmul.mubr.f32.gmra.mrb[0].mxu0 %v2191
      %v2331 = vpop.f32.mrb[0].mxu0
      %v2332 = vadd.f32 0.0, %v2331
      %v2333 = vpop.f32.mrb[0].mxu0
      %2334 = vmatprep.mubr.f32.mxu0 0.0
      %2335 = vmatmul.mubr.f32.gmra.mrb[0].mxu0 %v2194
      %v2336 = vpop.f32.mrb[0].mxu0
      %v2337 = vadd.f32 0.0, %v2336
      %v2338 = vpop.f32.mrb[0].mxu0
      %2339 = vmatprep.mubr.f32.mxu0 0.0
      %2340 = vmatmul.mubr.f32.gmra.mrb[0].mxu0 %v2197
      %v2341 = vpop.f32.mrb[0].mxu0
      %v2342 = vadd.f32 0.0, %v2341
      %v2343 = vpop.f32.mrb[0].mxu0
      %2344 = vmatprep.mubr.f32.mxu0 0.0
      %2345 = vmatmul.mubr.f32.gmra.mrb[0].mxu0 %v2200
      %v2346 = vpop.f32.mrb[0].mxu0
      %v2347 = vadd.f32 0.0, %v2346
      %v2348 = vpop.f32.mrb[0].mxu0
      %2349 = vdwg.mxu0
      %v2350 = vadd.f32 %v2119, %v2272
      %v2351 = vadd.f32 %v2120, %v2277
      %v2352 = vadd.f32 %v2121, %v2282
      %v2353 = vadd.f32 %v2122, %v2287
      %v2354 = vadd.f32 %v2123, %v2292
      %v2355 = vadd.f32 %v2124, %v2297
      %v2356 = vadd.f32 %v2125, %v2302
      %v2357 = vadd.f32 %v2126, %v2307
      %v2358 = vadd.f32 %v2127, %v2312
      %v2359 = vadd.f32 %v2128, %v2317
      %v2360 = vadd.f32 %v2129, %v2322
      %v2361 = vadd.f32 %v2130, %v2327
      %v2362 = vadd.f32 %v2131, %v2332
      %v2363 = vadd.f32 %v2132, %v2337
      %v2364 = vadd.f32 %v2133, %v2342
      %v2365 = vadd.f32 %v2134, %v2347
      %v2366 = vld [vmem:[%s2135 + $0x1] sm:$0xff]
      %v2367 = vld [vmem:[%s2135 + $0x9] sm:$0xff]
      %v2368 = vld [vmem:[%s2135 + $0x19] sm:$0xff]
      %v2369 = vld [vmem:[%s2135 + $0x21] sm:$0xff]
      %v2370 = vld [vmem:[%s2135 + $0x31] sm:$0xff]
      %v2371 = vld [vmem:[%s2135 + $0x39] sm:$0xff]
      %v2372 = vld [vmem:[%s2135 + $0x49] sm:$0xff]
      %v2373 = vld [vmem:[%s2135 + $0x51] sm:$0xff]
      %v2374 = vld [vmem:[%s2135 + $0x61] sm:$0xff]
      %v2375 = vld [vmem:[%s2135 + $0x69] sm:$0xff]
      %v2376 = vld [vmem:[%s2135 + $0x79] sm:$0xff]
      %v2377 = vld [vmem:[%s2135 + $0x81] sm:$0xff]
      %v2378 = vld [vmem:[%s2135 + $0x91] sm:$0xff]
      %v2379 = vld [vmem:[%s2135 + $0x99] sm:$0xff]
      %v2380 = vld [vmem:[%s2135 + $0xa9] sm:$0xff]
      %v2381 = vld [vmem:[%s2135 + $0xb1] sm:$0xff]
      %s2382 = scalar_lea.vmem %s6, 28
      %v2383 = vld [vmem:[%s2382] sm:$0xf]
      %v2385 = vsel %vm592, %v2366, 0
      %v2388 = vsel %vm592, %v2367, 0
      %v2391 = vsel %vm592, %v2368, 0
      %v2394 = vsel %vm592, %v2369, 0
      %v2397 = vsel %vm592, %v2370, 0
      %v2400 = vsel %vm592, %v2371, 0
      %v2403 = vsel %vm592, %v2372, 0
      %v2406 = vsel %vm592, %v2373, 0
      %v2409 = vsel %vm592, %v2374, 0
      %v2412 = vsel %vm592, %v2375, 0
      %v2415 = vsel %vm592, %v2376, 0
      %v2418 = vsel %vm592, %v2377, 0
      %v2421 = vsel %vm592, %v2378, 0
      %v2424 = vsel %vm592, %v2379, 0
      %v2427 = vsel %vm592, %v2380, 0
      %v2430 = vsel %vm592, %v2381, 0
      %v2433 = vsel %vm870, %v2383, 0
      %2435 = vmatprep.subr.mxu0 0.0
      %2436 = vmatpush1.msra.mxu0 %v2433
      %2437 = vmatprep.subr.mxu0 0.0
      %2438 = vmatpush1.msra.mxu0 0.0
      %2439 = vmatprep.subr.mxu0 0.0
      %2440 = vmatpush1.msra.mxu0 0.0
      %2441 = vmatprep.subr.mxu0 0.0
      %2442 = vmatpush1.msra.mxu0 0.0
      %2443 = vmatprep.subr.mxu0 0.0
      %2444 = vmatpush1.msra.mxu0 0.0
      %2445 = vmatprep.subr.mxu0 0.0
      %2446 = vmatpush1.msra.mxu0 0.0
      %2447 = vmatprep.subr.mxu0 0.0
      %2448 = vmatpush1.msra.mxu0 0.0
      %2449 = vmatprep.subr.mxu0 0.0
      %2450 = vmatpush1.msra.mxu0 0.0
      %2451 = vmatprep.subr.mxu0 0.0
      %2452 = vmatpush1.msra.mxu0 0.0
      %2453 = vmatprep.subr.mxu0 0.0
      %2454 = vmatpush1.msra.mxu0 0.0
      %2455 = vmatprep.subr.mxu0 0.0
      %2456 = vmatpush1.msra.mxu0 0.0
      %2457 = vmatprep.subr.mxu0 0.0
      %2458 = vmatpush1.msra.mxu0 0.0
      %2459 = vmatprep.subr.mxu0 0.0
      %2460 = vmatpush1.msra.mxu0 0.0
      %2461 = vmatprep.subr.mxu0 0.0
      %2462 = vmatpush1.msra.mxu0 0.0
      %2463 = vmatprep.subr.mxu0 0.0
      %2464 = vmatpush1.msra.mxu0 0.0
      %2465 = vmatprep.subr.mxu0 0.0
      %2466 = vmatpush1.msra.mxu0 0.0
      %2467 = vmatprep.subr.mxu0 0.0
      %2468 = vmatpush1.msra.mxu0 0.0
      %2469 = vmatprep.subr.mxu0 0.0
      %2470 = vmatpush1.msra.mxu0 0.0
      %2471 = vmatprep.subr.mxu0 0.0
      %2472 = vmatpush1.msra.mxu0 0.0
      %2473 = vmatprep.subr.mxu0 0.0
      %2474 = vmatpush1.msra.mxu0 0.0
      %2475 = vmatprep.subr.mxu0 0.0
      %2476 = vmatpush1.msra.mxu0 0.0
      %2477 = vmatprep.subr.mxu0 0.0
      %2478 = vmatpush1.msra.mxu0 0.0
      %2479 = vmatprep.subr.mxu0 0.0
      %2480 = vmatpush1.msra.mxu0 0.0
      %2481 = vmatprep.subr.mxu0 0.0
      %2482 = vmatpush1.msra.mxu0 0.0
      %2483 = vmatprep.subr.mxu0 0.0
      %2484 = vmatpush1.msra.mxu0 0.0
      %2485 = vmatprep.subr.mxu0 0.0
      %2486 = vmatpush1.msra.mxu0 0.0
      %2487 = vmatprep.subr.mxu0 0.0
      %2488 = vmatpush1.msra.mxu0 0.0
      %2489 = vmatprep.subr.mxu0 0.0
      %2490 = vmatpush1.msra.mxu0 0.0
      %2491 = vmatprep.subr.mxu0 0.0
      %2492 = vmatpush1.msra.mxu0 0.0
      %2493 = vmatprep.subr.mxu0 0.0
      %2494 = vmatpush1.msra.mxu0 0.0
      %2495 = vmatprep.subr.mxu0 0.0
      %2496 = vmatpush1.msra.mxu0 0.0
      %2497 = vmatprep.subr.mxu0 0.0
      %2498 = vmatpush1.msra.mxu0 0.0
      %2499 = vmatprep.mubr.f32.mxu0 0.0
      %2500 = vmatmul.mubr.f32.gmra.mrb[0].mxu0 %v2385
      %v2501 = vpop.f32.mrb[0].mxu0
      %v2502 = vadd.f32 0.0, %v2501
      %v2503 = vpop.f32.mrb[0].mxu0
      %2504 = vmatprep.mubr.f32.mxu0 0.0
      %2505 = vmatmul.mubr.f32.gmra.mrb[0].mxu0 %v2388
      %v2506 = vpop.f32.mrb[0].mxu0
      %v2507 = vadd.f32 0.0, %v2506
      %v2508 = vpop.f32.mrb[0].mxu0
      %2509 = vmatprep.mubr.f32.mxu0 0.0
      %2510 = vmatmul.mubr.f32.gmra.mrb[0].mxu0 %v2391
      %v2511 = vpop.f32.mrb[0].mxu0
      %v2512 = vadd.f32 0.0, %v2511
      %v2513 = vpop.f32.mrb[0].mxu0
      %2514 = vmatprep.mubr.f32.mxu0 0.0
      %2515 = vmatmul.mubr.f32.gmra.mrb[0].mxu0 %v2394
      %v2516 = vpop.f32.mrb[0].mxu0
      %v2517 = vadd.f32 0.0, %v2516
      %v2518 = vpop.f32.mrb[0].mxu0
      %2519 = vmatprep.mubr.f32.mxu0 0.0
      %2520 = vmatmul.mubr.f32.gmra.mrb[0].mxu0 %v2397
      %v2521 = vpop.f32.mrb[0].mxu0
      %v2522 = vadd.f32 0.0, %v2521
      %v2523 = vpop.f32.mrb[0].mxu0
      %2524 = vmatprep.mubr.f32.mxu0 0.0
      %2525 = vmatmul.mubr.f32.gmra.mrb[0].mxu0 %v2400
      %v2526 = vpop.f32.mrb[0].mxu0
      %v2527 = vadd.f32 0.0, %v2526
      %v2528 = vpop.f32.mrb[0].mxu0
      %2529 = vmatprep.mubr.f32.mxu0 0.0
      %2530 = vmatmul.mubr.f32.gmra.mrb[0].mxu0 %v2403
      %v2531 = vpop.f32.mrb[0].mxu0
      %v2532 = vadd.f32 0.0, %v2531
      %v2533 = vpop.f32.mrb[0].mxu0
      %2534 = vmatprep.mubr.f32.mxu0 0.0
      %2535 = vmatmul.mubr.f32.gmra.mrb[0].mxu0 %v2406
      %v2536 = vpop.f32.mrb[0].mxu0
      %v2537 = vadd.f32 0.0, %v2536
      %v2538 = vpop.f32.mrb[0].mxu0
      %2539 = vmatprep.mubr.f32.mxu0 0.0
      %2540 = vmatmul.mubr.f32.gmra.mrb[0].mxu0 %v2409
      %v2541 = vpop.f32.mrb[0].mxu0
      %v2542 = vadd.f32 0.0, %v2541
      %v2543 = vpop.f32.mrb[0].mxu0
      %2544 = vmatprep.mubr.f32.mxu0 0.0
      %2545 = vmatmul.mubr.f32.gmra.mrb[0].mxu0 %v2412
      %v2546 = vpop.f32.mrb[0].mxu0
      %v2547 = vadd.f32 0.0, %v2546
      %v2548 = vpop.f32.mrb[0].mxu0
      %2549 = vmatprep.mubr.f32.mxu0 0.0
      %2550 = vmatmul.mubr.f32.gmra.mrb[0].mxu0 %v2415
      %v2551 = vpop.f32.mrb[0].mxu0
      %v2552 = vadd.f32 0.0, %v2551
      %v2553 = vpop.f32.mrb[0].mxu0
      %2554 = vmatprep.mubr.f32.mxu0 0.0
      %2555 = vmatmul.mubr.f32.gmra.mrb[0].mxu0 %v2418
      %v2556 = vpop.f32.mrb[0].mxu0
      %v2557 = vadd.f32 0.0, %v2556
      %v2558 = vpop.f32.mrb[0].mxu0
      %2559 = vmatprep.mubr.f32.mxu0 0.0
      %2560 = vmatmul.mubr.f32.gmra.mrb[0].mxu0 %v2421
      %v2561 = vpop.f32.mrb[0].mxu0
      %v2562 = vadd.f32 0.0, %v2561
      %v2563 = vpop.f32.mrb[0].mxu0
      %2564 = vmatprep.mubr.f32.mxu0 0.0
      %2565 = vmatmul.mubr.f32.gmra.mrb[0].mxu0 %v2424
      %v2566 = vpop.f32.mrb[0].mxu0
      %v2567 = vadd.f32 0.0, %v2566
      %v2568 = vpop.f32.mrb[0].mxu0
      %2569 = vmatprep.mubr.f32.mxu0 0.0
      %2570 = vmatmul.mubr.f32.gmra.mrb[0].mxu0 %v2427
      %v2571 = vpop.f32.mrb[0].mxu0
      %v2572 = vadd.f32 0.0, %v2571
      %v2573 = vpop.f32.mrb[0].mxu0
      %2574 = vmatprep.mubr.f32.mxu0 0.0
      %2575 = vmatmul.mubr.f32.gmra.mrb[0].mxu0 %v2430
      %v2576 = vpop.f32.mrb[0].mxu0
      %v2577 = vadd.f32 0.0, %v2576
      %v2578 = vpop.f32.mrb[0].mxu0
      %2579 = vdwg.mxu0
      %v2580 = vadd.f32 %v2350, %v2502
      %v2581 = vadd.f32 %v2351, %v2507
      %v2582 = vadd.f32 %v2352, %v2512
      %v2583 = vadd.f32 %v2353, %v2517
      %v2584 = vadd.f32 %v2354, %v2522
      %v2585 = vadd.f32 %v2355, %v2527
      %v2586 = vadd.f32 %v2356, %v2532
      %v2587 = vadd.f32 %v2357, %v2537
      %v2588 = vadd.f32 %v2358, %v2542
      %v2589 = vadd.f32 %v2359, %v2547
      %v2590 = vadd.f32 %v2360, %v2552
      %v2591 = vadd.f32 %v2361, %v2557
      %v2592 = vadd.f32 %v2362, %v2562
      %v2593 = vadd.f32 %v2363, %v2567
      %v2594 = vadd.f32 %v2364, %v2572
      %v2595 = vadd.f32 %v2365, %v2577
      %v2596 = vld [vmem:[%s2135 + $0x2] sm:$0xff]
      %v2597 = vld [vmem:[%s2135 + $0xa] sm:$0xff]
      %v2598 = vld [vmem:[%s2135 + $0x1a] sm:$0xff]
      %v2599 = vld [vmem:[%s2135 + $0x22] sm:$0xff]
      %v2600 = vld [vmem:[%s2135 + $0x32] sm:$0xff]
      %v2601 = vld [vmem:[%s2135 + $0x3a] sm:$0xff]
      %v2602 = vld [vmem:[%s2135 + $0x4a] sm:$0xff]
      %v2603 = vld [vmem:[%s2135 + $0x52] sm:$0xff]
      %v2604 = vld [vmem:[%s2135 + $0x62] sm:$0xff]
      %v2605 = vld [vmem:[%s2135 + $0x6a] sm:$0xff]
      %v2606 = vld [vmem:[%s2135 + $0x7a] sm:$0xff]
      %v2607 = vld [vmem:[%s2135 + $0x82] sm:$0xff]
      %v2608 = vld [vmem:[%s2135 + $0x92] sm:$0xff]
      %v2609 = vld [vmem:[%s2135 + $0x9a] sm:$0xff]
      %v2610 = vld [vmem:[%s2135 + $0xaa] sm:$0xff]
      %v2611 = vld [vmem:[%s2135 + $0xb2] sm:$0xff]
      %s2612 = scalar_lea.vmem %s6, 32
      %v2613 = vld [vmem:[%s2612] sm:$0xf]
      %v2615 = vsel %vm592, %v2596, 0
      %v2618 = vsel %vm592, %v2597, 0
      %v2621 = vsel %vm592, %v2598, 0
      %v2624 = vsel %vm592, %v2599, 0
      %v2627 = vsel %vm592, %v2600, 0
      %v2630 = vsel %vm592, %v2601, 0
      %v2633 = vsel %vm592, %v2602, 0
      %v2636 = vsel %vm592, %v2603, 0
      %v2639 = vsel %vm592, %v2604, 0
      %v2642 = vsel %vm592, %v2605, 0
      %v2645 = vsel %vm592, %v2606, 0
      %v2648 = vsel %vm592, %v2607, 0
      %v2651 = vsel %vm592, %v2608, 0
      %v2654 = vsel %vm592, %v2609, 0
      %v2657 = vsel %vm592, %v2610, 0
      %v2660 = vsel %vm592, %v2611, 0
      %v2663 = vsel %vm870, %v2613, 0
      %2665 = vmatprep.subr.mxu0 0.0
      %2666 = vmatpush1.msra.mxu0 %v2663
      %2667 = vmatprep.subr.mxu0 0.0
      %2668 = vmatpush1.msra.mxu0 0.0
      %2669 = vmatprep.subr.mxu0 0.0
      %2670 = vmatpush1.msra.mxu0 0.0
      %2671 = vmatprep.subr.mxu0 0.0
      %2672 = vmatpush1.msra.mxu0 0.0
      %2673 = vmatprep.subr.mxu0 0.0
      %2674 = vmatpush1.msra.mxu0 0.0
      %2675 = vmatprep.subr.mxu0 0.0
      %2676 = vmatpush1.msra.mxu0 0.0
      %2677 = vmatprep.subr.mxu0 0.0
      %2678 = vmatpush1.msra.mxu0 0.0
      %2679 = vmatprep.subr.mxu0 0.0
      %2680 = vmatpush1.msra.mxu0 0.0
      %2681 = vmatprep.subr.mxu0 0.0
      %2682 = vmatpush1.msra.mxu0 0.0
      %2683 = vmatprep.subr.mxu0 0.0
      %2684 = vmatpush1.msra.mxu0 0.0
      %2685 = vmatprep.subr.mxu0 0.0
      %2686 = vmatpush1.msra.mxu0 0.0
      %2687 = vmatprep.subr.mxu0 0.0
      %2688 = vmatpush1.msra.mxu0 0.0
      %2689 = vmatprep.subr.mxu0 0.0
      %2690 = vmatpush1.msra.mxu0 0.0
      %2691 = vmatprep.subr.mxu0 0.0
      %2692 = vmatpush1.msra.mxu0 0.0
      %2693 = vmatprep.subr.mxu0 0.0
      %2694 = vmatpush1.msra.mxu0 0.0
      %2695 = vmatprep.subr.mxu0 0.0
      %2696 = vmatpush1.msra.mxu0 0.0
      %2697 = vmatprep.subr.mxu0 0.0
      %2698 = vmatpush1.msra.mxu0 0.0
      %2699 = vmatprep.subr.mxu0 0.0
      %2700 = vmatpush1.msra.mxu0 0.0
      %2701 = vmatprep.subr.mxu0 0.0
      %2702 = vmatpush1.msra.mxu0 0.0
      %2703 = vmatprep.subr.mxu0 0.0
      %2704 = vmatpush1.msra.mxu0 0.0
      %2705 = vmatprep.subr.mxu0 0.0
      %2706 = vmatpush1.msra.mxu0 0.0
      %2707 = vmatprep.subr.mxu0 0.0
      %2708 = vmatpush1.msra.mxu0 0.0
      %2709 = vmatprep.subr.mxu0 0.0
      %2710 = vmatpush1.msra.mxu0 0.0
      %2711 = vmatprep.subr.mxu0 0.0
      %2712 = vmatpush1.msra.mxu0 0.0
      %2713 = vmatprep.subr.mxu0 0.0
      %2714 = vmatpush1.msra.mxu0 0.0
      %2715 = vmatprep.subr.mxu0 0.0
      %2716 = vmatpush1.msra.mxu0 0.0
      %2717 = vmatprep.subr.mxu0 0.0
      %2718 = vmatpush1.msra.mxu0 0.0
      %2719 = vmatprep.subr.mxu0 0.0
      %2720 = vmatpush1.msra.mxu0 0.0
      %2721 = vmatprep.subr.mxu0 0.0
      %2722 = vmatpush1.msra.mxu0 0.0
      %2723 = vmatprep.subr.mxu0 0.0
      %2724 = vmatpush1.msra.mxu0 0.0
      %2725 = vmatprep.subr.mxu0 0.0
      %2726 = vmatpush1.msra.mxu0 0.0
      %2727 = vmatprep.subr.mxu0 0.0
      %2728 = vmatpush1.msra.mxu0 0.0
      %2729 = vmatprep.mubr.f32.mxu0 0.0
      %2730 = vmatmul.mubr.f32.gmra.mrb[0].mxu0 %v2615
      %v2731 = vpop.f32.mrb[0].mxu0
      %v2732 = vadd.f32 0.0, %v2731
      %v2733 = vpop.f32.mrb[0].mxu0
      %2734 = vmatprep.mubr.f32.mxu0 0.0
      %2735 = vmatmul.mubr.f32.gmra.mrb[0].mxu0 %v2618
      %v2736 = vpop.f32.mrb[0].mxu0
      %v2737 = vadd.f32 0.0, %v2736
      %v2738 = vpop.f32.mrb[0].mxu0
      %2739 = vmatprep.mubr.f32.mxu0 0.0
      %2740 = vmatmul.mubr.f32.gmra.mrb[0].mxu0 %v2621
      %v2741 = vpop.f32.mrb[0].mxu0
      %v2742 = vadd.f32 0.0, %v2741
      %v2743 = vpop.f32.mrb[0].mxu0
      %2744 = vmatprep.mubr.f32.mxu0 0.0
      %2745 = vmatmul.mubr.f32.gmra.mrb[0].mxu0 %v2624
      %v2746 = vpop.f32.mrb[0].mxu0
      %v2747 = vadd.f32 0.0, %v2746
      %v2748 = vpop.f32.mrb[0].mxu0
      %2749 = vmatprep.mubr.f32.mxu0 0.0
      %2750 = vmatmul.mubr.f32.gmra.mrb[0].mxu0 %v2627
      %v2751 = vpop.f32.mrb[0].mxu0
      %v2752 = vadd.f32 0.0, %v2751
      %v2753 = vpop.f32.mrb[0].mxu0
      %2754 = vmatprep.mubr.f32.mxu0 0.0
      %2755 = vmatmul.mubr.f32.gmra.mrb[0].mxu0 %v2630
      %v2756 = vpop.f32.mrb[0].mxu0
      %v2757 = vadd.f32 0.0, %v2756
      %v2758 = vpop.f32.mrb[0].mxu0
      %2759 = vmatprep.mubr.f32.mxu0 0.0
      %2760 = vmatmul.mubr.f32.gmra.mrb[0].mxu0 %v2633
      %v2761 = vpop.f32.mrb[0].mxu0
      %v2762 = vadd.f32 0.0, %v2761
      %v2763 = vpop.f32.mrb[0].mxu0
      %2764 = vmatprep.mubr.f32.mxu0 0.0
      %2765 = vmatmul.mubr.f32.gmra.mrb[0].mxu0 %v2636
      %v2766 = vpop.f32.mrb[0].mxu0
      %v2767 = vadd.f32 0.0, %v2766
      %v2768 = vpop.f32.mrb[0].mxu0
      %2769 = vmatprep.mubr.f32.mxu0 0.0
      %2770 = vmatmul.mubr.f32.gmra.mrb[0].mxu0 %v2639
      %v2771 = vpop.f32.mrb[0].mxu0
      %v2772 = vadd.f32 0.0, %v2771
      %v2773 = vpop.f32.mrb[0].mxu0
      %2774 = vmatprep.mubr.f32.mxu0 0.0
      %2775 = vmatmul.mubr.f32.gmra.mrb[0].mxu0 %v2642
      %v2776 = vpop.f32.mrb[0].mxu0
      %v2777 = vadd.f32 0.0, %v2776
      %v2778 = vpop.f32.mrb[0].mxu0
      %2779 = vmatprep.mubr.f32.mxu0 0.0
      %2780 = vmatmul.mubr.f32.gmra.mrb[0].mxu0 %v2645
      %v2781 = vpop.f32.mrb[0].mxu0
      %v2782 = vadd.f32 0.0, %v2781
      %v2783 = vpop.f32.mrb[0].mxu0
      %2784 = vmatprep.mubr.f32.mxu0 0.0
      %2785 = vmatmul.mubr.f32.gmra.mrb[0].mxu0 %v2648
      %v2786 = vpop.f32.mrb[0].mxu0
      %v2787 = vadd.f32 0.0, %v2786
      %v2788 = vpop.f32.mrb[0].mxu0
      %2789 = vmatprep.mubr.f32.mxu0 0.0
      %2790 = vmatmul.mubr.f32.gmra.mrb[0].mxu0 %v2651
      %v2791 = vpop.f32.mrb[0].mxu0
      %v2792 = vadd.f32 0.0, %v2791
      %v2793 = vpop.f32.mrb[0].mxu0
      %2794 = vmatprep.mubr.f32.mxu0 0.0
      %2795 = vmatmul.mubr.f32.gmra.mrb[0].mxu0 %v2654
      %v2796 = vpop.f32.mrb[0].mxu0
      %v2797 = vadd.f32 0.0, %v2796
      %v2798 = vpop.f32.mrb[0].mxu0
      %2799 = vmatprep.mubr.f32.mxu0 0.0
      %2800 = vmatmul.mubr.f32.gmra.mrb[0].mxu0 %v2657
      %v2801 = vpop.f32.mrb[0].mxu0
      %v2802 = vadd.f32 0.0, %v2801
      %v2803 = vpop.f32.mrb[0].mxu0
      %2804 = vmatprep.mubr.f32.mxu0 0.0
      %2805 = vmatmul.mubr.f32.gmra.mrb[0].mxu0 %v2660
      %v2806 = vpop.f32.mrb[0].mxu0
      %v2807 = vadd.f32 0.0, %v2806
      %v2808 = vpop.f32.mrb[0].mxu0
      %2809 = vdwg.mxu0
      %v2810 = vadd.f32 %v2580, %v2732
      %v2811 = vadd.f32 %v2581, %v2737
      %v2812 = vadd.f32 %v2582, %v2742
      %v2813 = vadd.f32 %v2583, %v2747
      %v2814 = vadd.f32 %v2584, %v2752
      %v2815 = vadd.f32 %v2585, %v2757
      %v2816 = vadd.f32 %v2586, %v2762
      %v2817 = vadd.f32 %v2587, %v2767
      %v2818 = vadd.f32 %v2588, %v2772
      %v2819 = vadd.f32 %v2589, %v2777
      %v2820 = vadd.f32 %v2590, %v2782
      %v2821 = vadd.f32 %v2591, %v2787
      %v2822 = vadd.f32 %v2592, %v2792
      %v2823 = vadd.f32 %v2593, %v2797
      %v2824 = vadd.f32 %v2594, %v2802
      %v2825 = vadd.f32 %v2595, %v2807
      %v2826 = vld [vmem:[%s7] sm:$0x1]
      %v2828 = vlaneseq
      %v2829 = vshrl.u32 %v2828, 7
      %v2830 = vsub.s32 0, %v2829
      %v2831 = vrot.slane %v2826, %v2830
      %v2833 = vadd.f32 %v2810, %v2831
      %v2834 = vadd.f32 %v2811, %v2831
      %v2835 = vadd.f32 %v2812, %v2831
      %v2836 = vadd.f32 %v2813, %v2831
      %v2837 = vadd.f32 %v2814, %v2831
      %v2838 = vadd.f32 %v2815, %v2831
      %v2839 = vadd.f32 %v2816, %v2831
      %v2840 = vadd.f32 %v2817, %v2831
      %v2841 = vadd.f32 %v2818, %v2831
      %v2842 = vadd.f32 %v2819, %v2831
      %v2843 = vadd.f32 %v2820, %v2831
      %v2844 = vadd.f32 %v2821, %v2831
      %v2845 = vadd.f32 %v2822, %v2831
      %v2846 = vadd.f32 %v2823, %v2831
      %v2847 = vadd.f32 %v2824, %v2831
      %v2848 = vadd.f32 %v2825, %v2831
      %v2849 = vld [vmem:[%s568] sm:$0xff]
      %v2850 = vld [vmem:[%s568 + $0x8] sm:$0xff]
      %v2851 = vld [vmem:[%s568 + $0x10] sm:$0xff]
      %v2852 = vld [vmem:[%s568 + $0x18] sm:$0xff]
      %v2853 = vld [vmem:[%s568 + $0x20] sm:$0xff]
      %v2854 = vld [vmem:[%s568 + $0x28] sm:$0xff]
      %v2855 = vld [vmem:[%s568 + $0x30] sm:$0xff]
      %v2856 = vld [vmem:[%s568 + $0x38] sm:$0xff]
      %v2857 = vld [vmem:[%s568 + $0x40] sm:$0xff]
      %v2858 = vld [vmem:[%s568 + $0x48] sm:$0xff]
      %v2859 = vld [vmem:[%s568 + $0x50] sm:$0xff]
      %v2860 = vld [vmem:[%s568 + $0x58] sm:$0xff]
      %v2861 = vld [vmem:[%s568 + $0x60] sm:$0xff]
      %v2862 = vld [vmem:[%s568 + $0x68] sm:$0xff]
      %v2863 = vld [vmem:[%s568 + $0x70] sm:$0xff]
      %v2864 = vld [vmem:[%s568 + $0x78] sm:$0xff]
      %v2865 = vadd.f32 %v2833, %v2849
      %v2866 = vadd.f32 %v2834, %v2850
      %v2867 = vadd.f32 %v2835, %v2851
      %v2868 = vadd.f32 %v2836, %v2852
      %v2869 = vadd.f32 %v2837, %v2853
      %v2870 = vadd.f32 %v2838, %v2854
      %v2871 = vadd.f32 %v2839, %v2855
      %v2872 = vadd.f32 %v2840, %v2856
      %v2873 = vadd.f32 %v2841, %v2857
      %v2874 = vadd.f32 %v2842, %v2858
      %v2875 = vadd.f32 %v2843, %v2859
      %v2876 = vadd.f32 %v2844, %v2860
      %v2877 = vadd.f32 %v2845, %v2861
      %v2878 = vadd.f32 %v2846, %v2862
      %v2879 = vadd.f32 %v2847, %v2863
      %v2880 = vadd.f32 %v2848, %v2864
      %2881 = vst.msk [vmem:[%s579] sm:$0xff] %vm592, %v2865
      %2882 = vst.msk [vmem:[%s579 + $0x8] sm:$0xff] %vm592, %v2866
      %2883 = vst.msk [vmem:[%s579 + $0x10] sm:$0xff] %vm592, %v2867
      %2884 = vst.msk [vmem:[%s579 + $0x18] sm:$0xff] %vm592, %v2868
      %2885 = vst.msk [vmem:[%s579 + $0x20] sm:$0xff] %vm592, %v2869
      %2886 = vst.msk [vmem:[%s579 + $0x28] sm:$0xff] %vm592, %v2870
      %2887 = vst.msk [vmem:[%s579 + $0x30] sm:$0xff] %vm592, %v2871
      %2888 = vst.msk [vmem:[%s579 + $0x38] sm:$0xff] %vm592, %v2872
      %2889 = vst.msk [vmem:[%s579 + $0x40] sm:$0xff] %vm592, %v2873
      %2890 = vst.msk [vmem:[%s579 + $0x48] sm:$0xff] %vm592, %v2874
      %2891 = vst.msk [vmem:[%s579 + $0x50] sm:$0xff] %vm592, %v2875
      %2892 = vst.msk [vmem:[%s579 + $0x58] sm:$0xff] %vm592, %v2876
      %2893 = vst.msk [vmem:[%s579 + $0x60] sm:$0xff] %vm592, %v2877
      %2894 = vst.msk [vmem:[%s579 + $0x68] sm:$0xff] %vm592, %v2878
      %2895 = vst.msk [vmem:[%s579 + $0x70] sm:$0xff] %vm592, %v2879
      %2896 = vst.msk [vmem:[%s579 + $0x78] sm:$0xff] %vm592, %v2880
      %v2897 = vsel %vm592, %v2865, 0.0
      %v2898 = vsel %vm592, %v2866, 0.0
      %v2899 = vadd.f32 %v2897, %v2898
      %v2900 = vsel %vm592, %v2867, 0.0
      %v2901 = vadd.f32 %v2899, %v2900
      %v2902 = vsel %vm592, %v2868, 0.0
      %v2903 = vadd.f32 %v2901, %v2902
      %v2904 = vsel %vm592, %v2869, 0.0
      %v2905 = vadd.f32 %v2903, %v2904
      %v2906 = vsel %vm592, %v2870, 0.0
      %v2907 = vadd.f32 %v2905, %v2906
      %v2908 = vsel %vm592, %v2871, 0.0
      %v2909 = vadd.f32 %v2907, %v2908
      %v2910 = vsel %vm592, %v2872, 0.0
      %v2911 = vadd.f32 %v2909, %v2910
      %v2912 = vsel %vm592, %v2873, 0.0
      %v2913 = vadd.f32 %v2911, %v2912
      %v2914 = vsel %vm592, %v2874, 0.0
      %v2915 = vadd.f32 %v2913, %v2914
      %v2916 = vsel %vm592, %v2875, 0.0
      %v2917 = vadd.f32 %v2915, %v2916
      %v2918 = vsel %vm592, %v2876, 0.0
      %v2919 = vadd.f32 %v2917, %v2918
      %v2920 = vsel %vm592, %v2877, 0.0
      %v2921 = vadd.f32 %v2919, %v2920
      %v2922 = vsel %vm592, %v2878, 0.0
      %v2923 = vadd.f32 %v2921, %v2922
      %v2924 = vsel %vm592, %v2879, 0.0
      %v2925 = vadd.f32 %v2923, %v2924
      %v2926 = vsel %vm592, %v2880, 0.0
      %v2927 = vadd.f32 %v2925, %v2926
      %v2928 = vrot.slane %v2927, 4
      %v2929 = vadd.f32 %v2927, %v2928
      %v2930 = vrot.slane %v2929, 2
      %v2931 = vadd.f32 %v2929, %v2930
      %v2932 = vrot.slane %v2931, 1
      %v2933 = vadd.f32 %v2931, %v2932
      %vm2934 = vcmask 24576
      %2935 = vst.msk [vmem:[%s588] sm:$0x1] %vm2934, %v2933
      %v2936 = vmul.f32 %v2865, %v2865
      %v2937 = vmul.f32 %v2866, %v2866
      %v2938 = vmul.f32 %v2867, %v2867
      %v2939 = vmul.f32 %v2868, %v2868
      %v2940 = vmul.f32 %v2869, %v2869
      %v2941 = vmul.f32 %v2870, %v2870
      %v2942 = vmul.f32 %v2871, %v2871
      %v2943 = vmul.f32 %v2872, %v2872
      %v2944 = vmul.f32 %v2873, %v2873
      %v2945 = vmul.f32 %v2874, %v2874
      %v2946 = vmul.f32 %v2875, %v2875
      %v2947 = vmul.f32 %v2876, %v2876
      %v2948 = vmul.f32 %v2877, %v2877
      %v2949 = vmul.f32 %v2878, %v2878
      %v2950 = vmul.f32 %v2879, %v2879
      %v2951 = vmul.f32 %v2880, %v2880
      %v2952 = vsel %vm592, %v2936, 0.0
      %v2953 = vsel %vm592, %v2937, 0.0
      %v2954 = vadd.f32 %v2952, %v2953
      %v2955 = vsel %vm592, %v2938, 0.0
      %v2956 = vadd.f32 %v2954, %v2955
      %v2957 = vsel %vm592, %v2939, 0.0
      %v2958 = vadd.f32 %v2956, %v2957
      %v2959 = vsel %vm592, %v2940, 0.0
      %v2960 = vadd.f32 %v2958, %v2959
      %v2961 = vsel %vm592, %v2941, 0.0
      %v2962 = vadd.f32 %v2960, %v2961
      %v2963 = vsel %vm592, %v2942, 0.0
      %v2964 = vadd.f32 %v2962, %v2963
      %v2965 = vsel %vm592, %v2943, 0.0
      %v2966 = vadd.f32 %v2964, %v2965
      %v2967 = vsel %vm592, %v2944, 0.0
      %v2968 = vadd.f32 %v2966, %v2967
      %v2969 = vsel %vm592, %v2945, 0.0
      %v2970 = vadd.f32 %v2968, %v2969
      %v2971 = vsel %vm592, %v2946, 0.0
      %v2972 = vadd.f32 %v2970, %v2971
      %v2973 = vsel %vm592, %v2947, 0.0
      %v2974 = vadd.f32 %v2972, %v2973
      %v2975 = vsel %vm592, %v2948, 0.0
      %v2976 = vadd.f32 %v2974, %v2975
      %v2977 = vsel %vm592, %v2949, 0.0
      %v2978 = vadd.f32 %v2976, %v2977
      %v2979 = vsel %vm592, %v2950, 0.0
      %v2980 = vadd.f32 %v2978, %v2979
      %v2981 = vsel %vm592, %v2951, 0.0
      %v2982 = vadd.f32 %v2980, %v2981
      %v2983 = vrot.slane %v2982, 4
      %v2984 = vadd.f32 %v2982, %v2983
      %v2985 = vrot.slane %v2984, 2
      %v2986 = vadd.f32 %v2984, %v2985
      %v2987 = vrot.slane %v2986, 1
      %v2988 = vadd.f32 %v2986, %v2987
      %2989 = vst.msk [vmem:[%s588 + $0x1] sm:$0x1] %vm2934, %v2988
      %s2990 = smul.u32 8, %s28
      %p2991 = scmp.lt.s32.totalorder %s27, 1
      %s2992 = scalar_select %p2991, %s27, 1
      %p2993 = scmp.lt.s32.totalorder %s2990, 15
      %s2994 = scalar_select %p2993, %s2990, 15
      %s2995 = smul.addr %s2994, 2
      %s2996 = smul.addr %s2992, 32
      %s2997 = sadd.s32 %s2995, %s2996
      %s2998 = smul.addr %s2997, 8
      %s2999 = scalar_lea.vmem %s9, %s2998
      %p3000 = scmp.lt.s32.totalorder %s27, 1
      %s3001 = scalar_select %p3000, %s27, 1
      %p3002 = scmp.lt.s32.totalorder %s28, 1
      %s3003 = scalar_select %p3002, %s28, 1
      %s3004 = smul.addr %s3001, 2
      %s3005 = sadd.s32 %s3003, %s3004
      %s3006 = smul.addr %s3005, 2
      %s3007 = scalar_lea.vmem %s10, %s3006
      // Predicated region
      $region65: #{encoder_block.4} parent=55 // pred_check
        %p3008 = pneg %p288
      $region66: #{encoder_block.4} parent=55 // pred_check_branch
        %3010 = sbr.rel (%p3008) target = $region68
      $region67: #{encoder_block.4} parent=55 // pred_region
        %s3011 = smul.u32 8, %s28
      $region68: #{encoder_block.4} parent=55 // pred_fallthru
        _
      // Predicated region
      $region69: #{encoder_block.4} parent=55 // pred_check
        %p3012 = pneg %p316
      $region70: #{encoder_block.4} parent=55 // pred_check_branch
        %3014 = sbr.rel (%p3012) target = $region72
      $region71: #{encoder_block.4} parent=55 // pred_region
        _
      $region72: #{encoder_block.4} parent=55 // pred_fallthru
        _
    $region56: #{encoder_block.4} parent=5 // pred_fallthru
      _
    %p3015 = scmp.le.s32.totalorder 2, %s18
    // Predicated region
    $region73: #{encoder_block.4} parent=5 // pred_check
      %p3016 = pneg %p3015
    $region74: #{encoder_block.4} parent=5 // pred_check_branch
      %3018 = sbr.rel (%p3016) target = $region76
    $region75: #{encoder_block.4} parent=5 // pred_region
      %s3019 = ssub.s32 %s18, 2
      // Predicated region
      $region77: #{encoder_block.4} parent=75 // pred_check
        %p3020 = pneg %p294
      $region78: #{encoder_block.4} parent=75 // pred_check_branch
        %3022 = sbr.rel (%p3020) target = $region80
      $region79: #{encoder_block.4} parent=75 // pred_region
        %s3023 = smul.u32 8, %s30
        %p3024 = scmp.lt.s32.totalorder %s29, 1
        %s3025 = scalar_select %p3024, %s29, 1
        %p3026 = scmp.lt.s32.totalorder %s3023, 15
        %s3027 = scalar_select %p3026, %s3023, 15
        %s3028 = smul.addr %s3027, 2
        %s3029 = smul.addr %s3025, 32
        %s3030 = sadd.s32 %s3028, %s3029
        %s3031 = smul.addr %s3030, 8
        %s3032 = scalar_lea.vmem %s9, %s3031
      $region80: #{encoder_block.4} parent=75 // pred_fallthru
        _
      // Predicated region
      $region81: #{encoder_block.4} parent=75 // pred_check
        %p3033 = pneg %p322
      $region82: #{encoder_block.4} parent=75 // pred_check_branch
        %3035 = sbr.rel (%p3033) target = $region84
      $region83: #{encoder_block.4} parent=75 // pred_region
        %p3036 = scmp.lt.s32.totalorder %s29, 1
        %s3037 = scalar_select %p3036, %s29, 1
        %p3038 = scmp.lt.s32.totalorder %s30, 1
        %s3039 = scalar_select %p3038, %s30, 1
        %s3040 = smul.addr %s3037, 2
        %s3041 = sadd.s32 %s3039, %s3040
        %s3042 = smul.addr %s3041, 2
        %s3043 = scalar_lea.vmem %s10, %s3042
      $region84: #{encoder_block.4} parent=75 // pred_fallthru
        _
    $region76: #{encoder_block.4} parent=5 // pred_fallthru
      _
  $region6: #{encoder_block.4} parent=0 // loop_footer
    %s22 = sadd.s32 1, %s18
  $region7: #{encoder_block.4} parent=0 // loop_footer_branch
    %17 = sbr.rel target = $region3
  $region8: #{encoder_block.4} parent=0 // loop_exit
    _

</llo_original>
